<compile_context>
chip_gen: v7x
topology: tpu7x:2x2x1
jax: 0.10.0
libtpu: 0.0.40
codegen_flags: <defaults>
</compile_context>

<pallas_src>
import functools

import jax
import jax.numpy as jnp
from jax.experimental import pallas as pl
from jax.experimental.pallas import tpu as pltpu

KSIZE = 4       # every ConvTranspose2d in this generator uses a 4x4 kernel
EPS = 1e-5      # nn.BatchNorm2d default eps

# (C_in, C_out, stride, padding) for each ConvTranspose2d, exactly as in the module
LAYERS = [
    (100, 512, 1, 0),
    (512, 256, 2, 1),
    (256, 128, 2, 1),
    (128, 64, 2, 1),
    (64, 3, 2, 1),
]


def _round_up(x, m):
    return ((x + m - 1) // m) * m


# ----------------------------------------------------------------------------
# Pallas kernel 1: tiled bf16 matmul, f32 accumulator, fused activation
# ----------------------------------------------------------------------------
def _matmul_kernel(x_ref, w_ref, o_ref, acc_ref, *, activation):
    k = pl.program_id(2)

    @pl.when(k == 0)
    def _():
        acc_ref[...] = jnp.zeros_like(acc_ref)

    acc_ref[...] += jnp.dot(x_ref[...], w_ref[...],
                            preferred_element_type=jnp.float32)

    @pl.when(k == pl.num_programs(2) - 1)
    def _():
        acc = acc_ref[...]
        if activation == "tanh":
            acc = jnp.tanh(acc)
        o_ref[...] = acc.astype(o_ref.dtype)


def _pick_tm(m):
    if m <= 256:
        return _round_up(max(m, 16), 16)        # bf16 sublane granule, single tile
    for t in (512, 256, 128):
        if m % t == 0 or m >= 8 * t:            # tolerate <= ~12.5% padding waste
            return t
    return 128


def pallas_matmul(x, w, activation="none"):
    """(M, K) @ (K, N) -> (M, N) f32; bf16 MXU operands, f32 accumulation."""
    m, k = x.shape
    k2, n = w.shape
    assert k == k2
    tm = _pick_tm(m)
    tn = 256 if n >= 256 else 128
    kp = _round_up(k, 128)
    tk = 512 if kp % 512 == 0 else (256 if kp % 256 == 0 else 128)
    mp = _round_up(m, tm)
    n_p = _round_up(n, tn)

    xb = x.astype(jnp.bfloat16)
    wb = w.astype(jnp.bfloat16)
    if (mp, kp) != (m, k):
        xb = jnp.pad(xb, ((0, mp - m), (0, kp - k)))
    if (kp, n_p) != (k, n):
        wb = jnp.pad(wb, ((0, kp - k), (0, n_p - n)))

    out = pl.pallas_call(
        functools.partial(_matmul_kernel, activation=activation),
        out_shape=jax.ShapeDtypeStruct((mp, n_p), jnp.float32),
        grid=(mp // tm, n_p // tn, kp // tk),
        in_specs=[
            pl.BlockSpec((tm, tk), lambda i, j, kk: (i, kk)),
            pl.BlockSpec((tk, tn), lambda i, j, kk: (kk, j)),
        ],
        out_specs=pl.BlockSpec((tm, tn), lambda i, j, kk: (i, j)),
        scratch_shapes=[pltpu.VMEM((tm, tn), jnp.float32)],
        compiler_params=pltpu.CompilerParams(
            dimension_semantics=("parallel", "parallel", "arbitrary"),
            vmem_limit_bytes=32 * 1024 * 1024,
        ),
    )(xb, wb)
    if (mp, n_p) != (m, n):
        out = out[:m, :n]
    return out


# ----------------------------------------------------------------------------
# Pallas kernels 2+3: tiled training-mode BatchNorm2d + ReLU (two passes)
# ----------------------------------------------------------------------------
def _bn_stats_kernel(x_ref, sum_ref, sq_ref):
    @pl.when(pl.program_id(0) == 0)
    def _():
        sum_ref[...] = jnp.zeros_like(sum_ref)
        sq_ref[...] = jnp.zeros_like(sq_ref)

    x = x_ref[...].astype(jnp.float32)
    sum_ref[...] += jnp.sum(x, axis=0, keepdims=True)
    sq_ref[...] += jnp.sum(x * x, axis=0, keepdims=True)


def _bn_apply_relu_kernel(x_ref, scale_ref, shift_ref, o_ref):
    y = jnp.maximum(x_ref[...] * scale_ref[...] + shift_ref[...], 0.0)
    o_ref[...] = y.astype(o_ref.dtype)


def pallas_bn_relu(x, gamma, beta, eps=EPS, out_dtype=jnp.bfloat16):
    """Training-mode BatchNorm2d + ReLU on x of shape (N*H*W, C).

    Emits `out_dtype` (bf16 by default): the next deconv layer consumes bf16 MXU
    operands anyway, so this is numerically identical and halves HBM traffic.
    """
    m, c = x.shape
    # Fold narrow channel dims into the 128-lane axis so loads/stores stay lane-dense.
    fold = 1
    if c < 128 and 128 % c == 0 and m % (128 // c) == 0:
        fold = 128 // c
    mf, cf = m // fold, c * fold
    xf = x.reshape(mf, cf)

    # >= 2 grid steps per pass; multiple of 16 keeps bf16 output blocks sublane-aligned.
    tm = min(512, _round_up(max(mf // 2, 16), 16))
    mp = _round_up(mf, tm)
    xp = jnp.pad(xf, ((0, mp - mf), (0, 0))) if mp != mf else xf
    grid = (mp // tm,)

    # Pass 1: per-column sum and sum-of-squares (accumulated in resident output blocks).
    s, sq = pl.pallas_call(
        _bn_stats_kernel,
        out_shape=(jax.ShapeDtypeStruct((1, cf), jnp.float32),
                   jax.ShapeDtypeStruct((1, cf), jnp.float32)),
        grid=grid,
        in_specs=[pl.BlockSpec((tm, cf), lambda i: (i, 0))],
        out_specs=(pl.BlockSpec((1, cf), lambda i: (0, 0)),
                   pl.BlockSpec((1, cf), lambda i: (0, 0))),
        compiler_params=pltpu.CompilerParams(
            dimension_semantics=("arbitrary",),
            vmem_limit_bytes=32 * 1024 * 1024,
        ),
    )(xp)

    # Per-channel batch statistics: padded zero rows contribute nothing; divide by true m.
    ch_sum = jnp.sum(s.reshape(fold, c), axis=0)
    ch_sq = jnp.sum(sq.reshape(fold, c), axis=0)
    mean = ch_sum / m
    var = ch_sq / m - mean * mean                  # biased variance (PyTorch BN)
    inv = jax.lax.rsqrt(var + eps)
    scale = gamma * inv
    shift = beta - mean * scale
    scale_f = jnp.tile(scale, (fold,)).reshape(1, cf)
    shift_f = jnp.tile(shift, (fold,)).reshape(1, cf)

    # Pass 2: fused scale*x + shift + ReLU, tiled ("parallel") over rows, bf16 out.
    out = pl.pallas_call(
        _bn_apply_relu_kernel,
        out_shape=jax.ShapeDtypeStruct((mp, cf), out_dtype),
        grid=grid,
        in_specs=[pl.BlockSpec((tm, cf), lambda i: (i, 0)),
                  pl.BlockSpec((1, cf), lambda i: (0, 0)),
                  pl.BlockSpec((1, cf), lambda i: (0, 0))],
        out_specs=pl.BlockSpec((tm, cf), lambda i: (i, 0)),
        compiler_params=pltpu.CompilerParams(
            dimension_semantics=("parallel",),
            vmem_limit_bytes=32 * 1024 * 1024,
        ),
    )(xp, scale_f, shift_f)
    if mp != mf:
        out = out[:mf]
    return out.reshape(m, c)


# ----------------------------------------------------------------------------
# Glue: ConvTranspose2d as sub-pixel phase matmuls (NHWC activations)
# ----------------------------------------------------------------------------
def _phase_weight_matrix(w_ct):
    """PyTorch ConvTranspose2d weight (Ci, Co, 4, 4) -> (4*Ci, 4*Co) phase matrix.

    K layout: (dy, dx, ci) over the 2x2 input window of padded input.
    N layout: (qy, qx, co) over the 4 output sub-pixel phases.
    Tap identity (stride=2, pad=1, k=4): kernel index = (3 - q) - 2*d per dim.
    """
    k_blocks = []
    for dy in range(2):
        for dx in range(2):
            q_cols = []
            for qy in range(2):
                for qx in range(2):
                    q_cols.append(w_ct[:, :, 3 - qy - 2 * dy, 3 - qx - 2 * dx])
            k_blocks.append(jnp.concatenate(q_cols, axis=1))   # (Ci, 4*Co)
    return jnp.concatenate(k_blocks, axis=0)                   # (4*Ci, 4*Co)


def deconv_s2(x_nhwc, w_ct, activation="none"):
    """ConvTranspose2d(k=4, s=2, p=1): (N,H,W,Ci) NHWC -> (N,2H,2W,Co) NHWC."""
    n, h, w, ci = x_nhwc.shape
    co = w_ct.shape[1]
    xp = jnp.pad(x_nhwc.astype(jnp.bfloat16), ((0, 0), (1, 1), (1, 1), (0, 0)))
    hw, ww = h + 1, w + 1                                  # 2x2 windows per dim
    cols = []
    for dy in range(2):
        for dx in range(2):
            cols.append(xp[:, dy:dy + hw, dx:dx + ww, :])
    patches = jnp.concatenate(cols, axis=-1).reshape(n * hw * ww, 4 * ci)
    wmat = _phase_weight_matrix(w_ct)                      # (4*Ci, 4*Co)
    y = pallas_matmul(patches, wmat, activation=activation)
    y = y.reshape(n, hw, ww, 2, 2, co)                     # [n, r, c, qy, qx, co]
    # out[n, 2m+py, 2m'+px, co] = y[n, m+py, m'+px, py, px, co]
    rows = []
    for py in range(2):
        phase_cols = []
        for px in range(2):
            phase_cols.append(y[:, py:py + h, px:px + w, py, px, :])  # (n,h,w,co)
        rows.append(jnp.stack(phase_cols, axis=3))          # (n, h, w, 2, co)
    full = jnp.stack(rows, axis=2)                          # (n, h, 2, w, 2, co)
    return full.reshape(n, 2 * h, 2 * w, co)


def deconv_first(x, w_ct):
    """ConvTranspose2d(k=4, s=1, p=0) on a 1x1 input: (N,Ci,1,1) -> (N,4,4,Co) NHWC."""
    n, ci = x.shape[0], w_ct.shape[0]
    co = w_ct.shape[1]
    xf = x.reshape(n, ci)
    wmat = jnp.transpose(w_ct, (0, 2, 3, 1)).reshape(ci, KSIZE * KSIZE * co)
    y = pallas_matmul(xf, wmat)                             # (N, 16*Co)
    return y.reshape(n, KSIZE, KSIZE, co)                   # NHWC


def generator_forward(x, params):
    """x: (N, 100, 1, 1) NCHW f32 -> (N, 3, 64, 64) NCHW f32."""
    w0, g0, b0 = params[0]
    h = deconv_first(x, w0)                                 # (N, 4, 4, 512) NHWC
    h = pallas_bn_relu(h.reshape(-1, h.shape[-1]), g0, b0).reshape(h.shape)

    for li in range(1, len(LAYERS)):
        w_ct, gamma, beta = params[li]
        last = li == len(LAYERS) - 1
        h = deconv_s2(h, w_ct, activation="tanh" if last else "none")
        if not last:
            c = h.shape[-1]
            h = pallas_bn_relu(h.reshape(-1, c), gamma, beta).reshape(h.shape)

    return jnp.transpose(h, (0, 3, 1, 2))                   # single NHWC -> NCHW


# ----------------------------------------------------------------------------
# Deterministic parameter init (synthetic; shapes match the PyTorch module)
# ----------------------------------------------------------------------------
def init_params(key):
    params = []
    for li, (cin, cout, stride, pad) in enumerate(LAYERS):
        key, kw, kg, kb = jax.random.split(key, 4)
        w = 0.02 * jax.random.normal(kw, (cin, cout, KSIZE, KSIZE), jnp.float32)
        if li < len(LAYERS) - 1:
            gamma = 1.0 + 0.1 * jax.random.normal(kg, (cout,), jnp.float32)
            beta = 0.1 * jax.random.normal(kb, (cout,), jnp.float32)
        else:
            gamma = beta = None
        params.append((w, gamma, beta))
    return params


# ----------------------------------------------------------------------------
# Pure-JAX reference (for correctness sanity check)
# ----------------------------------------------------------------------------
def reference_forward(x, params):
    h = x
    for li, (cin, cout, stride, pad) in enumerate(LAYERS):
        w, gamma, beta = params[li]
        rhs = jnp.transpose(w[:, :, ::-1, ::-1], (1, 0, 2, 3))   # OIHW, flipped
        p = KSIZE - 1 - pad
        h = jax.lax.conv_general_dilated(
            h, rhs, window_strides=(1, 1), padding=[(p, p), (p, p)],
            lhs_dilation=(stride, stride),
            dimension_numbers=("NCHW", "OIHW", "NCHW"),
            precision=jax.lax.Precision.HIGHEST,
        )
        if li == len(LAYERS) - 1:
            h = jnp.tanh(h)
        else:
            mean = jnp.mean(h, axis=(0, 2, 3), keepdims=True)
            var = jnp.mean((h - mean) ** 2, axis=(0, 2, 3), keepdims=True)
            h = (h - mean) * jax.lax.rsqrt(var + EPS)
            h = h * gamma.reshape(1, -1, 1, 1) + beta.reshape(1, -1, 1, 1)
            h = jnp.maximum(h, 0.0)
    return h


if __name__ == "__main__":
    key = jax.random.PRNGKey(0)
    key, kx = jax.random.split(key)
    batch = 2
    x = jax.random.normal(kx, (batch, 100, 1, 1), jnp.float32)   # DCGAN latent NCHW
    params = init_params(key)

    out = jax.jit(generator_forward)(x, params)
    out = jax.block_until_ready(out)
    assert out.shape == (batch, 3, 64, 64), out.shape

    ref = reference_forward(x, params)
    max_err = float(jnp.max(jnp.abs(out - ref)))
    assert max_err < 5e-2, f"mismatch vs reference: {max_err}"

    print("KERNEL_OK")
</pallas_src>

<mosaic_0001>
module attributes {stable_mosaic.version = 11 : i64} {
  func.func @_matmul_kernel(%arg0: i32, %arg1: i32, %arg2: i32, %arg3: memref<16x128xbf16, #tpu.memory_space<vmem>>, %arg4: memref<128x256xbf16, #tpu.memory_space<vmem>>, %arg5: memref<16x256xf32, #tpu.memory_space<vmem>>, %arg6: memref<16x256xf32, #tpu.memory_space<vmem>>) attributes {dimension_semantics = [#tpu.dimension_semantics<parallel>, #tpu.dimension_semantics<parallel>, #tpu.dimension_semantics<arbitrary>], iteration_bounds = array<i64: 1, 32, 1>, scalar_prefetch = 0 : i64, scratch_operands = 1 : i64, tpu.core_type = #tpu.core_type<tc>, window_params = [{transform_indices = @transform_0, window_bounds = array<i64: 16, 128>}, {transform_indices = @transform_1, window_bounds = array<i64: 128, 256>}, {transform_indices = @transform_2, window_bounds = array<i64: 16, 256>}]} {
    %c0_i32 = arith.constant 0 : i32
    %0 = arith.cmpi eq, %arg2, %c0_i32 : i32
    %1 = arith.extui %0 : i1 to i32
    %c0_i32_0 = arith.constant 0 : i32
    %2 = arith.cmpi ne, %1, %c0_i32_0 : i32
    scf.if %2 {
      %cst_10 = arith.constant 0.000000e+00 : f32
      %12 = vector.broadcast %cst_10 : f32 to vector<16x256xf32>
      %c0_11 = arith.constant 0 : index
      %c0_12 = arith.constant 0 : index
      %13 = vector.load %arg6[%c0_11, %c0_12] : memref<16x256xf32, #tpu.memory_space<vmem>>, vector<16x256xf32>
      tpu.vector_store %arg6[%c0_11, %c0_12], %12 {strides = array<i32>} : memref<16x256xf32, #tpu.memory_space<vmem>>, vector<16x256xf32>,
    } else {
    }
    %c0 = arith.constant 0 : index
    %c0_1 = arith.constant 0 : index
    %3 = vector.load %arg6[%c0, %c0_1] : memref<16x256xf32, #tpu.memory_space<vmem>>, vector<16x256xf32>
    %c0_2 = arith.constant 0 : index
    %c0_3 = arith.constant 0 : index
    %4 = vector.load %arg3[%c0_2, %c0_3] : memref<16x128xbf16, #tpu.memory_space<vmem>>, vector<16x128xbf16>
    %c0_4 = arith.constant 0 : index
    %c0_5 = arith.constant 0 : index
    %5 = vector.load %arg4[%c0_4, %c0_5] : memref<128x256xbf16, #tpu.memory_space<vmem>>, vector<128x256xbf16>
    %cst = arith.constant dense<0.000000e+00> : vector<16x256xf32>
    %6 = tpu.matmul %4, %5, %cst {dimension_numbers = #tpu.dot_dimension_numbers<[1], [0], [0], [1], [0, 0, 1, 1], [], []>} : vector<16x128xbf16>, vector<128x256xbf16>, vector<16x256xf32> -> vector<16x256xf32>
    %7 = arith.addf %3, %6 : vector<16x256xf32>
    %c0_6 = arith.constant 0 : index
    %c0_7 = arith.constant 0 : index
    %8 = vector.load %arg6[%c0_6, %c0_7] : memref<16x256xf32, #tpu.memory_space<vmem>>, vector<16x256xf32>
    tpu.vector_store %arg6[%c0_6, %c0_7], %7 {strides = array<i32>} : memref<16x256xf32, #tpu.memory_space<vmem>>, vector<16x256xf32>,
    %c0_i32_8 = arith.constant 0 : i32
    %9 = arith.cmpi eq, %arg2, %c0_i32_8 : i32
    %10 = arith.extui %9 : i1 to i32
    %c0_i32_9 = arith.constant 0 : i32
    %11 = arith.cmpi ne, %10, %c0_i32_9 : i32
    scf.if %11 {
      %c0_10 = arith.constant 0 : index
      %c0_11 = arith.constant 0 : index
      %12 = vector.load %arg6[%c0_10, %c0_11] : memref<16x256xf32, #tpu.memory_space<vmem>>, vector<16x256xf32>
      %c0_12 = arith.constant 0 : index
      %c0_13 = arith.constant 0 : index
      %13 = vector.load %arg5[%c0_12, %c0_13] : memref<16x256xf32, #tpu.memory_space<vmem>>, vector<16x256xf32>
      tpu.vector_store %arg5[%c0_12, %c0_13], %12 {strides = array<i32>} : memref<16x256xf32, #tpu.memory_space<vmem>>, vector<16x256xf32>,
    } else {
    }
    return
  }
  func.func @transform_0(%arg0: i32, %arg1: i32, %arg2: i32) -> (i32, i32) {
    %c0_i32 = arith.constant 0 : i32
    return %arg0, %arg2 : i32, i32
  }
  func.func @transform_1(%arg0: i32, %arg1: i32, %arg2: i32) -> (i32, i32) {
    %c0_i32 = arith.constant 0 : i32
    return %arg2, %arg1 : i32, i32
  }
  func.func @transform_2(%arg0: i32, %arg1: i32, %arg2: i32) -> (i32, i32) {
    %c0_i32 = arith.constant 0 : i32
    return %arg0, %arg1 : i32, i32
  }
}

module attributes {stable_mosaic.version = 11 : i64} {
  func.func @_bn_stats_kernel(%arg0: i32, %arg1: memref<16x512xf32, #tpu.memory_space<vmem>>, %arg2: memref<1x512xf32, #tpu.memory_space<vmem>>, %arg3: memref<1x512xf32, #tpu.memory_space<vmem>>) attributes {dimension_semantics = [#tpu.dimension_semantics<arbitrary>], iteration_bounds = array<i64: 2>, scalar_prefetch = 0 : i64, scratch_operands = 0 : i64, tpu.core_type = #tpu.core_type<tc>, window_params = [{transform_indices = @transform_0, window_bounds = array<i64: 16, 512>}, {pipeline_mode = #tpu.pipeline_mode<synchronous>, transform_indices = @transform_1, window_bounds = array<i64: 1, 512>}, {pipeline_mode = #tpu.pipeline_mode<synchronous>, transform_indices = @transform_2, window_bounds = array<i64: 1, 512>}]} {
    %c0_i32 = arith.constant 0 : i32
    %0 = arith.cmpi eq, %arg0, %c0_i32 : i32
    %1 = arith.extui %0 : i1 to i32
    %c0_i32_0 = arith.constant 0 : i32
    %2 = arith.cmpi ne, %1, %c0_i32_0 : i32
    scf.if %2 {
      %cst_11 = arith.constant 0.000000e+00 : f32
      %15 = vector.broadcast %cst_11 : f32 to vector<1x512xf32>
      %c0_12 = arith.constant 0 : index
      %c0_13 = arith.constant 0 : index
      %16 = vector.load %arg2[%c0_12, %c0_13] : memref<1x512xf32, #tpu.memory_space<vmem>>, vector<1x512xf32>
      tpu.vector_store %arg2[%c0_12, %c0_13], %15 {strides = array<i32>} : memref<1x512xf32, #tpu.memory_space<vmem>>, vector<1x512xf32>,
      %cst_14 = arith.constant 0.000000e+00 : f32
      %17 = vector.broadcast %cst_14 : f32 to vector<1x512xf32>
      %c0_15 = arith.constant 0 : index
      %c0_16 = arith.constant 0 : index
      %18 = vector.load %arg3[%c0_15, %c0_16] : memref<1x512xf32, #tpu.memory_space<vmem>>, vector<1x512xf32>
      tpu.vector_store %arg3[%c0_15, %c0_16], %17 {strides = array<i32>} : memref<1x512xf32, #tpu.memory_space<vmem>>, vector<1x512xf32>,
    } else {
    }
    %c0 = arith.constant 0 : index
    %c0_1 = arith.constant 0 : index
    %3 = vector.load %arg1[%c0, %c0_1] : memref<16x512xf32, #tpu.memory_space<vmem>>, vector<16x512xf32>
    %c0_2 = arith.constant 0 : index
    %c0_3 = arith.constant 0 : index
    %4 = vector.load %arg2[%c0_2, %c0_3] : memref<1x512xf32, #tpu.memory_space<vmem>>, vector<1x512xf32>
    %cst = arith.constant dense<0.000000e+00> : vector<512xf32>
    %5 = vector.multi_reduction <add>, %3, %cst [0] : vector<16x512xf32> to vector<512xf32>
    %6 = vector.shape_cast %5 : vector<512xf32> to vector<1x512xf32>
    %7 = arith.addf %4, %6 : vector<1x512xf32>
    %c0_4 = arith.constant 0 : index
    %c0_5 = arith.constant 0 : index
    %8 = vector.load %arg2[%c0_4, %c0_5] : memref<1x512xf32, #tpu.memory_space<vmem>>, vector<1x512xf32>
    tpu.vector_store %arg2[%c0_4, %c0_5], %7 {strides = array<i32>} : memref<1x512xf32, #tpu.memory_space<vmem>>, vector<1x512xf32>,
    %c0_6 = arith.constant 0 : index
    %c0_7 = arith.constant 0 : index
    %9 = vector.load %arg3[%c0_6, %c0_7] : memref<1x512xf32, #tpu.memory_space<vmem>>, vector<1x512xf32>
    %10 = arith.mulf %3, %3 : vector<16x512xf32>
    %cst_8 = arith.constant dense<0.000000e+00> : vector<512xf32>
    %11 = vector.multi_reduction <add>, %10, %cst_8 [0] : vector<16x512xf32> to vector<512xf32>
    %12 = vector.shape_cast %11 : vector<512xf32> to vector<1x512xf32>
    %13 = arith.addf %9, %12 : vector<1x512xf32>
    %c0_9 = arith.constant 0 : index
    %c0_10 = arith.constant 0 : index
    %14 = vector.load %arg3[%c0_9, %c0_10] : memref<1x512xf32, #tpu.memory_space<vmem>>, vector<1x512xf32>
    tpu.vector_store %arg3[%c0_9, %c0_10], %13 {strides = array<i32>} : memref<1x512xf32, #tpu.memory_space<vmem>>, vector<1x512xf32>,
    return
  }
  func.func @transform_0(%arg0: i32) -> (i32, i32) {
    %c0_i32 = arith.constant 0 : i32
    %c0_i32_0 = arith.constant 0 : i32
    return %arg0, %c0_i32 : i32, i32
  }
  func.func @transform_1(%arg0: i32) -> (i32, i32) {
    %c0_i32 = arith.constant 0 : i32
    %c0_i32_0 = arith.constant 0 : i32
    %c0_i32_1 = arith.constant 0 : i32
    return %c0_i32, %c0_i32_0 : i32, i32
  }
  func.func @transform_2(%arg0: i32) -> (i32, i32) {
    %c0_i32 = arith.constant 0 : i32
    %c0_i32_0 = arith.constant 0 : i32
    %c0_i32_1 = arith.constant 0 : i32
    return %c0_i32, %c0_i32_0 : i32, i32
  }
}

module attributes {stable_mosaic.version = 11 : i64} {
  func.func @_bn_apply_relu_kernel(%arg0: i32, %arg1: memref<16x512xf32, #tpu.memory_space<vmem>>, %arg2: memref<1x512xf32, #tpu.memory_space<vmem>>, %arg3: memref<1x512xf32, #tpu.memory_space<vmem>>, %arg4: memref<16x512xbf16, #tpu.memory_space<vmem>>) attributes {dimension_semantics = [#tpu.dimension_semantics<parallel>], iteration_bounds = array<i64: 2>, scalar_prefetch = 0 : i64, scratch_operands = 0 : i64, tpu.core_type = #tpu.core_type<tc>, window_params = [{transform_indices = @transform_0, window_bounds = array<i64: 16, 512>}, {pipeline_mode = #tpu.pipeline_mode<synchronous>, transform_indices = @transform_1, window_bounds = array<i64: 1, 512>}, {pipeline_mode = #tpu.pipeline_mode<synchronous>, transform_indices = @transform_2, window_bounds = array<i64: 1, 512>}, {transform_indices = @transform_3, window_bounds = array<i64: 16, 512>}]} {
    %c0 = arith.constant 0 : index
    %c0_0 = arith.constant 0 : index
    %0 = vector.load %arg1[%c0, %c0_0] : memref<16x512xf32, #tpu.memory_space<vmem>>, vector<16x512xf32>
    %c0_1 = arith.constant 0 : index
    %c0_2 = arith.constant 0 : index
    %1 = vector.load %arg2[%c0_1, %c0_2] : memref<1x512xf32, #tpu.memory_space<vmem>>, vector<1x512xf32>
    %2 = vector.broadcast %1 : vector<1x512xf32> to vector<16x512xf32>
    %3 = arith.mulf %0, %2 : vector<16x512xf32>
    %c0_3 = arith.constant 0 : index
    %c0_4 = arith.constant 0 : index
    %4 = vector.load %arg3[%c0_3, %c0_4] : memref<1x512xf32, #tpu.memory_space<vmem>>, vector<1x512xf32>
    %5 = vector.broadcast %4 : vector<1x512xf32> to vector<16x512xf32>
    %6 = arith.addf %3, %5 : vector<16x512xf32>
    %cst = arith.constant 0.000000e+00 : f32
    %7 = vector.broadcast %cst : f32 to vector<16x512xf32>
    %8 = arith.maximumf %6, %7 : vector<16x512xf32>
    %9 = arith.truncf %8 : vector<16x512xf32> to vector<16x512xbf16>
    %c0_5 = arith.constant 0 : index
    %c0_6 = arith.constant 0 : index
    %10 = vector.load %arg4[%c0_5, %c0_6] : memref<16x512xbf16, #tpu.memory_space<vmem>>, vector<16x512xbf16>
    tpu.vector_store %arg4[%c0_5, %c0_6], %9 {strides = array<i32>} : memref<16x512xbf16, #tpu.memory_space<vmem>>, vector<16x512xbf16>,
    return
  }
  func.func @transform_0(%arg0: i32) -> (i32, i32) {
    %c0_i32 = arith.constant 0 : i32
    %c0_i32_0 = arith.constant 0 : i32
    return %arg0, %c0_i32 : i32, i32
  }
  func.func @transform_1(%arg0: i32) -> (i32, i32) {
    %c0_i32 = arith.constant 0 : i32
    %c0_i32_0 = arith.constant 0 : i32
    %c0_i32_1 = arith.constant 0 : i32
    return %c0_i32, %c0_i32_0 : i32, i32
  }
  func.func @transform_2(%arg0: i32) -> (i32, i32) {
    %c0_i32 = arith.constant 0 : i32
    %c0_i32_0 = arith.constant 0 : i32
    %c0_i32_1 = arith.constant 0 : i32
    return %c0_i32, %c0_i32_0 : i32, i32
  }
  func.func @transform_3(%arg0: i32) -> (i32, i32) {
    %c0_i32 = arith.constant 0 : i32
    %c0_i32_0 = arith.constant 0 : i32
    return %arg0, %c0_i32 : i32, i32
  }
}

module attributes {stable_mosaic.version = 11 : i64} {
  func.func @_matmul_kernel(%arg0: i32, %arg1: i32, %arg2: i32, %arg3: memref<64x512xbf16, #tpu.memory_space<vmem>>, %arg4: memref<512x256xbf16, #tpu.memory_space<vmem>>, %arg5: memref<64x256xf32, #tpu.memory_space<vmem>>, %arg6: memref<64x256xf32, #tpu.memory_space<vmem>>) attributes {dimension_semantics = [#tpu.dimension_semantics<parallel>, #tpu.dimension_semantics<parallel>, #tpu.dimension_semantics<arbitrary>], iteration_bounds = array<i64: 1, 4, 4>, scalar_prefetch = 0 : i64, scratch_operands = 1 : i64, tpu.core_type = #tpu.core_type<tc>, window_params = [{transform_indices = @transform_0, window_bounds = array<i64: 64, 512>}, {transform_indices = @transform_1, window_bounds = array<i64: 512, 256>}, {transform_indices = @transform_2, window_bounds = array<i64: 64, 256>}]} {
    %c0_i32 = arith.constant 0 : i32
    %0 = arith.cmpi eq, %arg2, %c0_i32 : i32
    %1 = arith.extui %0 : i1 to i32
    %c0_i32_0 = arith.constant 0 : i32
    %2 = arith.cmpi ne, %1, %c0_i32_0 : i32
    scf.if %2 {
      %cst_9 = arith.constant 0.000000e+00 : f32
      %12 = vector.broadcast %cst_9 : f32 to vector<64x256xf32>
      %c0_10 = arith.constant 0 : index
      %c0_11 = arith.constant 0 : index
      %13 = vector.load %arg6[%c0_10, %c0_11] : memref<64x256xf32, #tpu.memory_space<vmem>>, vector<64x256xf32>
      tpu.vector_store %arg6[%c0_10, %c0_11], %12 {strides = array<i32>} : memref<64x256xf32, #tpu.memory_space<vmem>>, vector<64x256xf32>,
    } else {
    }
    %c0 = arith.constant 0 : index
    %c0_1 = arith.constant 0 : index
    %3 = vector.load %arg6[%c0, %c0_1] : memref<64x256xf32, #tpu.memory_space<vmem>>, vector<64x256xf32>
    %c0_2 = arith.constant 0 : index
    %c0_3 = arith.constant 0 : index
    %4 = vector.load %arg3[%c0_2, %c0_3] : memref<64x512xbf16, #tpu.memory_space<vmem>>, vector<64x512xbf16>
    %c0_4 = arith.constant 0 : index
    %c0_5 = arith.constant 0 : index
    %5 = vector.load %arg4[%c0_4, %c0_5] : memref<512x256xbf16, #tpu.memory_space<vmem>>, vector<512x256xbf16>
    %cst = arith.constant dense<0.000000e+00> : vector<64x256xf32>
    %6 = tpu.matmul %4, %5, %cst {dimension_numbers = #tpu.dot_dimension_numbers<[1], [0], [0], [1], [0, 0, 1, 1], [], []>} : vector<64x512xbf16>, vector<512x256xbf16>, vector<64x256xf32> -> vector<64x256xf32>
    %7 = arith.addf %3, %6 : vector<64x256xf32>
    %c0_6 = arith.constant 0 : index
    %c0_7 = arith.constant 0 : index
    %8 = vector.load %arg6[%c0_6, %c0_7] : memref<64x256xf32, #tpu.memory_space<vmem>>, vector<64x256xf32>
    tpu.vector_store %arg6[%c0_6, %c0_7], %7 {strides = array<i32>} : memref<64x256xf32, #tpu.memory_space<vmem>>, vector<64x256xf32>,
    %c3_i32 = arith.constant 3 : i32
    %9 = arith.cmpi eq, %arg2, %c3_i32 : i32
    %10 = arith.extui %9 : i1 to i32
    %c0_i32_8 = arith.constant 0 : i32
    %11 = arith.cmpi ne, %10, %c0_i32_8 : i32
    scf.if %11 {
      %c0_9 = arith.constant 0 : index
      %c0_10 = arith.constant 0 : index
      %12 = vector.load %arg6[%c0_9, %c0_10] : memref<64x256xf32, #tpu.memory_space<vmem>>, vector<64x256xf32>
      %c0_11 = arith.constant 0 : index
      %c0_12 = arith.constant 0 : index
      %13 = vector.load %arg5[%c0_11, %c0_12] : memref<64x256xf32, #tpu.memory_space<vmem>>, vector<64x256xf32>
      tpu.vector_store %arg5[%c0_11, %c0_12], %12 {strides = array<i32>} : memref<64x256xf32, #tpu.memory_space<vmem>>, vector<64x256xf32>,
    } else {
    }
    return
  }
  func.func @transform_0(%arg0: i32, %arg1: i32, %arg2: i32) -> (i32, i32) {
    %c0_i32 = arith.constant 0 : i32
    return %arg0, %arg2 : i32, i32
  }
  func.func @transform_1(%arg0: i32, %arg1: i32, %arg2: i32) -> (i32, i32) {
    %c0_i32 = arith.constant 0 : i32
    return %arg2, %arg1 : i32, i32
  }
  func.func @transform_2(%arg0: i32, %arg1: i32, %arg2: i32) -> (i32, i32) {
    %c0_i32 = arith.constant 0 : i32
    return %arg0, %arg1 : i32, i32
  }
}

module attributes {stable_mosaic.version = 11 : i64} {
  func.func @_bn_stats_kernel(%arg0: i32, %arg1: memref<64x256xf32, #tpu.memory_space<vmem>>, %arg2: memref<1x256xf32, #tpu.memory_space<vmem>>, %arg3: memref<1x256xf32, #tpu.memory_space<vmem>>) attributes {dimension_semantics = [#tpu.dimension_semantics<arbitrary>], iteration_bounds = array<i64: 2>, scalar_prefetch = 0 : i64, scratch_operands = 0 : i64, tpu.core_type = #tpu.core_type<tc>, window_params = [{transform_indices = @transform_0, window_bounds = array<i64: 64, 256>}, {pipeline_mode = #tpu.pipeline_mode<synchronous>, transform_indices = @transform_1, window_bounds = array<i64: 1, 256>}, {pipeline_mode = #tpu.pipeline_mode<synchronous>, transform_indices = @transform_2, window_bounds = array<i64: 1, 256>}]} {
    %c0_i32 = arith.constant 0 : i32
    %0 = arith.cmpi eq, %arg0, %c0_i32 : i32
    %1 = arith.extui %0 : i1 to i32
    %c0_i32_0 = arith.constant 0 : i32
    %2 = arith.cmpi ne, %1, %c0_i32_0 : i32
    scf.if %2 {
      %cst_11 = arith.constant 0.000000e+00 : f32
      %15 = vector.broadcast %cst_11 : f32 to vector<1x256xf32>
      %c0_12 = arith.constant 0 : index
      %c0_13 = arith.constant 0 : index
      %16 = vector.load %arg2[%c0_12, %c0_13] : memref<1x256xf32, #tpu.memory_space<vmem>>, vector<1x256xf32>
      tpu.vector_store %arg2[%c0_12, %c0_13], %15 {strides = array<i32>} : memref<1x256xf32, #tpu.memory_space<vmem>>, vector<1x256xf32>,
      %cst_14 = arith.constant 0.000000e+00 : f32
      %17 = vector.broadcast %cst_14 : f32 to vector<1x256xf32>
      %c0_15 = arith.constant 0 : index
      %c0_16 = arith.constant 0 : index
      %18 = vector.load %arg3[%c0_15, %c0_16] : memref<1x256xf32, #tpu.memory_space<vmem>>, vector<1x256xf32>
      tpu.vector_store %arg3[%c0_15, %c0_16], %17 {strides = array<i32>} : memref<1x256xf32, #tpu.memory_space<vmem>>, vector<1x256xf32>,
    } else {
    }
    %c0 = arith.constant 0 : index
    %c0_1 = arith.constant 0 : index
    %3 = vector.load %arg1[%c0, %c0_1] : memref<64x256xf32, #tpu.memory_space<vmem>>, vector<64x256xf32>
    %c0_2 = arith.constant 0 : index
    %c0_3 = arith.constant 0 : index
    %4 = vector.load %arg2[%c0_2, %c0_3] : memref<1x256xf32, #tpu.memory_space<vmem>>, vector<1x256xf32>
    %cst = arith.constant dense<0.000000e+00> : vector<256xf32>
    %5 = vector.multi_reduction <add>, %3, %cst [0] : vector<64x256xf32> to vector<256xf32>
    %6 = vector.shape_cast %5 : vector<256xf32> to vector<1x256xf32>
    %7 = arith.addf %4, %6 : vector<1x256xf32>
    %c0_4 = arith.constant 0 : index
    %c0_5 = arith.constant 0 : index
    %8 = vector.load %arg2[%c0_4, %c0_5] : memref<1x256xf32, #tpu.memory_space<vmem>>, vector<1x256xf32>
    tpu.vector_store %arg2[%c0_4, %c0_5], %7 {strides = array<i32>} : memref<1x256xf32, #tpu.memory_space<vmem>>, vector<1x256xf32>,
    %c0_6 = arith.constant 0 : index
    %c0_7 = arith.constant 0 : index
    %9 = vector.load %arg3[%c0_6, %c0_7] : memref<1x256xf32, #tpu.memory_space<vmem>>, vector<1x256xf32>
    %10 = arith.mulf %3, %3 : vector<64x256xf32>
    %cst_8 = arith.constant dense<0.000000e+00> : vector<256xf32>
    %11 = vector.multi_reduction <add>, %10, %cst_8 [0] : vector<64x256xf32> to vector<256xf32>
    %12 = vector.shape_cast %11 : vector<256xf32> to vector<1x256xf32>
    %13 = arith.addf %9, %12 : vector<1x256xf32>
    %c0_9 = arith.constant 0 : index
    %c0_10 = arith.constant 0 : index
    %14 = vector.load %arg3[%c0_9, %c0_10] : memref<1x256xf32, #tpu.memory_space<vmem>>, vector<1x256xf32>
    tpu.vector_store %arg3[%c0_9, %c0_10], %13 {strides = array<i32>} : memref<1x256xf32, #tpu.memory_space<vmem>>, vector<1x256xf32>,
    return
  }
  func.func @transform_0(%arg0: i32) -> (i32, i32) {
    %c0_i32 = arith.constant 0 : i32
    %c0_i32_0 = arith.constant 0 : i32
    return %arg0, %c0_i32 : i32, i32
  }
  func.func @transform_1(%arg0: i32) -> (i32, i32) {
    %c0_i32 = arith.constant 0 : i32
    %c0_i32_0 = arith.constant 0 : i32
    %c0_i32_1 = arith.constant 0 : i32
    return %c0_i32, %c0_i32_0 : i32, i32
  }
  func.func @transform_2(%arg0: i32) -> (i32, i32) {
    %c0_i32 = arith.constant 0 : i32
    %c0_i32_0 = arith.constant 0 : i32
    %c0_i32_1 = arith.constant 0 : i32
    return %c0_i32, %c0_i32_0 : i32, i32
  }
}

module attributes {stable_mosaic.version = 11 : i64} {
  func.func @_bn_apply_relu_kernel(%arg0: i32, %arg1: memref<64x256xf32, #tpu.memory_space<vmem>>, %arg2: memref<1x256xf32, #tpu.memory_space<vmem>>, %arg3: memref<1x256xf32, #tpu.memory_space<vmem>>, %arg4: memref<64x256xbf16, #tpu.memory_space<vmem>>) attributes {dimension_semantics = [#tpu.dimension_semantics<parallel>], iteration_bounds = array<i64: 2>, scalar_prefetch = 0 : i64, scratch_operands = 0 : i64, tpu.core_type = #tpu.core_type<tc>, window_params = [{transform_indices = @transform_0, window_bounds = array<i64: 64, 256>}, {pipeline_mode = #tpu.pipeline_mode<synchronous>, transform_indices = @transform_1, window_bounds = array<i64: 1, 256>}, {pipeline_mode = #tpu.pipeline_mode<synchronous>, transform_indices = @transform_2, window_bounds = array<i64: 1, 256>}, {transform_indices = @transform_3, window_bounds = array<i64: 64, 256>}]} {
    %c0 = arith.constant 0 : index
    %c0_0 = arith.constant 0 : index
    %0 = vector.load %arg1[%c0, %c0_0] : memref<64x256xf32, #tpu.memory_space<vmem>>, vector<64x256xf32>
    %c0_1 = arith.constant 0 : index
    %c0_2 = arith.constant 0 : index
    %1 = vector.load %arg2[%c0_1, %c0_2] : memref<1x256xf32, #tpu.memory_space<vmem>>, vector<1x256xf32>
    %2 = vector.broadcast %1 : vector<1x256xf32> to vector<64x256xf32>
    %3 = arith.mulf %0, %2 : vector<64x256xf32>
    %c0_3 = arith.constant 0 : index
    %c0_4 = arith.constant 0 : index
    %4 = vector.load %arg3[%c0_3, %c0_4] : memref<1x256xf32, #tpu.memory_space<vmem>>, vector<1x256xf32>
    %5 = vector.broadcast %4 : vector<1x256xf32> to vector<64x256xf32>
    %6 = arith.addf %3, %5 : vector<64x256xf32>
    %cst = arith.constant 0.000000e+00 : f32
    %7 = vector.broadcast %cst : f32 to vector<64x256xf32>
    %8 = arith.maximumf %6, %7 : vector<64x256xf32>
    %9 = arith.truncf %8 : vector<64x256xf32> to vector<64x256xbf16>
    %c0_5 = arith.constant 0 : index
    %c0_6 = arith.constant 0 : index
    %10 = vector.load %arg4[%c0_5, %c0_6] : memref<64x256xbf16, #tpu.memory_space<vmem>>, vector<64x256xbf16>
    tpu.vector_store %arg4[%c0_5, %c0_6], %9 {strides = array<i32>} : memref<64x256xbf16, #tpu.memory_space<vmem>>, vector<64x256xbf16>,
    return
  }
  func.func @transform_0(%arg0: i32) -> (i32, i32) {
    %c0_i32 = arith.constant 0 : i32
    %c0_i32_0 = arith.constant 0 : i32
    return %arg0, %c0_i32 : i32, i32
  }
  func.func @transform_1(%arg0: i32) -> (i32, i32) {
    %c0_i32 = arith.constant 0 : i32
    %c0_i32_0 = arith.constant 0 : i32
    %c0_i32_1 = arith.constant 0 : i32
    return %c0_i32, %c0_i32_0 : i32, i32
  }
  func.func @transform_2(%arg0: i32) -> (i32, i32) {
    %c0_i32 = arith.constant 0 : i32
    %c0_i32_0 = arith.constant 0 : i32
    %c0_i32_1 = arith.constant 0 : i32
    return %c0_i32, %c0_i32_0 : i32, i32
  }
  func.func @transform_3(%arg0: i32) -> (i32, i32) {
    %c0_i32 = arith.constant 0 : i32
    %c0_i32_0 = arith.constant 0 : i32
    return %arg0, %c0_i32 : i32, i32
  }
}

module attributes {stable_mosaic.version = 11 : i64} {
  func.func @_matmul_kernel(%arg0: i32, %arg1: i32, %arg2: i32, %arg3: memref<176x512xbf16, #tpu.memory_space<vmem>>, %arg4: memref<512x256xbf16, #tpu.memory_space<vmem>>, %arg5: memref<176x256xf32, #tpu.memory_space<vmem>>, %arg6: memref<176x256xf32, #tpu.memory_space<vmem>>) attributes {dimension_semantics = [#tpu.dimension_semantics<parallel>, #tpu.dimension_semantics<parallel>, #tpu.dimension_semantics<arbitrary>], iteration_bounds = array<i64: 1, 2, 2>, scalar_prefetch = 0 : i64, scratch_operands = 1 : i64, tpu.core_type = #tpu.core_type<tc>, window_params = [{transform_indices = @transform_0, window_bounds = array<i64: 176, 512>}, {transform_indices = @transform_1, window_bounds = array<i64: 512, 256>}, {transform_indices = @transform_2, window_bounds = array<i64: 176, 256>}]} {
    %c0_i32 = arith.constant 0 : i32
    %0 = arith.cmpi eq, %arg2, %c0_i32 : i32
    %1 = arith.extui %0 : i1 to i32
    %c0_i32_0 = arith.constant 0 : i32
    %2 = arith.cmpi ne, %1, %c0_i32_0 : i32
    scf.if %2 {
      %cst_9 = arith.constant 0.000000e+00 : f32
      %12 = vector.broadcast %cst_9 : f32 to vector<176x256xf32>
      %c0_10 = arith.constant 0 : index
      %c0_11 = arith.constant 0 : index
      %13 = vector.load %arg6[%c0_10, %c0_11] : memref<176x256xf32, #tpu.memory_space<vmem>>, vector<176x256xf32>
      tpu.vector_store %arg6[%c0_10, %c0_11], %12 {strides = array<i32>} : memref<176x256xf32, #tpu.memory_space<vmem>>, vector<176x256xf32>,
    } else {
    }
    %c0 = arith.constant 0 : index
    %c0_1 = arith.constant 0 : index
    %3 = vector.load %arg6[%c0, %c0_1] : memref<176x256xf32, #tpu.memory_space<vmem>>, vector<176x256xf32>
    %c0_2 = arith.constant 0 : index
    %c0_3 = arith.constant 0 : index
    %4 = vector.load %arg3[%c0_2, %c0_3] : memref<176x512xbf16, #tpu.memory_space<vmem>>, vector<176x512xbf16>
    %c0_4 = arith.constant 0 : index
    %c0_5 = arith.constant 0 : index
    %5 = vector.load %arg4[%c0_4, %c0_5] : memref<512x256xbf16, #tpu.memory_space<vmem>>, vector<512x256xbf16>
    %cst = arith.constant dense<0.000000e+00> : vector<176x256xf32>
    %6 = tpu.matmul %4, %5, %cst {dimension_numbers = #tpu.dot_dimension_numbers<[1], [0], [0], [1], [0, 0, 1, 1], [], []>} : vector<176x512xbf16>, vector<512x256xbf16>, vector<176x256xf32> -> vector<176x256xf32>
    %7 = arith.addf %3, %6 : vector<176x256xf32>
    %c0_6 = arith.constant 0 : index
    %c0_7 = arith.constant 0 : index
    %8 = vector.load %arg6[%c0_6, %c0_7] : memref<176x256xf32, #tpu.memory_space<vmem>>, vector<176x256xf32>
    tpu.vector_store %arg6[%c0_6, %c0_7], %7 {strides = array<i32>} : memref<176x256xf32, #tpu.memory_space<vmem>>, vector<176x256xf32>,
    %c1_i32 = arith.constant 1 : i32
    %9 = arith.cmpi eq, %arg2, %c1_i32 : i32
    %10 = arith.extui %9 : i1 to i32
    %c0_i32_8 = arith.constant 0 : i32
    %11 = arith.cmpi ne, %10, %c0_i32_8 : i32
    scf.if %11 {
      %c0_9 = arith.constant 0 : index
      %c0_10 = arith.constant 0 : index
      %12 = vector.load %arg6[%c0_9, %c0_10] : memref<176x256xf32, #tpu.memory_space<vmem>>, vector<176x256xf32>
      %c0_11 = arith.constant 0 : index
      %c0_12 = arith.constant 0 : index
      %13 = vector.load %arg5[%c0_11, %c0_12] : memref<176x256xf32, #tpu.memory_space<vmem>>, vector<176x256xf32>
      tpu.vector_store %arg5[%c0_11, %c0_12], %12 {strides = array<i32>} : memref<176x256xf32, #tpu.memory_space<vmem>>, vector<176x256xf32>,
    } else {
    }
    return
  }
  func.func @transform_0(%arg0: i32, %arg1: i32, %arg2: i32) -> (i32, i32) {
    %c0_i32 = arith.constant 0 : i32
    return %arg0, %arg2 : i32, i32
  }
  func.func @transform_1(%arg0: i32, %arg1: i32, %arg2: i32) -> (i32, i32) {
    %c0_i32 = arith.constant 0 : i32
    return %arg2, %arg1 : i32, i32
  }
  func.func @transform_2(%arg0: i32, %arg1: i32, %arg2: i32) -> (i32, i32) {
    %c0_i32 = arith.constant 0 : i32
    return %arg0, %arg1 : i32, i32
  }
}

module attributes {stable_mosaic.version = 11 : i64} {
  func.func @_bn_stats_kernel(%arg0: i32, %arg1: memref<256x128xf32, #tpu.memory_space<vmem>>, %arg2: memref<1x128xf32, #tpu.memory_space<vmem>>, %arg3: memref<1x128xf32, #tpu.memory_space<vmem>>) attributes {dimension_semantics = [#tpu.dimension_semantics<arbitrary>], iteration_bounds = array<i64: 2>, scalar_prefetch = 0 : i64, scratch_operands = 0 : i64, tpu.core_type = #tpu.core_type<tc>, window_params = [{transform_indices = @transform_0, window_bounds = array<i64: 256, 128>}, {pipeline_mode = #tpu.pipeline_mode<synchronous>, transform_indices = @transform_1, window_bounds = array<i64: 1, 128>}, {pipeline_mode = #tpu.pipeline_mode<synchronous>, transform_indices = @transform_2, window_bounds = array<i64: 1, 128>}]} {
    %c0_i32 = arith.constant 0 : i32
    %0 = arith.cmpi eq, %arg0, %c0_i32 : i32
    %1 = arith.extui %0 : i1 to i32
    %c0_i32_0 = arith.constant 0 : i32
    %2 = arith.cmpi ne, %1, %c0_i32_0 : i32
    scf.if %2 {
      %cst_11 = arith.constant 0.000000e+00 : f32
      %15 = vector.broadcast %cst_11 : f32 to vector<1x128xf32>
      %c0_12 = arith.constant 0 : index
      %c0_13 = arith.constant 0 : index
      %16 = vector.load %arg2[%c0_12, %c0_13] : memref<1x128xf32, #tpu.memory_space<vmem>>, vector<1x128xf32>
      tpu.vector_store %arg2[%c0_12, %c0_13], %15 {strides = array<i32>} : memref<1x128xf32, #tpu.memory_space<vmem>>, vector<1x128xf32>,
      %cst_14 = arith.constant 0.000000e+00 : f32
      %17 = vector.broadcast %cst_14 : f32 to vector<1x128xf32>
      %c0_15 = arith.constant 0 : index
      %c0_16 = arith.constant 0 : index
      %18 = vector.load %arg3[%c0_15, %c0_16] : memref<1x128xf32, #tpu.memory_space<vmem>>, vector<1x128xf32>
      tpu.vector_store %arg3[%c0_15, %c0_16], %17 {strides = array<i32>} : memref<1x128xf32, #tpu.memory_space<vmem>>, vector<1x128xf32>,
    } else {
    }
    %c0 = arith.constant 0 : index
    %c0_1 = arith.constant 0 : index
    %3 = vector.load %arg1[%c0, %c0_1] : memref<256x128xf32, #tpu.memory_space<vmem>>, vector<256x128xf32>
    %c0_2 = arith.constant 0 : index
    %c0_3 = arith.constant 0 : index
    %4 = vector.load %arg2[%c0_2, %c0_3] : memref<1x128xf32, #tpu.memory_space<vmem>>, vector<1x128xf32>
    %cst = arith.constant dense<0.000000e+00> : vector<128xf32>
    %5 = vector.multi_reduction <add>, %3, %cst [0] : vector<256x128xf32> to vector<128xf32>
    %6 = vector.shape_cast %5 : vector<128xf32> to vector<1x128xf32>
    %7 = arith.addf %4, %6 : vector<1x128xf32>
    %c0_4 = arith.constant 0 : index
    %c0_5 = arith.constant 0 : index
    %8 = vector.load %arg2[%c0_4, %c0_5] : memref<1x128xf32, #tpu.memory_space<vmem>>, vector<1x128xf32>
    tpu.vector_store %arg2[%c0_4, %c0_5], %7 {strides = array<i32>} : memref<1x128xf32, #tpu.memory_space<vmem>>, vector<1x128xf32>,
    %c0_6 = arith.constant 0 : index
    %c0_7 = arith.constant 0 : index
    %9 = vector.load %arg3[%c0_6, %c0_7] : memref<1x128xf32, #tpu.memory_space<vmem>>, vector<1x128xf32>
    %10 = arith.mulf %3, %3 : vector<256x128xf32>
    %cst_8 = arith.constant dense<0.000000e+00> : vector<128xf32>
    %11 = vector.multi_reduction <add>, %10, %cst_8 [0] : vector<256x128xf32> to vector<128xf32>
    %12 = vector.shape_cast %11 : vector<128xf32> to vector<1x128xf32>
    %13 = arith.addf %9, %12 : vector<1x128xf32>
    %c0_9 = arith.constant 0 : index
    %c0_10 = arith.constant 0 : index
    %14 = vector.load %arg3[%c0_9, %c0_10] : memref<1x128xf32, #tpu.memory_space<vmem>>, vector<1x128xf32>
    tpu.vector_store %arg3[%c0_9, %c0_10], %13 {strides = array<i32>} : memref<1x128xf32, #tpu.memory_space<vmem>>, vector<1x128xf32>,
    return
  }
  func.func @transform_0(%arg0: i32) -> (i32, i32) {
    %c0_i32 = arith.constant 0 : i32
    %c0_i32_0 = arith.constant 0 : i32
    return %arg0, %c0_i32 : i32, i32
  }
  func.func @transform_1(%arg0: i32) -> (i32, i32) {
    %c0_i32 = arith.constant 0 : i32
    %c0_i32_0 = arith.constant 0 : i32
    %c0_i32_1 = arith.constant 0 : i32
    return %c0_i32, %c0_i32_0 : i32, i32
  }
  func.func @transform_2(%arg0: i32) -> (i32, i32) {
    %c0_i32 = arith.constant 0 : i32
    %c0_i32_0 = arith.constant 0 : i32
    %c0_i32_1 = arith.constant 0 : i32
    return %c0_i32, %c0_i32_0 : i32, i32
  }
}

module attributes {stable_mosaic.version = 11 : i64} {
  func.func @_bn_apply_relu_kernel(%arg0: i32, %arg1: memref<256x128xf32, #tpu.memory_space<vmem>>, %arg2: memref<1x128xf32, #tpu.memory_space<vmem>>, %arg3: memref<1x128xf32, #tpu.memory_space<vmem>>, %arg4: memref<256x128xbf16, #tpu.memory_space<vmem>>) attributes {dimension_semantics = [#tpu.dimension_semantics<parallel>], iteration_bounds = array<i64: 2>, scalar_prefetch = 0 : i64, scratch_operands = 0 : i64, tpu.core_type = #tpu.core_type<tc>, window_params = [{transform_indices = @transform_0, window_bounds = array<i64: 256, 128>}, {pipeline_mode = #tpu.pipeline_mode<synchronous>, transform_indices = @transform_1, window_bounds = array<i64: 1, 128>}, {pipeline_mode = #tpu.pipeline_mode<synchronous>, transform_indices = @transform_2, window_bounds = array<i64: 1, 128>}, {transform_indices = @transform_3, window_bounds = array<i64: 256, 128>}]} {
    %c0 = arith.constant 0 : index
    %c0_0 = arith.constant 0 : index
    %0 = vector.load %arg1[%c0, %c0_0] : memref<256x128xf32, #tpu.memory_space<vmem>>, vector<256x128xf32>
    %c0_1 = arith.constant 0 : index
    %c0_2 = arith.constant 0 : index
    %1 = vector.load %arg2[%c0_1, %c0_2] : memref<1x128xf32, #tpu.memory_space<vmem>>, vector<1x128xf32>
    %2 = vector.broadcast %1 : vector<1x128xf32> to vector<256x128xf32>
    %3 = arith.mulf %0, %2 : vector<256x128xf32>
    %c0_3 = arith.constant 0 : index
    %c0_4 = arith.constant 0 : index
    %4 = vector.load %arg3[%c0_3, %c0_4] : memref<1x128xf32, #tpu.memory_space<vmem>>, vector<1x128xf32>
    %5 = vector.broadcast %4 : vector<1x128xf32> to vector<256x128xf32>
    %6 = arith.addf %3, %5 : vector<256x128xf32>
    %cst = arith.constant 0.000000e+00 : f32
    %7 = vector.broadcast %cst : f32 to vector<256x128xf32>
    %8 = arith.maximumf %6, %7 : vector<256x128xf32>
    %9 = arith.truncf %8 : vector<256x128xf32> to vector<256x128xbf16>
    %c0_5 = arith.constant 0 : index
    %c0_6 = arith.constant 0 : index
    %10 = vector.load %arg4[%c0_5, %c0_6] : memref<256x128xbf16, #tpu.memory_space<vmem>>, vector<256x128xbf16>
    tpu.vector_store %arg4[%c0_5, %c0_6], %9 {strides = array<i32>} : memref<256x128xbf16, #tpu.memory_space<vmem>>, vector<256x128xbf16>,
    return
  }
  func.func @transform_0(%arg0: i32) -> (i32, i32) {
    %c0_i32 = arith.constant 0 : i32
    %c0_i32_0 = arith.constant 0 : i32
    return %arg0, %c0_i32 : i32, i32
  }
  func.func @transform_1(%arg0: i32) -> (i32, i32) {
    %c0_i32 = arith.constant 0 : i32
    %c0_i32_0 = arith.constant 0 : i32
    %c0_i32_1 = arith.constant 0 : i32
    return %c0_i32, %c0_i32_0 : i32, i32
  }
  func.func @transform_2(%arg0: i32) -> (i32, i32) {
    %c0_i32 = arith.constant 0 : i32
    %c0_i32_0 = arith.constant 0 : i32
    %c0_i32_1 = arith.constant 0 : i32
    return %c0_i32, %c0_i32_0 : i32, i32
  }
  func.func @transform_3(%arg0: i32) -> (i32, i32) {
    %c0_i32 = arith.constant 0 : i32
    %c0_i32_0 = arith.constant 0 : i32
    return %arg0, %c0_i32 : i32, i32
  }
}

module attributes {stable_mosaic.version = 11 : i64} {
  func.func @_matmul_kernel(%arg0: i32, %arg1: i32, %arg2: i32, %arg3: memref<128x512xbf16, #tpu.memory_space<vmem>>, %arg4: memref<512x256xbf16, #tpu.memory_space<vmem>>, %arg5: memref<128x256xf32, #tpu.memory_space<vmem>>, %arg6: memref<128x256xf32, #tpu.memory_space<vmem>>) attributes {dimension_semantics = [#tpu.dimension_semantics<parallel>, #tpu.dimension_semantics<parallel>, #tpu.dimension_semantics<arbitrary>], iteration_bounds = array<i64: 5, 1, 1>, scalar_prefetch = 0 : i64, scratch_operands = 1 : i64, tpu.core_type = #tpu.core_type<tc>, window_params = [{transform_indices = @transform_0, window_bounds = array<i64: 128, 512>}, {transform_indices = @transform_1, window_bounds = array<i64: 512, 256>}, {transform_indices = @transform_2, window_bounds = array<i64: 128, 256>}]} {
    %c0_i32 = arith.constant 0 : i32
    %0 = arith.cmpi eq, %arg2, %c0_i32 : i32
    %1 = arith.extui %0 : i1 to i32
    %c0_i32_0 = arith.constant 0 : i32
    %2 = arith.cmpi ne, %1, %c0_i32_0 : i32
    scf.if %2 {
      %cst_10 = arith.constant 0.000000e+00 : f32
      %12 = vector.broadcast %cst_10 : f32 to vector<128x256xf32>
      %c0_11 = arith.constant 0 : index
      %c0_12 = arith.constant 0 : index
      %13 = vector.load %arg6[%c0_11, %c0_12] : memref<128x256xf32, #tpu.memory_space<vmem>>, vector<128x256xf32>
      tpu.vector_store %arg6[%c0_11, %c0_12], %12 {strides = array<i32>} : memref<128x256xf32, #tpu.memory_space<vmem>>, vector<128x256xf32>,
    } else {
    }
    %c0 = arith.constant 0 : index
    %c0_1 = arith.constant 0 : index
    %3 = vector.load %arg6[%c0, %c0_1] : memref<128x256xf32, #tpu.memory_space<vmem>>, vector<128x256xf32>
    %c0_2 = arith.constant 0 : index
    %c0_3 = arith.constant 0 : index
    %4 = vector.load %arg3[%c0_2, %c0_3] : memref<128x512xbf16, #tpu.memory_space<vmem>>, vector<128x512xbf16>
    %c0_4 = arith.constant 0 : index
    %c0_5 = arith.constant 0 : index
    %5 = vector.load %arg4[%c0_4, %c0_5] : memref<512x256xbf16, #tpu.memory_space<vmem>>, vector<512x256xbf16>
    %cst = arith.constant dense<0.000000e+00> : vector<128x256xf32>
    %6 = tpu.matmul %4, %5, %cst {dimension_numbers = #tpu.dot_dimension_numbers<[1], [0], [0], [1], [0, 0, 1, 1], [], []>} : vector<128x512xbf16>, vector<512x256xbf16>, vector<128x256xf32> -> vector<128x256xf32>
    %7 = arith.addf %3, %6 : vector<128x256xf32>
    %c0_6 = arith.constant 0 : index
    %c0_7 = arith.constant 0 : index
    %8 = vector.load %arg6[%c0_6, %c0_7] : memref<128x256xf32, #tpu.memory_space<vmem>>, vector<128x256xf32>
    tpu.vector_store %arg6[%c0_6, %c0_7], %7 {strides = array<i32>} : memref<128x256xf32, #tpu.memory_space<vmem>>, vector<128x256xf32>,
    %c0_i32_8 = arith.constant 0 : i32
    %9 = arith.cmpi eq, %arg2, %c0_i32_8 : i32
    %10 = arith.extui %9 : i1 to i32
    %c0_i32_9 = arith.constant 0 : i32
    %11 = arith.cmpi ne, %10, %c0_i32_9 : i32
    scf.if %11 {
      %c0_10 = arith.constant 0 : index
      %c0_11 = arith.constant 0 : index
      %12 = vector.load %arg6[%c0_10, %c0_11] : memref<128x256xf32, #tpu.memory_space<vmem>>, vector<128x256xf32>
      %c0_12 = arith.constant 0 : index
      %c0_13 = arith.constant 0 : index
      %13 = vector.load %arg5[%c0_12, %c0_13] : memref<128x256xf32, #tpu.memory_space<vmem>>, vector<128x256xf32>
      tpu.vector_store %arg5[%c0_12, %c0_13], %12 {strides = array<i32>} : memref<128x256xf32, #tpu.memory_space<vmem>>, vector<128x256xf32>,
    } else {
    }
    return
  }
  func.func @transform_0(%arg0: i32, %arg1: i32, %arg2: i32) -> (i32, i32) {
    %c0_i32 = arith.constant 0 : i32
    return %arg0, %arg2 : i32, i32
  }
  func.func @transform_1(%arg0: i32, %arg1: i32, %arg2: i32) -> (i32, i32) {
    %c0_i32 = arith.constant 0 : i32
    return %arg2, %arg1 : i32, i32
  }
  func.func @transform_2(%arg0: i32, %arg1: i32, %arg2: i32) -> (i32, i32) {
    %c0_i32 = arith.constant 0 : i32
    return %arg0, %arg1 : i32, i32
  }
}

module attributes {stable_mosaic.version = 11 : i64} {
  func.func @_bn_stats_kernel(%arg0: i32, %arg1: memref<512x128xf32, #tpu.memory_space<vmem>>, %arg2: memref<1x128xf32, #tpu.memory_space<vmem>>, %arg3: memref<1x128xf32, #tpu.memory_space<vmem>>) attributes {dimension_semantics = [#tpu.dimension_semantics<arbitrary>], iteration_bounds = array<i64: 2>, scalar_prefetch = 0 : i64, scratch_operands = 0 : i64, tpu.core_type = #tpu.core_type<tc>, window_params = [{transform_indices = @transform_0, window_bounds = array<i64: 512, 128>}, {pipeline_mode = #tpu.pipeline_mode<synchronous>, transform_indices = @transform_1, window_bounds = array<i64: 1, 128>}, {pipeline_mode = #tpu.pipeline_mode<synchronous>, transform_indices = @transform_2, window_bounds = array<i64: 1, 128>}]} {
    %c0_i32 = arith.constant 0 : i32
    %0 = arith.cmpi eq, %arg0, %c0_i32 : i32
    %1 = arith.extui %0 : i1 to i32
    %c0_i32_0 = arith.constant 0 : i32
    %2 = arith.cmpi ne, %1, %c0_i32_0 : i32
    scf.if %2 {
      %cst_11 = arith.constant 0.000000e+00 : f32
      %15 = vector.broadcast %cst_11 : f32 to vector<1x128xf32>
      %c0_12 = arith.constant 0 : index
      %c0_13 = arith.constant 0 : index
      %16 = vector.load %arg2[%c0_12, %c0_13] : memref<1x128xf32, #tpu.memory_space<vmem>>, vector<1x128xf32>
      tpu.vector_store %arg2[%c0_12, %c0_13], %15 {strides = array<i32>} : memref<1x128xf32, #tpu.memory_space<vmem>>, vector<1x128xf32>,
      %cst_14 = arith.constant 0.000000e+00 : f32
      %17 = vector.broadcast %cst_14 : f32 to vector<1x128xf32>
      %c0_15 = arith.constant 0 : index
      %c0_16 = arith.constant 0 : index
      %18 = vector.load %arg3[%c0_15, %c0_16] : memref<1x128xf32, #tpu.memory_space<vmem>>, vector<1x128xf32>
      tpu.vector_store %arg3[%c0_15, %c0_16], %17 {strides = array<i32>} : memref<1x128xf32, #tpu.memory_space<vmem>>, vector<1x128xf32>,
    } else {
    }
    %c0 = arith.constant 0 : index
    %c0_1 = arith.constant 0 : index
    %3 = vector.load %arg1[%c0, %c0_1] : memref<512x128xf32, #tpu.memory_space<vmem>>, vector<512x128xf32>
    %c0_2 = arith.constant 0 : index
    %c0_3 = arith.constant 0 : index
    %4 = vector.load %arg2[%c0_2, %c0_3] : memref<1x128xf32, #tpu.memory_space<vmem>>, vector<1x128xf32>
    %cst = arith.constant dense<0.000000e+00> : vector<128xf32>
    %5 = vector.multi_reduction <add>, %3, %cst [0] : vector<512x128xf32> to vector<128xf32>
    %6 = vector.shape_cast %5 : vector<128xf32> to vector<1x128xf32>
    %7 = arith.addf %4, %6 : vector<1x128xf32>
    %c0_4 = arith.constant 0 : index
    %c0_5 = arith.constant 0 : index
    %8 = vector.load %arg2[%c0_4, %c0_5] : memref<1x128xf32, #tpu.memory_space<vmem>>, vector<1x128xf32>
    tpu.vector_store %arg2[%c0_4, %c0_5], %7 {strides = array<i32>} : memref<1x128xf32, #tpu.memory_space<vmem>>, vector<1x128xf32>,
    %c0_6 = arith.constant 0 : index
    %c0_7 = arith.constant 0 : index
    %9 = vector.load %arg3[%c0_6, %c0_7] : memref<1x128xf32, #tpu.memory_space<vmem>>, vector<1x128xf32>
    %10 = arith.mulf %3, %3 : vector<512x128xf32>
    %cst_8 = arith.constant dense<0.000000e+00> : vector<128xf32>
    %11 = vector.multi_reduction <add>, %10, %cst_8 [0] : vector<512x128xf32> to vector<128xf32>
    %12 = vector.shape_cast %11 : vector<128xf32> to vector<1x128xf32>
    %13 = arith.addf %9, %12 : vector<1x128xf32>
    %c0_9 = arith.constant 0 : index
    %c0_10 = arith.constant 0 : index
    %14 = vector.load %arg3[%c0_9, %c0_10] : memref<1x128xf32, #tpu.memory_space<vmem>>, vector<1x128xf32>
    tpu.vector_store %arg3[%c0_9, %c0_10], %13 {strides = array<i32>} : memref<1x128xf32, #tpu.memory_space<vmem>>, vector<1x128xf32>,
    return
  }
  func.func @transform_0(%arg0: i32) -> (i32, i32) {
    %c0_i32 = arith.constant 0 : i32
    %c0_i32_0 = arith.constant 0 : i32
    return %arg0, %c0_i32 : i32, i32
  }
  func.func @transform_1(%arg0: i32) -> (i32, i32) {
    %c0_i32 = arith.constant 0 : i32
    %c0_i32_0 = arith.constant 0 : i32
    %c0_i32_1 = arith.constant 0 : i32
    return %c0_i32, %c0_i32_0 : i32, i32
  }
  func.func @transform_2(%arg0: i32) -> (i32, i32) {
    %c0_i32 = arith.constant 0 : i32
    %c0_i32_0 = arith.constant 0 : i32
    %c0_i32_1 = arith.constant 0 : i32
    return %c0_i32, %c0_i32_0 : i32, i32
  }
}

module attributes {stable_mosaic.version = 11 : i64} {
  func.func @_bn_apply_relu_kernel(%arg0: i32, %arg1: memref<512x128xf32, #tpu.memory_space<vmem>>, %arg2: memref<1x128xf32, #tpu.memory_space<vmem>>, %arg3: memref<1x128xf32, #tpu.memory_space<vmem>>, %arg4: memref<512x128xbf16, #tpu.memory_space<vmem>>) attributes {dimension_semantics = [#tpu.dimension_semantics<parallel>], iteration_bounds = array<i64: 2>, scalar_prefetch = 0 : i64, scratch_operands = 0 : i64, tpu.core_type = #tpu.core_type<tc>, window_params = [{transform_indices = @transform_0, window_bounds = array<i64: 512, 128>}, {pipeline_mode = #tpu.pipeline_mode<synchronous>, transform_indices = @transform_1, window_bounds = array<i64: 1, 128>}, {pipeline_mode = #tpu.pipeline_mode<synchronous>, transform_indices = @transform_2, window_bounds = array<i64: 1, 128>}, {transform_indices = @transform_3, window_bounds = array<i64: 512, 128>}]} {
    %c0 = arith.constant 0 : index
    %c0_0 = arith.constant 0 : index
    %0 = vector.load %arg1[%c0, %c0_0] : memref<512x128xf32, #tpu.memory_space<vmem>>, vector<512x128xf32>
    %c0_1 = arith.constant 0 : index
    %c0_2 = arith.constant 0 : index
    %1 = vector.load %arg2[%c0_1, %c0_2] : memref<1x128xf32, #tpu.memory_space<vmem>>, vector<1x128xf32>
    %2 = vector.broadcast %1 : vector<1x128xf32> to vector<512x128xf32>
    %3 = arith.mulf %0, %2 : vector<512x128xf32>
    %c0_3 = arith.constant 0 : index
    %c0_4 = arith.constant 0 : index
    %4 = vector.load %arg3[%c0_3, %c0_4] : memref<1x128xf32, #tpu.memory_space<vmem>>, vector<1x128xf32>
    %5 = vector.broadcast %4 : vector<1x128xf32> to vector<512x128xf32>
    %6 = arith.addf %3, %5 : vector<512x128xf32>
    %cst = arith.constant 0.000000e+00 : f32
    %7 = vector.broadcast %cst : f32 to vector<512x128xf32>
    %8 = arith.maximumf %6, %7 : vector<512x128xf32>
    %9 = arith.truncf %8 : vector<512x128xf32> to vector<512x128xbf16>
    %c0_5 = arith.constant 0 : index
    %c0_6 = arith.constant 0 : index
    %10 = vector.load %arg4[%c0_5, %c0_6] : memref<512x128xbf16, #tpu.memory_space<vmem>>, vector<512x128xbf16>
    tpu.vector_store %arg4[%c0_5, %c0_6], %9 {strides = array<i32>} : memref<512x128xbf16, #tpu.memory_space<vmem>>, vector<512x128xbf16>,
    return
  }
  func.func @transform_0(%arg0: i32) -> (i32, i32) {
    %c0_i32 = arith.constant 0 : i32
    %c0_i32_0 = arith.constant 0 : i32
    return %arg0, %c0_i32 : i32, i32
  }
  func.func @transform_1(%arg0: i32) -> (i32, i32) {
    %c0_i32 = arith.constant 0 : i32
    %c0_i32_0 = arith.constant 0 : i32
    %c0_i32_1 = arith.constant 0 : i32
    return %c0_i32, %c0_i32_0 : i32, i32
  }
  func.func @transform_2(%arg0: i32) -> (i32, i32) {
    %c0_i32 = arith.constant 0 : i32
    %c0_i32_0 = arith.constant 0 : i32
    %c0_i32_1 = arith.constant 0 : i32
    return %c0_i32, %c0_i32_0 : i32, i32
  }
  func.func @transform_3(%arg0: i32) -> (i32, i32) {
    %c0_i32 = arith.constant 0 : i32
    %c0_i32_0 = arith.constant 0 : i32
    return %arg0, %c0_i32 : i32, i32
  }
}

module attributes {stable_mosaic.version = 11 : i64} {
  func.func @_matmul_kernel(%arg0: i32, %arg1: i32, %arg2: i32, %arg3: memref<256x256xbf16, #tpu.memory_space<vmem>>, %arg4: memref<256x128xbf16, #tpu.memory_space<vmem>>, %arg5: memref<256x128xf32, #tpu.memory_space<vmem>>, %arg6: memref<256x128xf32, #tpu.memory_space<vmem>>) attributes {dimension_semantics = [#tpu.dimension_semantics<parallel>, #tpu.dimension_semantics<parallel>, #tpu.dimension_semantics<arbitrary>], iteration_bounds = array<i64: 9, 1, 1>, scalar_prefetch = 0 : i64, scratch_operands = 1 : i64, tpu.core_type = #tpu.core_type<tc>, window_params = [{transform_indices = @transform_0, window_bounds = array<i64: 256, 256>}, {transform_indices = @transform_1, window_bounds = array<i64: 256, 128>}, {transform_indices = @transform_2, window_bounds = array<i64: 256, 128>}]} {
    %c0_i32 = arith.constant 0 : i32
    %0 = arith.cmpi eq, %arg2, %c0_i32 : i32
    %1 = arith.extui %0 : i1 to i32
    %c0_i32_0 = arith.constant 0 : i32
    %2 = arith.cmpi ne, %1, %c0_i32_0 : i32
    scf.if %2 {
      %cst_10 = arith.constant 0.000000e+00 : f32
      %12 = vector.broadcast %cst_10 : f32 to vector<256x128xf32>
      %c0_11 = arith.constant 0 : index
      %c0_12 = arith.constant 0 : index
      %13 = vector.load %arg6[%c0_11, %c0_12] : memref<256x128xf32, #tpu.memory_space<vmem>>, vector<256x128xf32>
      tpu.vector_store %arg6[%c0_11, %c0_12], %12 {strides = array<i32>} : memref<256x128xf32, #tpu.memory_space<vmem>>, vector<256x128xf32>,
    } else {
    }
    %c0 = arith.constant 0 : index
    %c0_1 = arith.constant 0 : index
    %3 = vector.load %arg6[%c0, %c0_1] : memref<256x128xf32, #tpu.memory_space<vmem>>, vector<256x128xf32>
    %c0_2 = arith.constant 0 : index
    %c0_3 = arith.constant 0 : index
    %4 = vector.load %arg3[%c0_2, %c0_3] : memref<256x256xbf16, #tpu.memory_space<vmem>>, vector<256x256xbf16>
    %c0_4 = arith.constant 0 : index
    %c0_5 = arith.constant 0 : index
    %5 = vector.load %arg4[%c0_4, %c0_5] : memref<256x128xbf16, #tpu.memory_space<vmem>>, vector<256x128xbf16>
    %cst = arith.constant dense<0.000000e+00> : vector<256x128xf32>
    %6 = tpu.matmul %4, %5, %cst {dimension_numbers = #tpu.dot_dimension_numbers<[1], [0], [0], [1], [0, 0, 1, 1], [], []>} : vector<256x256xbf16>, vector<256x128xbf16>, vector<256x128xf32> -> vector<256x128xf32>
    %7 = arith.addf %3, %6 : vector<256x128xf32>
    %c0_6 = arith.constant 0 : index
    %c0_7 = arith.constant 0 : index
    %8 = vector.load %arg6[%c0_6, %c0_7] : memref<256x128xf32, #tpu.memory_space<vmem>>, vector<256x128xf32>
    tpu.vector_store %arg6[%c0_6, %c0_7], %7 {strides = array<i32>} : memref<256x128xf32, #tpu.memory_space<vmem>>, vector<256x128xf32>,
    %c0_i32_8 = arith.constant 0 : i32
    %9 = arith.cmpi eq, %arg2, %c0_i32_8 : i32
    %10 = arith.extui %9 : i1 to i32
    %c0_i32_9 = arith.constant 0 : i32
    %11 = arith.cmpi ne, %10, %c0_i32_9 : i32
    scf.if %11 {
      %c0_10 = arith.constant 0 : index
      %c0_11 = arith.constant 0 : index
      %12 = vector.load %arg6[%c0_10, %c0_11] : memref<256x128xf32, #tpu.memory_space<vmem>>, vector<256x128xf32>
      %13 = math.tanh %12 : vector<256x128xf32>
      %c0_12 = arith.constant 0 : index
      %c0_13 = arith.constant 0 : index
      %14 = vector.load %arg5[%c0_12, %c0_13] : memref<256x128xf32, #tpu.memory_space<vmem>>, vector<256x128xf32>
      tpu.vector_store %arg5[%c0_12, %c0_13], %13 {strides = array<i32>} : memref<256x128xf32, #tpu.memory_space<vmem>>, vector<256x128xf32>,
    } else {
    }
    return
  }
  func.func @transform_0(%arg0: i32, %arg1: i32, %arg2: i32) -> (i32, i32) {
    %c0_i32 = arith.constant 0 : i32
    return %arg0, %arg2 : i32, i32
  }
  func.func @transform_1(%arg0: i32, %arg1: i32, %arg2: i32) -> (i32, i32) {
    %c0_i32 = arith.constant 0 : i32
    return %arg2, %arg1 : i32, i32
  }
  func.func @transform_2(%arg0: i32, %arg1: i32, %arg2: i32) -> (i32, i32) {
    %c0_i32 = arith.constant 0 : i32
    return %arg0, %arg1 : i32, i32
  }
}

</mosaic_0001>

<llo_original>
// kernel: generator_forward.13
$region0: #{generator_forward.13}
  #allocation0 [shape = 'u32[]', space=smem, size = 0x4, offset = 0x4, fixed_abs, tag = 'smem constant byte address 0x4 - core index']
  #allocation1 [shape = 'u32[144,128]{1,0:T(1,128)}', space=vmem, size = 0x12000, scoped, tag = 'internal scratch']
  #allocation2 [shape = 'f32[16,256]{1,0:T(8,128)}', space=vmem, size = 0x4000, scoped, tag = 'scratch operand']
  %s0 = inlined_call_operand.vmem [shape: bf16[16,128], index: 0, kind: input, shape index: {}]
  %s1 = inlined_call_operand.vmem [shape: bf16[128,8192], index: 1, kind: input, shape index: {}]
  %s2 = inlined_call_operand.vmem [shape: f32[16,8192], index: 2, kind: output, shape index: {}]
  %s3 = sld [smem:[#allocation0]]
  $region106: #{generator_forward.13} parent=0
    _
  %s5 = ssub.s32 1, %s3
  %s6 = scalar_select 0, %s5, %s3
  $region1: #{generator_forward.13} parent=0
    #allocation3 [shape = 'u8[131072]{0}', space=vmem, size = 0x20000, scoped, tag = 'input window, operand 1']
    #allocation4 [shape = 'u8[32768]{0}', space=vmem, size = 0x8000, scoped, tag = 'output window, operand 0']
    loop: start=0, step=1, limit=34
    $region2: #{generator_forward.13} parent=1 // loop_pre_header
      _
    $region3: #{generator_forward.13} parent=1 // loop_header
      %s8 = sphi 0, %s12
      %p9 = scmp.ge.s32.totalorder %s8, 34
      %s15 = sphi 0, %s34
      %s16 = sphi 0, %s30
      %s17 = sphi 0, %s26
      %s18 = sphi 0, %s15
      %s19 = sphi 0, %s16
      %s20 = sphi 0, %s17
      %s21 = sphi 0, %s18
      %s22 = sphi 0, %s19
      %s23 = sphi 0, %s20
      %s39 = sphi 0, %s41
      %s42 = sphi 0, %s39
      %s43 = sphi 0, %s42
      %s59 = sphi 0, %s43
      %s67 = sphi 0, %s69
      %s70 = sphi 0, %s67
      %s71 = sphi 0, %s70
      %s87 = sphi 0, %s71
      %s95 = sphi 0, %s97
      %s98 = sphi 0, %s95
      %s99 = sphi 0, %s98
      %s115 = sphi 0, %s99
    $region4: #{generator_forward.13} parent=1 // loop_header_branch
      %11 = sbr.rel (%p9) target = $region8
    $region5: #{generator_forward.13} parent=1 // loop_body
      %s13 = ssub.s32 %s8, 1
      %s14 = ssub.s32 %s8, 2
      %s24 = sadd.s32 1, %s17
      %p25 = scmp.ge.s32.totalorder %s24, 1
      %s26 = scalar_select %p25, 0, %s24
      %s27 = sadd.s32 1, %s16
      %s28 = scalar_select %p25, %s27, %s16
      %p29 = scmp.ge.s32.totalorder %s28, 32
      %s30 = scalar_select %p29, 0, %s28
      %s31 = sadd.s32 1, %s15
      %s32 = scalar_select %p29, %s31, %s15
      %p33 = scmp.ge.s32.totalorder %s32, 1
      %s34 = scalar_select %p33, 0, %s32
      %s35 = ssub.s32 %s15, %s34
      %s36 = ssub.s32 %s17, %s26
      %s37 = sor.u32 %s35, %s36
      %p38 = scmp.eq.s32.totalorder %s37, 0
      %s40 = sadd.s32 %s39, 1
      %s41 = scalar_select %p38, %s39, %s40
      %p44 = pneg %p38
      %p45 = scmp.eq.s32.totalorder %s8, 31
      %p46 = por %p44, %p45
      %p47 = scmp.ne.s32.totalorder %s39, %s42
      %p48 = scmp.eq.s32.totalorder %s8, 0
      %p49 = por %p47, %p48
      %p50 = scmp.ne.s32.totalorder %s39, %s42
      %p51 = scmp.eq.s32.totalorder %s13, 31
      %p52 = por %p50, %p51
      %p53 = scmp.ne.s32.totalorder %s42, %s43
      %p54 = scmp.eq.s32.totalorder %s13, 0
      %p55 = por %p53, %p54
      %p56 = scmp.ne.s32.totalorder %s42, %s43
      %p57 = scmp.eq.s32.totalorder %s14, 31
      %p58 = por %p56, %p57
      %p60 = scmp.ne.s32.totalorder %s43, %s59
      %p61 = scmp.eq.s32.totalorder %s14, 0
      %p62 = por %p60, %p61
      %s63 = ssub.s32 %s17, %s26
      %s64 = ssub.s32 %s16, %s30
      %s65 = sor.u32 %s63, %s64
      %p66 = scmp.eq.s32.totalorder %s65, 0
      %s68 = sadd.s32 %s67, 1
      %s69 = scalar_select %p66, %s67, %s68
      %p72 = pneg %p66
      %p73 = scmp.eq.s32.totalorder %s8, 31
      %p74 = por %p72, %p73
      %p75 = scmp.ne.s32.totalorder %s67, %s70
      %p76 = scmp.eq.s32.totalorder %s8, 0
      %p77 = por %p75, %p76
      %p78 = scmp.ne.s32.totalorder %s67, %s70
      %p79 = scmp.eq.s32.totalorder %s13, 31
      %p80 = por %p78, %p79
      %p81 = scmp.ne.s32.totalorder %s70, %s71
      %p82 = scmp.eq.s32.totalorder %s13, 0
      %p83 = por %p81, %p82
      %p84 = scmp.ne.s32.totalorder %s70, %s71
      %p85 = scmp.eq.s32.totalorder %s14, 31
      %p86 = por %p84, %p85
      %p88 = scmp.ne.s32.totalorder %s71, %s87
      %p89 = scmp.eq.s32.totalorder %s14, 0
      %p90 = por %p88, %p89
      %s91 = ssub.s32 %s15, %s34
      %s92 = ssub.s32 %s16, %s30
      %s93 = sor.u32 %s91, %s92
      %p94 = scmp.eq.s32.totalorder %s93, 0
      %s96 = sadd.s32 %s95, 1
      %s97 = scalar_select %p94, %s95, %s96
      %p100 = pneg %p94
      %p101 = scmp.eq.s32.totalorder %s8, 31
      %p102 = por %p100, %p101
      %p103 = scmp.ne.s32.totalorder %s95, %s98
      %p104 = scmp.eq.s32.totalorder %s8, 0
      %p105 = por %p103, %p104
      %p106 = scmp.ne.s32.totalorder %s95, %s98
      %p107 = scmp.eq.s32.totalorder %s13, 31
      %p108 = por %p106, %p107
      %p109 = scmp.ne.s32.totalorder %s98, %s99
      %p110 = scmp.eq.s32.totalorder %s13, 0
      %p111 = por %p109, %p110
      %p112 = scmp.ne.s32.totalorder %s98, %s99
      %p113 = scmp.eq.s32.totalorder %s14, 31
      %p114 = por %p112, %p113
      %p116 = scmp.ne.s32.totalorder %s99, %s115
      %p117 = scmp.eq.s32.totalorder %s14, 0
      %p118 = por %p116, %p117
      %p119 = scmp.le.s32.totalorder 1, %s8
      %p120 = scmp.lt.s32.totalorder %s8, 33
      %p121 = pnand %p119, %p120
      %p122 = pneg %p121
      // Predicated region
      $region9: #{generator_forward.13} parent=5 // pred_check
        _
      $region10: #{generator_forward.13} parent=5 // pred_check_branch
        %124 = sbr.rel (%p121) target = $region12
      $region11: #{generator_forward.13} parent=5 // pred_region
        %s125 = ssub.s32 %s8, 1
        // Predicated region
        $region13: #{generator_forward.13} parent=11 // pred_check
          %p126 = pneg %p55
        $region14: #{generator_forward.13} parent=11 // pred_check_branch
          %128 = sbr.rel (%p126) target = $region16
        $region15: #{generator_forward.13} parent=11 // pred_region
          %s129 = smul.u32 2, %s18
          %p130 = scmp.lt.s32.totalorder %s129, 1
          %s131 = scalar_select %p130, %s129, 1
          %p132 = scmp.lt.s32.totalorder %s20, 0
          %s133 = scalar_select %p132, %s20, 0
          %s134 = sadd.s32 %s133, %s131
          %s135 = smul.addr %s134, 4
          %s136 = scalar_lea.vmem %s0, %s135
          %s137 = smul.u32 2, %s18
        $region16: #{generator_forward.13} parent=11 // pred_fallthru
          _
      $region12: #{generator_forward.13} parent=5 // pred_fallthru
        _
      %p138 = scmp.lt.s32.totalorder %s8, 32
      // Predicated region
      $region17: #{generator_forward.13} parent=5 // pred_check
        %p139 = pneg %p138
      $region18: #{generator_forward.13} parent=5 // pred_check_branch
        %141 = sbr.rel (%p139) target = $region20
      $region19: #{generator_forward.13} parent=5 // pred_region
        // Predicated region
        $region21: #{generator_forward.13} parent=19 // pred_check
          %p142 = pneg %p77
        $region22: #{generator_forward.13} parent=19 // pred_check_branch
          %144 = sbr.rel (%p142) target = $region24
        $region23: #{generator_forward.13} parent=19 // pred_region
          %s145 = sand.u32 %s67, 1
          %s146 = sand.u32 %s67, 1
          %s147 = smul.addr %s146, 128
          %s148 = scalar_lea.vmem [#allocation3], %s147
          %s149 = smul.u32 16, %s17
          %s150 = smul.u32 2, %s16
          %s151 = smul.addr %s149, 64
          %s152 = sadd.s32 %s150, %s151
          %s153 = smul.addr %s152, 4
          %s154 = scalar_lea.vmem %s1, %s153
          // Predicated region
          $region25: #{generator_forward.13} parent=23 // pred_check
            _
          $region26: #{generator_forward.13} parent=23 // pred_check_branch
            %156 = sbr.rel (0) target = $region28
          $region27: #{generator_forward.13} parent=23 // pred_region
            // Predicated region
            $region29: #{generator_forward.13} parent=27 // pred_check
              _
            $region30: #{generator_forward.13} parent=27 // pred_check_branch
              %158 = sbr.rel (0) target = $region32
            $region31: #{generator_forward.13} parent=27 // pred_region
              // Predicated region
              $region44: #{generator_forward.13} parent=31 // pred_check
                _
              $region45: #{generator_forward.13} parent=31 // pred_check_branch
                %203 = sbr.rel (0) target = $region47
              $region46: #{generator_forward.13} parent=31 // pred_region
                loop: start=0, step=1, limit=1
                $region48: #{generator_forward.13} parent=46 // loop_pre_header
                  _
                $region49: #{generator_forward.13} parent=46 // loop_header
                  %s205 = sphi 0, %s209
                  %p206 = scmp.ge.s32.totalorder %s205, 1
                  %s210 = sphi %s154, %s154
                  %s211 = sphi %s148, %s148
                $region50: #{generator_forward.13} parent=46 // loop_header_branch
                  %208 = sbr.rel (%p206) target = $region54
                $region51: #{generator_forward.13} parent=46 // loop_body
                  %v212 = vld [vmem:[%s210] sm:$0xff]
                  %213 = vst [vmem:[%s211] sm:$0xff] %v212
                  %v214 = vld [vmem:[%s210 + $0x100] sm:$0xff]
                  %215 = vst [vmem:[%s211 + $0x8] sm:$0xff] %v214
                  %v216 = vld [vmem:[%s210 + $0x200] sm:$0xff]
                  %217 = vst [vmem:[%s211 + $0x10] sm:$0xff] %v216
                  %v218 = vld [vmem:[%s210 + $0x300] sm:$0xff]
                  %219 = vst [vmem:[%s211 + $0x18] sm:$0xff] %v218
                  %v220 = vld [vmem:[%s210 + $0x400] sm:$0xff]
                  %221 = vst [vmem:[%s211 + $0x20] sm:$0xff] %v220
                  %v222 = vld [vmem:[%s210 + $0x500] sm:$0xff]
                  %223 = vst [vmem:[%s211 + $0x28] sm:$0xff] %v222
                  %v224 = vld [vmem:[%s210 + $0x600] sm:$0xff]
                  %225 = vst [vmem:[%s211 + $0x30] sm:$0xff] %v224
                  %v226 = vld [vmem:[%s210 + $0x700] sm:$0xff]
                  %227 = vst [vmem:[%s211 + $0x38] sm:$0xff] %v226
                  %v228 = vld [vmem:[%s210 + $0x800] sm:$0xff]
                  %229 = vst [vmem:[%s211 + $0x40] sm:$0xff] %v228
                  %v230 = vld [vmem:[%s210 + $0x900] sm:$0xff]
                  %231 = vst [vmem:[%s211 + $0x48] sm:$0xff] %v230
                  %v232 = vld [vmem:[%s210 + $0xa00] sm:$0xff]
                  %233 = vst [vmem:[%s211 + $0x50] sm:$0xff] %v232
                  %v234 = vld [vmem:[%s210 + $0xb00] sm:$0xff]
                  %235 = vst [vmem:[%s211 + $0x58] sm:$0xff] %v234
                  %v236 = vld [vmem:[%s210 + $0xc00] sm:$0xff]
                  %237 = vst [vmem:[%s211 + $0x60] sm:$0xff] %v236
                  %v238 = vld [vmem:[%s210 + $0xd00] sm:$0xff]
                  %239 = vst [vmem:[%s211 + $0x68] sm:$0xff] %v238
                  %v240 = vld [vmem:[%s210 + $0xe00] sm:$0xff]
                  %241 = vst [vmem:[%s211 + $0x70] sm:$0xff] %v240
                  %v242 = vld [vmem:[%s210 + $0xf00] sm:$0xff]
                  %243 = vst [vmem:[%s211 + $0x78] sm:$0xff] %v242
                $region52: #{generator_forward.13} parent=46 // loop_footer
                  %s209 = sadd.s32 1, %s205
                $region53: #{generator_forward.13} parent=46 // loop_footer_branch
                  %204 = sbr.rel target = $region49
                $region54: #{generator_forward.13} parent=46 // loop_exit
                  _
              $region47: #{generator_forward.13} parent=31 // pred_fallthru
                _
              // Predicated region
              $region55: #{generator_forward.13} parent=31 // pred_check
                _
              $region56: #{generator_forward.13} parent=31 // pred_check_branch
                %245 = sbr.rel target = $region58
              $region57: #{generator_forward.13} parent=31 // pred_region
                _
              $region58: #{generator_forward.13} parent=31 // pred_fallthru
                _
            $region32: #{generator_forward.13} parent=27 // pred_fallthru
              _
            // Predicated region
            $region33: #{generator_forward.13} parent=27 // pred_check
              _
            $region34: #{generator_forward.13} parent=27 // pred_check_branch
              %160 = sbr.rel target = $region36
            $region35: #{generator_forward.13} parent=27 // pred_region
              loop: start=0, step=1, limit=1
              $region37: #{generator_forward.13} parent=35 // loop_pre_header
                _
              $region38: #{generator_forward.13} parent=35 // loop_header
                %s163 = sphi 0, %s167
                %p164 = scmp.ge.s32.totalorder %s163, 1
                %s168 = sphi %s154, %s154
                %s169 = sphi %s148, %s148
              $region39: #{generator_forward.13} parent=35 // loop_header_branch
                %166 = sbr.rel (%p164) target = $region43
              $region40: #{generator_forward.13} parent=35 // loop_body
                %v170 = vld [vmem:[%s168] sm:$0xff]
                %171 = vst [vmem:[%s169] sm:$0xff] %v170
                %v172 = vld [vmem:[%s168 + $0x100] sm:$0xff]
                %173 = vst [vmem:[%s169 + $0x8] sm:$0xff] %v172
                %v174 = vld [vmem:[%s168 + $0x200] sm:$0xff]
                %175 = vst [vmem:[%s169 + $0x10] sm:$0xff] %v174
                %v176 = vld [vmem:[%s168 + $0x300] sm:$0xff]
                %177 = vst [vmem:[%s169 + $0x18] sm:$0xff] %v176
                %v178 = vld [vmem:[%s168 + $0x400] sm:$0xff]
                %179 = vst [vmem:[%s169 + $0x20] sm:$0xff] %v178
                %v180 = vld [vmem:[%s168 + $0x500] sm:$0xff]
                %181 = vst [vmem:[%s169 + $0x28] sm:$0xff] %v180
                %v182 = vld [vmem:[%s168 + $0x600] sm:$0xff]
                %183 = vst [vmem:[%s169 + $0x30] sm:$0xff] %v182
                %v184 = vld [vmem:[%s168 + $0x700] sm:$0xff]
                %185 = vst [vmem:[%s169 + $0x38] sm:$0xff] %v184
                %v186 = vld [vmem:[%s168 + $0x800] sm:$0xff]
                %187 = vst [vmem:[%s169 + $0x40] sm:$0xff] %v186
                %v188 = vld [vmem:[%s168 + $0x900] sm:$0xff]
                %189 = vst [vmem:[%s169 + $0x48] sm:$0xff] %v188
                %v190 = vld [vmem:[%s168 + $0xa00] sm:$0xff]
                %191 = vst [vmem:[%s169 + $0x50] sm:$0xff] %v190
                %v192 = vld [vmem:[%s168 + $0xb00] sm:$0xff]
                %193 = vst [vmem:[%s169 + $0x58] sm:$0xff] %v192
                %v194 = vld [vmem:[%s168 + $0xc00] sm:$0xff]
                %195 = vst [vmem:[%s169 + $0x60] sm:$0xff] %v194
                %v196 = vld [vmem:[%s168 + $0xd00] sm:$0xff]
                %197 = vst [vmem:[%s169 + $0x68] sm:$0xff] %v196
                %v198 = vld [vmem:[%s168 + $0xe00] sm:$0xff]
                %199 = vst [vmem:[%s169 + $0x70] sm:$0xff] %v198
                %v200 = vld [vmem:[%s168 + $0xf00] sm:$0xff]
                %201 = vst [vmem:[%s169 + $0x78] sm:$0xff] %v200
              $region41: #{generator_forward.13} parent=35 // loop_footer
                %s167 = sadd.s32 1, %s163
              $region42: #{generator_forward.13} parent=35 // loop_footer_branch
                %162 = sbr.rel target = $region38
              $region43: #{generator_forward.13} parent=35 // loop_exit
                _
            $region36: #{generator_forward.13} parent=27 // pred_fallthru
              _
          $region28: #{generator_forward.13} parent=23 // pred_fallthru
            _
          %246 = vnop
        $region24: #{generator_forward.13} parent=19 // pred_fallthru
          _
      $region20: #{generator_forward.13} parent=5 // pred_fallthru
        _
      %p247 = scmp.le.s32.totalorder 1, %s8
      %p248 = scmp.lt.s32.totalorder %s8, 33
      %p249 = pnand %p247, %p248
      %p250 = pneg %p249
      // Predicated region
      $region59: #{generator_forward.13} parent=5 // pred_check
        _
      $region60: #{generator_forward.13} parent=5 // pred_check_branch
        %252 = sbr.rel (%p249) target = $region62
      $region61: #{generator_forward.13} parent=5 // pred_region
        %s253 = ssub.s32 %s8, 1
        %s254 = sand.u32 %s70, 1
        %s255 = sand.u32 %s70, 1
        %s256 = smul.addr %s255, 128
        %s257 = scalar_lea.vmem [#allocation3], %s256
        // Predicated region
        $region63: #{generator_forward.13} parent=61 // pred_check
          %p258 = pneg %p83
        $region64: #{generator_forward.13} parent=61 // pred_check_branch
          %260 = sbr.rel (%p258) target = $region66
        $region65: #{generator_forward.13} parent=61 // pred_region
          _
        $region66: #{generator_forward.13} parent=61 // pred_fallthru
          _
        %s261 = smul.u32 2, %s18
        %p262 = scmp.lt.s32.totalorder %s261, 1
        %s263 = scalar_select %p262, %s261, 1
        %p264 = scmp.lt.s32.totalorder %s20, 0
        %s265 = scalar_select %p264, %s20, 0
        %s266 = sadd.s32 %s265, %s263
        %s267 = smul.addr %s266, 4
        %s268 = scalar_lea.vmem %s0, %s267
        %p269 = pneg %p55
        %p270 = pneg %p52
        %s271 = sand.u32 %s70, 1
        %s272 = sand.u32 %s70, 1
        %s273 = smul.addr %s272, 128
        %s274 = scalar_lea.vmem [#allocation3], %s273
        %p275 = pneg %p83
        %p276 = pneg %p80
        %p277 = pneg %p111
        %p278 = pneg %p108
        %s279 = sand.u32 %s98, 1
        %s280 = sand.u32 %s98, 1
        %s281 = smul.addr %s280, 32
        %s282 = scalar_lea.vmem [#allocation4], %s281
        %s283 = smul.u32 2, %s18
        %p284 = scmp.lt.s32.totalorder %s283, 1
        %s285 = scalar_select %p284, %s283, 1
        %p286 = scmp.lt.s32.totalorder %s20, 0
        %s287 = scalar_select %p286, %s20, 0
        %s288 = sadd.s32 %s287, %s285
        %s289 = smul.addr %s288, 4
        %s290 = scalar_lea.vmem %s0, %s289
        %s291 = smul.u32 2, %s18
        %s292 = smul.u32 16, %s20
        %s293 = smul.u32 2, %s19
        %s294 = smul.u32 2, %s18
        %s295 = smul.u32 2, %s19
        %p297 = scmp.eq.s32.totalorder %s20, 0
        // Predicated region
        $region67: #{generator_forward.13} parent=61 // pred_check
          %p298 = pneg %p297
        $region68: #{generator_forward.13} parent=61 // pred_check_branch
          %300 = sbr.rel (%p298) target = $region70
        $region69: #{generator_forward.13} parent=61 // pred_region
          %301 = vst [vmem:[#allocation2] sm:$0xff] 0.0
          %302 = vst [vmem:[#allocation2 + $0x8] sm:$0xff] 0.0
          %303 = vst [vmem:[#allocation2 + $0x10] sm:$0xff] 0.0
          %304 = vst [vmem:[#allocation2 + $0x18] sm:$0xff] 0.0
        $region70: #{generator_forward.13} parent=61 // pred_fallthru
          _
        %v305 = vld [vmem:[#allocation2] sm:$0xff]
        %v306 = vld [vmem:[#allocation2 + $0x8] sm:$0xff]
        %v307 = vld [vmem:[#allocation2 + $0x10] sm:$0xff]
        %v308 = vld [vmem:[#allocation2 + $0x18] sm:$0xff]
        %v309 = vld [vmem:[%s290] sm:$0xf]
        %v310 = vld [vmem:[%s290 + $0x4] sm:$0xf]
        %v311 = vld [vmem:[%s257] sm:$0xff]
        %v312 = vld [vmem:[%s257 + $0x8] sm:$0xff]
        %v313 = vld [vmem:[%s257 + $0x10] sm:$0xff]
        %v314 = vld [vmem:[%s257 + $0x18] sm:$0xff]
        %v315 = vld [vmem:[%s257 + $0x20] sm:$0xff]
        %v316 = vld [vmem:[%s257 + $0x28] sm:$0xff]
        %v317 = vld [vmem:[%s257 + $0x30] sm:$0xff]
        %v318 = vld [vmem:[%s257 + $0x38] sm:$0xff]
        %v319 = vld [vmem:[%s257 + $0x40] sm:$0xff]
        %v320 = vld [vmem:[%s257 + $0x48] sm:$0xff]
        %v321 = vld [vmem:[%s257 + $0x50] sm:$0xff]
        %v322 = vld [vmem:[%s257 + $0x58] sm:$0xff]
        %v323 = vld [vmem:[%s257 + $0x60] sm:$0xff]
        %v324 = vld [vmem:[%s257 + $0x68] sm:$0xff]
        %v325 = vld [vmem:[%s257 + $0x70] sm:$0xff]
        %v326 = vld [vmem:[%s257 + $0x78] sm:$0xff]
        %v329 = vunpack.c.l.b16 %v309
        %v330 = vunpack.c.l.b16 %v310
        %v331 = vpack.c.b16 %v330, %v329
        %v349 = vunpack.c.l.b16 %v311
        %v350 = vunpack.c.h.b16 %v311
        %v351 = vunpack.c.l.b16 %v312
        %v352 = vunpack.c.h.b16 %v312
        %v353 = vunpack.c.l.b16 %v313
        %v354 = vunpack.c.h.b16 %v313
        %v355 = vunpack.c.l.b16 %v314
        %v356 = vunpack.c.h.b16 %v314
        %v357 = vunpack.c.l.b16 %v315
        %v358 = vunpack.c.h.b16 %v315
        %v359 = vunpack.c.l.b16 %v316
        %v360 = vunpack.c.h.b16 %v316
        %v361 = vunpack.c.l.b16 %v317
        %v362 = vunpack.c.h.b16 %v317
        %v363 = vunpack.c.l.b16 %v318
        %v364 = vunpack.c.h.b16 %v318
        %v365 = vunpack.c.l.b16 %v319
        %v366 = vunpack.c.h.b16 %v319
        %v367 = vunpack.c.l.b16 %v320
        %v368 = vunpack.c.h.b16 %v320
        %v369 = vunpack.c.l.b16 %v321
        %v370 = vunpack.c.h.b16 %v321
        %v371 = vunpack.c.l.b16 %v322
        %v372 = vunpack.c.h.b16 %v322
        %v373 = vunpack.c.l.b16 %v323
        %v374 = vunpack.c.h.b16 %v323
        %v375 = vunpack.c.l.b16 %v324
        %v376 = vunpack.c.h.b16 %v324
        %v377 = vunpack.c.l.b16 %v325
        %v378 = vunpack.c.h.b16 %v325
        %v379 = vunpack.c.l.b16 %v326
        %v380 = vunpack.c.h.b16 %v326
        %v381 = vpack.c.b16 %v351, %v349
        %v382 = vpack.c.b16 %v352, %v350
        %v383 = vpack.c.b16 %v355, %v353
        %v384 = vpack.c.b16 %v356, %v354
        %v385 = vpack.c.b16 %v359, %v357
        %v386 = vpack.c.b16 %v360, %v358
        %v387 = vpack.c.b16 %v363, %v361
        %v388 = vpack.c.b16 %v364, %v362
        %v389 = vpack.c.b16 %v367, %v365
        %v390 = vpack.c.b16 %v368, %v366
        %v391 = vpack.c.b16 %v371, %v369
        %v392 = vpack.c.b16 %v372, %v370
        %v393 = vpack.c.b16 %v375, %v373
        %v394 = vpack.c.b16 %v376, %v374
        %v395 = vpack.c.b16 %v379, %v377
        %v396 = vpack.c.b16 %v380, %v378
        %413 = vmatprep.subr.bf16.mxu0 %v382
        %414 = vmatpush1.bf16.msra.mxu0 %v381
        %415 = vmatprep.subr.bf16.mxu0 %v384
        %416 = vmatpush1.bf16.msra.mxu0 %v383
        %417 = vmatprep.subr.bf16.mxu0 %v386
        %418 = vmatpush1.bf16.msra.mxu0 %v385
        %419 = vmatprep.subr.bf16.mxu0 %v388
        %420 = vmatpush1.bf16.msra.mxu0 %v387
        %421 = vmatprep.subr.bf16.mxu0 %v390
        %422 = vmatpush1.bf16.msra.mxu0 %v389
        %423 = vmatprep.subr.bf16.mxu0 %v392
        %424 = vmatpush1.bf16.msra.mxu0 %v391
        %425 = vmatprep.subr.bf16.mxu0 %v394
        %426 = vmatpush1.bf16.msra.mxu0 %v393
        %427 = vmatprep.subr.bf16.mxu0 %v396
        %428 = vmatpush1.bf16.msra.mxu0 %v395
        %429 = vmatprep.subr.bf16.mxu0 0
        %430 = vmatpush1.bf16.msra.mxu0 0
        %431 = vmatprep.subr.bf16.mxu0 0
        %432 = vmatpush1.bf16.msra.mxu0 0
        %433 = vmatprep.subr.bf16.mxu0 0
        %434 = vmatpush1.bf16.msra.mxu0 0
        %435 = vmatprep.subr.bf16.mxu0 0
        %436 = vmatpush1.bf16.msra.mxu0 0
        %437 = vmatprep.subr.bf16.mxu0 0
        %438 = vmatpush1.bf16.msra.mxu0 0
        %439 = vmatprep.subr.bf16.mxu0 0
        %440 = vmatpush1.bf16.msra.mxu0 0
        %441 = vmatprep.subr.bf16.mxu0 0
        %442 = vmatpush1.bf16.msra.mxu0 0
        %443 = vmatprep.subr.bf16.mxu0 0
        %444 = vmatpush1.bf16.msra.mxu0 0
        %445 = vmatprep.mubr.bf16.mxu0 0
        %446 = vmatmul.mubr.bf16.gmra.mrb[0].mxu0 %v331
        %v447 = vpop.f32.mrb[0].mxu0
        %v448 = vadd.f32 0.0, %v447
        %v449 = vpop.f32.mrb[0].mxu0
        %v450 = vadd.f32 0.0, %v449
        %v451 = vpop.f32.mrb[0].mxu0
        %v452 = vadd.f32 0.0, %v451
        %v453 = vpop.f32.mrb[0].mxu0
        %v454 = vadd.f32 0.0, %v453
        %455 = vdwg.mxu0
        %v456 = vadd.f32 %v305, %v448
        %v457 = vadd.f32 %v306, %v450
        %v458 = vadd.f32 %v307, %v452
        %v459 = vadd.f32 %v308, %v454
        %460 = vst [vmem:[#allocation2] sm:$0xff] %v456
        %461 = vst [vmem:[#allocation2 + $0x8] sm:$0xff] %v457
        %462 = vst [vmem:[#allocation2 + $0x10] sm:$0xff] %v458
        %463 = vst [vmem:[#allocation2 + $0x18] sm:$0xff] %v459
        // Predicated region
        $region71: #{generator_forward.13} parent=61 // pred_check
          %p464 = pneg %p297
        $region72: #{generator_forward.13} parent=61 // pred_check_branch
          %466 = sbr.rel (%p464) target = $region74
        $region73: #{generator_forward.13} parent=61 // pred_region
          %v467 = vld [vmem:[#allocation2] sm:$0xff]
          %v468 = vld [vmem:[#allocation2 + $0x8] sm:$0xff]
          %v469 = vld [vmem:[#allocation2 + $0x10] sm:$0xff]
          %v470 = vld [vmem:[#allocation2 + $0x18] sm:$0xff]
          %471 = vst [vmem:[%s282] sm:$0xff] %v467
          %472 = vst [vmem:[%s282 + $0x8] sm:$0xff] %v468
          %473 = vst [vmem:[%s282 + $0x10] sm:$0xff] %v469
          %474 = vst [vmem:[%s282 + $0x18] sm:$0xff] %v470
        $region74: #{generator_forward.13} parent=61 // pred_fallthru
          _
        %s475 = sand.u32 %s98, 1
        %s476 = sand.u32 %s98, 1
        %s477 = smul.addr %s476, 32
        %s478 = scalar_lea.vmem [#allocation4], %s477
        // Predicated region
        $region75: #{generator_forward.13} parent=61 // pred_check
          %p479 = pneg %p108
        $region76: #{generator_forward.13} parent=61 // pred_check_branch
          %481 = sbr.rel (%p479) target = $region78
        $region77: #{generator_forward.13} parent=61 // pred_region
          %s482 = smul.u32 2, %s18
          %s483 = smul.u32 2, %s19
          %s484 = smul.addr %s482, 64
          %s485 = sadd.s32 %s483, %s484
          %s486 = smul.addr %s485, 8
          %s487 = scalar_lea.vmem %s2, %s486
          // Predicated region
          $region79: #{generator_forward.13} parent=77 // pred_check
            _
          $region80: #{generator_forward.13} parent=77 // pred_check_branch
            %489 = sbr.rel (0) target = $region82
          $region81: #{generator_forward.13} parent=77 // pred_region
            // Predicated region
            $region83: #{generator_forward.13} parent=81 // pred_check
              _
            $region84: #{generator_forward.13} parent=81 // pred_check_branch
              %491 = sbr.rel (0) target = $region86
            $region85: #{generator_forward.13} parent=81 // pred_region
              loop: start=0, step=1, limit=1
              $region87: #{generator_forward.13} parent=85 // loop_pre_header
                _
              $region88: #{generator_forward.13} parent=85 // loop_header
                %s493 = sphi 0, %s497
                %p494 = scmp.ge.s32.totalorder %s493, 1
                %s498 = sphi %s478, %s478
                %s499 = sphi %s487, %s487
              $region89: #{generator_forward.13} parent=85 // loop_header_branch
                %496 = sbr.rel (%p494) target = $region93
              $region90: #{generator_forward.13} parent=85 // loop_body
                %v500 = vld [vmem:[%s498] sm:$0xff]
                %501 = vst [vmem:[%s499] sm:$0xff] %v500
                %v502 = vld [vmem:[%s498 + $0x8] sm:$0xff]
                %503 = vst [vmem:[%s499 + $0x8] sm:$0xff] %v502
                %v504 = vld [vmem:[%s498 + $0x10] sm:$0xff]
                %505 = vst [vmem:[%s499 + $0x200] sm:$0xff] %v504
                %v506 = vld [vmem:[%s498 + $0x18] sm:$0xff]
                %507 = vst [vmem:[%s499 + $0x208] sm:$0xff] %v506
              $region91: #{generator_forward.13} parent=85 // loop_footer
                %s497 = sadd.s32 1, %s493
              $region92: #{generator_forward.13} parent=85 // loop_footer_branch
                %492 = sbr.rel target = $region88
              $region93: #{generator_forward.13} parent=85 // loop_exit
                _
            $region86: #{generator_forward.13} parent=81 // pred_fallthru
              _
            // Predicated region
            $region94: #{generator_forward.13} parent=81 // pred_check
              _
            $region95: #{generator_forward.13} parent=81 // pred_check_branch
              %509 = sbr.rel target = $region97
            $region96: #{generator_forward.13} parent=81 // pred_region
              _
            $region97: #{generator_forward.13} parent=81 // pred_fallthru
              _
          $region82: #{generator_forward.13} parent=77 // pred_fallthru
            _
          %510 = vnop
        $region78: #{generator_forward.13} parent=61 // pred_fallthru
          _
      $region62: #{generator_forward.13} parent=5 // pred_fallthru
        _
      %p511 = scmp.le.s32.totalorder 2, %s8
      // Predicated region
      $region98: #{generator_forward.13} parent=5 // pred_check
        %p512 = pneg %p511
      $region99: #{generator_forward.13} parent=5 // pred_check_branch
        %514 = sbr.rel (%p512) target = $region101
      $region100: #{generator_forward.13} parent=5 // pred_region
        %s515 = ssub.s32 %s8, 2
        // Predicated region
        $region102: #{generator_forward.13} parent=100 // pred_check
          %p516 = pneg %p114
        $region103: #{generator_forward.13} parent=100 // pred_check_branch
          %518 = sbr.rel (%p516) target = $region105
        $region104: #{generator_forward.13} parent=100 // pred_region
          %s519 = sand.u32 %s99, 1
          %s520 = sand.u32 %s99, 1
          %s521 = smul.addr %s520, 32
          %s522 = scalar_lea.vmem [#allocation4], %s521
        $region105: #{generator_forward.13} parent=100 // pred_fallthru
          _
      $region101: #{generator_forward.13} parent=5 // pred_fallthru
        _
    $region6: #{generator_forward.13} parent=1 // loop_footer
      %s12 = sadd.s32 1, %s8
    $region7: #{generator_forward.13} parent=1 // loop_footer_branch
      %7 = sbr.rel target = $region3
    $region8: #{generator_forward.13} parent=1 // loop_exit
      _

// kernel: generator_forward.14
$region0: #{generator_forward.14}
  #allocation0 [shape = 'u32[]', space=smem, size = 0x4, offset = 0x4, fixed_abs, tag = 'smem constant byte address 0x4 - core index']
  #allocation1 [shape = 'u32[144,128]{1,0:T(1,128)}', space=vmem, size = 0x12000, scoped, tag = 'internal scratch']
  %s0 = inlined_call_operand.vmem [shape: f32[32,512], index: 0, kind: input, shape index: {}]
  %s1 = inlined_call_operand.vmem [shape: f32[1,512], index: 1, kind: output, shape index: {0}]
  %s2 = inlined_call_operand.vmem [shape: f32[1,512], index: 2, kind: output, shape index: {1}]
  %3 = xla_tuple %s1, %s2
  %s4 = sld [smem:[#allocation0]]
  $region49: #{generator_forward.14} parent=0
    _
  %s6 = ssub.s32 1, %s4
  %s7 = scalar_select 0, %s6, %s4
  loop: start=0, step=1, limit=4
  $region2: #{generator_forward.14} parent=0 // loop_pre_header
    _
  $region3: #{generator_forward.14} parent=0 // loop_header
    %s9 = sphi 0, %s13
    %p10 = scmp.ge.s32.totalorder %s9, 4
    %s19 = sphi 0, %s21
    %s22 = sphi 0, %s19
    %s23 = sphi 0, %s22
    %s39 = sphi 0, %s23
    %s43 = sphi 0, %s43
    %s45 = sphi 0, %s43
    %s46 = sphi 0, %s45
    %s60 = sphi 0, %s46
    %s64 = sphi 0, %s64
    %s66 = sphi 0, %s64
    %s67 = sphi 0, %s66
    %s81 = sphi 0, %s67
  $region4: #{generator_forward.14} parent=0 // loop_header_branch
    %12 = sbr.rel (%p10) target = $region8
  $region5: #{generator_forward.14} parent=0 // loop_body
    %s14 = ssub.s32 %s9, 1
    %s15 = ssub.s32 %s9, 2
    %s16 = sadd.s32 %s9, 1
    %s17 = ssub.s32 %s9, %s16
    %p18 = scmp.eq.s32.totalorder %s17, 0
    %s20 = sadd.s32 %s19, 1
    %s21 = scalar_select %p18, %s19, %s20
    %p24 = pneg %p18
    %p25 = scmp.eq.s32.totalorder %s9, 1
    %p26 = por %p24, %p25
    %p27 = scmp.ne.s32.totalorder %s19, %s22
    %p28 = scmp.eq.s32.totalorder %s9, 0
    %p29 = por %p27, %p28
    %p30 = scmp.ne.s32.totalorder %s19, %s22
    %p31 = scmp.eq.s32.totalorder %s14, 1
    %p32 = por %p30, %p31
    %p33 = scmp.ne.s32.totalorder %s22, %s23
    %p34 = scmp.eq.s32.totalorder %s14, 0
    %p35 = por %p33, %p34
    %p36 = scmp.ne.s32.totalorder %s22, %s23
    %p37 = scmp.eq.s32.totalorder %s15, 1
    %p38 = por %p36, %p37
    %p40 = scmp.ne.s32.totalorder %s23, %s39
    %p41 = scmp.eq.s32.totalorder %s15, 0
    %p42 = por %p40, %p41
    %s44 = sadd.s32 %s43, 1
    %p47 = scmp.eq.s32.totalorder %s9, 1
    %p48 = scmp.ne.s32.totalorder %s43, %s45
    %p49 = scmp.eq.s32.totalorder %s9, 0
    %p50 = por %p48, %p49
    %p51 = scmp.ne.s32.totalorder %s43, %s45
    %p52 = scmp.eq.s32.totalorder %s14, 1
    %p53 = por %p51, %p52
    %p54 = scmp.ne.s32.totalorder %s45, %s46
    %p55 = scmp.eq.s32.totalorder %s14, 0
    %p56 = por %p54, %p55
    %p57 = scmp.ne.s32.totalorder %s45, %s46
    %p58 = scmp.eq.s32.totalorder %s15, 1
    %p59 = por %p57, %p58
    %p61 = scmp.ne.s32.totalorder %s46, %s60
    %p62 = scmp.eq.s32.totalorder %s15, 0
    %p63 = por %p61, %p62
    %s65 = sadd.s32 %s64, 1
    %p68 = scmp.eq.s32.totalorder %s9, 1
    %p69 = scmp.ne.s32.totalorder %s64, %s66
    %p70 = scmp.eq.s32.totalorder %s9, 0
    %p71 = por %p69, %p70
    %p72 = scmp.ne.s32.totalorder %s64, %s66
    %p73 = scmp.eq.s32.totalorder %s14, 1
    %p74 = por %p72, %p73
    %p75 = scmp.ne.s32.totalorder %s66, %s67
    %p76 = scmp.eq.s32.totalorder %s14, 0
    %p77 = por %p75, %p76
    %p78 = scmp.ne.s32.totalorder %s66, %s67
    %p79 = scmp.eq.s32.totalorder %s15, 1
    %p80 = por %p78, %p79
    %p82 = scmp.ne.s32.totalorder %s67, %s81
    %p83 = scmp.eq.s32.totalorder %s15, 0
    %p84 = por %p82, %p83
    %p85 = scmp.le.s32.totalorder 1, %s9
    %p86 = scmp.lt.s32.totalorder %s9, 3
    %p87 = pnand %p85, %p86
    %p88 = pneg %p87
    // Predicated region
    $region9: #{generator_forward.14} parent=5 // pred_check
      _
    $region10: #{generator_forward.14} parent=5 // pred_check_branch
      %90 = sbr.rel (%p87) target = $region12
    $region11: #{generator_forward.14} parent=5 // pred_region
      %s91 = ssub.s32 %s9, 1
    $region12: #{generator_forward.14} parent=5 // pred_fallthru
      _
    %p92 = scmp.lt.s32.totalorder %s9, 2
    // Predicated region
    $region13: #{generator_forward.14} parent=5 // pred_check
      %p93 = pneg %p92
    $region14: #{generator_forward.14} parent=5 // pred_check_branch
      %95 = sbr.rel (%p93) target = $region16
    $region15: #{generator_forward.14} parent=5 // pred_region
      // Predicated region
      $region17: #{generator_forward.14} parent=15 // pred_check
        %p96 = pneg %p29
      $region18: #{generator_forward.14} parent=15 // pred_check_branch
        %98 = sbr.rel (%p96) target = $region20
      $region19: #{generator_forward.14} parent=15 // pred_region
        %s99 = smul.u32 2, %s9
        %p100 = scmp.lt.s32.totalorder %s99, 3
        %s101 = scalar_select %p100, %s99, 3
        %s102 = smul.addr %s101, 4
        %s103 = smul.addr %s102, 8
        %s104 = scalar_lea.vmem %s0, %s103
        %s105 = smul.u32 2, %s9
      $region20: #{generator_forward.14} parent=15 // pred_fallthru
        _
    $region16: #{generator_forward.14} parent=5 // pred_fallthru
      _
    %p106 = scmp.le.s32.totalorder 1, %s9
    %p107 = scmp.lt.s32.totalorder %s9, 3
    %p108 = pnand %p106, %p107
    %p109 = pneg %p108
    // Predicated region
    $region21: #{generator_forward.14} parent=5 // pred_check
      _
    $region22: #{generator_forward.14} parent=5 // pred_check_branch
      %111 = sbr.rel (%p108) target = $region24
    $region23: #{generator_forward.14} parent=5 // pred_region
      %s112 = ssub.s32 %s9, 1
      %s113 = smul.u32 2, %s14
      %p114 = scmp.lt.s32.totalorder %s113, 3
      %s115 = scalar_select %p114, %s113, 3
      %s116 = smul.addr %s115, 4
      %s117 = smul.addr %s116, 8
      %s118 = scalar_lea.vmem %s0, %s117
      %p119 = pneg %p35
      %p120 = pneg %p32
      %p121 = pneg %p56
      %p122 = pneg %p53
      %p123 = pneg %p77
      %p124 = pneg %p74
      %s125 = smul.u32 2, %s14
      %p126 = scmp.lt.s32.totalorder %s125, 3
      %s127 = scalar_select %p126, %s125, 3
      %s128 = smul.addr %s127, 4
      %s129 = smul.addr %s128, 8
      %s130 = scalar_lea.vmem %s0, %s129
      %s131 = smul.u32 2, %s14
      %p132 = scmp.eq.s32.totalorder %s14, 0
      // Predicated region
      $region25: #{generator_forward.14} parent=23 // pred_check
        %p133 = pneg %p132
      $region26: #{generator_forward.14} parent=23 // pred_check_branch
        %135 = sbr.rel (%p133) target = $region28
      $region27: #{generator_forward.14} parent=23 // pred_region
        %v136 = vlaneseq
        %vm137 = vcmp.ge.s32.totalorder %v136, 0
        %vm138 = vcmp.lt.s32.totalorder %v136, 512
        %vm139 = vmand %vm137, %vm138
        %140 = vst.msk [vmem:[%s1] sm:$0xf] %vm139, 0.0
        %141 = vst.msk [vmem:[%s2] sm:$0xf] %vm139, 0.0
      $region28: #{generator_forward.14} parent=23 // pred_fallthru
        _
      %v142 = vld [vmem:[%s130] sm:$0xff]
      %v143 = vld [vmem:[%s130 + $0x8] sm:$0xff]
      %v144 = vld [vmem:[%s130 + $0x10] sm:$0xff]
      %v145 = vld [vmem:[%s130 + $0x18] sm:$0xff]
      %v146 = vld [vmem:[%s130 + $0x20] sm:$0xff]
      %v147 = vld [vmem:[%s130 + $0x28] sm:$0xff]
      %v148 = vld [vmem:[%s130 + $0x30] sm:$0xff]
      %v149 = vld [vmem:[%s130 + $0x38] sm:$0xff]
      %v150 = vld [vmem:[%s1] sm:$0xf]
      %v151 = vadd.f32 %v142, %v146
      %v152 = vrot.slane %v151, 4
      %v153 = vadd.f32 %v151, %v152
      %v154 = vrot.slane %v153, 2
      %v155 = vadd.f32 %v153, %v154
      %v156 = vrot.slane %v155, 1
      %v157 = vadd.f32 %v155, %v156
      %v158 = vadd.f32 %v143, %v147
      %v159 = vrot.slane %v158, 4
      %v160 = vadd.f32 %v158, %v159
      %v161 = vrot.slane %v160, 2
      %v162 = vadd.f32 %v160, %v161
      %v163 = vrot.slane %v162, 1
      %v164 = vadd.f32 %v162, %v163
      %v165 = vadd.f32 %v144, %v148
      %v166 = vrot.slane %v165, 4
      %v167 = vadd.f32 %v165, %v166
      %v168 = vrot.slane %v167, 2
      %v169 = vadd.f32 %v167, %v168
      %v170 = vrot.slane %v169, 1
      %v171 = vadd.f32 %v169, %v170
      %v172 = vadd.f32 %v145, %v149
      %v173 = vrot.slane %v172, 4
      %v174 = vadd.f32 %v172, %v173
      %v175 = vrot.slane %v174, 2
      %v176 = vadd.f32 %v174, %v175
      %v177 = vrot.slane %v176, 1
      %v178 = vadd.f32 %v176, %v177
      %v183 = vcombine.low %v157, %v164
      %v184 = vcombine.low %v171, %v178
      %v186 = vunpack.c.l.s4 1966171168
      %v187 = vunpack.c.0.s8 %v186
      %v188 = vlaneseq
      %v189 = vshrl.u32 %v188, 7
      %v190 = vsub.s32 %v187, %v189
      %v191 = vrot.slane %v183, %v190
      %v193 = vunpack.c.l.s4 1966171168
      %v194 = vunpack.c.0.s8 %v193
      %v195 = vlaneseq
      %v196 = vshrl.u32 %v195, 7
      %v197 = vsub.s32 %v194, %v196
      %v198 = vrot.slane %v184, %v197
      %v199 = vcombine.low %v191, %v198
      %v201 = vunpack.c.l.s4 1966171168
      %v202 = vunpack.c.0.s8 %v201
      %v203 = vlaneseq
      %v204 = vshrl.u32 %v203, 7
      %v205 = vsub.s32 %v202, %v204
      %v206 = vrot.slane %v199, %v205
      %v208 = vadd.f32 %v150, %v206
      %v209 = vlaneseq
      %vm210 = vcmp.ge.s32.totalorder %v209, 0
      %vm211 = vcmp.lt.s32.totalorder %v209, 512
      %vm212 = vmand %vm210, %vm211
      %213 = vst.msk [vmem:[%s1] sm:$0xf] %vm212, %v208
      %v214 = vld [vmem:[%s2] sm:$0xf]
      %v215 = vmul.f32 %v142, %v142
      %v216 = vmul.f32 %v143, %v143
      %v217 = vmul.f32 %v144, %v144
      %v218 = vmul.f32 %v145, %v145
      %v219 = vmul.f32 %v146, %v146
      %v220 = vmul.f32 %v147, %v147
      %v221 = vmul.f32 %v148, %v148
      %v222 = vmul.f32 %v149, %v149
      %v223 = vadd.f32 %v215, %v219
      %v224 = vrot.slane %v223, 4
      %v225 = vadd.f32 %v223, %v224
      %v226 = vrot.slane %v225, 2
      %v227 = vadd.f32 %v225, %v226
      %v228 = vrot.slane %v227, 1
      %v229 = vadd.f32 %v227, %v228
      %v230 = vadd.f32 %v216, %v220
      %v231 = vrot.slane %v230, 4
      %v232 = vadd.f32 %v230, %v231
      %v233 = vrot.slane %v232, 2
      %v234 = vadd.f32 %v232, %v233
      %v235 = vrot.slane %v234, 1
      %v236 = vadd.f32 %v234, %v235
      %v237 = vadd.f32 %v217, %v221
      %v238 = vrot.slane %v237, 4
      %v239 = vadd.f32 %v237, %v238
      %v240 = vrot.slane %v239, 2
      %v241 = vadd.f32 %v239, %v240
      %v242 = vrot.slane %v241, 1
      %v243 = vadd.f32 %v241, %v242
      %v244 = vadd.f32 %v218, %v222
      %v245 = vrot.slane %v244, 4
      %v246 = vadd.f32 %v244, %v245
      %v247 = vrot.slane %v246, 2
      %v248 = vadd.f32 %v246, %v247
      %v249 = vrot.slane %v248, 1
      %v250 = vadd.f32 %v248, %v249
      %v255 = vcombine.low %v229, %v236
      %v256 = vcombine.low %v243, %v250
      %v258 = vunpack.c.l.s4 1966171168
      %v259 = vunpack.c.0.s8 %v258
      %v260 = vlaneseq
      %v261 = vshrl.u32 %v260, 7
      %v262 = vsub.s32 %v259, %v261
      %v263 = vrot.slane %v255, %v262
      %v265 = vunpack.c.l.s4 1966171168
      %v266 = vunpack.c.0.s8 %v265
      %v267 = vlaneseq
      %v268 = vshrl.u32 %v267, 7
      %v269 = vsub.s32 %v266, %v268
      %v270 = vrot.slane %v256, %v269
      %v271 = vcombine.low %v263, %v270
      %v273 = vunpack.c.l.s4 1966171168
      %v274 = vunpack.c.0.s8 %v273
      %v275 = vlaneseq
      %v276 = vshrl.u32 %v275, 7
      %v277 = vsub.s32 %v274, %v276
      %v278 = vrot.slane %v271, %v277
      %v280 = vadd.f32 %v214, %v278
      %281 = vst.msk [vmem:[%s2] sm:$0xf] %vm212, %v280
      // Predicated region
      $region29: #{generator_forward.14} parent=23 // pred_check
        %p282 = pneg %p53
      $region30: #{generator_forward.14} parent=23 // pred_check_branch
        %284 = sbr.rel (%p282) target = $region32
      $region31: #{generator_forward.14} parent=23 // pred_region
        _
      $region32: #{generator_forward.14} parent=23 // pred_fallthru
        _
      // Predicated region
      $region33: #{generator_forward.14} parent=23 // pred_check
        %p285 = pneg %p74
      $region34: #{generator_forward.14} parent=23 // pred_check_branch
        %287 = sbr.rel (%p285) target = $region36
      $region35: #{generator_forward.14} parent=23 // pred_region
        _
      $region36: #{generator_forward.14} parent=23 // pred_fallthru
        _
      // Predicated region
      $region37: #{generator_forward.14} parent=23 // pred_check
        %p288 = pneg %p53
      $region38: #{generator_forward.14} parent=23 // pred_check_branch
        %290 = sbr.rel (%p288) target = $region40
      $region39: #{generator_forward.14} parent=23 // pred_region
        _
      $region40: #{generator_forward.14} parent=23 // pred_fallthru
        _
      // Predicated region
      $region41: #{generator_forward.14} parent=23 // pred_check
        %p291 = pneg %p74
      $region42: #{generator_forward.14} parent=23 // pred_check_branch
        %293 = sbr.rel (%p291) target = $region44
      $region43: #{generator_forward.14} parent=23 // pred_region
        _
      $region44: #{generator_forward.14} parent=23 // pred_fallthru
        _
    $region24: #{generator_forward.14} parent=5 // pred_fallthru
      _
    %p294 = scmp.le.s32.totalorder 2, %s9
    // Predicated region
    $region45: #{generator_forward.14} parent=5 // pred_check
      %p295 = pneg %p294
    $region46: #{generator_forward.14} parent=5 // pred_check_branch
      %297 = sbr.rel (%p295) target = $region48
    $region47: #{generator_forward.14} parent=5 // pred_region
      %s298 = ssub.s32 %s9, 2
    $region48: #{generator_forward.14} parent=5 // pred_fallthru
      _
  $region6: #{generator_forward.14} parent=0 // loop_footer
    %s13 = sadd.s32 1, %s9
  $region7: #{generator_forward.14} parent=0 // loop_footer_branch
    %8 = sbr.rel target = $region3
  $region8: #{generator_forward.14} parent=0 // loop_exit
    _

// kernel: generator_forward.15
$region0: #{generator_forward.15}
  #allocation0 [shape = 'u32[]', space=smem, size = 0x4, offset = 0x4, fixed_abs, tag = 'smem constant byte address 0x4 - core index']
  #allocation1 [shape = 'u32[144,128]{1,0:T(1,128)}', space=vmem, size = 0x12000, scoped, tag = 'internal scratch']
  %s0 = inlined_call_operand.vmem [shape: f32[32,512], index: 0, kind: input, shape index: {}]
  %s1 = inlined_call_operand.vmem [shape: f32[1,512], index: 1, kind: input, shape index: {}]
  %s2 = inlined_call_operand.vmem [shape: f32[1,512], index: 2, kind: input, shape index: {}]
  %s3 = inlined_call_operand.vmem [shape: bf16[32,512], index: 3, kind: output, shape index: {}]
  %s4 = sld [smem:[#allocation0]]
  $region45: #{generator_forward.15} parent=0
    _
  %s6 = ssub.s32 1, %s4
  %s7 = scalar_select 0, %s6, %s4
  loop: start=0, step=1, limit=4
  $region2: #{generator_forward.15} parent=0 // loop_pre_header
    _
  $region3: #{generator_forward.15} parent=0 // loop_header
    %s9 = sphi 0, %s13
    %p10 = scmp.ge.s32.totalorder %s9, 4
    %s19 = sphi 0, %s21
    %s22 = sphi 0, %s19
    %s23 = sphi 0, %s22
    %s39 = sphi 0, %s23
    %s43 = sphi 0, %s43
    %s45 = sphi 0, %s43
    %s46 = sphi 0, %s45
    %s60 = sphi 0, %s46
    %s64 = sphi 0, %s64
    %s66 = sphi 0, %s64
    %s67 = sphi 0, %s66
    %s81 = sphi 0, %s67
    %s87 = sphi 0, %s89
    %s90 = sphi 0, %s87
    %s91 = sphi 0, %s90
    %s107 = sphi 0, %s91
  $region4: #{generator_forward.15} parent=0 // loop_header_branch
    %12 = sbr.rel (%p10) target = $region8
  $region5: #{generator_forward.15} parent=0 // loop_body
    %s14 = ssub.s32 %s9, 1
    %s15 = ssub.s32 %s9, 2
    %s16 = sadd.s32 %s9, 1
    %s17 = ssub.s32 %s9, %s16
    %p18 = scmp.eq.s32.totalorder %s17, 0
    %s20 = sadd.s32 %s19, 1
    %s21 = scalar_select %p18, %s19, %s20
    %p24 = pneg %p18
    %p25 = scmp.eq.s32.totalorder %s9, 1
    %p26 = por %p24, %p25
    %p27 = scmp.ne.s32.totalorder %s19, %s22
    %p28 = scmp.eq.s32.totalorder %s9, 0
    %p29 = por %p27, %p28
    %p30 = scmp.ne.s32.totalorder %s19, %s22
    %p31 = scmp.eq.s32.totalorder %s14, 1
    %p32 = por %p30, %p31
    %p33 = scmp.ne.s32.totalorder %s22, %s23
    %p34 = scmp.eq.s32.totalorder %s14, 0
    %p35 = por %p33, %p34
    %p36 = scmp.ne.s32.totalorder %s22, %s23
    %p37 = scmp.eq.s32.totalorder %s15, 1
    %p38 = por %p36, %p37
    %p40 = scmp.ne.s32.totalorder %s23, %s39
    %p41 = scmp.eq.s32.totalorder %s15, 0
    %p42 = por %p40, %p41
    %s44 = sadd.s32 %s43, 1
    %p47 = scmp.eq.s32.totalorder %s9, 1
    %p48 = scmp.ne.s32.totalorder %s43, %s45
    %p49 = scmp.eq.s32.totalorder %s9, 0
    %p50 = por %p48, %p49
    %p51 = scmp.ne.s32.totalorder %s43, %s45
    %p52 = scmp.eq.s32.totalorder %s14, 1
    %p53 = por %p51, %p52
    %p54 = scmp.ne.s32.totalorder %s45, %s46
    %p55 = scmp.eq.s32.totalorder %s14, 0
    %p56 = por %p54, %p55
    %p57 = scmp.ne.s32.totalorder %s45, %s46
    %p58 = scmp.eq.s32.totalorder %s15, 1
    %p59 = por %p57, %p58
    %p61 = scmp.ne.s32.totalorder %s46, %s60
    %p62 = scmp.eq.s32.totalorder %s15, 0
    %p63 = por %p61, %p62
    %s65 = sadd.s32 %s64, 1
    %p68 = scmp.eq.s32.totalorder %s9, 1
    %p69 = scmp.ne.s32.totalorder %s64, %s66
    %p70 = scmp.eq.s32.totalorder %s9, 0
    %p71 = por %p69, %p70
    %p72 = scmp.ne.s32.totalorder %s64, %s66
    %p73 = scmp.eq.s32.totalorder %s14, 1
    %p74 = por %p72, %p73
    %p75 = scmp.ne.s32.totalorder %s66, %s67
    %p76 = scmp.eq.s32.totalorder %s14, 0
    %p77 = por %p75, %p76
    %p78 = scmp.ne.s32.totalorder %s66, %s67
    %p79 = scmp.eq.s32.totalorder %s15, 1
    %p80 = por %p78, %p79
    %p82 = scmp.ne.s32.totalorder %s67, %s81
    %p83 = scmp.eq.s32.totalorder %s15, 0
    %p84 = por %p82, %p83
    %s85 = ssub.s32 %s9, %s16
    %p86 = scmp.eq.s32.totalorder %s85, 0
    %s88 = sadd.s32 %s87, 1
    %s89 = scalar_select %p86, %s87, %s88
    %p92 = pneg %p86
    %p93 = scmp.eq.s32.totalorder %s9, 1
    %p94 = por %p92, %p93
    %p95 = scmp.ne.s32.totalorder %s87, %s90
    %p96 = scmp.eq.s32.totalorder %s9, 0
    %p97 = por %p95, %p96
    %p98 = scmp.ne.s32.totalorder %s87, %s90
    %p99 = scmp.eq.s32.totalorder %s14, 1
    %p100 = por %p98, %p99
    %p101 = scmp.ne.s32.totalorder %s90, %s91
    %p102 = scmp.eq.s32.totalorder %s14, 0
    %p103 = por %p101, %p102
    %p104 = scmp.ne.s32.totalorder %s90, %s91
    %p105 = scmp.eq.s32.totalorder %s15, 1
    %p106 = por %p104, %p105
    %p108 = scmp.ne.s32.totalorder %s91, %s107
    %p109 = scmp.eq.s32.totalorder %s15, 0
    %p110 = por %p108, %p109
    %p111 = scmp.le.s32.totalorder 1, %s9
    %p112 = scmp.lt.s32.totalorder %s9, 3
    %p113 = pnand %p111, %p112
    %p114 = pneg %p113
    // Predicated region
    $region9: #{generator_forward.15} parent=5 // pred_check
      _
    $region10: #{generator_forward.15} parent=5 // pred_check_branch
      %116 = sbr.rel (%p113) target = $region12
    $region11: #{generator_forward.15} parent=5 // pred_region
      %s117 = ssub.s32 %s9, 1
      // Predicated region
      $region13: #{generator_forward.15} parent=11 // pred_check
        %p118 = pneg %p56
      $region14: #{generator_forward.15} parent=11 // pred_check_branch
        %120 = sbr.rel (%p118) target = $region16
      $region15: #{generator_forward.15} parent=11 // pred_region
        _
      $region16: #{generator_forward.15} parent=11 // pred_fallthru
        _
      // Predicated region
      $region17: #{generator_forward.15} parent=11 // pred_check
        %p121 = pneg %p77
      $region18: #{generator_forward.15} parent=11 // pred_check_branch
        %123 = sbr.rel (%p121) target = $region20
      $region19: #{generator_forward.15} parent=11 // pred_region
        _
      $region20: #{generator_forward.15} parent=11 // pred_fallthru
        _
    $region12: #{generator_forward.15} parent=5 // pred_fallthru
      _
    %p124 = scmp.lt.s32.totalorder %s9, 2
    // Predicated region
    $region21: #{generator_forward.15} parent=5 // pred_check
      %p125 = pneg %p124
    $region22: #{generator_forward.15} parent=5 // pred_check_branch
      %127 = sbr.rel (%p125) target = $region24
    $region23: #{generator_forward.15} parent=5 // pred_region
      // Predicated region
      $region25: #{generator_forward.15} parent=23 // pred_check
        %p128 = pneg %p29
      $region26: #{generator_forward.15} parent=23 // pred_check_branch
        %130 = sbr.rel (%p128) target = $region28
      $region27: #{generator_forward.15} parent=23 // pred_region
        %s131 = smul.u32 2, %s9
        %p132 = scmp.lt.s32.totalorder %s131, 3
        %s133 = scalar_select %p132, %s131, 3
        %s134 = smul.addr %s133, 4
        %s135 = smul.addr %s134, 8
        %s136 = scalar_lea.vmem %s0, %s135
        %s137 = smul.u32 2, %s9
      $region28: #{generator_forward.15} parent=23 // pred_fallthru
        _
    $region24: #{generator_forward.15} parent=5 // pred_fallthru
      _
    %p138 = scmp.le.s32.totalorder 1, %s9
    %p139 = scmp.lt.s32.totalorder %s9, 3
    %p140 = pnand %p138, %p139
    %p141 = pneg %p140
    // Predicated region
    $region29: #{generator_forward.15} parent=5 // pred_check
      _
    $region30: #{generator_forward.15} parent=5 // pred_check_branch
      %143 = sbr.rel (%p140) target = $region32
    $region31: #{generator_forward.15} parent=5 // pred_region
      %s144 = ssub.s32 %s9, 1
      %s145 = smul.u32 2, %s14
      %p146 = scmp.lt.s32.totalorder %s145, 3
      %s147 = scalar_select %p146, %s145, 3
      %s148 = smul.addr %s147, 4
      %s149 = smul.addr %s148, 8
      %s150 = scalar_lea.vmem %s0, %s149
      %p151 = pneg %p35
      %p152 = pneg %p32
      %p153 = pneg %p56
      %p154 = pneg %p53
      %p155 = pneg %p77
      %p156 = pneg %p74
      %p157 = pneg %p103
      %p158 = pneg %p100
      %s159 = smul.u32 2, %s14
      %p160 = scmp.lt.s32.totalorder %s159, 3
      %s161 = scalar_select %p160, %s159, 3
      %s162 = smul.addr %s161, 4
      %s163 = smul.addr %s162, 4
      %s164 = scalar_lea.vmem %s3, %s163
      %s165 = smul.u32 2, %s14
      %p166 = scmp.lt.s32.totalorder %s165, 3
      %s167 = scalar_select %p166, %s165, 3
      %s168 = smul.addr %s167, 4
      %s169 = smul.addr %s168, 8
      %s170 = scalar_lea.vmem %s0, %s169
      %s171 = smul.u32 2, %s14
      %s172 = smul.u32 2, %s14
      %p173 = scmp.lt.s32.totalorder %s172, 3
      %s174 = scalar_select %p173, %s172, 3
      %s175 = smul.addr %s174, 4
      %s176 = smul.addr %s175, 4
      %s177 = scalar_lea.vmem %s3, %s176
      %s178 = smul.u32 2, %s14
      %v179 = vld [vmem:[%s170] sm:$0xff]
      %v180 = vld [vmem:[%s170 + $0x8] sm:$0xff]
      %v181 = vld [vmem:[%s170 + $0x10] sm:$0xff]
      %v182 = vld [vmem:[%s170 + $0x18] sm:$0xff]
      %v183 = vld [vmem:[%s170 + $0x20] sm:$0xff]
      %v184 = vld [vmem:[%s170 + $0x28] sm:$0xff]
      %v185 = vld [vmem:[%s170 + $0x30] sm:$0xff]
      %v186 = vld [vmem:[%s170 + $0x38] sm:$0xff]
      %v187 = vld [vmem:[%s1] sm:$0xf]
      %v189 = vlaneseq
      %v190 = vshrl.u32 %v189, 7
      %v191 = vsub.s32 0, %v190
      %v192 = vrot.slane %v187, %v191
      %v193 = vlaneseq
      %v194 = vshrl.u32 %v193, 7
      %v195 = vsub.s32 1, %v194
      %v196 = vrot.slane %v187, %v195
      %v197 = vlaneseq
      %v198 = vshrl.u32 %v197, 7
      %v199 = vsub.s32 2, %v198
      %v200 = vrot.slane %v187, %v199
      %v201 = vlaneseq
      %v202 = vshrl.u32 %v201, 7
      %v203 = vsub.s32 3, %v202
      %v204 = vrot.slane %v187, %v203
      %v209 = vmul.f32 %v179, %v192
      %v210 = vmul.f32 %v180, %v196
      %v211 = vmul.f32 %v181, %v200
      %v212 = vmul.f32 %v182, %v204
      %v213 = vmul.f32 %v183, %v192
      %v214 = vmul.f32 %v184, %v196
      %v215 = vmul.f32 %v185, %v200
      %v216 = vmul.f32 %v186, %v204
      %v217 = vld [vmem:[%s2] sm:$0xf]
      %v219 = vlaneseq
      %v220 = vshrl.u32 %v219, 7
      %v221 = vsub.s32 0, %v220
      %v222 = vrot.slane %v217, %v221
      %v223 = vlaneseq
      %v224 = vshrl.u32 %v223, 7
      %v225 = vsub.s32 1, %v224
      %v226 = vrot.slane %v217, %v225
      %v227 = vlaneseq
      %v228 = vshrl.u32 %v227, 7
      %v229 = vsub.s32 2, %v228
      %v230 = vrot.slane %v217, %v229
      %v231 = vlaneseq
      %v232 = vshrl.u32 %v231, 7
      %v233 = vsub.s32 3, %v232
      %v234 = vrot.slane %v217, %v233
      %v239 = vadd.f32 %v209, %v222
      %v240 = vadd.f32 %v210, %v226
      %v241 = vadd.f32 %v211, %v230
      %v242 = vadd.f32 %v212, %v234
      %v243 = vadd.f32 %v213, %v222
      %v244 = vadd.f32 %v214, %v226
      %v245 = vadd.f32 %v215, %v230
      %v246 = vadd.f32 %v216, %v234
      %v247 = vmax.f32 %v239, 0.0
      %v248 = vmax.f32 %v240, 0.0
      %v249 = vmax.f32 %v241, 0.0
      %v250 = vmax.f32 %v242, 0.0
      %v251 = vmax.f32 %v243, 0.0
      %v252 = vmax.f32 %v244, 0.0
      %v253 = vmax.f32 %v245, 0.0
      %v254 = vmax.f32 %v246, 0.0
      %v255 = vpack.c.bf16 %v251, %v247
      %v256 = vpack.c.bf16 %v252, %v248
      %v257 = vpack.c.bf16 %v253, %v249
      %v258 = vpack.c.bf16 %v254, %v250
      %v263 = vunpack.c.l.b16 %v255
      %v264 = vunpack.c.l.b16 %v256
      %v265 = vunpack.c.l.b16 %v257
      %v266 = vunpack.c.l.b16 %v258
      %v267 = vunpack.c.h.b16 %v255
      %v268 = vunpack.c.h.b16 %v256
      %v269 = vunpack.c.h.b16 %v257
      %v270 = vunpack.c.h.b16 %v258
      %v271 = vpack.c.b16 %v264, %v263
      %v272 = vpack.c.b16 %v266, %v265
      %v273 = vpack.c.b16 %v268, %v267
      %v274 = vpack.c.b16 %v270, %v269
      %279 = vst [vmem:[%s177] sm:$0xff] %v271
      %280 = vst [vmem:[%s177 + $0x8] sm:$0xff] %v272
      %281 = vst [vmem:[%s177 + $0x10] sm:$0xff] %v273
      %282 = vst [vmem:[%s177 + $0x18] sm:$0xff] %v274
      %s283 = smul.u32 2, %s14
      %p284 = scmp.lt.s32.totalorder %s283, 3
      %s285 = scalar_select %p284, %s283, 3
      %s286 = smul.addr %s285, 4
      %s287 = smul.addr %s286, 4
      %s288 = scalar_lea.vmem %s3, %s287
      // Predicated region
      $region33: #{generator_forward.15} parent=31 // pred_check
        %p289 = pneg %p100
      $region34: #{generator_forward.15} parent=31 // pred_check_branch
        %291 = sbr.rel (%p289) target = $region36
      $region35: #{generator_forward.15} parent=31 // pred_region
        %s292 = smul.u32 2, %s14
      $region36: #{generator_forward.15} parent=31 // pred_fallthru
        _
    $region32: #{generator_forward.15} parent=5 // pred_fallthru
      _
    %p293 = scmp.le.s32.totalorder 2, %s9
    // Predicated region
    $region37: #{generator_forward.15} parent=5 // pred_check
      %p294 = pneg %p293
    $region38: #{generator_forward.15} parent=5 // pred_check_branch
      %296 = sbr.rel (%p294) target = $region40
    $region39: #{generator_forward.15} parent=5 // pred_region
      %s297 = ssub.s32 %s9, 2
      // Predicated region
      $region41: #{generator_forward.15} parent=39 // pred_check
        %p298 = pneg %p106
      $region42: #{generator_forward.15} parent=39 // pred_check_branch
        %300 = sbr.rel (%p298) target = $region44
      $region43: #{generator_forward.15} parent=39 // pred_region
        %s301 = smul.u32 2, %s15
        %p302 = scmp.lt.s32.totalorder %s301, 3
        %s303 = scalar_select %p302, %s301, 3
        %s304 = smul.addr %s303, 4
        %s305 = smul.addr %s304, 4
        %s306 = scalar_lea.vmem %s3, %s305
      $region44: #{generator_forward.15} parent=39 // pred_fallthru
        _
    $region40: #{generator_forward.15} parent=5 // pred_fallthru
      _
  $region6: #{generator_forward.15} parent=0 // loop_footer
    %s13 = sadd.s32 1, %s9
  $region7: #{generator_forward.15} parent=0 // loop_footer_branch
    %8 = sbr.rel target = $region3
  $region8: #{generator_forward.15} parent=0 // loop_exit
    _

// kernel: generator_forward.16
$region0: #{generator_forward.16}
  #allocation0 [shape = 'u32[]', space=smem, size = 0x4, offset = 0x4, fixed_abs, tag = 'smem constant byte address 0x4 - core index']
  #allocation1 [shape = 'u32[144,128]{1,0:T(1,128)}', space=vmem, size = 0x12000, scoped, tag = 'internal scratch']
  #allocation2 [shape = 'f32[64,256]{1,0:T(8,128)}', space=vmem, size = 0x10000, scoped, tag = 'scratch operand']
  %s0 = inlined_call_operand.vmem [shape: bf16[64,2048], index: 0, kind: input, shape index: {}]
  %s1 = inlined_call_operand.vmem [shape: bf16[2048,1024], index: 1, kind: input, shape index: {}]
  %s2 = inlined_call_operand.vmem [shape: f32[64,1024], index: 2, kind: output, shape index: {}]
  %s3 = sld [smem:[#allocation0]]
  $region129: #{generator_forward.16} parent=0
    _
  %s5 = ssub.s32 1, %s3
  %s6 = scalar_select 0, %s5, %s3
  $region1: #{generator_forward.16} parent=0
    #allocation3 [shape = 'u8[131072]{0}', space=vmem, size = 0x20000, scoped, tag = 'input window, operand 0']
    #allocation4 [shape = 'u8[524288]{0}', space=vmem, size = 0x80000, scoped, tag = 'input window, operand 1']
    #allocation5 [shape = 'u8[131072]{0}', space=vmem, size = 0x20000, scoped, tag = 'output window, operand 0']
    loop: start=0, step=1, limit=18
    $region2: #{generator_forward.16} parent=1 // loop_pre_header
      _
    $region3: #{generator_forward.16} parent=1 // loop_header
      %s8 = sphi 0, %s12
      %p9 = scmp.ge.s32.totalorder %s8, 18
      %s15 = sphi 0, %s34
      %s16 = sphi 0, %s30
      %s17 = sphi 0, %s26
      %s18 = sphi 0, %s15
      %s19 = sphi 0, %s16
      %s20 = sphi 0, %s17
      %s21 = sphi 0, %s18
      %s22 = sphi 0, %s19
      %s23 = sphi 0, %s20
      %s39 = sphi 0, %s41
      %s42 = sphi 0, %s39
      %s43 = sphi 0, %s42
      %s59 = sphi 0, %s43
      %s67 = sphi 0, %s69
      %s70 = sphi 0, %s67
      %s71 = sphi 0, %s70
      %s87 = sphi 0, %s71
      %s95 = sphi 0, %s97
      %s98 = sphi 0, %s95
      %s99 = sphi 0, %s98
      %s115 = sphi 0, %s99
    $region4: #{generator_forward.16} parent=1 // loop_header_branch
      %11 = sbr.rel (%p9) target = $region8
    $region5: #{generator_forward.16} parent=1 // loop_body
      %s13 = ssub.s32 %s8, 1
      %s14 = ssub.s32 %s8, 2
      %s24 = sadd.s32 1, %s17
      %p25 = scmp.ge.s32.totalorder %s24, 4
      %s26 = scalar_select %p25, 0, %s24
      %s27 = sadd.s32 1, %s16
      %s28 = scalar_select %p25, %s27, %s16
      %p29 = scmp.ge.s32.totalorder %s28, 4
      %s30 = scalar_select %p29, 0, %s28
      %s31 = sadd.s32 1, %s15
      %s32 = scalar_select %p29, %s31, %s15
      %p33 = scmp.ge.s32.totalorder %s32, 1
      %s34 = scalar_select %p33, 0, %s32
      %s35 = ssub.s32 %s15, %s34
      %s36 = ssub.s32 %s17, %s26
      %s37 = sor.u32 %s35, %s36
      %p38 = scmp.eq.s32.totalorder %s37, 0
      %s40 = sadd.s32 %s39, 1
      %s41 = scalar_select %p38, %s39, %s40
      %p44 = pneg %p38
      %p45 = scmp.eq.s32.totalorder %s8, 15
      %p46 = por %p44, %p45
      %p47 = scmp.ne.s32.totalorder %s39, %s42
      %p48 = scmp.eq.s32.totalorder %s8, 0
      %p49 = por %p47, %p48
      %p50 = scmp.ne.s32.totalorder %s39, %s42
      %p51 = scmp.eq.s32.totalorder %s13, 15
      %p52 = por %p50, %p51
      %p53 = scmp.ne.s32.totalorder %s42, %s43
      %p54 = scmp.eq.s32.totalorder %s13, 0
      %p55 = por %p53, %p54
      %p56 = scmp.ne.s32.totalorder %s42, %s43
      %p57 = scmp.eq.s32.totalorder %s14, 15
      %p58 = por %p56, %p57
      %p60 = scmp.ne.s32.totalorder %s43, %s59
      %p61 = scmp.eq.s32.totalorder %s14, 0
      %p62 = por %p60, %p61
      %s63 = ssub.s32 %s17, %s26
      %s64 = ssub.s32 %s16, %s30
      %s65 = sor.u32 %s63, %s64
      %p66 = scmp.eq.s32.totalorder %s65, 0
      %s68 = sadd.s32 %s67, 1
      %s69 = scalar_select %p66, %s67, %s68
      %p72 = pneg %p66
      %p73 = scmp.eq.s32.totalorder %s8, 15
      %p74 = por %p72, %p73
      %p75 = scmp.ne.s32.totalorder %s67, %s70
      %p76 = scmp.eq.s32.totalorder %s8, 0
      %p77 = por %p75, %p76
      %p78 = scmp.ne.s32.totalorder %s67, %s70
      %p79 = scmp.eq.s32.totalorder %s13, 15
      %p80 = por %p78, %p79
      %p81 = scmp.ne.s32.totalorder %s70, %s71
      %p82 = scmp.eq.s32.totalorder %s13, 0
      %p83 = por %p81, %p82
      %p84 = scmp.ne.s32.totalorder %s70, %s71
      %p85 = scmp.eq.s32.totalorder %s14, 15
      %p86 = por %p84, %p85
      %p88 = scmp.ne.s32.totalorder %s71, %s87
      %p89 = scmp.eq.s32.totalorder %s14, 0
      %p90 = por %p88, %p89
      %s91 = ssub.s32 %s15, %s34
      %s92 = ssub.s32 %s16, %s30
      %s93 = sor.u32 %s91, %s92
      %p94 = scmp.eq.s32.totalorder %s93, 0
      %s96 = sadd.s32 %s95, 1
      %s97 = scalar_select %p94, %s95, %s96
      %p100 = pneg %p94
      %p101 = scmp.eq.s32.totalorder %s8, 15
      %p102 = por %p100, %p101
      %p103 = scmp.ne.s32.totalorder %s95, %s98
      %p104 = scmp.eq.s32.totalorder %s8, 0
      %p105 = por %p103, %p104
      %p106 = scmp.ne.s32.totalorder %s95, %s98
      %p107 = scmp.eq.s32.totalorder %s13, 15
      %p108 = por %p106, %p107
      %p109 = scmp.ne.s32.totalorder %s98, %s99
      %p110 = scmp.eq.s32.totalorder %s13, 0
      %p111 = por %p109, %p110
      %p112 = scmp.ne.s32.totalorder %s98, %s99
      %p113 = scmp.eq.s32.totalorder %s14, 15
      %p114 = por %p112, %p113
      %p116 = scmp.ne.s32.totalorder %s99, %s115
      %p117 = scmp.eq.s32.totalorder %s14, 0
      %p118 = por %p116, %p117
      %p119 = scmp.le.s32.totalorder 1, %s8
      %p120 = scmp.lt.s32.totalorder %s8, 17
      %p121 = pnand %p119, %p120
      %p122 = pneg %p121
      // Predicated region
      $region9: #{generator_forward.16} parent=5 // pred_check
        _
      $region10: #{generator_forward.16} parent=5 // pred_check_branch
        %124 = sbr.rel (%p121) target = $region12
      $region11: #{generator_forward.16} parent=5 // pred_region
        %s125 = ssub.s32 %s8, 1
      $region12: #{generator_forward.16} parent=5 // pred_fallthru
        _
      %p126 = scmp.lt.s32.totalorder %s8, 16
      // Predicated region
      $region13: #{generator_forward.16} parent=5 // pred_check
        %p127 = pneg %p126
      $region14: #{generator_forward.16} parent=5 // pred_check_branch
        %129 = sbr.rel (%p127) target = $region16
      $region15: #{generator_forward.16} parent=5 // pred_region
        // Predicated region
        $region17: #{generator_forward.16} parent=15 // pred_check
          %p130 = pneg %p49
        $region18: #{generator_forward.16} parent=15 // pred_check_branch
          %132 = sbr.rel (%p130) target = $region20
        $region19: #{generator_forward.16} parent=15 // pred_region
          %s133 = sand.u32 %s39, 1
          %s134 = sand.u32 %s39, 1
          %s135 = smul.addr %s134, 128
          %s136 = scalar_lea.vmem [#allocation3], %s135
          %s137 = smul.u32 8, %s15
          %s138 = smul.u32 4, %s17
          %s139 = smul.addr %s137, 16
          %s140 = sadd.s32 %s138, %s139
          %s141 = smul.addr %s140, 4
          %s142 = scalar_lea.vmem %s0, %s141
          // Predicated region
          $region21: #{generator_forward.16} parent=19 // pred_check
            _
          $region22: #{generator_forward.16} parent=19 // pred_check_branch
            %144 = sbr.rel (0) target = $region24
          $region23: #{generator_forward.16} parent=19 // pred_region
            // Predicated region
            $region25: #{generator_forward.16} parent=23 // pred_check
              _
            $region26: #{generator_forward.16} parent=23 // pred_check_branch
              %146 = sbr.rel (0) target = $region28
            $region27: #{generator_forward.16} parent=23 // pred_region
              loop: start=0, step=1, limit=1
              $region29: #{generator_forward.16} parent=27 // loop_pre_header
                _
              $region30: #{generator_forward.16} parent=27 // loop_header
                %s148 = sphi 0, %s152
                %p149 = scmp.ge.s32.totalorder %s148, 1
                %s153 = sphi %s142, %s142
                %s154 = sphi %s136, %s136
              $region31: #{generator_forward.16} parent=27 // loop_header_branch
                %151 = sbr.rel (%p149) target = $region35
              $region32: #{generator_forward.16} parent=27 // loop_body
                %v155 = vld [vmem:[%s153] sm:$0xff]
                %156 = vst [vmem:[%s154] sm:$0xff] %v155
                %v157 = vld [vmem:[%s153 + $0x8] sm:$0xff]
                %158 = vst [vmem:[%s154 + $0x8] sm:$0xff] %v157
                %v159 = vld [vmem:[%s153 + $0x40] sm:$0xff]
                %160 = vst [vmem:[%s154 + $0x10] sm:$0xff] %v159
                %v161 = vld [vmem:[%s153 + $0x48] sm:$0xff]
                %162 = vst [vmem:[%s154 + $0x18] sm:$0xff] %v161
                %v163 = vld [vmem:[%s153 + $0x80] sm:$0xff]
                %164 = vst [vmem:[%s154 + $0x20] sm:$0xff] %v163
                %v165 = vld [vmem:[%s153 + $0x88] sm:$0xff]
                %166 = vst [vmem:[%s154 + $0x28] sm:$0xff] %v165
                %v167 = vld [vmem:[%s153 + $0xc0] sm:$0xff]
                %168 = vst [vmem:[%s154 + $0x30] sm:$0xff] %v167
                %v169 = vld [vmem:[%s153 + $0xc8] sm:$0xff]
                %170 = vst [vmem:[%s154 + $0x38] sm:$0xff] %v169
                %v171 = vld [vmem:[%s153 + $0x100] sm:$0xff]
                %172 = vst [vmem:[%s154 + $0x40] sm:$0xff] %v171
                %v173 = vld [vmem:[%s153 + $0x108] sm:$0xff]
                %174 = vst [vmem:[%s154 + $0x48] sm:$0xff] %v173
                %v175 = vld [vmem:[%s153 + $0x140] sm:$0xff]
                %176 = vst [vmem:[%s154 + $0x50] sm:$0xff] %v175
                %v177 = vld [vmem:[%s153 + $0x148] sm:$0xff]
                %178 = vst [vmem:[%s154 + $0x58] sm:$0xff] %v177
                %v179 = vld [vmem:[%s153 + $0x180] sm:$0xff]
                %180 = vst [vmem:[%s154 + $0x60] sm:$0xff] %v179
                %v181 = vld [vmem:[%s153 + $0x188] sm:$0xff]
                %182 = vst [vmem:[%s154 + $0x68] sm:$0xff] %v181
                %v183 = vld [vmem:[%s153 + $0x1c0] sm:$0xff]
                %184 = vst [vmem:[%s154 + $0x70] sm:$0xff] %v183
                %v185 = vld [vmem:[%s153 + $0x1c8] sm:$0xff]
                %186 = vst [vmem:[%s154 + $0x78] sm:$0xff] %v185
              $region33: #{generator_forward.16} parent=27 // loop_footer
                %s152 = sadd.s32 1, %s148
              $region34: #{generator_forward.16} parent=27 // loop_footer_branch
                %147 = sbr.rel target = $region30
              $region35: #{generator_forward.16} parent=27 // loop_exit
                _
            $region28: #{generator_forward.16} parent=23 // pred_fallthru
              _
            // Predicated region
            $region36: #{generator_forward.16} parent=23 // pred_check
              _
            $region37: #{generator_forward.16} parent=23 // pred_check_branch
              %188 = sbr.rel target = $region39
            $region38: #{generator_forward.16} parent=23 // pred_region
              _
            $region39: #{generator_forward.16} parent=23 // pred_fallthru
              _
          $region24: #{generator_forward.16} parent=19 // pred_fallthru
            _
          %189 = vnop
        $region20: #{generator_forward.16} parent=15 // pred_fallthru
          _
        // Predicated region
        $region40: #{generator_forward.16} parent=15 // pred_check
          %p190 = pneg %p77
        $region41: #{generator_forward.16} parent=15 // pred_check_branch
          %192 = sbr.rel (%p190) target = $region43
        $region42: #{generator_forward.16} parent=15 // pred_region
          %s193 = sand.u32 %s67, 1
          %s194 = sand.u32 %s67, 1
          %s195 = smul.addr %s194, 512
          %s196 = scalar_lea.vmem [#allocation4], %s195
          %s197 = smul.u32 64, %s17
          %s198 = smul.u32 2, %s16
          %s199 = smul.addr %s197, 8
          %s200 = sadd.s32 %s198, %s199
          %s201 = smul.addr %s200, 4
          %s202 = scalar_lea.vmem %s1, %s201
          // Predicated region
          $region44: #{generator_forward.16} parent=42 // pred_check
            _
          $region45: #{generator_forward.16} parent=42 // pred_check_branch
            %204 = sbr.rel (0) target = $region47
          $region46: #{generator_forward.16} parent=42 // pred_region
            // Predicated region
            $region48: #{generator_forward.16} parent=46 // pred_check
              _
            $region49: #{generator_forward.16} parent=46 // pred_check_branch
              %206 = sbr.rel (0) target = $region51
            $region50: #{generator_forward.16} parent=46 // pred_region
              // Predicated region
              $region63: #{generator_forward.16} parent=50 // pred_check
                _
              $region64: #{generator_forward.16} parent=50 // pred_check_branch
                %347 = sbr.rel (0) target = $region66
              $region65: #{generator_forward.16} parent=50 // pred_region
                loop: start=0, step=1, limit=1
                $region67: #{generator_forward.16} parent=65 // loop_pre_header
                  _
                $region68: #{generator_forward.16} parent=65 // loop_header
                  %s349 = sphi 0, %s353
                  %p350 = scmp.ge.s32.totalorder %s349, 1
                  %s354 = sphi %s202, %s202
                  %s355 = sphi %s196, %s196
                $region69: #{generator_forward.16} parent=65 // loop_header_branch
                  %352 = sbr.rel (%p350) target = $region73
                $region70: #{generator_forward.16} parent=65 // loop_body
                  %v356 = vld [vmem:[%s354] sm:$0xff]
                  %357 = vst [vmem:[%s355] sm:$0xff] %v356
                  %v358 = vld [vmem:[%s354 + $0x20] sm:$0xff]
                  %359 = vst [vmem:[%s355 + $0x8] sm:$0xff] %v358
                  %v360 = vld [vmem:[%s354 + $0x40] sm:$0xff]
                  %361 = vst [vmem:[%s355 + $0x10] sm:$0xff] %v360
                  %v362 = vld [vmem:[%s354 + $0x60] sm:$0xff]
                  %363 = vst [vmem:[%s355 + $0x18] sm:$0xff] %v362
                  %v364 = vld [vmem:[%s354 + $0x80] sm:$0xff]
                  %365 = vst [vmem:[%s355 + $0x20] sm:$0xff] %v364
                  %v366 = vld [vmem:[%s354 + $0xa0] sm:$0xff]
                  %367 = vst [vmem:[%s355 + $0x28] sm:$0xff] %v366
                  %v368 = vld [vmem:[%s354 + $0xc0] sm:$0xff]
                  %369 = vst [vmem:[%s355 + $0x30] sm:$0xff] %v368
                  %v370 = vld [vmem:[%s354 + $0xe0] sm:$0xff]
                  %371 = vst [vmem:[%s355 + $0x38] sm:$0xff] %v370
                  %v372 = vld [vmem:[%s354 + $0x100] sm:$0xff]
                  %373 = vst [vmem:[%s355 + $0x40] sm:$0xff] %v372
                  %v374 = vld [vmem:[%s354 + $0x120] sm:$0xff]
                  %375 = vst [vmem:[%s355 + $0x48] sm:$0xff] %v374
                  %v376 = vld [vmem:[%s354 + $0x140] sm:$0xff]
                  %377 = vst [vmem:[%s355 + $0x50] sm:$0xff] %v376
                  %v378 = vld [vmem:[%s354 + $0x160] sm:$0xff]
                  %379 = vst [vmem:[%s355 + $0x58] sm:$0xff] %v378
                  %v380 = vld [vmem:[%s354 + $0x180] sm:$0xff]
                  %381 = vst [vmem:[%s355 + $0x60] sm:$0xff] %v380
                  %v382 = vld [vmem:[%s354 + $0x1a0] sm:$0xff]
                  %383 = vst [vmem:[%s355 + $0x68] sm:$0xff] %v382
                  %v384 = vld [vmem:[%s354 + $0x1c0] sm:$0xff]
                  %385 = vst [vmem:[%s355 + $0x70] sm:$0xff] %v384
                  %v386 = vld [vmem:[%s354 + $0x1e0] sm:$0xff]
                  %387 = vst [vmem:[%s355 + $0x78] sm:$0xff] %v386
                  %v388 = vld [vmem:[%s354 + $0x200] sm:$0xff]
                  %389 = vst [vmem:[%s355 + $0x80] sm:$0xff] %v388
                  %v390 = vld [vmem:[%s354 + $0x220] sm:$0xff]
                  %391 = vst [vmem:[%s355 + $0x88] sm:$0xff] %v390
                  %v392 = vld [vmem:[%s354 + $0x240] sm:$0xff]
                  %393 = vst [vmem:[%s355 + $0x90] sm:$0xff] %v392
                  %v394 = vld [vmem:[%s354 + $0x260] sm:$0xff]
                  %395 = vst [vmem:[%s355 + $0x98] sm:$0xff] %v394
                  %v396 = vld [vmem:[%s354 + $0x280] sm:$0xff]
                  %397 = vst [vmem:[%s355 + $0xa0] sm:$0xff] %v396
                  %v398 = vld [vmem:[%s354 + $0x2a0] sm:$0xff]
                  %399 = vst [vmem:[%s355 + $0xa8] sm:$0xff] %v398
                  %v400 = vld [vmem:[%s354 + $0x2c0] sm:$0xff]
                  %401 = vst [vmem:[%s355 + $0xb0] sm:$0xff] %v400
                  %v402 = vld [vmem:[%s354 + $0x2e0] sm:$0xff]
                  %403 = vst [vmem:[%s355 + $0xb8] sm:$0xff] %v402
                  %v404 = vld [vmem:[%s354 + $0x300] sm:$0xff]
                  %405 = vst [vmem:[%s355 + $0xc0] sm:$0xff] %v404
                  %v406 = vld [vmem:[%s354 + $0x320] sm:$0xff]
                  %407 = vst [vmem:[%s355 + $0xc8] sm:$0xff] %v406
                  %v408 = vld [vmem:[%s354 + $0x340] sm:$0xff]
                  %409 = vst [vmem:[%s355 + $0xd0] sm:$0xff] %v408
                  %v410 = vld [vmem:[%s354 + $0x360] sm:$0xff]
                  %411 = vst [vmem:[%s355 + $0xd8] sm:$0xff] %v410
                  %v412 = vld [vmem:[%s354 + $0x380] sm:$0xff]
                  %413 = vst [vmem:[%s355 + $0xe0] sm:$0xff] %v412
                  %v414 = vld [vmem:[%s354 + $0x3a0] sm:$0xff]
                  %415 = vst [vmem:[%s355 + $0xe8] sm:$0xff] %v414
                  %v416 = vld [vmem:[%s354 + $0x3c0] sm:$0xff]
                  %417 = vst [vmem:[%s355 + $0xf0] sm:$0xff] %v416
                  %v418 = vld [vmem:[%s354 + $0x3e0] sm:$0xff]
                  %419 = vst [vmem:[%s355 + $0xf8] sm:$0xff] %v418
                  %v420 = vld [vmem:[%s354 + $0x400] sm:$0xff]
                  %421 = vst [vmem:[%s355 + $0x100] sm:$0xff] %v420
                  %v422 = vld [vmem:[%s354 + $0x420] sm:$0xff]
                  %423 = vst [vmem:[%s355 + $0x108] sm:$0xff] %v422
                  %v424 = vld [vmem:[%s354 + $0x440] sm:$0xff]
                  %425 = vst [vmem:[%s355 + $0x110] sm:$0xff] %v424
                  %v426 = vld [vmem:[%s354 + $0x460] sm:$0xff]
                  %427 = vst [vmem:[%s355 + $0x118] sm:$0xff] %v426
                  %v428 = vld [vmem:[%s354 + $0x480] sm:$0xff]
                  %429 = vst [vmem:[%s355 + $0x120] sm:$0xff] %v428
                  %v430 = vld [vmem:[%s354 + $0x4a0] sm:$0xff]
                  %431 = vst [vmem:[%s355 + $0x128] sm:$0xff] %v430
                  %v432 = vld [vmem:[%s354 + $0x4c0] sm:$0xff]
                  %433 = vst [vmem:[%s355 + $0x130] sm:$0xff] %v432
                  %v434 = vld [vmem:[%s354 + $0x4e0] sm:$0xff]
                  %435 = vst [vmem:[%s355 + $0x138] sm:$0xff] %v434
                  %v436 = vld [vmem:[%s354 + $0x500] sm:$0xff]
                  %437 = vst [vmem:[%s355 + $0x140] sm:$0xff] %v436
                  %v438 = vld [vmem:[%s354 + $0x520] sm:$0xff]
                  %439 = vst [vmem:[%s355 + $0x148] sm:$0xff] %v438
                  %v440 = vld [vmem:[%s354 + $0x540] sm:$0xff]
                  %441 = vst [vmem:[%s355 + $0x150] sm:$0xff] %v440
                  %v442 = vld [vmem:[%s354 + $0x560] sm:$0xff]
                  %443 = vst [vmem:[%s355 + $0x158] sm:$0xff] %v442
                  %v444 = vld [vmem:[%s354 + $0x580] sm:$0xff]
                  %445 = vst [vmem:[%s355 + $0x160] sm:$0xff] %v444
                  %v446 = vld [vmem:[%s354 + $0x5a0] sm:$0xff]
                  %447 = vst [vmem:[%s355 + $0x168] sm:$0xff] %v446
                  %v448 = vld [vmem:[%s354 + $0x5c0] sm:$0xff]
                  %449 = vst [vmem:[%s355 + $0x170] sm:$0xff] %v448
                  %v450 = vld [vmem:[%s354 + $0x5e0] sm:$0xff]
                  %451 = vst [vmem:[%s355 + $0x178] sm:$0xff] %v450
                  %v452 = vld [vmem:[%s354 + $0x600] sm:$0xff]
                  %453 = vst [vmem:[%s355 + $0x180] sm:$0xff] %v452
                  %v454 = vld [vmem:[%s354 + $0x620] sm:$0xff]
                  %455 = vst [vmem:[%s355 + $0x188] sm:$0xff] %v454
                  %v456 = vld [vmem:[%s354 + $0x640] sm:$0xff]
                  %457 = vst [vmem:[%s355 + $0x190] sm:$0xff] %v456
                  %v458 = vld [vmem:[%s354 + $0x660] sm:$0xff]
                  %459 = vst [vmem:[%s355 + $0x198] sm:$0xff] %v458
                  %v460 = vld [vmem:[%s354 + $0x680] sm:$0xff]
                  %461 = vst [vmem:[%s355 + $0x1a0] sm:$0xff] %v460
                  %v462 = vld [vmem:[%s354 + $0x6a0] sm:$0xff]
                  %463 = vst [vmem:[%s355 + $0x1a8] sm:$0xff] %v462
                  %v464 = vld [vmem:[%s354 + $0x6c0] sm:$0xff]
                  %465 = vst [vmem:[%s355 + $0x1b0] sm:$0xff] %v464
                  %v466 = vld [vmem:[%s354 + $0x6e0] sm:$0xff]
                  %467 = vst [vmem:[%s355 + $0x1b8] sm:$0xff] %v466
                  %v468 = vld [vmem:[%s354 + $0x700] sm:$0xff]
                  %469 = vst [vmem:[%s355 + $0x1c0] sm:$0xff] %v468
                  %v470 = vld [vmem:[%s354 + $0x720] sm:$0xff]
                  %471 = vst [vmem:[%s355 + $0x1c8] sm:$0xff] %v470
                  %v472 = vld [vmem:[%s354 + $0x740] sm:$0xff]
                  %473 = vst [vmem:[%s355 + $0x1d0] sm:$0xff] %v472
                  %v474 = vld [vmem:[%s354 + $0x760] sm:$0xff]
                  %475 = vst [vmem:[%s355 + $0x1d8] sm:$0xff] %v474
                  %v476 = vld [vmem:[%s354 + $0x780] sm:$0xff]
                  %477 = vst [vmem:[%s355 + $0x1e0] sm:$0xff] %v476
                  %v478 = vld [vmem:[%s354 + $0x7a0] sm:$0xff]
                  %479 = vst [vmem:[%s355 + $0x1e8] sm:$0xff] %v478
                  %v480 = vld [vmem:[%s354 + $0x7c0] sm:$0xff]
                  %481 = vst [vmem:[%s355 + $0x1f0] sm:$0xff] %v480
                  %v482 = vld [vmem:[%s354 + $0x7e0] sm:$0xff]
                  %483 = vst [vmem:[%s355 + $0x1f8] sm:$0xff] %v482
                $region71: #{generator_forward.16} parent=65 // loop_footer
                  %s353 = sadd.s32 1, %s349
                $region72: #{generator_forward.16} parent=65 // loop_footer_branch
                  %348 = sbr.rel target = $region68
                $region73: #{generator_forward.16} parent=65 // loop_exit
                  _
              $region66: #{generator_forward.16} parent=50 // pred_fallthru
                _
              // Predicated region
              $region74: #{generator_forward.16} parent=50 // pred_check
                _
              $region75: #{generator_forward.16} parent=50 // pred_check_branch
                %485 = sbr.rel target = $region77
              $region76: #{generator_forward.16} parent=50 // pred_region
                _
              $region77: #{generator_forward.16} parent=50 // pred_fallthru
                _
            $region51: #{generator_forward.16} parent=46 // pred_fallthru
              _
            // Predicated region
            $region52: #{generator_forward.16} parent=46 // pred_check
              _
            $region53: #{generator_forward.16} parent=46 // pred_check_branch
              %208 = sbr.rel target = $region55
            $region54: #{generator_forward.16} parent=46 // pred_region
              loop: start=0, step=1, limit=1
              $region56: #{generator_forward.16} parent=54 // loop_pre_header
                _
              $region57: #{generator_forward.16} parent=54 // loop_header
                %s211 = sphi 0, %s215
                %p212 = scmp.ge.s32.totalorder %s211, 1
                %s216 = sphi %s202, %s202
                %s217 = sphi %s196, %s196
              $region58: #{generator_forward.16} parent=54 // loop_header_branch
                %214 = sbr.rel (%p212) target = $region62
              $region59: #{generator_forward.16} parent=54 // loop_body
                %v218 = vld [vmem:[%s216] sm:$0xff]
                %219 = vst [vmem:[%s217] sm:$0xff] %v218
                %v220 = vld [vmem:[%s216 + $0x20] sm:$0xff]
                %221 = vst [vmem:[%s217 + $0x8] sm:$0xff] %v220
                %v222 = vld [vmem:[%s216 + $0x40] sm:$0xff]
                %223 = vst [vmem:[%s217 + $0x10] sm:$0xff] %v222
                %v224 = vld [vmem:[%s216 + $0x60] sm:$0xff]
                %225 = vst [vmem:[%s217 + $0x18] sm:$0xff] %v224
                %v226 = vld [vmem:[%s216 + $0x80] sm:$0xff]
                %227 = vst [vmem:[%s217 + $0x20] sm:$0xff] %v226
                %v228 = vld [vmem:[%s216 + $0xa0] sm:$0xff]
                %229 = vst [vmem:[%s217 + $0x28] sm:$0xff] %v228
                %v230 = vld [vmem:[%s216 + $0xc0] sm:$0xff]
                %231 = vst [vmem:[%s217 + $0x30] sm:$0xff] %v230
                %v232 = vld [vmem:[%s216 + $0xe0] sm:$0xff]
                %233 = vst [vmem:[%s217 + $0x38] sm:$0xff] %v232
                %v234 = vld [vmem:[%s216 + $0x100] sm:$0xff]
                %235 = vst [vmem:[%s217 + $0x40] sm:$0xff] %v234
                %v236 = vld [vmem:[%s216 + $0x120] sm:$0xff]
                %237 = vst [vmem:[%s217 + $0x48] sm:$0xff] %v236
                %v238 = vld [vmem:[%s216 + $0x140] sm:$0xff]
                %239 = vst [vmem:[%s217 + $0x50] sm:$0xff] %v238
                %v240 = vld [vmem:[%s216 + $0x160] sm:$0xff]
                %241 = vst [vmem:[%s217 + $0x58] sm:$0xff] %v240
                %v242 = vld [vmem:[%s216 + $0x180] sm:$0xff]
                %243 = vst [vmem:[%s217 + $0x60] sm:$0xff] %v242
                %v244 = vld [vmem:[%s216 + $0x1a0] sm:$0xff]
                %245 = vst [vmem:[%s217 + $0x68] sm:$0xff] %v244
                %v246 = vld [vmem:[%s216 + $0x1c0] sm:$0xff]
                %247 = vst [vmem:[%s217 + $0x70] sm:$0xff] %v246
                %v248 = vld [vmem:[%s216 + $0x1e0] sm:$0xff]
                %249 = vst [vmem:[%s217 + $0x78] sm:$0xff] %v248
                %v250 = vld [vmem:[%s216 + $0x200] sm:$0xff]
                %251 = vst [vmem:[%s217 + $0x80] sm:$0xff] %v250
                %v252 = vld [vmem:[%s216 + $0x220] sm:$0xff]
                %253 = vst [vmem:[%s217 + $0x88] sm:$0xff] %v252
                %v254 = vld [vmem:[%s216 + $0x240] sm:$0xff]
                %255 = vst [vmem:[%s217 + $0x90] sm:$0xff] %v254
                %v256 = vld [vmem:[%s216 + $0x260] sm:$0xff]
                %257 = vst [vmem:[%s217 + $0x98] sm:$0xff] %v256
                %v258 = vld [vmem:[%s216 + $0x280] sm:$0xff]
                %259 = vst [vmem:[%s217 + $0xa0] sm:$0xff] %v258
                %v260 = vld [vmem:[%s216 + $0x2a0] sm:$0xff]
                %261 = vst [vmem:[%s217 + $0xa8] sm:$0xff] %v260
                %v262 = vld [vmem:[%s216 + $0x2c0] sm:$0xff]
                %263 = vst [vmem:[%s217 + $0xb0] sm:$0xff] %v262
                %v264 = vld [vmem:[%s216 + $0x2e0] sm:$0xff]
                %265 = vst [vmem:[%s217 + $0xb8] sm:$0xff] %v264
                %v266 = vld [vmem:[%s216 + $0x300] sm:$0xff]
                %267 = vst [vmem:[%s217 + $0xc0] sm:$0xff] %v266
                %v268 = vld [vmem:[%s216 + $0x320] sm:$0xff]
                %269 = vst [vmem:[%s217 + $0xc8] sm:$0xff] %v268
                %v270 = vld [vmem:[%s216 + $0x340] sm:$0xff]
                %271 = vst [vmem:[%s217 + $0xd0] sm:$0xff] %v270
                %v272 = vld [vmem:[%s216 + $0x360] sm:$0xff]
                %273 = vst [vmem:[%s217 + $0xd8] sm:$0xff] %v272
                %v274 = vld [vmem:[%s216 + $0x380] sm:$0xff]
                %275 = vst [vmem:[%s217 + $0xe0] sm:$0xff] %v274
                %v276 = vld [vmem:[%s216 + $0x3a0] sm:$0xff]
                %277 = vst [vmem:[%s217 + $0xe8] sm:$0xff] %v276
                %v278 = vld [vmem:[%s216 + $0x3c0] sm:$0xff]
                %279 = vst [vmem:[%s217 + $0xf0] sm:$0xff] %v278
                %v280 = vld [vmem:[%s216 + $0x3e0] sm:$0xff]
                %281 = vst [vmem:[%s217 + $0xf8] sm:$0xff] %v280
                %v282 = vld [vmem:[%s216 + $0x400] sm:$0xff]
                %283 = vst [vmem:[%s217 + $0x100] sm:$0xff] %v282
                %v284 = vld [vmem:[%s216 + $0x420] sm:$0xff]
                %285 = vst [vmem:[%s217 + $0x108] sm:$0xff] %v284
                %v286 = vld [vmem:[%s216 + $0x440] sm:$0xff]
                %287 = vst [vmem:[%s217 + $0x110] sm:$0xff] %v286
                %v288 = vld [vmem:[%s216 + $0x460] sm:$0xff]
                %289 = vst [vmem:[%s217 + $0x118] sm:$0xff] %v288
                %v290 = vld [vmem:[%s216 + $0x480] sm:$0xff]
                %291 = vst [vmem:[%s217 + $0x120] sm:$0xff] %v290
                %v292 = vld [vmem:[%s216 + $0x4a0] sm:$0xff]
                %293 = vst [vmem:[%s217 + $0x128] sm:$0xff] %v292
                %v294 = vld [vmem:[%s216 + $0x4c0] sm:$0xff]
                %295 = vst [vmem:[%s217 + $0x130] sm:$0xff] %v294
                %v296 = vld [vmem:[%s216 + $0x4e0] sm:$0xff]
                %297 = vst [vmem:[%s217 + $0x138] sm:$0xff] %v296
                %v298 = vld [vmem:[%s216 + $0x500] sm:$0xff]
                %299 = vst [vmem:[%s217 + $0x140] sm:$0xff] %v298
                %v300 = vld [vmem:[%s216 + $0x520] sm:$0xff]
                %301 = vst [vmem:[%s217 + $0x148] sm:$0xff] %v300
                %v302 = vld [vmem:[%s216 + $0x540] sm:$0xff]
                %303 = vst [vmem:[%s217 + $0x150] sm:$0xff] %v302
                %v304 = vld [vmem:[%s216 + $0x560] sm:$0xff]
                %305 = vst [vmem:[%s217 + $0x158] sm:$0xff] %v304
                %v306 = vld [vmem:[%s216 + $0x580] sm:$0xff]
                %307 = vst [vmem:[%s217 + $0x160] sm:$0xff] %v306
                %v308 = vld [vmem:[%s216 + $0x5a0] sm:$0xff]
                %309 = vst [vmem:[%s217 + $0x168] sm:$0xff] %v308
                %v310 = vld [vmem:[%s216 + $0x5c0] sm:$0xff]
                %311 = vst [vmem:[%s217 + $0x170] sm:$0xff] %v310
                %v312 = vld [vmem:[%s216 + $0x5e0] sm:$0xff]
                %313 = vst [vmem:[%s217 + $0x178] sm:$0xff] %v312
                %v314 = vld [vmem:[%s216 + $0x600] sm:$0xff]
                %315 = vst [vmem:[%s217 + $0x180] sm:$0xff] %v314
                %v316 = vld [vmem:[%s216 + $0x620] sm:$0xff]
                %317 = vst [vmem:[%s217 + $0x188] sm:$0xff] %v316
                %v318 = vld [vmem:[%s216 + $0x640] sm:$0xff]
                %319 = vst [vmem:[%s217 + $0x190] sm:$0xff] %v318
                %v320 = vld [vmem:[%s216 + $0x660] sm:$0xff]
                %321 = vst [vmem:[%s217 + $0x198] sm:$0xff] %v320
                %v322 = vld [vmem:[%s216 + $0x680] sm:$0xff]
                %323 = vst [vmem:[%s217 + $0x1a0] sm:$0xff] %v322
                %v324 = vld [vmem:[%s216 + $0x6a0] sm:$0xff]
                %325 = vst [vmem:[%s217 + $0x1a8] sm:$0xff] %v324
                %v326 = vld [vmem:[%s216 + $0x6c0] sm:$0xff]
                %327 = vst [vmem:[%s217 + $0x1b0] sm:$0xff] %v326
                %v328 = vld [vmem:[%s216 + $0x6e0] sm:$0xff]
                %329 = vst [vmem:[%s217 + $0x1b8] sm:$0xff] %v328
                %v330 = vld [vmem:[%s216 + $0x700] sm:$0xff]
                %331 = vst [vmem:[%s217 + $0x1c0] sm:$0xff] %v330
                %v332 = vld [vmem:[%s216 + $0x720] sm:$0xff]
                %333 = vst [vmem:[%s217 + $0x1c8] sm:$0xff] %v332
                %v334 = vld [vmem:[%s216 + $0x740] sm:$0xff]
                %335 = vst [vmem:[%s217 + $0x1d0] sm:$0xff] %v334
                %v336 = vld [vmem:[%s216 + $0x760] sm:$0xff]
                %337 = vst [vmem:[%s217 + $0x1d8] sm:$0xff] %v336
                %v338 = vld [vmem:[%s216 + $0x780] sm:$0xff]
                %339 = vst [vmem:[%s217 + $0x1e0] sm:$0xff] %v338
                %v340 = vld [vmem:[%s216 + $0x7a0] sm:$0xff]
                %341 = vst [vmem:[%s217 + $0x1e8] sm:$0xff] %v340
                %v342 = vld [vmem:[%s216 + $0x7c0] sm:$0xff]
                %343 = vst [vmem:[%s217 + $0x1f0] sm:$0xff] %v342
                %v344 = vld [vmem:[%s216 + $0x7e0] sm:$0xff]
                %345 = vst [vmem:[%s217 + $0x1f8] sm:$0xff] %v344
              $region60: #{generator_forward.16} parent=54 // loop_footer
                %s215 = sadd.s32 1, %s211
              $region61: #{generator_forward.16} parent=54 // loop_footer_branch
                %210 = sbr.rel target = $region57
              $region62: #{generator_forward.16} parent=54 // loop_exit
                _
            $region55: #{generator_forward.16} parent=46 // pred_fallthru
              _
          $region47: #{generator_forward.16} parent=42 // pred_fallthru
            _
          %486 = vnop
        $region43: #{generator_forward.16} parent=15 // pred_fallthru
          _
      $region16: #{generator_forward.16} parent=5 // pred_fallthru
        _
      %p487 = scmp.le.s32.totalorder 1, %s8
      %p488 = scmp.lt.s32.totalorder %s8, 17
      %p489 = pnand %p487, %p488
      %p490 = pneg %p489
      // Predicated region
      $region78: #{generator_forward.16} parent=5 // pred_check
        _
      $region79: #{generator_forward.16} parent=5 // pred_check_branch
        %492 = sbr.rel (%p489) target = $region81
      $region80: #{generator_forward.16} parent=5 // pred_region
        %s493 = ssub.s32 %s8, 1
        %s494 = sand.u32 %s42, 1
        %s495 = sand.u32 %s42, 1
        %s496 = smul.addr %s495, 128
        %s497 = scalar_lea.vmem [#allocation3], %s496
        // Predicated region
        $region82: #{generator_forward.16} parent=80 // pred_check
          %p498 = pneg %p55
        $region83: #{generator_forward.16} parent=80 // pred_check_branch
          %500 = sbr.rel (%p498) target = $region85
        $region84: #{generator_forward.16} parent=80 // pred_region
          _
        $region85: #{generator_forward.16} parent=80 // pred_fallthru
          _
        %s501 = sand.u32 %s70, 1
        %s502 = sand.u32 %s70, 1
        %s503 = smul.addr %s502, 512
        %s504 = scalar_lea.vmem [#allocation4], %s503
        // Predicated region
        $region86: #{generator_forward.16} parent=80 // pred_check
          %p505 = pneg %p83
        $region87: #{generator_forward.16} parent=80 // pred_check_branch
          %507 = sbr.rel (%p505) target = $region89
        $region88: #{generator_forward.16} parent=80 // pred_region
          _
        $region89: #{generator_forward.16} parent=80 // pred_fallthru
          _
        %s508 = sand.u32 %s42, 1
        %s509 = sand.u32 %s42, 1
        %s510 = smul.addr %s509, 128
        %s511 = scalar_lea.vmem [#allocation3], %s510
        %p512 = pneg %p55
        %p513 = pneg %p52
        %s514 = sand.u32 %s70, 1
        %s515 = sand.u32 %s70, 1
        %s516 = smul.addr %s515, 512
        %s517 = scalar_lea.vmem [#allocation4], %s516
        %p518 = pneg %p83
        %p519 = pneg %p80
        %p520 = pneg %p111
        %p521 = pneg %p108
        %s522 = sand.u32 %s98, 1
        %s523 = sand.u32 %s98, 1
        %s524 = smul.addr %s523, 128
        %s525 = scalar_lea.vmem [#allocation5], %s524
        %s526 = smul.u32 8, %s18
        %s527 = smul.u32 4, %s20
        %s528 = smul.u32 64, %s20
        %s529 = smul.u32 2, %s19
        %s530 = smul.u32 8, %s18
        %s531 = smul.u32 2, %s19
        %p532 = scmp.eq.s32.totalorder %s20, 0
        // Predicated region
        $region90: #{generator_forward.16} parent=80 // pred_check
          %p533 = pneg %p532
        $region91: #{generator_forward.16} parent=80 // pred_check_branch
          %535 = sbr.rel (%p533) target = $region93
        $region92: #{generator_forward.16} parent=80 // pred_region
          %536 = vst [vmem:[#allocation2] sm:$0xff] 0.0
          %537 = vst [vmem:[#allocation2 + $0x8] sm:$0xff] 0.0
          %538 = vst [vmem:[#allocation2 + $0x10] sm:$0xff] 0.0
          %539 = vst [vmem:[#allocation2 + $0x18] sm:$0xff] 0.0
          %540 = vst [vmem:[#allocation2 + $0x20] sm:$0xff] 0.0
          %541 = vst [vmem:[#allocation2 + $0x28] sm:$0xff] 0.0
          %542 = vst [vmem:[#allocation2 + $0x30] sm:$0xff] 0.0
          %543 = vst [vmem:[#allocation2 + $0x38] sm:$0xff] 0.0
          %544 = vst [vmem:[#allocation2 + $0x40] sm:$0xff] 0.0
          %545 = vst [vmem:[#allocation2 + $0x48] sm:$0xff] 0.0
          %546 = vst [vmem:[#allocation2 + $0x50] sm:$0xff] 0.0
          %547 = vst [vmem:[#allocation2 + $0x58] sm:$0xff] 0.0
          %548 = vst [vmem:[#allocation2 + $0x60] sm:$0xff] 0.0
          %549 = vst [vmem:[#allocation2 + $0x68] sm:$0xff] 0.0
          %550 = vst [vmem:[#allocation2 + $0x70] sm:$0xff] 0.0
          %551 = vst [vmem:[#allocation2 + $0x78] sm:$0xff] 0.0
        $region93: #{generator_forward.16} parent=80 // pred_fallthru
          _
        %v552 = vld [vmem:[#allocation2] sm:$0xff]
        %v553 = vld [vmem:[#allocation2 + $0x8] sm:$0xff]
        %v554 = vld [vmem:[#allocation2 + $0x10] sm:$0xff]
        %v555 = vld [vmem:[#allocation2 + $0x18] sm:$0xff]
        %v556 = vld [vmem:[#allocation2 + $0x20] sm:$0xff]
        %v557 = vld [vmem:[#allocation2 + $0x28] sm:$0xff]
        %v558 = vld [vmem:[#allocation2 + $0x30] sm:$0xff]
        %v559 = vld [vmem:[#allocation2 + $0x38] sm:$0xff]
        %v560 = vld [vmem:[#allocation2 + $0x40] sm:$0xff]
        %v561 = vld [vmem:[#allocation2 + $0x48] sm:$0xff]
        %v562 = vld [vmem:[#allocation2 + $0x50] sm:$0xff]
        %v563 = vld [vmem:[#allocation2 + $0x58] sm:$0xff]
        %v564 = vld [vmem:[#allocation2 + $0x60] sm:$0xff]
        %v565 = vld [vmem:[#allocation2 + $0x68] sm:$0xff]
        %v566 = vld [vmem:[#allocation2 + $0x70] sm:$0xff]
        %v567 = vld [vmem:[#allocation2 + $0x78] sm:$0xff]
        %v568 = vld [vmem:[%s497] sm:$0xff]
        %v569 = vld [vmem:[%s497 + $0x8] sm:$0xff]
        %v570 = vld [vmem:[%s497 + $0x10] sm:$0xff]
        %v571 = vld [vmem:[%s497 + $0x18] sm:$0xff]
        %v572 = vld [vmem:[%s497 + $0x20] sm:$0xff]
        %v573 = vld [vmem:[%s497 + $0x28] sm:$0xff]
        %v574 = vld [vmem:[%s497 + $0x30] sm:$0xff]
        %v575 = vld [vmem:[%s497 + $0x38] sm:$0xff]
        %v576 = vld [vmem:[%s497 + $0x40] sm:$0xff]
        %v577 = vld [vmem:[%s497 + $0x48] sm:$0xff]
        %v578 = vld [vmem:[%s497 + $0x50] sm:$0xff]
        %v579 = vld [vmem:[%s497 + $0x58] sm:$0xff]
        %v580 = vld [vmem:[%s497 + $0x60] sm:$0xff]
        %v581 = vld [vmem:[%s497 + $0x68] sm:$0xff]
        %v582 = vld [vmem:[%s497 + $0x70] sm:$0xff]
        %v583 = vld [vmem:[%s497 + $0x78] sm:$0xff]
        %v584 = vld [vmem:[%s504] sm:$0xff]
        %v585 = vld [vmem:[%s504 + $0x8] sm:$0xff]
        %v586 = vld [vmem:[%s504 + $0x10] sm:$0xff]
        %v587 = vld [vmem:[%s504 + $0x18] sm:$0xff]
        %v588 = vld [vmem:[%s504 + $0x20] sm:$0xff]
        %v589 = vld [vmem:[%s504 + $0x28] sm:$0xff]
        %v590 = vld [vmem:[%s504 + $0x30] sm:$0xff]
        %v591 = vld [vmem:[%s504 + $0x38] sm:$0xff]
        %v592 = vld [vmem:[%s504 + $0x40] sm:$0xff]
        %v593 = vld [vmem:[%s504 + $0x48] sm:$0xff]
        %v594 = vld [vmem:[%s504 + $0x50] sm:$0xff]
        %v595 = vld [vmem:[%s504 + $0x58] sm:$0xff]
        %v596 = vld [vmem:[%s504 + $0x60] sm:$0xff]
        %v597 = vld [vmem:[%s504 + $0x68] sm:$0xff]
        %v598 = vld [vmem:[%s504 + $0x70] sm:$0xff]
        %v599 = vld [vmem:[%s504 + $0x78] sm:$0xff]
        %v600 = vld [vmem:[%s504 + $0x80] sm:$0xff]
        %v601 = vld [vmem:[%s504 + $0x88] sm:$0xff]
        %v602 = vld [vmem:[%s504 + $0x90] sm:$0xff]
        %v603 = vld [vmem:[%s504 + $0x98] sm:$0xff]
        %v604 = vld [vmem:[%s504 + $0xa0] sm:$0xff]
        %v605 = vld [vmem:[%s504 + $0xa8] sm:$0xff]
        %v606 = vld [vmem:[%s504 + $0xb0] sm:$0xff]
        %v607 = vld [vmem:[%s504 + $0xb8] sm:$0xff]
        %v608 = vld [vmem:[%s504 + $0xc0] sm:$0xff]
        %v609 = vld [vmem:[%s504 + $0xc8] sm:$0xff]
        %v610 = vld [vmem:[%s504 + $0xd0] sm:$0xff]
        %v611 = vld [vmem:[%s504 + $0xd8] sm:$0xff]
        %v612 = vld [vmem:[%s504 + $0xe0] sm:$0xff]
        %v613 = vld [vmem:[%s504 + $0xe8] sm:$0xff]
        %v614 = vld [vmem:[%s504 + $0xf0] sm:$0xff]
        %v615 = vld [vmem:[%s504 + $0xf8] sm:$0xff]
        %v616 = vld [vmem:[%s504 + $0x100] sm:$0xff]
        %v617 = vld [vmem:[%s504 + $0x108] sm:$0xff]
        %v618 = vld [vmem:[%s504 + $0x110] sm:$0xff]
        %v619 = vld [vmem:[%s504 + $0x118] sm:$0xff]
        %v620 = vld [vmem:[%s504 + $0x120] sm:$0xff]
        %v621 = vld [vmem:[%s504 + $0x128] sm:$0xff]
        %v622 = vld [vmem:[%s504 + $0x130] sm:$0xff]
        %v623 = vld [vmem:[%s504 + $0x138] sm:$0xff]
        %v624 = vld [vmem:[%s504 + $0x140] sm:$0xff]
        %v625 = vld [vmem:[%s504 + $0x148] sm:$0xff]
        %v626 = vld [vmem:[%s504 + $0x150] sm:$0xff]
        %v627 = vld [vmem:[%s504 + $0x158] sm:$0xff]
        %v628 = vld [vmem:[%s504 + $0x160] sm:$0xff]
        %v629 = vld [vmem:[%s504 + $0x168] sm:$0xff]
        %v630 = vld [vmem:[%s504 + $0x170] sm:$0xff]
        %v631 = vld [vmem:[%s504 + $0x178] sm:$0xff]
        %v632 = vld [vmem:[%s504 + $0x180] sm:$0xff]
        %v633 = vld [vmem:[%s504 + $0x188] sm:$0xff]
        %v634 = vld [vmem:[%s504 + $0x190] sm:$0xff]
        %v635 = vld [vmem:[%s504 + $0x198] sm:$0xff]
        %v636 = vld [vmem:[%s504 + $0x1a0] sm:$0xff]
        %v637 = vld [vmem:[%s504 + $0x1a8] sm:$0xff]
        %v638 = vld [vmem:[%s504 + $0x1b0] sm:$0xff]
        %v639 = vld [vmem:[%s504 + $0x1b8] sm:$0xff]
        %v640 = vld [vmem:[%s504 + $0x1c0] sm:$0xff]
        %v641 = vld [vmem:[%s504 + $0x1c8] sm:$0xff]
        %v642 = vld [vmem:[%s504 + $0x1d0] sm:$0xff]
        %v643 = vld [vmem:[%s504 + $0x1d8] sm:$0xff]
        %v644 = vld [vmem:[%s504 + $0x1e0] sm:$0xff]
        %v645 = vld [vmem:[%s504 + $0x1e8] sm:$0xff]
        %v646 = vld [vmem:[%s504 + $0x1f0] sm:$0xff]
        %v647 = vld [vmem:[%s504 + $0x1f8] sm:$0xff]
        %v664 = vunpack.c.l.b16 %v568
        %v665 = vunpack.c.h.b16 %v568
        %v666 = vunpack.c.l.b16 %v569
        %v667 = vunpack.c.h.b16 %v569
        %v668 = vunpack.c.l.b16 %v570
        %v669 = vunpack.c.h.b16 %v570
        %v670 = vunpack.c.l.b16 %v571
        %v671 = vunpack.c.h.b16 %v571
        %v672 = vunpack.c.l.b16 %v572
        %v673 = vunpack.c.h.b16 %v572
        %v674 = vunpack.c.l.b16 %v573
        %v675 = vunpack.c.h.b16 %v573
        %v676 = vunpack.c.l.b16 %v574
        %v677 = vunpack.c.h.b16 %v574
        %v678 = vunpack.c.l.b16 %v575
        %v679 = vunpack.c.h.b16 %v575
        %v680 = vunpack.c.l.b16 %v576
        %v681 = vunpack.c.h.b16 %v576
        %v682 = vunpack.c.l.b16 %v577
        %v683 = vunpack.c.h.b16 %v577
        %v684 = vunpack.c.l.b16 %v578
        %v685 = vunpack.c.h.b16 %v578
        %v686 = vunpack.c.l.b16 %v579
        %v687 = vunpack.c.h.b16 %v579
        %v688 = vunpack.c.l.b16 %v580
        %v689 = vunpack.c.h.b16 %v580
        %v690 = vunpack.c.l.b16 %v581
        %v691 = vunpack.c.h.b16 %v581
        %v692 = vunpack.c.l.b16 %v582
        %v693 = vunpack.c.h.b16 %v582
        %v694 = vunpack.c.l.b16 %v583
        %v695 = vunpack.c.h.b16 %v583
        %v696 = vpack.c.b16 %v668, %v664
        %v697 = vpack.c.b16 %v669, %v665
        %v698 = vpack.c.b16 %v670, %v666
        %v699 = vpack.c.b16 %v671, %v667
        %v700 = vpack.c.b16 %v676, %v672
        %v701 = vpack.c.b16 %v677, %v673
        %v702 = vpack.c.b16 %v678, %v674
        %v703 = vpack.c.b16 %v679, %v675
        %v704 = vpack.c.b16 %v684, %v680
        %v705 = vpack.c.b16 %v685, %v681
        %v706 = vpack.c.b16 %v686, %v682
        %v707 = vpack.c.b16 %v687, %v683
        %v708 = vpack.c.b16 %v692, %v688
        %v709 = vpack.c.b16 %v693, %v689
        %v710 = vpack.c.b16 %v694, %v690
        %v711 = vpack.c.b16 %v695, %v691
        %v792 = vunpack.c.l.b16 %v584
        %v793 = vunpack.c.h.b16 %v584
        %v794 = vunpack.c.l.b16 %v585
        %v795 = vunpack.c.h.b16 %v585
        %v796 = vunpack.c.l.b16 %v586
        %v797 = vunpack.c.h.b16 %v586
        %v798 = vunpack.c.l.b16 %v587
        %v799 = vunpack.c.h.b16 %v587
        %v800 = vunpack.c.l.b16 %v588
        %v801 = vunpack.c.h.b16 %v588
        %v802 = vunpack.c.l.b16 %v589
        %v803 = vunpack.c.h.b16 %v589
        %v804 = vunpack.c.l.b16 %v590
        %v805 = vunpack.c.h.b16 %v590
        %v806 = vunpack.c.l.b16 %v591
        %v807 = vunpack.c.h.b16 %v591
        %v808 = vunpack.c.l.b16 %v592
        %v809 = vunpack.c.h.b16 %v592
        %v810 = vunpack.c.l.b16 %v593
        %v811 = vunpack.c.h.b16 %v593
        %v812 = vunpack.c.l.b16 %v594
        %v813 = vunpack.c.h.b16 %v594
        %v814 = vunpack.c.l.b16 %v595
        %v815 = vunpack.c.h.b16 %v595
        %v816 = vunpack.c.l.b16 %v596
        %v817 = vunpack.c.h.b16 %v596
        %v818 = vunpack.c.l.b16 %v597
        %v819 = vunpack.c.h.b16 %v597
        %v820 = vunpack.c.l.b16 %v598
        %v821 = vunpack.c.h.b16 %v598
        %v822 = vunpack.c.l.b16 %v599
        %v823 = vunpack.c.h.b16 %v599
        %v824 = vunpack.c.l.b16 %v600
        %v825 = vunpack.c.h.b16 %v600
        %v826 = vunpack.c.l.b16 %v601
        %v827 = vunpack.c.h.b16 %v601
        %v828 = vunpack.c.l.b16 %v602
        %v829 = vunpack.c.h.b16 %v602
        %v830 = vunpack.c.l.b16 %v603
        %v831 = vunpack.c.h.b16 %v603
        %v832 = vunpack.c.l.b16 %v604
        %v833 = vunpack.c.h.b16 %v604
        %v834 = vunpack.c.l.b16 %v605
        %v835 = vunpack.c.h.b16 %v605
        %v836 = vunpack.c.l.b16 %v606
        %v837 = vunpack.c.h.b16 %v606
        %v838 = vunpack.c.l.b16 %v607
        %v839 = vunpack.c.h.b16 %v607
        %v840 = vunpack.c.l.b16 %v608
        %v841 = vunpack.c.h.b16 %v608
        %v842 = vunpack.c.l.b16 %v609
        %v843 = vunpack.c.h.b16 %v609
        %v844 = vunpack.c.l.b16 %v610
        %v845 = vunpack.c.h.b16 %v610
        %v846 = vunpack.c.l.b16 %v611
        %v847 = vunpack.c.h.b16 %v611
        %v848 = vunpack.c.l.b16 %v612
        %v849 = vunpack.c.h.b16 %v612
        %v850 = vunpack.c.l.b16 %v613
        %v851 = vunpack.c.h.b16 %v613
        %v852 = vunpack.c.l.b16 %v614
        %v853 = vunpack.c.h.b16 %v614
        %v854 = vunpack.c.l.b16 %v615
        %v855 = vunpack.c.h.b16 %v615
        %v856 = vunpack.c.l.b16 %v616
        %v857 = vunpack.c.h.b16 %v616
        %v858 = vunpack.c.l.b16 %v617
        %v859 = vunpack.c.h.b16 %v617
        %v860 = vunpack.c.l.b16 %v618
        %v861 = vunpack.c.h.b16 %v618
        %v862 = vunpack.c.l.b16 %v619
        %v863 = vunpack.c.h.b16 %v619
        %v864 = vunpack.c.l.b16 %v620
        %v865 = vunpack.c.h.b16 %v620
        %v866 = vunpack.c.l.b16 %v621
        %v867 = vunpack.c.h.b16 %v621
        %v868 = vunpack.c.l.b16 %v622
        %v869 = vunpack.c.h.b16 %v622
        %v870 = vunpack.c.l.b16 %v623
        %v871 = vunpack.c.h.b16 %v623
        %v872 = vunpack.c.l.b16 %v624
        %v873 = vunpack.c.h.b16 %v624
        %v874 = vunpack.c.l.b16 %v625
        %v875 = vunpack.c.h.b16 %v625
        %v876 = vunpack.c.l.b16 %v626
        %v877 = vunpack.c.h.b16 %v626
        %v878 = vunpack.c.l.b16 %v627
        %v879 = vunpack.c.h.b16 %v627
        %v880 = vunpack.c.l.b16 %v628
        %v881 = vunpack.c.h.b16 %v628
        %v882 = vunpack.c.l.b16 %v629
        %v883 = vunpack.c.h.b16 %v629
        %v884 = vunpack.c.l.b16 %v630
        %v885 = vunpack.c.h.b16 %v630
        %v886 = vunpack.c.l.b16 %v631
        %v887 = vunpack.c.h.b16 %v631
        %v888 = vunpack.c.l.b16 %v632
        %v889 = vunpack.c.h.b16 %v632
        %v890 = vunpack.c.l.b16 %v633
        %v891 = vunpack.c.h.b16 %v633
        %v892 = vunpack.c.l.b16 %v634
        %v893 = vunpack.c.h.b16 %v634
        %v894 = vunpack.c.l.b16 %v635
        %v895 = vunpack.c.h.b16 %v635
        %v896 = vunpack.c.l.b16 %v636
        %v897 = vunpack.c.h.b16 %v636
        %v898 = vunpack.c.l.b16 %v637
        %v899 = vunpack.c.h.b16 %v637
        %v900 = vunpack.c.l.b16 %v638
        %v901 = vunpack.c.h.b16 %v638
        %v902 = vunpack.c.l.b16 %v639
        %v903 = vunpack.c.h.b16 %v639
        %v904 = vunpack.c.l.b16 %v640
        %v905 = vunpack.c.h.b16 %v640
        %v906 = vunpack.c.l.b16 %v641
        %v907 = vunpack.c.h.b16 %v641
        %v908 = vunpack.c.l.b16 %v642
        %v909 = vunpack.c.h.b16 %v642
        %v910 = vunpack.c.l.b16 %v643
        %v911 = vunpack.c.h.b16 %v643
        %v912 = vunpack.c.l.b16 %v644
        %v913 = vunpack.c.h.b16 %v644
        %v914 = vunpack.c.l.b16 %v645
        %v915 = vunpack.c.h.b16 %v645
        %v916 = vunpack.c.l.b16 %v646
        %v917 = vunpack.c.h.b16 %v646
        %v918 = vunpack.c.l.b16 %v647
        %v919 = vunpack.c.h.b16 %v647
        %v920 = vpack.c.b16 %v794, %v792
        %v921 = vpack.c.b16 %v795, %v793
        %v922 = vpack.c.b16 %v798, %v796
        %v923 = vpack.c.b16 %v799, %v797
        %v924 = vpack.c.b16 %v802, %v800
        %v925 = vpack.c.b16 %v803, %v801
        %v926 = vpack.c.b16 %v806, %v804
        %v927 = vpack.c.b16 %v807, %v805
        %v928 = vpack.c.b16 %v810, %v808
        %v929 = vpack.c.b16 %v811, %v809
        %v930 = vpack.c.b16 %v814, %v812
        %v931 = vpack.c.b16 %v815, %v813
        %v932 = vpack.c.b16 %v818, %v816
        %v933 = vpack.c.b16 %v819, %v817
        %v934 = vpack.c.b16 %v822, %v820
        %v935 = vpack.c.b16 %v823, %v821
        %v936 = vpack.c.b16 %v826, %v824
        %v937 = vpack.c.b16 %v827, %v825
        %v938 = vpack.c.b16 %v830, %v828
        %v939 = vpack.c.b16 %v831, %v829
        %v940 = vpack.c.b16 %v834, %v832
        %v941 = vpack.c.b16 %v835, %v833
        %v942 = vpack.c.b16 %v838, %v836
        %v943 = vpack.c.b16 %v839, %v837
        %v944 = vpack.c.b16 %v842, %v840
        %v945 = vpack.c.b16 %v843, %v841
        %v946 = vpack.c.b16 %v846, %v844
        %v947 = vpack.c.b16 %v847, %v845
        %v948 = vpack.c.b16 %v850, %v848
        %v949 = vpack.c.b16 %v851, %v849
        %v950 = vpack.c.b16 %v854, %v852
        %v951 = vpack.c.b16 %v855, %v853
        %v952 = vpack.c.b16 %v858, %v856
        %v953 = vpack.c.b16 %v859, %v857
        %v954 = vpack.c.b16 %v862, %v860
        %v955 = vpack.c.b16 %v863, %v861
        %v956 = vpack.c.b16 %v866, %v864
        %v957 = vpack.c.b16 %v867, %v865
        %v958 = vpack.c.b16 %v870, %v868
        %v959 = vpack.c.b16 %v871, %v869
        %v960 = vpack.c.b16 %v874, %v872
        %v961 = vpack.c.b16 %v875, %v873
        %v962 = vpack.c.b16 %v878, %v876
        %v963 = vpack.c.b16 %v879, %v877
        %v964 = vpack.c.b16 %v882, %v880
        %v965 = vpack.c.b16 %v883, %v881
        %v966 = vpack.c.b16 %v886, %v884
        %v967 = vpack.c.b16 %v887, %v885
        %v968 = vpack.c.b16 %v890, %v888
        %v969 = vpack.c.b16 %v891, %v889
        %v970 = vpack.c.b16 %v894, %v892
        %v971 = vpack.c.b16 %v895, %v893
        %v972 = vpack.c.b16 %v898, %v896
        %v973 = vpack.c.b16 %v899, %v897
        %v974 = vpack.c.b16 %v902, %v900
        %v975 = vpack.c.b16 %v903, %v901
        %v976 = vpack.c.b16 %v906, %v904
        %v977 = vpack.c.b16 %v907, %v905
        %v978 = vpack.c.b16 %v910, %v908
        %v979 = vpack.c.b16 %v911, %v909
        %v980 = vpack.c.b16 %v914, %v912
        %v981 = vpack.c.b16 %v915, %v913
        %v982 = vpack.c.b16 %v918, %v916
        %v983 = vpack.c.b16 %v919, %v917
        %1048 = vmatprep.subr.bf16.mxu0 %v921
        %1049 = vmatpush1.bf16.msra.mxu0 %v920
        %1050 = vmatprep.subr.bf16.mxu0 %v923
        %1051 = vmatpush1.bf16.msra.mxu0 %v922
        %1052 = vmatprep.subr.bf16.mxu0 %v925
        %1053 = vmatpush1.bf16.msra.mxu0 %v924
        %1054 = vmatprep.subr.bf16.mxu0 %v927
        %1055 = vmatpush1.bf16.msra.mxu0 %v926
        %1056 = vmatprep.subr.bf16.mxu0 %v929
        %1057 = vmatpush1.bf16.msra.mxu0 %v928
        %1058 = vmatprep.subr.bf16.mxu0 %v931
        %1059 = vmatpush1.bf16.msra.mxu0 %v930
        %1060 = vmatprep.subr.bf16.mxu0 %v933
        %1061 = vmatpush1.bf16.msra.mxu0 %v932
        %1062 = vmatprep.subr.bf16.mxu0 %v935
        %1063 = vmatpush1.bf16.msra.mxu0 %v934
        %1064 = vmatprep.subr.bf16.mxu0 %v937
        %1065 = vmatpush1.bf16.msra.mxu0 %v936
        %1066 = vmatprep.subr.bf16.mxu0 %v939
        %1067 = vmatpush1.bf16.msra.mxu0 %v938
        %1068 = vmatprep.subr.bf16.mxu0 %v941
        %1069 = vmatpush1.bf16.msra.mxu0 %v940
        %1070 = vmatprep.subr.bf16.mxu0 %v943
        %1071 = vmatpush1.bf16.msra.mxu0 %v942
        %1072 = vmatprep.subr.bf16.mxu0 %v945
        %1073 = vmatpush1.bf16.msra.mxu0 %v944
        %1074 = vmatprep.subr.bf16.mxu0 %v947
        %1075 = vmatpush1.bf16.msra.mxu0 %v946
        %1076 = vmatprep.subr.bf16.mxu0 %v949
        %1077 = vmatpush1.bf16.msra.mxu0 %v948
        %1078 = vmatprep.subr.bf16.mxu0 %v951
        %1079 = vmatpush1.bf16.msra.mxu0 %v950
        %1080 = vmatprep.mubr.bf16.mxu0 %v697
        %1081 = vmatmul.mubr.bf16.gmra.mrb[0].mxu0 %v696
        %v1082 = vpop.f32.mrb[0].mxu0
        %v1083 = vadd.f32 0.0, %v1082
        %v1084 = vpop.f32.mrb[0].mxu0
        %v1085 = vadd.f32 0.0, %v1084
        %v1086 = vpop.f32.mrb[0].mxu0
        %v1087 = vadd.f32 0.0, %v1086
        %v1088 = vpop.f32.mrb[0].mxu0
        %v1089 = vadd.f32 0.0, %v1088
        %1090 = vmatprep.mubr.bf16.mxu0 %v701
        %1091 = vmatmul.mubr.bf16.gmra.mrb[0].mxu0 %v700
        %v1092 = vpop.f32.mrb[0].mxu0
        %v1093 = vadd.f32 0.0, %v1092
        %v1094 = vpop.f32.mrb[0].mxu0
        %v1095 = vadd.f32 0.0, %v1094
        %v1096 = vpop.f32.mrb[0].mxu0
        %v1097 = vadd.f32 0.0, %v1096
        %v1098 = vpop.f32.mrb[0].mxu0
        %v1099 = vadd.f32 0.0, %v1098
        %1100 = vmatprep.mubr.bf16.mxu0 %v705
        %1101 = vmatmul.mubr.bf16.gmra.mrb[0].mxu0 %v704
        %v1102 = vpop.f32.mrb[0].mxu0
        %v1103 = vadd.f32 0.0, %v1102
        %v1104 = vpop.f32.mrb[0].mxu0
        %v1105 = vadd.f32 0.0, %v1104
        %v1106 = vpop.f32.mrb[0].mxu0
        %v1107 = vadd.f32 0.0, %v1106
        %v1108 = vpop.f32.mrb[0].mxu0
        %v1109 = vadd.f32 0.0, %v1108
        %1110 = vmatprep.mubr.bf16.mxu0 %v709
        %1111 = vmatmul.mubr.bf16.gmra.mrb[0].mxu0 %v708
        %v1112 = vpop.f32.mrb[0].mxu0
        %v1113 = vadd.f32 0.0, %v1112
        %v1114 = vpop.f32.mrb[0].mxu0
        %v1115 = vadd.f32 0.0, %v1114
        %v1116 = vpop.f32.mrb[0].mxu0
        %v1117 = vadd.f32 0.0, %v1116
        %v1118 = vpop.f32.mrb[0].mxu0
        %v1119 = vadd.f32 0.0, %v1118
        %1120 = vdwg.mxu0
        %1121 = vmatprep.subr.bf16.mxu0 %v953
        %1122 = vmatpush1.bf16.msra.mxu0 %v952
        %1123 = vmatprep.subr.bf16.mxu0 %v955
        %1124 = vmatpush1.bf16.msra.mxu0 %v954
        %1125 = vmatprep.subr.bf16.mxu0 %v957
        %1126 = vmatpush1.bf16.msra.mxu0 %v956
        %1127 = vmatprep.subr.bf16.mxu0 %v959
        %1128 = vmatpush1.bf16.msra.mxu0 %v958
        %1129 = vmatprep.subr.bf16.mxu0 %v961
        %1130 = vmatpush1.bf16.msra.mxu0 %v960
        %1131 = vmatprep.subr.bf16.mxu0 %v963
        %1132 = vmatpush1.bf16.msra.mxu0 %v962
        %1133 = vmatprep.subr.bf16.mxu0 %v965
        %1134 = vmatpush1.bf16.msra.mxu0 %v964
        %1135 = vmatprep.subr.bf16.mxu0 %v967
        %1136 = vmatpush1.bf16.msra.mxu0 %v966
        %1137 = vmatprep.subr.bf16.mxu0 %v969
        %1138 = vmatpush1.bf16.msra.mxu0 %v968
        %1139 = vmatprep.subr.bf16.mxu0 %v971
        %1140 = vmatpush1.bf16.msra.mxu0 %v970
        %1141 = vmatprep.subr.bf16.mxu0 %v973
        %1142 = vmatpush1.bf16.msra.mxu0 %v972
        %1143 = vmatprep.subr.bf16.mxu0 %v975
        %1144 = vmatpush1.bf16.msra.mxu0 %v974
        %1145 = vmatprep.subr.bf16.mxu0 %v977
        %1146 = vmatpush1.bf16.msra.mxu0 %v976
        %1147 = vmatprep.subr.bf16.mxu0 %v979
        %1148 = vmatpush1.bf16.msra.mxu0 %v978
        %1149 = vmatprep.subr.bf16.mxu0 %v981
        %1150 = vmatpush1.bf16.msra.mxu0 %v980
        %1151 = vmatprep.subr.bf16.mxu0 %v983
        %1152 = vmatpush1.bf16.msra.mxu0 %v982
        %1153 = vmatprep.mubr.bf16.mxu0 %v699
        %1154 = vmatmul.mubr.bf16.gmra.mrb[0].mxu0 %v698
        %v1155 = vpop.f32.mrb[0].mxu0
        %v1156 = vadd.f32 %v1083, %v1155
        %v1157 = vpop.f32.mrb[0].mxu0
        %v1158 = vadd.f32 %v1085, %v1157
        %v1159 = vpop.f32.mrb[0].mxu0
        %v1160 = vadd.f32 %v1087, %v1159
        %v1161 = vpop.f32.mrb[0].mxu0
        %v1162 = vadd.f32 %v1089, %v1161
        %1163 = vmatprep.mubr.bf16.mxu0 %v703
        %1164 = vmatmul.mubr.bf16.gmra.mrb[0].mxu0 %v702
        %v1165 = vpop.f32.mrb[0].mxu0
        %v1166 = vadd.f32 %v1093, %v1165
        %v1167 = vpop.f32.mrb[0].mxu0
        %v1168 = vadd.f32 %v1095, %v1167
        %v1169 = vpop.f32.mrb[0].mxu0
        %v1170 = vadd.f32 %v1097, %v1169
        %v1171 = vpop.f32.mrb[0].mxu0
        %v1172 = vadd.f32 %v1099, %v1171
        %1173 = vmatprep.mubr.bf16.mxu0 %v707
        %1174 = vmatmul.mubr.bf16.gmra.mrb[0].mxu0 %v706
        %v1175 = vpop.f32.mrb[0].mxu0
        %v1176 = vadd.f32 %v1103, %v1175
        %v1177 = vpop.f32.mrb[0].mxu0
        %v1178 = vadd.f32 %v1105, %v1177
        %v1179 = vpop.f32.mrb[0].mxu0
        %v1180 = vadd.f32 %v1107, %v1179
        %v1181 = vpop.f32.mrb[0].mxu0
        %v1182 = vadd.f32 %v1109, %v1181
        %1183 = vmatprep.mubr.bf16.mxu0 %v711
        %1184 = vmatmul.mubr.bf16.gmra.mrb[0].mxu0 %v710
        %v1185 = vpop.f32.mrb[0].mxu0
        %v1186 = vadd.f32 %v1113, %v1185
        %v1187 = vpop.f32.mrb[0].mxu0
        %v1188 = vadd.f32 %v1115, %v1187
        %v1189 = vpop.f32.mrb[0].mxu0
        %v1190 = vadd.f32 %v1117, %v1189
        %v1191 = vpop.f32.mrb[0].mxu0
        %v1192 = vadd.f32 %v1119, %v1191
        %1193 = vdwg.mxu0
        %v1194 = vadd.f32 %v552, %v1156
        %v1195 = vadd.f32 %v553, %v1158
        %v1196 = vadd.f32 %v554, %v1160
        %v1197 = vadd.f32 %v555, %v1162
        %v1198 = vadd.f32 %v556, %v1166
        %v1199 = vadd.f32 %v557, %v1168
        %v1200 = vadd.f32 %v558, %v1170
        %v1201 = vadd.f32 %v559, %v1172
        %v1202 = vadd.f32 %v560, %v1176
        %v1203 = vadd.f32 %v561, %v1178
        %v1204 = vadd.f32 %v562, %v1180
        %v1205 = vadd.f32 %v563, %v1182
        %v1206 = vadd.f32 %v564, %v1186
        %v1207 = vadd.f32 %v565, %v1188
        %v1208 = vadd.f32 %v566, %v1190
        %v1209 = vadd.f32 %v567, %v1192
        %1210 = vst [vmem:[#allocation2] sm:$0xff] %v1194
        %1211 = vst [vmem:[#allocation2 + $0x8] sm:$0xff] %v1195
        %1212 = vst [vmem:[#allocation2 + $0x10] sm:$0xff] %v1196
        %1213 = vst [vmem:[#allocation2 + $0x18] sm:$0xff] %v1197
        %1214 = vst [vmem:[#allocation2 + $0x20] sm:$0xff] %v1198
        %1215 = vst [vmem:[#allocation2 + $0x28] sm:$0xff] %v1199
        %1216 = vst [vmem:[#allocation2 + $0x30] sm:$0xff] %v1200
        %1217 = vst [vmem:[#allocation2 + $0x38] sm:$0xff] %v1201
        %1218 = vst [vmem:[#allocation2 + $0x40] sm:$0xff] %v1202
        %1219 = vst [vmem:[#allocation2 + $0x48] sm:$0xff] %v1203
        %1220 = vst [vmem:[#allocation2 + $0x50] sm:$0xff] %v1204
        %1221 = vst [vmem:[#allocation2 + $0x58] sm:$0xff] %v1205
        %1222 = vst [vmem:[#allocation2 + $0x60] sm:$0xff] %v1206
        %1223 = vst [vmem:[#allocation2 + $0x68] sm:$0xff] %v1207
        %1224 = vst [vmem:[#allocation2 + $0x70] sm:$0xff] %v1208
        %1225 = vst [vmem:[#allocation2 + $0x78] sm:$0xff] %v1209
        %p1226 = scmp.eq.s32.totalorder %s20, 3
        // Predicated region
        $region94: #{generator_forward.16} parent=80 // pred_check
          %p1227 = pneg %p1226
        $region95: #{generator_forward.16} parent=80 // pred_check_branch
          %1229 = sbr.rel (%p1227) target = $region97
        $region96: #{generator_forward.16} parent=80 // pred_region
          %v1230 = vld [vmem:[#allocation2] sm:$0xff]
          %v1231 = vld [vmem:[#allocation2 + $0x8] sm:$0xff]
          %v1232 = vld [vmem:[#allocation2 + $0x10] sm:$0xff]
          %v1233 = vld [vmem:[#allocation2 + $0x18] sm:$0xff]
          %v1234 = vld [vmem:[#allocation2 + $0x20] sm:$0xff]
          %v1235 = vld [vmem:[#allocation2 + $0x28] sm:$0xff]
          %v1236 = vld [vmem:[#allocation2 + $0x30] sm:$0xff]
          %v1237 = vld [vmem:[#allocation2 + $0x38] sm:$0xff]
          %v1238 = vld [vmem:[#allocation2 + $0x40] sm:$0xff]
          %v1239 = vld [vmem:[#allocation2 + $0x48] sm:$0xff]
          %v1240 = vld [vmem:[#allocation2 + $0x50] sm:$0xff]
          %v1241 = vld [vmem:[#allocation2 + $0x58] sm:$0xff]
          %v1242 = vld [vmem:[#allocation2 + $0x60] sm:$0xff]
          %v1243 = vld [vmem:[#allocation2 + $0x68] sm:$0xff]
          %v1244 = vld [vmem:[#allocation2 + $0x70] sm:$0xff]
          %v1245 = vld [vmem:[#allocation2 + $0x78] sm:$0xff]
          %1246 = vst [vmem:[%s525] sm:$0xff] %v1230
          %1247 = vst [vmem:[%s525 + $0x8] sm:$0xff] %v1231
          %1248 = vst [vmem:[%s525 + $0x10] sm:$0xff] %v1232
          %1249 = vst [vmem:[%s525 + $0x18] sm:$0xff] %v1233
          %1250 = vst [vmem:[%s525 + $0x20] sm:$0xff] %v1234
          %1251 = vst [vmem:[%s525 + $0x28] sm:$0xff] %v1235
          %1252 = vst [vmem:[%s525 + $0x30] sm:$0xff] %v1236
          %1253 = vst [vmem:[%s525 + $0x38] sm:$0xff] %v1237
          %1254 = vst [vmem:[%s525 + $0x40] sm:$0xff] %v1238
          %1255 = vst [vmem:[%s525 + $0x48] sm:$0xff] %v1239
          %1256 = vst [vmem:[%s525 + $0x50] sm:$0xff] %v1240
          %1257 = vst [vmem:[%s525 + $0x58] sm:$0xff] %v1241
          %1258 = vst [vmem:[%s525 + $0x60] sm:$0xff] %v1242
          %1259 = vst [vmem:[%s525 + $0x68] sm:$0xff] %v1243
          %1260 = vst [vmem:[%s525 + $0x70] sm:$0xff] %v1244
          %1261 = vst [vmem:[%s525 + $0x78] sm:$0xff] %v1245
        $region97: #{generator_forward.16} parent=80 // pred_fallthru
          _
        %s1262 = sand.u32 %s98, 1
        %s1263 = sand.u32 %s98, 1
        %s1264 = smul.addr %s1263, 128
        %s1265 = scalar_lea.vmem [#allocation5], %s1264
        // Predicated region
        $region98: #{generator_forward.16} parent=80 // pred_check
          %p1266 = pneg %p108
        $region99: #{generator_forward.16} parent=80 // pred_check_branch
          %1268 = sbr.rel (%p1266) target = $region101
        $region100: #{generator_forward.16} parent=80 // pred_region
          %s1269 = smul.u32 8, %s18
          %s1270 = smul.u32 2, %s19
          %s1271 = smul.addr %s1269, 8
          %s1272 = sadd.s32 %s1270, %s1271
          %s1273 = smul.addr %s1272, 8
          %s1274 = scalar_lea.vmem %s2, %s1273
          // Predicated region
          $region102: #{generator_forward.16} parent=100 // pred_check
            _
          $region103: #{generator_forward.16} parent=100 // pred_check_branch
            %1276 = sbr.rel (0) target = $region105
          $region104: #{generator_forward.16} parent=100 // pred_region
            // Predicated region
            $region106: #{generator_forward.16} parent=104 // pred_check
              _
            $region107: #{generator_forward.16} parent=104 // pred_check_branch
              %1278 = sbr.rel (0) target = $region109
            $region108: #{generator_forward.16} parent=104 // pred_region
              loop: start=0, step=1, limit=1
              $region110: #{generator_forward.16} parent=108 // loop_pre_header
                _
              $region111: #{generator_forward.16} parent=108 // loop_header
                %s1280 = sphi 0, %s1284
                %p1281 = scmp.ge.s32.totalorder %s1280, 1
                %s1285 = sphi %s1265, %s1265
                %s1286 = sphi %s1274, %s1274
              $region112: #{generator_forward.16} parent=108 // loop_header_branch
                %1283 = sbr.rel (%p1281) target = $region116
              $region113: #{generator_forward.16} parent=108 // loop_body
                %v1287 = vld [vmem:[%s1285] sm:$0xff]
                %1288 = vst [vmem:[%s1286] sm:$0xff] %v1287
                %v1289 = vld [vmem:[%s1285 + $0x8] sm:$0xff]
                %1290 = vst [vmem:[%s1286 + $0x8] sm:$0xff] %v1289
                %v1291 = vld [vmem:[%s1285 + $0x10] sm:$0xff]
                %1292 = vst [vmem:[%s1286 + $0x40] sm:$0xff] %v1291
                %v1293 = vld [vmem:[%s1285 + $0x18] sm:$0xff]
                %1294 = vst [vmem:[%s1286 + $0x48] sm:$0xff] %v1293
                %v1295 = vld [vmem:[%s1285 + $0x20] sm:$0xff]
                %1296 = vst [vmem:[%s1286 + $0x80] sm:$0xff] %v1295
                %v1297 = vld [vmem:[%s1285 + $0x28] sm:$0xff]
                %1298 = vst [vmem:[%s1286 + $0x88] sm:$0xff] %v1297
                %v1299 = vld [vmem:[%s1285 + $0x30] sm:$0xff]
                %1300 = vst [vmem:[%s1286 + $0xc0] sm:$0xff] %v1299
                %v1301 = vld [vmem:[%s1285 + $0x38] sm:$0xff]
                %1302 = vst [vmem:[%s1286 + $0xc8] sm:$0xff] %v1301
                %v1303 = vld [vmem:[%s1285 + $0x40] sm:$0xff]
                %1304 = vst [vmem:[%s1286 + $0x100] sm:$0xff] %v1303
                %v1305 = vld [vmem:[%s1285 + $0x48] sm:$0xff]
                %1306 = vst [vmem:[%s1286 + $0x108] sm:$0xff] %v1305
                %v1307 = vld [vmem:[%s1285 + $0x50] sm:$0xff]
                %1308 = vst [vmem:[%s1286 + $0x140] sm:$0xff] %v1307
                %v1309 = vld [vmem:[%s1285 + $0x58] sm:$0xff]
                %1310 = vst [vmem:[%s1286 + $0x148] sm:$0xff] %v1309
                %v1311 = vld [vmem:[%s1285 + $0x60] sm:$0xff]
                %1312 = vst [vmem:[%s1286 + $0x180] sm:$0xff] %v1311
                %v1313 = vld [vmem:[%s1285 + $0x68] sm:$0xff]
                %1314 = vst [vmem:[%s1286 + $0x188] sm:$0xff] %v1313
                %v1315 = vld [vmem:[%s1285 + $0x70] sm:$0xff]
                %1316 = vst [vmem:[%s1286 + $0x1c0] sm:$0xff] %v1315
                %v1317 = vld [vmem:[%s1285 + $0x78] sm:$0xff]
                %1318 = vst [vmem:[%s1286 + $0x1c8] sm:$0xff] %v1317
              $region114: #{generator_forward.16} parent=108 // loop_footer
                %s1284 = sadd.s32 1, %s1280
              $region115: #{generator_forward.16} parent=108 // loop_footer_branch
                %1279 = sbr.rel target = $region111
              $region116: #{generator_forward.16} parent=108 // loop_exit
                _
            $region109: #{generator_forward.16} parent=104 // pred_fallthru
              _
            // Predicated region
            $region117: #{generator_forward.16} parent=104 // pred_check
              _
            $region118: #{generator_forward.16} parent=104 // pred_check_branch
              %1320 = sbr.rel target = $region120
            $region119: #{generator_forward.16} parent=104 // pred_region
              _
            $region120: #{generator_forward.16} parent=104 // pred_fallthru
              _
          $region105: #{generator_forward.16} parent=100 // pred_fallthru
            _
          %1321 = vnop
        $region101: #{generator_forward.16} parent=80 // pred_fallthru
          _
      $region81: #{generator_forward.16} parent=5 // pred_fallthru
        _
      %p1322 = scmp.le.s32.totalorder 2, %s8
      // Predicated region
      $region121: #{generator_forward.16} parent=5 // pred_check
        %p1323 = pneg %p1322
      $region122: #{generator_forward.16} parent=5 // pred_check_branch
        %1325 = sbr.rel (%p1323) target = $region124
      $region123: #{generator_forward.16} parent=5 // pred_region
        %s1326 = ssub.s32 %s8, 2
        // Predicated region
        $region125: #{generator_forward.16} parent=123 // pred_check
          %p1327 = pneg %p114
        $region126: #{generator_forward.16} parent=123 // pred_check_branch
          %1329 = sbr.rel (%p1327) target = $region128
        $region127: #{generator_forward.16} parent=123 // pred_region
          %s1330 = sand.u32 %s99, 1
          %s1331 = sand.u32 %s99, 1
          %s1332 = smul.addr %s1331, 128
          %s1333 = scalar_lea.vmem [#allocation5], %s1332
        $region128: #{generator_forward.16} parent=123 // pred_fallthru
          _
      $region124: #{generator_forward.16} parent=5 // pred_fallthru
        _
    $region6: #{generator_forward.16} parent=1 // loop_footer
      %s12 = sadd.s32 1, %s8
    $region7: #{generator_forward.16} parent=1 // loop_footer_branch
      %7 = sbr.rel target = $region3
    $region8: #{generator_forward.16} parent=1 // loop_exit
      _

// kernel: generator_forward.17
$region0: #{generator_forward.17}
  #allocation0 [shape = 'u32[]', space=smem, size = 0x4, offset = 0x4, fixed_abs, tag = 'smem constant byte address 0x4 - core index']
  #allocation1 [shape = 'u32[144,128]{1,0:T(1,128)}', space=vmem, size = 0x12000, scoped, tag = 'internal scratch']
  %s0 = inlined_call_operand.vmem [shape: f32[128,256], index: 0, kind: input, shape index: {}]
  %s1 = inlined_call_operand.vmem [shape: f32[1,256], index: 1, kind: output, shape index: {0}]
  %s2 = inlined_call_operand.vmem [shape: f32[1,256], index: 2, kind: output, shape index: {1}]
  %3 = xla_tuple %s1, %s2
  %s4 = sld [smem:[#allocation0]]
  $region49: #{generator_forward.17} parent=0
    _
  %s6 = ssub.s32 1, %s4
  %s7 = scalar_select 0, %s6, %s4
  loop: start=0, step=1, limit=4
  $region2: #{generator_forward.17} parent=0 // loop_pre_header
    _
  $region3: #{generator_forward.17} parent=0 // loop_header
    %s9 = sphi 0, %s13
    %p10 = scmp.ge.s32.totalorder %s9, 4
    %s19 = sphi 0, %s21
    %s22 = sphi 0, %s19
    %s23 = sphi 0, %s22
    %s39 = sphi 0, %s23
    %s43 = sphi 0, %s43
    %s45 = sphi 0, %s43
    %s46 = sphi 0, %s45
    %s60 = sphi 0, %s46
    %s64 = sphi 0, %s64
    %s66 = sphi 0, %s64
    %s67 = sphi 0, %s66
    %s81 = sphi 0, %s67
  $region4: #{generator_forward.17} parent=0 // loop_header_branch
    %12 = sbr.rel (%p10) target = $region8
  $region5: #{generator_forward.17} parent=0 // loop_body
    %s14 = ssub.s32 %s9, 1
    %s15 = ssub.s32 %s9, 2
    %s16 = sadd.s32 %s9, 1
    %s17 = ssub.s32 %s9, %s16
    %p18 = scmp.eq.s32.totalorder %s17, 0
    %s20 = sadd.s32 %s19, 1
    %s21 = scalar_select %p18, %s19, %s20
    %p24 = pneg %p18
    %p25 = scmp.eq.s32.totalorder %s9, 1
    %p26 = por %p24, %p25
    %p27 = scmp.ne.s32.totalorder %s19, %s22
    %p28 = scmp.eq.s32.totalorder %s9, 0
    %p29 = por %p27, %p28
    %p30 = scmp.ne.s32.totalorder %s19, %s22
    %p31 = scmp.eq.s32.totalorder %s14, 1
    %p32 = por %p30, %p31
    %p33 = scmp.ne.s32.totalorder %s22, %s23
    %p34 = scmp.eq.s32.totalorder %s14, 0
    %p35 = por %p33, %p34
    %p36 = scmp.ne.s32.totalorder %s22, %s23
    %p37 = scmp.eq.s32.totalorder %s15, 1
    %p38 = por %p36, %p37
    %p40 = scmp.ne.s32.totalorder %s23, %s39
    %p41 = scmp.eq.s32.totalorder %s15, 0
    %p42 = por %p40, %p41
    %s44 = sadd.s32 %s43, 1
    %p47 = scmp.eq.s32.totalorder %s9, 1
    %p48 = scmp.ne.s32.totalorder %s43, %s45
    %p49 = scmp.eq.s32.totalorder %s9, 0
    %p50 = por %p48, %p49
    %p51 = scmp.ne.s32.totalorder %s43, %s45
    %p52 = scmp.eq.s32.totalorder %s14, 1
    %p53 = por %p51, %p52
    %p54 = scmp.ne.s32.totalorder %s45, %s46
    %p55 = scmp.eq.s32.totalorder %s14, 0
    %p56 = por %p54, %p55
    %p57 = scmp.ne.s32.totalorder %s45, %s46
    %p58 = scmp.eq.s32.totalorder %s15, 1
    %p59 = por %p57, %p58
    %p61 = scmp.ne.s32.totalorder %s46, %s60
    %p62 = scmp.eq.s32.totalorder %s15, 0
    %p63 = por %p61, %p62
    %s65 = sadd.s32 %s64, 1
    %p68 = scmp.eq.s32.totalorder %s9, 1
    %p69 = scmp.ne.s32.totalorder %s64, %s66
    %p70 = scmp.eq.s32.totalorder %s9, 0
    %p71 = por %p69, %p70
    %p72 = scmp.ne.s32.totalorder %s64, %s66
    %p73 = scmp.eq.s32.totalorder %s14, 1
    %p74 = por %p72, %p73
    %p75 = scmp.ne.s32.totalorder %s66, %s67
    %p76 = scmp.eq.s32.totalorder %s14, 0
    %p77 = por %p75, %p76
    %p78 = scmp.ne.s32.totalorder %s66, %s67
    %p79 = scmp.eq.s32.totalorder %s15, 1
    %p80 = por %p78, %p79
    %p82 = scmp.ne.s32.totalorder %s67, %s81
    %p83 = scmp.eq.s32.totalorder %s15, 0
    %p84 = por %p82, %p83
    %p85 = scmp.le.s32.totalorder 1, %s9
    %p86 = scmp.lt.s32.totalorder %s9, 3
    %p87 = pnand %p85, %p86
    %p88 = pneg %p87
    // Predicated region
    $region9: #{generator_forward.17} parent=5 // pred_check
      _
    $region10: #{generator_forward.17} parent=5 // pred_check_branch
      %90 = sbr.rel (%p87) target = $region12
    $region11: #{generator_forward.17} parent=5 // pred_region
      %s91 = ssub.s32 %s9, 1
    $region12: #{generator_forward.17} parent=5 // pred_fallthru
      _
    %p92 = scmp.lt.s32.totalorder %s9, 2
    // Predicated region
    $region13: #{generator_forward.17} parent=5 // pred_check
      %p93 = pneg %p92
    $region14: #{generator_forward.17} parent=5 // pred_check_branch
      %95 = sbr.rel (%p93) target = $region16
    $region15: #{generator_forward.17} parent=5 // pred_region
      // Predicated region
      $region17: #{generator_forward.17} parent=15 // pred_check
        %p96 = pneg %p29
      $region18: #{generator_forward.17} parent=15 // pred_check_branch
        %98 = sbr.rel (%p96) target = $region20
      $region19: #{generator_forward.17} parent=15 // pred_region
        %s99 = smul.u32 8, %s9
        %p100 = scmp.lt.s32.totalorder %s99, 15
        %s101 = scalar_select %p100, %s99, 15
        %s102 = smul.addr %s101, 2
        %s103 = smul.addr %s102, 8
        %s104 = scalar_lea.vmem %s0, %s103
        %s105 = smul.u32 8, %s9
      $region20: #{generator_forward.17} parent=15 // pred_fallthru
        _
    $region16: #{generator_forward.17} parent=5 // pred_fallthru
      _
    %p106 = scmp.le.s32.totalorder 1, %s9
    %p107 = scmp.lt.s32.totalorder %s9, 3
    %p108 = pnand %p106, %p107
    %p109 = pneg %p108
    // Predicated region
    $region21: #{generator_forward.17} parent=5 // pred_check
      _
    $region22: #{generator_forward.17} parent=5 // pred_check_branch
      %111 = sbr.rel (%p108) target = $region24
    $region23: #{generator_forward.17} parent=5 // pred_region
      %s112 = ssub.s32 %s9, 1
      %s113 = smul.u32 8, %s14
      %p114 = scmp.lt.s32.totalorder %s113, 15
      %s115 = scalar_select %p114, %s113, 15
      %s116 = smul.addr %s115, 2
      %s117 = smul.addr %s116, 8
      %s118 = scalar_lea.vmem %s0, %s117
      %p119 = pneg %p35
      %p120 = pneg %p32
      %p121 = pneg %p56
      %p122 = pneg %p53
      %p123 = pneg %p77
      %p124 = pneg %p74
      %s125 = smul.u32 8, %s14
      %p126 = scmp.lt.s32.totalorder %s125, 15
      %s127 = scalar_select %p126, %s125, 15
      %s128 = smul.addr %s127, 2
      %s129 = smul.addr %s128, 8
      %s130 = scalar_lea.vmem %s0, %s129
      %s131 = smul.u32 8, %s14
      %p132 = scmp.eq.s32.totalorder %s14, 0
      // Predicated region
      $region25: #{generator_forward.17} parent=23 // pred_check
        %p133 = pneg %p132
      $region26: #{generator_forward.17} parent=23 // pred_check_branch
        %135 = sbr.rel (%p133) target = $region28
      $region27: #{generator_forward.17} parent=23 // pred_region
        %v136 = vlaneseq
        %vm137 = vcmp.ge.s32.totalorder %v136, 0
        %vm138 = vcmp.lt.s32.totalorder %v136, 256
        %vm139 = vmand %vm137, %vm138
        %140 = vst.msk [vmem:[%s1] sm:$0x3] %vm139, 0.0
        %141 = vst.msk [vmem:[%s2] sm:$0x3] %vm139, 0.0
      $region28: #{generator_forward.17} parent=23 // pred_fallthru
        _
      %v142 = vld [vmem:[%s130] sm:$0xff]
      %v143 = vld [vmem:[%s130 + $0x8] sm:$0xff]
      %v144 = vld [vmem:[%s130 + $0x10] sm:$0xff]
      %v145 = vld [vmem:[%s130 + $0x18] sm:$0xff]
      %v146 = vld [vmem:[%s130 + $0x20] sm:$0xff]
      %v147 = vld [vmem:[%s130 + $0x28] sm:$0xff]
      %v148 = vld [vmem:[%s130 + $0x30] sm:$0xff]
      %v149 = vld [vmem:[%s130 + $0x38] sm:$0xff]
      %v150 = vld [vmem:[%s130 + $0x40] sm:$0xff]
      %v151 = vld [vmem:[%s130 + $0x48] sm:$0xff]
      %v152 = vld [vmem:[%s130 + $0x50] sm:$0xff]
      %v153 = vld [vmem:[%s130 + $0x58] sm:$0xff]
      %v154 = vld [vmem:[%s130 + $0x60] sm:$0xff]
      %v155 = vld [vmem:[%s130 + $0x68] sm:$0xff]
      %v156 = vld [vmem:[%s130 + $0x70] sm:$0xff]
      %v157 = vld [vmem:[%s130 + $0x78] sm:$0xff]
      %v158 = vld [vmem:[%s1] sm:$0x3]
      %v159 = vadd.f32 %v142, %v144
      %v160 = vadd.f32 %v159, %v146
      %v161 = vadd.f32 %v160, %v148
      %v162 = vadd.f32 %v161, %v150
      %v163 = vadd.f32 %v162, %v152
      %v164 = vadd.f32 %v163, %v154
      %v165 = vadd.f32 %v164, %v156
      %v166 = vrot.slane %v165, 4
      %v167 = vadd.f32 %v165, %v166
      %v168 = vrot.slane %v167, 2
      %v169 = vadd.f32 %v167, %v168
      %v170 = vrot.slane %v169, 1
      %v171 = vadd.f32 %v169, %v170
      %v172 = vadd.f32 %v143, %v145
      %v173 = vadd.f32 %v172, %v147
      %v174 = vadd.f32 %v173, %v149
      %v175 = vadd.f32 %v174, %v151
      %v176 = vadd.f32 %v175, %v153
      %v177 = vadd.f32 %v176, %v155
      %v178 = vadd.f32 %v177, %v157
      %v179 = vrot.slane %v178, 4
      %v180 = vadd.f32 %v178, %v179
      %v181 = vrot.slane %v180, 2
      %v182 = vadd.f32 %v180, %v181
      %v183 = vrot.slane %v182, 1
      %v184 = vadd.f32 %v182, %v183
      %v187 = vcombine.low %v171, %v184
      %v189 = vunpack.c.l.s4 1966171168
      %v190 = vunpack.c.0.s8 %v189
      %v191 = vlaneseq
      %v192 = vshrl.u32 %v191, 7
      %v193 = vsub.s32 %v190, %v192
      %v194 = vrot.slane %v187, %v193
      %v196 = vunpack.c.l.s4 1966171168
      %v197 = vunpack.c.0.s8 %v196
      %v198 = vlaneseq
      %v199 = vshrl.u32 %v198, 7
      %v200 = vsub.s32 %v197, %v199
      %v201 = vrot.slane %v194, %v200
      %v203 = vadd.f32 %v158, %v201
      %v204 = vlaneseq
      %vm205 = vcmp.ge.s32.totalorder %v204, 0
      %vm206 = vcmp.lt.s32.totalorder %v204, 256
      %vm207 = vmand %vm205, %vm206
      %208 = vst.msk [vmem:[%s1] sm:$0x3] %vm207, %v203
      %v209 = vld [vmem:[%s2] sm:$0x3]
      %v210 = vmul.f32 %v142, %v142
      %v211 = vmul.f32 %v143, %v143
      %v212 = vmul.f32 %v144, %v144
      %v213 = vmul.f32 %v145, %v145
      %v214 = vmul.f32 %v146, %v146
      %v215 = vmul.f32 %v147, %v147
      %v216 = vmul.f32 %v148, %v148
      %v217 = vmul.f32 %v149, %v149
      %v218 = vmul.f32 %v150, %v150
      %v219 = vmul.f32 %v151, %v151
      %v220 = vmul.f32 %v152, %v152
      %v221 = vmul.f32 %v153, %v153
      %v222 = vmul.f32 %v154, %v154
      %v223 = vmul.f32 %v155, %v155
      %v224 = vmul.f32 %v156, %v156
      %v225 = vmul.f32 %v157, %v157
      %v226 = vadd.f32 %v210, %v212
      %v227 = vadd.f32 %v226, %v214
      %v228 = vadd.f32 %v227, %v216
      %v229 = vadd.f32 %v228, %v218
      %v230 = vadd.f32 %v229, %v220
      %v231 = vadd.f32 %v230, %v222
      %v232 = vadd.f32 %v231, %v224
      %v233 = vrot.slane %v232, 4
      %v234 = vadd.f32 %v232, %v233
      %v235 = vrot.slane %v234, 2
      %v236 = vadd.f32 %v234, %v235
      %v237 = vrot.slane %v236, 1
      %v238 = vadd.f32 %v236, %v237
      %v239 = vadd.f32 %v211, %v213
      %v240 = vadd.f32 %v239, %v215
      %v241 = vadd.f32 %v240, %v217
      %v242 = vadd.f32 %v241, %v219
      %v243 = vadd.f32 %v242, %v221
      %v244 = vadd.f32 %v243, %v223
      %v245 = vadd.f32 %v244, %v225
      %v246 = vrot.slane %v245, 4
      %v247 = vadd.f32 %v245, %v246
      %v248 = vrot.slane %v247, 2
      %v249 = vadd.f32 %v247, %v248
      %v250 = vrot.slane %v249, 1
      %v251 = vadd.f32 %v249, %v250
      %v254 = vcombine.low %v238, %v251
      %v256 = vunpack.c.l.s4 1966171168
      %v257 = vunpack.c.0.s8 %v256
      %v258 = vlaneseq
      %v259 = vshrl.u32 %v258, 7
      %v260 = vsub.s32 %v257, %v259
      %v261 = vrot.slane %v254, %v260
      %v263 = vunpack.c.l.s4 1966171168
      %v264 = vunpack.c.0.s8 %v263
      %v265 = vlaneseq
      %v266 = vshrl.u32 %v265, 7
      %v267 = vsub.s32 %v264, %v266
      %v268 = vrot.slane %v261, %v267
      %v270 = vadd.f32 %v209, %v268
      %271 = vst.msk [vmem:[%s2] sm:$0x3] %vm207, %v270
      // Predicated region
      $region29: #{generator_forward.17} parent=23 // pred_check
        %p272 = pneg %p53
      $region30: #{generator_forward.17} parent=23 // pred_check_branch
        %274 = sbr.rel (%p272) target = $region32
      $region31: #{generator_forward.17} parent=23 // pred_region
        _
      $region32: #{generator_forward.17} parent=23 // pred_fallthru
        _
      // Predicated region
      $region33: #{generator_forward.17} parent=23 // pred_check
        %p275 = pneg %p74
      $region34: #{generator_forward.17} parent=23 // pred_check_branch
        %277 = sbr.rel (%p275) target = $region36
      $region35: #{generator_forward.17} parent=23 // pred_region
        _
      $region36: #{generator_forward.17} parent=23 // pred_fallthru
        _
      // Predicated region
      $region37: #{generator_forward.17} parent=23 // pred_check
        %p278 = pneg %p53
      $region38: #{generator_forward.17} parent=23 // pred_check_branch
        %280 = sbr.rel (%p278) target = $region40
      $region39: #{generator_forward.17} parent=23 // pred_region
        _
      $region40: #{generator_forward.17} parent=23 // pred_fallthru
        _
      // Predicated region
      $region41: #{generator_forward.17} parent=23 // pred_check
        %p281 = pneg %p74
      $region42: #{generator_forward.17} parent=23 // pred_check_branch
        %283 = sbr.rel (%p281) target = $region44
      $region43: #{generator_forward.17} parent=23 // pred_region
        _
      $region44: #{generator_forward.17} parent=23 // pred_fallthru
        _
    $region24: #{generator_forward.17} parent=5 // pred_fallthru
      _
    %p284 = scmp.le.s32.totalorder 2, %s9
    // Predicated region
    $region45: #{generator_forward.17} parent=5 // pred_check
      %p285 = pneg %p284
    $region46: #{generator_forward.17} parent=5 // pred_check_branch
      %287 = sbr.rel (%p285) target = $region48
    $region47: #{generator_forward.17} parent=5 // pred_region
      %s288 = ssub.s32 %s9, 2
    $region48: #{generator_forward.17} parent=5 // pred_fallthru
      _
  $region6: #{generator_forward.17} parent=0 // loop_footer
    %s13 = sadd.s32 1, %s9
  $region7: #{generator_forward.17} parent=0 // loop_footer_branch
    %8 = sbr.rel target = $region3
  $region8: #{generator_forward.17} parent=0 // loop_exit
    _

// kernel: generator_forward.18
$region0: #{generator_forward.18}
  #allocation0 [shape = 'u32[]', space=smem, size = 0x4, offset = 0x4, fixed_abs, tag = 'smem constant byte address 0x4 - core index']
  #allocation1 [shape = 'u32[144,128]{1,0:T(1,128)}', space=vmem, size = 0x12000, scoped, tag = 'internal scratch']
  %s0 = inlined_call_operand.vmem [shape: f32[128,256], index: 0, kind: input, shape index: {}]
  %s1 = inlined_call_operand.vmem [shape: f32[1,256], index: 1, kind: input, shape index: {}]
  %s2 = inlined_call_operand.vmem [shape: f32[1,256], index: 2, kind: input, shape index: {}]
  %s3 = inlined_call_operand.vmem [shape: bf16[128,256], index: 3, kind: output, shape index: {}]
  %s4 = sld [smem:[#allocation0]]
  $region45: #{generator_forward.18} parent=0
    _
  %s6 = ssub.s32 1, %s4
  %s7 = scalar_select 0, %s6, %s4
  loop: start=0, step=1, limit=4
  $region2: #{generator_forward.18} parent=0 // loop_pre_header
    _
  $region3: #{generator_forward.18} parent=0 // loop_header
    %s9 = sphi 0, %s13
    %p10 = scmp.ge.s32.totalorder %s9, 4
    %s19 = sphi 0, %s21
    %s22 = sphi 0, %s19
    %s23 = sphi 0, %s22
    %s39 = sphi 0, %s23
    %s43 = sphi 0, %s43
    %s45 = sphi 0, %s43
    %s46 = sphi 0, %s45
    %s60 = sphi 0, %s46
    %s64 = sphi 0, %s64
    %s66 = sphi 0, %s64
    %s67 = sphi 0, %s66
    %s81 = sphi 0, %s67
    %s87 = sphi 0, %s89
    %s90 = sphi 0, %s87
    %s91 = sphi 0, %s90
    %s107 = sphi 0, %s91
  $region4: #{generator_forward.18} parent=0 // loop_header_branch
    %12 = sbr.rel (%p10) target = $region8
  $region5: #{generator_forward.18} parent=0 // loop_body
    %s14 = ssub.s32 %s9, 1
    %s15 = ssub.s32 %s9, 2
    %s16 = sadd.s32 %s9, 1
    %s17 = ssub.s32 %s9, %s16
    %p18 = scmp.eq.s32.totalorder %s17, 0
    %s20 = sadd.s32 %s19, 1
    %s21 = scalar_select %p18, %s19, %s20
    %p24 = pneg %p18
    %p25 = scmp.eq.s32.totalorder %s9, 1
    %p26 = por %p24, %p25
    %p27 = scmp.ne.s32.totalorder %s19, %s22
    %p28 = scmp.eq.s32.totalorder %s9, 0
    %p29 = por %p27, %p28
    %p30 = scmp.ne.s32.totalorder %s19, %s22
    %p31 = scmp.eq.s32.totalorder %s14, 1
    %p32 = por %p30, %p31
    %p33 = scmp.ne.s32.totalorder %s22, %s23
    %p34 = scmp.eq.s32.totalorder %s14, 0
    %p35 = por %p33, %p34
    %p36 = scmp.ne.s32.totalorder %s22, %s23
    %p37 = scmp.eq.s32.totalorder %s15, 1
    %p38 = por %p36, %p37
    %p40 = scmp.ne.s32.totalorder %s23, %s39
    %p41 = scmp.eq.s32.totalorder %s15, 0
    %p42 = por %p40, %p41
    %s44 = sadd.s32 %s43, 1
    %p47 = scmp.eq.s32.totalorder %s9, 1
    %p48 = scmp.ne.s32.totalorder %s43, %s45
    %p49 = scmp.eq.s32.totalorder %s9, 0
    %p50 = por %p48, %p49
    %p51 = scmp.ne.s32.totalorder %s43, %s45
    %p52 = scmp.eq.s32.totalorder %s14, 1
    %p53 = por %p51, %p52
    %p54 = scmp.ne.s32.totalorder %s45, %s46
    %p55 = scmp.eq.s32.totalorder %s14, 0
    %p56 = por %p54, %p55
    %p57 = scmp.ne.s32.totalorder %s45, %s46
    %p58 = scmp.eq.s32.totalorder %s15, 1
    %p59 = por %p57, %p58
    %p61 = scmp.ne.s32.totalorder %s46, %s60
    %p62 = scmp.eq.s32.totalorder %s15, 0
    %p63 = por %p61, %p62
    %s65 = sadd.s32 %s64, 1
    %p68 = scmp.eq.s32.totalorder %s9, 1
    %p69 = scmp.ne.s32.totalorder %s64, %s66
    %p70 = scmp.eq.s32.totalorder %s9, 0
    %p71 = por %p69, %p70
    %p72 = scmp.ne.s32.totalorder %s64, %s66
    %p73 = scmp.eq.s32.totalorder %s14, 1
    %p74 = por %p72, %p73
    %p75 = scmp.ne.s32.totalorder %s66, %s67
    %p76 = scmp.eq.s32.totalorder %s14, 0
    %p77 = por %p75, %p76
    %p78 = scmp.ne.s32.totalorder %s66, %s67
    %p79 = scmp.eq.s32.totalorder %s15, 1
    %p80 = por %p78, %p79
    %p82 = scmp.ne.s32.totalorder %s67, %s81
    %p83 = scmp.eq.s32.totalorder %s15, 0
    %p84 = por %p82, %p83
    %s85 = ssub.s32 %s9, %s16
    %p86 = scmp.eq.s32.totalorder %s85, 0
    %s88 = sadd.s32 %s87, 1
    %s89 = scalar_select %p86, %s87, %s88
    %p92 = pneg %p86
    %p93 = scmp.eq.s32.totalorder %s9, 1
    %p94 = por %p92, %p93
    %p95 = scmp.ne.s32.totalorder %s87, %s90
    %p96 = scmp.eq.s32.totalorder %s9, 0
    %p97 = por %p95, %p96
    %p98 = scmp.ne.s32.totalorder %s87, %s90
    %p99 = scmp.eq.s32.totalorder %s14, 1
    %p100 = por %p98, %p99
    %p101 = scmp.ne.s32.totalorder %s90, %s91
    %p102 = scmp.eq.s32.totalorder %s14, 0
    %p103 = por %p101, %p102
    %p104 = scmp.ne.s32.totalorder %s90, %s91
    %p105 = scmp.eq.s32.totalorder %s15, 1
    %p106 = por %p104, %p105
    %p108 = scmp.ne.s32.totalorder %s91, %s107
    %p109 = scmp.eq.s32.totalorder %s15, 0
    %p110 = por %p108, %p109
    %p111 = scmp.le.s32.totalorder 1, %s9
    %p112 = scmp.lt.s32.totalorder %s9, 3
    %p113 = pnand %p111, %p112
    %p114 = pneg %p113
    // Predicated region
    $region9: #{generator_forward.18} parent=5 // pred_check
      _
    $region10: #{generator_forward.18} parent=5 // pred_check_branch
      %116 = sbr.rel (%p113) target = $region12
    $region11: #{generator_forward.18} parent=5 // pred_region
      %s117 = ssub.s32 %s9, 1
      // Predicated region
      $region13: #{generator_forward.18} parent=11 // pred_check
        %p118 = pneg %p56
      $region14: #{generator_forward.18} parent=11 // pred_check_branch
        %120 = sbr.rel (%p118) target = $region16
      $region15: #{generator_forward.18} parent=11 // pred_region
        _
      $region16: #{generator_forward.18} parent=11 // pred_fallthru
        _
      // Predicated region
      $region17: #{generator_forward.18} parent=11 // pred_check
        %p121 = pneg %p77
      $region18: #{generator_forward.18} parent=11 // pred_check_branch
        %123 = sbr.rel (%p121) target = $region20
      $region19: #{generator_forward.18} parent=11 // pred_region
        _
      $region20: #{generator_forward.18} parent=11 // pred_fallthru
        _
    $region12: #{generator_forward.18} parent=5 // pred_fallthru
      _
    %p124 = scmp.lt.s32.totalorder %s9, 2
    // Predicated region
    $region21: #{generator_forward.18} parent=5 // pred_check
      %p125 = pneg %p124
    $region22: #{generator_forward.18} parent=5 // pred_check_branch
      %127 = sbr.rel (%p125) target = $region24
    $region23: #{generator_forward.18} parent=5 // pred_region
      // Predicated region
      $region25: #{generator_forward.18} parent=23 // pred_check
        %p128 = pneg %p29
      $region26: #{generator_forward.18} parent=23 // pred_check_branch
        %130 = sbr.rel (%p128) target = $region28
      $region27: #{generator_forward.18} parent=23 // pred_region
        %s131 = smul.u32 8, %s9
        %p132 = scmp.lt.s32.totalorder %s131, 15
        %s133 = scalar_select %p132, %s131, 15
        %s134 = smul.addr %s133, 2
        %s135 = smul.addr %s134, 8
        %s136 = scalar_lea.vmem %s0, %s135
        %s137 = smul.u32 8, %s9
      $region28: #{generator_forward.18} parent=23 // pred_fallthru
        _
    $region24: #{generator_forward.18} parent=5 // pred_fallthru
      _
    %p138 = scmp.le.s32.totalorder 1, %s9
    %p139 = scmp.lt.s32.totalorder %s9, 3
    %p140 = pnand %p138, %p139
    %p141 = pneg %p140
    // Predicated region
    $region29: #{generator_forward.18} parent=5 // pred_check
      _
    $region30: #{generator_forward.18} parent=5 // pred_check_branch
      %143 = sbr.rel (%p140) target = $region32
    $region31: #{generator_forward.18} parent=5 // pred_region
      %s144 = ssub.s32 %s9, 1
      %s145 = smul.u32 8, %s14
      %p146 = scmp.lt.s32.totalorder %s145, 15
      %s147 = scalar_select %p146, %s145, 15
      %s148 = smul.addr %s147, 2
      %s149 = smul.addr %s148, 8
      %s150 = scalar_lea.vmem %s0, %s149
      %p151 = pneg %p35
      %p152 = pneg %p32
      %p153 = pneg %p56
      %p154 = pneg %p53
      %p155 = pneg %p77
      %p156 = pneg %p74
      %p157 = pneg %p103
      %p158 = pneg %p100
      %s159 = smul.u32 8, %s14
      %p160 = scmp.lt.s32.totalorder %s159, 15
      %s161 = scalar_select %p160, %s159, 15
      %s162 = smul.addr %s161, 2
      %s163 = smul.addr %s162, 4
      %s164 = scalar_lea.vmem %s3, %s163
      %s165 = smul.u32 8, %s14
      %p166 = scmp.lt.s32.totalorder %s165, 15
      %s167 = scalar_select %p166, %s165, 15
      %s168 = smul.addr %s167, 2
      %s169 = smul.addr %s168, 8
      %s170 = scalar_lea.vmem %s0, %s169
      %s171 = smul.u32 8, %s14
      %s172 = smul.u32 8, %s14
      %p173 = scmp.lt.s32.totalorder %s172, 15
      %s174 = scalar_select %p173, %s172, 15
      %s175 = smul.addr %s174, 2
      %s176 = smul.addr %s175, 4
      %s177 = scalar_lea.vmem %s3, %s176
      %s178 = smul.u32 8, %s14
      %v179 = vld [vmem:[%s170] sm:$0xff]
      %v180 = vld [vmem:[%s170 + $0x8] sm:$0xff]
      %v181 = vld [vmem:[%s170 + $0x10] sm:$0xff]
      %v182 = vld [vmem:[%s170 + $0x18] sm:$0xff]
      %v183 = vld [vmem:[%s170 + $0x20] sm:$0xff]
      %v184 = vld [vmem:[%s170 + $0x28] sm:$0xff]
      %v185 = vld [vmem:[%s170 + $0x30] sm:$0xff]
      %v186 = vld [vmem:[%s170 + $0x38] sm:$0xff]
      %v187 = vld [vmem:[%s170 + $0x40] sm:$0xff]
      %v188 = vld [vmem:[%s170 + $0x48] sm:$0xff]
      %v189 = vld [vmem:[%s170 + $0x50] sm:$0xff]
      %v190 = vld [vmem:[%s170 + $0x58] sm:$0xff]
      %v191 = vld [vmem:[%s170 + $0x60] sm:$0xff]
      %v192 = vld [vmem:[%s170 + $0x68] sm:$0xff]
      %v193 = vld [vmem:[%s170 + $0x70] sm:$0xff]
      %v194 = vld [vmem:[%s170 + $0x78] sm:$0xff]
      %v195 = vld [vmem:[%s1] sm:$0x3]
      %v197 = vlaneseq
      %v198 = vshrl.u32 %v197, 7
      %v199 = vsub.s32 0, %v198
      %v200 = vrot.slane %v195, %v199
      %v201 = vlaneseq
      %v202 = vshrl.u32 %v201, 7
      %v203 = vsub.s32 1, %v202
      %v204 = vrot.slane %v195, %v203
      %v207 = vmul.f32 %v179, %v200
      %v208 = vmul.f32 %v180, %v204
      %v209 = vmul.f32 %v181, %v200
      %v210 = vmul.f32 %v182, %v204
      %v211 = vmul.f32 %v183, %v200
      %v212 = vmul.f32 %v184, %v204
      %v213 = vmul.f32 %v185, %v200
      %v214 = vmul.f32 %v186, %v204
      %v215 = vmul.f32 %v187, %v200
      %v216 = vmul.f32 %v188, %v204
      %v217 = vmul.f32 %v189, %v200
      %v218 = vmul.f32 %v190, %v204
      %v219 = vmul.f32 %v191, %v200
      %v220 = vmul.f32 %v192, %v204
      %v221 = vmul.f32 %v193, %v200
      %v222 = vmul.f32 %v194, %v204
      %v223 = vld [vmem:[%s2] sm:$0x3]
      %v225 = vlaneseq
      %v226 = vshrl.u32 %v225, 7
      %v227 = vsub.s32 0, %v226
      %v228 = vrot.slane %v223, %v227
      %v229 = vlaneseq
      %v230 = vshrl.u32 %v229, 7
      %v231 = vsub.s32 1, %v230
      %v232 = vrot.slane %v223, %v231
      %v235 = vadd.f32 %v207, %v228
      %v236 = vadd.f32 %v208, %v232
      %v237 = vadd.f32 %v209, %v228
      %v238 = vadd.f32 %v210, %v232
      %v239 = vadd.f32 %v211, %v228
      %v240 = vadd.f32 %v212, %v232
      %v241 = vadd.f32 %v213, %v228
      %v242 = vadd.f32 %v214, %v232
      %v243 = vadd.f32 %v215, %v228
      %v244 = vadd.f32 %v216, %v232
      %v245 = vadd.f32 %v217, %v228
      %v246 = vadd.f32 %v218, %v232
      %v247 = vadd.f32 %v219, %v228
      %v248 = vadd.f32 %v220, %v232
      %v249 = vadd.f32 %v221, %v228
      %v250 = vadd.f32 %v222, %v232
      %v251 = vmax.f32 %v235, 0.0
      %v252 = vmax.f32 %v236, 0.0
      %v253 = vmax.f32 %v237, 0.0
      %v254 = vmax.f32 %v238, 0.0
      %v255 = vmax.f32 %v239, 0.0
      %v256 = vmax.f32 %v240, 0.0
      %v257 = vmax.f32 %v241, 0.0
      %v258 = vmax.f32 %v242, 0.0
      %v259 = vmax.f32 %v243, 0.0
      %v260 = vmax.f32 %v244, 0.0
      %v261 = vmax.f32 %v245, 0.0
      %v262 = vmax.f32 %v246, 0.0
      %v263 = vmax.f32 %v247, 0.0
      %v264 = vmax.f32 %v248, 0.0
      %v265 = vmax.f32 %v249, 0.0
      %v266 = vmax.f32 %v250, 0.0
      %v267 = vpack.c.bf16 %v253, %v251
      %v268 = vpack.c.bf16 %v254, %v252
      %v269 = vpack.c.bf16 %v257, %v255
      %v270 = vpack.c.bf16 %v258, %v256
      %v271 = vpack.c.bf16 %v261, %v259
      %v272 = vpack.c.bf16 %v262, %v260
      %v273 = vpack.c.bf16 %v265, %v263
      %v274 = vpack.c.bf16 %v266, %v264
      %v283 = vunpack.c.l.b16 %v267
      %v284 = vunpack.c.l.b16 %v268
      %v285 = vunpack.c.h.b16 %v267
      %v286 = vunpack.c.h.b16 %v268
      %v287 = vunpack.c.l.b16 %v269
      %v288 = vunpack.c.l.b16 %v270
      %v289 = vunpack.c.h.b16 %v269
      %v290 = vunpack.c.h.b16 %v270
      %v291 = vunpack.c.l.b16 %v271
      %v292 = vunpack.c.l.b16 %v272
      %v293 = vunpack.c.h.b16 %v271
      %v294 = vunpack.c.h.b16 %v272
      %v295 = vunpack.c.l.b16 %v273
      %v296 = vunpack.c.l.b16 %v274
      %v297 = vunpack.c.h.b16 %v273
      %v298 = vunpack.c.h.b16 %v274
      %v299 = vpack.c.b16 %v284, %v283
      %v300 = vpack.c.b16 %v286, %v285
      %v301 = vpack.c.b16 %v288, %v287
      %v302 = vpack.c.b16 %v290, %v289
      %v303 = vpack.c.b16 %v292, %v291
      %v304 = vpack.c.b16 %v294, %v293
      %v305 = vpack.c.b16 %v296, %v295
      %v306 = vpack.c.b16 %v298, %v297
      %315 = vst [vmem:[%s177] sm:$0xff] %v299
      %316 = vst [vmem:[%s177 + $0x8] sm:$0xff] %v300
      %317 = vst [vmem:[%s177 + $0x10] sm:$0xff] %v301
      %318 = vst [vmem:[%s177 + $0x18] sm:$0xff] %v302
      %319 = vst [vmem:[%s177 + $0x20] sm:$0xff] %v303
      %320 = vst [vmem:[%s177 + $0x28] sm:$0xff] %v304
      %321 = vst [vmem:[%s177 + $0x30] sm:$0xff] %v305
      %322 = vst [vmem:[%s177 + $0x38] sm:$0xff] %v306
      %s323 = smul.u32 8, %s14
      %p324 = scmp.lt.s32.totalorder %s323, 15
      %s325 = scalar_select %p324, %s323, 15
      %s326 = smul.addr %s325, 2
      %s327 = smul.addr %s326, 4
      %s328 = scalar_lea.vmem %s3, %s327
      // Predicated region
      $region33: #{generator_forward.18} parent=31 // pred_check
        %p329 = pneg %p100
      $region34: #{generator_forward.18} parent=31 // pred_check_branch
        %331 = sbr.rel (%p329) target = $region36
      $region35: #{generator_forward.18} parent=31 // pred_region
        %s332 = smul.u32 8, %s14
      $region36: #{generator_forward.18} parent=31 // pred_fallthru
        _
    $region32: #{generator_forward.18} parent=5 // pred_fallthru
      _
    %p333 = scmp.le.s32.totalorder 2, %s9
    // Predicated region
    $region37: #{generator_forward.18} parent=5 // pred_check
      %p334 = pneg %p333
    $region38: #{generator_forward.18} parent=5 // pred_check_branch
      %336 = sbr.rel (%p334) target = $region40
    $region39: #{generator_forward.18} parent=5 // pred_region
      %s337 = ssub.s32 %s9, 2
      // Predicated region
      $region41: #{generator_forward.18} parent=39 // pred_check
        %p338 = pneg %p106
      $region42: #{generator_forward.18} parent=39 // pred_check_branch
        %340 = sbr.rel (%p338) target = $region44
      $region43: #{generator_forward.18} parent=39 // pred_region
        %s341 = smul.u32 8, %s15
        %p342 = scmp.lt.s32.totalorder %s341, 15
        %s343 = scalar_select %p342, %s341, 15
        %s344 = smul.addr %s343, 2
        %s345 = smul.addr %s344, 4
        %s346 = scalar_lea.vmem %s3, %s345
      $region44: #{generator_forward.18} parent=39 // pred_fallthru
        _
    $region40: #{generator_forward.18} parent=5 // pred_fallthru
      _
  $region6: #{generator_forward.18} parent=0 // loop_footer
    %s13 = sadd.s32 1, %s9
  $region7: #{generator_forward.18} parent=0 // loop_footer_branch
    %8 = sbr.rel target = $region3
  $region8: #{generator_forward.18} parent=0 // loop_exit
    _

// kernel: generator_forward.19
$region0: #{generator_forward.19}
  #allocation0 [shape = 'u32[]', space=smem, size = 0x4, offset = 0x4, fixed_abs, tag = 'smem constant byte address 0x4 - core index']
  #allocation1 [shape = 'u32[144,128]{1,0:T(1,128)}', space=vmem, size = 0x12000, scoped, tag = 'internal scratch']
  #allocation2 [shape = 'f32[176,256]{1,0:T(8,128)}', space=vmem, size = 0x2c000, scoped, tag = 'scratch operand']
  %s0 = inlined_call_operand.vmem [shape: bf16[176,1024], index: 0, kind: input, shape index: {}]
  %s1 = inlined_call_operand.vmem [shape: bf16[1024,512], index: 1, kind: input, shape index: {}]
  %s2 = inlined_call_operand.vmem [shape: f32[176,512], index: 2, kind: output, shape index: {}]
  %s3 = sld [smem:[#allocation0]]
  $region129: #{generator_forward.19} parent=0
    _
  %s5 = ssub.s32 1, %s3
  %s6 = scalar_select 0, %s5, %s3
  $region1: #{generator_forward.19} parent=0
    #allocation3 [shape = 'u8[360448]{0}', space=vmem, size = 0x58000, scoped, tag = 'input window, operand 0']
    #allocation4 [shape = 'u8[524288]{0}', space=vmem, size = 0x80000, scoped, tag = 'input window, operand 1']
    #allocation5 [shape = 'u8[360448]{0}', space=vmem, size = 0x58000, scoped, tag = 'output window, operand 0']
    loop: start=0, step=1, limit=6
    $region2: #{generator_forward.19} parent=1 // loop_pre_header
      _
    $region3: #{generator_forward.19} parent=1 // loop_header
      %s8 = sphi 0, %s12
      %p9 = scmp.ge.s32.totalorder %s8, 6
      %s15 = sphi 0, %s34
      %s16 = sphi 0, %s30
      %s17 = sphi 0, %s26
      %s18 = sphi 0, %s15
      %s19 = sphi 0, %s16
      %s20 = sphi 0, %s17
      %s21 = sphi 0, %s18
      %s22 = sphi 0, %s19
      %s23 = sphi 0, %s20
      %s39 = sphi 0, %s41
      %s42 = sphi 0, %s39
      %s43 = sphi 0, %s42
      %s59 = sphi 0, %s43
      %s67 = sphi 0, %s69
      %s70 = sphi 0, %s67
      %s71 = sphi 0, %s70
      %s87 = sphi 0, %s71
      %s95 = sphi 0, %s97
      %s98 = sphi 0, %s95
      %s99 = sphi 0, %s98
      %s115 = sphi 0, %s99
    $region4: #{generator_forward.19} parent=1 // loop_header_branch
      %11 = sbr.rel (%p9) target = $region8
    $region5: #{generator_forward.19} parent=1 // loop_body
      %s13 = ssub.s32 %s8, 1
      %s14 = ssub.s32 %s8, 2
      %s24 = sadd.s32 1, %s17
      %p25 = scmp.ge.s32.totalorder %s24, 2
      %s26 = scalar_select %p25, 0, %s24
      %s27 = sadd.s32 1, %s16
      %s28 = scalar_select %p25, %s27, %s16
      %p29 = scmp.ge.s32.totalorder %s28, 2
      %s30 = scalar_select %p29, 0, %s28
      %s31 = sadd.s32 1, %s15
      %s32 = scalar_select %p29, %s31, %s15
      %p33 = scmp.ge.s32.totalorder %s32, 1
      %s34 = scalar_select %p33, 0, %s32
      %s35 = ssub.s32 %s15, %s34
      %s36 = ssub.s32 %s17, %s26
      %s37 = sor.u32 %s35, %s36
      %p38 = scmp.eq.s32.totalorder %s37, 0
      %s40 = sadd.s32 %s39, 1
      %s41 = scalar_select %p38, %s39, %s40
      %p44 = pneg %p38
      %p45 = scmp.eq.s32.totalorder %s8, 3
      %p46 = por %p44, %p45
      %p47 = scmp.ne.s32.totalorder %s39, %s42
      %p48 = scmp.eq.s32.totalorder %s8, 0
      %p49 = por %p47, %p48
      %p50 = scmp.ne.s32.totalorder %s39, %s42
      %p51 = scmp.eq.s32.totalorder %s13, 3
      %p52 = por %p50, %p51
      %p53 = scmp.ne.s32.totalorder %s42, %s43
      %p54 = scmp.eq.s32.totalorder %s13, 0
      %p55 = por %p53, %p54
      %p56 = scmp.ne.s32.totalorder %s42, %s43
      %p57 = scmp.eq.s32.totalorder %s14, 3
      %p58 = por %p56, %p57
      %p60 = scmp.ne.s32.totalorder %s43, %s59
      %p61 = scmp.eq.s32.totalorder %s14, 0
      %p62 = por %p60, %p61
      %s63 = ssub.s32 %s17, %s26
      %s64 = ssub.s32 %s16, %s30
      %s65 = sor.u32 %s63, %s64
      %p66 = scmp.eq.s32.totalorder %s65, 0
      %s68 = sadd.s32 %s67, 1
      %s69 = scalar_select %p66, %s67, %s68
      %p72 = pneg %p66
      %p73 = scmp.eq.s32.totalorder %s8, 3
      %p74 = por %p72, %p73
      %p75 = scmp.ne.s32.totalorder %s67, %s70
      %p76 = scmp.eq.s32.totalorder %s8, 0
      %p77 = por %p75, %p76
      %p78 = scmp.ne.s32.totalorder %s67, %s70
      %p79 = scmp.eq.s32.totalorder %s13, 3
      %p80 = por %p78, %p79
      %p81 = scmp.ne.s32.totalorder %s70, %s71
      %p82 = scmp.eq.s32.totalorder %s13, 0
      %p83 = por %p81, %p82
      %p84 = scmp.ne.s32.totalorder %s70, %s71
      %p85 = scmp.eq.s32.totalorder %s14, 3
      %p86 = por %p84, %p85
      %p88 = scmp.ne.s32.totalorder %s71, %s87
      %p89 = scmp.eq.s32.totalorder %s14, 0
      %p90 = por %p88, %p89
      %s91 = ssub.s32 %s15, %s34
      %s92 = ssub.s32 %s16, %s30
      %s93 = sor.u32 %s91, %s92
      %p94 = scmp.eq.s32.totalorder %s93, 0
      %s96 = sadd.s32 %s95, 1
      %s97 = scalar_select %p94, %s95, %s96
      %p100 = pneg %p94
      %p101 = scmp.eq.s32.totalorder %s8, 3
      %p102 = por %p100, %p101
      %p103 = scmp.ne.s32.totalorder %s95, %s98
      %p104 = scmp.eq.s32.totalorder %s8, 0
      %p105 = por %p103, %p104
      %p106 = scmp.ne.s32.totalorder %s95, %s98
      %p107 = scmp.eq.s32.totalorder %s13, 3
      %p108 = por %p106, %p107
      %p109 = scmp.ne.s32.totalorder %s98, %s99
      %p110 = scmp.eq.s32.totalorder %s13, 0
      %p111 = por %p109, %p110
      %p112 = scmp.ne.s32.totalorder %s98, %s99
      %p113 = scmp.eq.s32.totalorder %s14, 3
      %p114 = por %p112, %p113
      %p116 = scmp.ne.s32.totalorder %s99, %s115
      %p117 = scmp.eq.s32.totalorder %s14, 0
      %p118 = por %p116, %p117
      %p119 = scmp.le.s32.totalorder 1, %s8
      %p120 = scmp.lt.s32.totalorder %s8, 5
      %p121 = pnand %p119, %p120
      %p122 = pneg %p121
      // Predicated region
      $region9: #{generator_forward.19} parent=5 // pred_check
        _
      $region10: #{generator_forward.19} parent=5 // pred_check_branch
        %124 = sbr.rel (%p121) target = $region12
      $region11: #{generator_forward.19} parent=5 // pred_region
        %s125 = ssub.s32 %s8, 1
      $region12: #{generator_forward.19} parent=5 // pred_fallthru
        _
      %p126 = scmp.lt.s32.totalorder %s8, 4
      // Predicated region
      $region13: #{generator_forward.19} parent=5 // pred_check
        %p127 = pneg %p126
      $region14: #{generator_forward.19} parent=5 // pred_check_branch
        %129 = sbr.rel (%p127) target = $region16
      $region15: #{generator_forward.19} parent=5 // pred_region
        // Predicated region
        $region17: #{generator_forward.19} parent=15 // pred_check
          %p130 = pneg %p49
        $region18: #{generator_forward.19} parent=15 // pred_check_branch
          %132 = sbr.rel (%p130) target = $region20
        $region19: #{generator_forward.19} parent=15 // pred_region
          %s133 = sand.u32 %s39, 1
          %s134 = sand.u32 %s39, 1
          %s135 = smul.addr %s134, 352
          %s136 = scalar_lea.vmem [#allocation3], %s135
          %s137 = smul.u32 22, %s15
          %s138 = smul.u32 4, %s17
          %s139 = smul.addr %s137, 8
          %s140 = sadd.s32 %s138, %s139
          %s141 = smul.addr %s140, 4
          %s142 = scalar_lea.vmem %s0, %s141
          // Predicated region
          $region21: #{generator_forward.19} parent=19 // pred_check
            _
          $region22: #{generator_forward.19} parent=19 // pred_check_branch
            %144 = sbr.rel (0) target = $region24
          $region23: #{generator_forward.19} parent=19 // pred_region
            // Predicated region
            $region25: #{generator_forward.19} parent=23 // pred_check
              _
            $region26: #{generator_forward.19} parent=23 // pred_check_branch
              %146 = sbr.rel (0) target = $region28
            $region27: #{generator_forward.19} parent=23 // pred_region
              loop: start=0, step=1, limit=1
              $region29: #{generator_forward.19} parent=27 // loop_pre_header
                _
              $region30: #{generator_forward.19} parent=27 // loop_header
                %s148 = sphi 0, %s152
                %p149 = scmp.ge.s32.totalorder %s148, 1
                %s153 = sphi %s142, %s142
                %s154 = sphi %s136, %s136
              $region31: #{generator_forward.19} parent=27 // loop_header_branch
                %151 = sbr.rel (%p149) target = $region35
              $region32: #{generator_forward.19} parent=27 // loop_body
                %v155 = vld [vmem:[%s153] sm:$0xff]
                %156 = vst [vmem:[%s154] sm:$0xff] %v155
                %v157 = vld [vmem:[%s153 + $0x8] sm:$0xff]
                %158 = vst [vmem:[%s154 + $0x8] sm:$0xff] %v157
                %v159 = vld [vmem:[%s153 + $0x20] sm:$0xff]
                %160 = vst [vmem:[%s154 + $0x10] sm:$0xff] %v159
                %v161 = vld [vmem:[%s153 + $0x28] sm:$0xff]
                %162 = vst [vmem:[%s154 + $0x18] sm:$0xff] %v161
                %v163 = vld [vmem:[%s153 + $0x40] sm:$0xff]
                %164 = vst [vmem:[%s154 + $0x20] sm:$0xff] %v163
                %v165 = vld [vmem:[%s153 + $0x48] sm:$0xff]
                %166 = vst [vmem:[%s154 + $0x28] sm:$0xff] %v165
                %v167 = vld [vmem:[%s153 + $0x60] sm:$0xff]
                %168 = vst [vmem:[%s154 + $0x30] sm:$0xff] %v167
                %v169 = vld [vmem:[%s153 + $0x68] sm:$0xff]
                %170 = vst [vmem:[%s154 + $0x38] sm:$0xff] %v169
                %v171 = vld [vmem:[%s153 + $0x80] sm:$0xff]
                %172 = vst [vmem:[%s154 + $0x40] sm:$0xff] %v171
                %v173 = vld [vmem:[%s153 + $0x88] sm:$0xff]
                %174 = vst [vmem:[%s154 + $0x48] sm:$0xff] %v173
                %v175 = vld [vmem:[%s153 + $0xa0] sm:$0xff]
                %176 = vst [vmem:[%s154 + $0x50] sm:$0xff] %v175
                %v177 = vld [vmem:[%s153 + $0xa8] sm:$0xff]
                %178 = vst [vmem:[%s154 + $0x58] sm:$0xff] %v177
                %v179 = vld [vmem:[%s153 + $0xc0] sm:$0xff]
                %180 = vst [vmem:[%s154 + $0x60] sm:$0xff] %v179
                %v181 = vld [vmem:[%s153 + $0xc8] sm:$0xff]
                %182 = vst [vmem:[%s154 + $0x68] sm:$0xff] %v181
                %v183 = vld [vmem:[%s153 + $0xe0] sm:$0xff]
                %184 = vst [vmem:[%s154 + $0x70] sm:$0xff] %v183
                %v185 = vld [vmem:[%s153 + $0xe8] sm:$0xff]
                %186 = vst [vmem:[%s154 + $0x78] sm:$0xff] %v185
                %v187 = vld [vmem:[%s153 + $0x100] sm:$0xff]
                %188 = vst [vmem:[%s154 + $0x80] sm:$0xff] %v187
                %v189 = vld [vmem:[%s153 + $0x108] sm:$0xff]
                %190 = vst [vmem:[%s154 + $0x88] sm:$0xff] %v189
                %v191 = vld [vmem:[%s153 + $0x120] sm:$0xff]
                %192 = vst [vmem:[%s154 + $0x90] sm:$0xff] %v191
                %v193 = vld [vmem:[%s153 + $0x128] sm:$0xff]
                %194 = vst [vmem:[%s154 + $0x98] sm:$0xff] %v193
                %v195 = vld [vmem:[%s153 + $0x140] sm:$0xff]
                %196 = vst [vmem:[%s154 + $0xa0] sm:$0xff] %v195
                %v197 = vld [vmem:[%s153 + $0x148] sm:$0xff]
                %198 = vst [vmem:[%s154 + $0xa8] sm:$0xff] %v197
                %v199 = vld [vmem:[%s153 + $0x160] sm:$0xff]
                %200 = vst [vmem:[%s154 + $0xb0] sm:$0xff] %v199
                %v201 = vld [vmem:[%s153 + $0x168] sm:$0xff]
                %202 = vst [vmem:[%s154 + $0xb8] sm:$0xff] %v201
                %v203 = vld [vmem:[%s153 + $0x180] sm:$0xff]
                %204 = vst [vmem:[%s154 + $0xc0] sm:$0xff] %v203
                %v205 = vld [vmem:[%s153 + $0x188] sm:$0xff]
                %206 = vst [vmem:[%s154 + $0xc8] sm:$0xff] %v205
                %v207 = vld [vmem:[%s153 + $0x1a0] sm:$0xff]
                %208 = vst [vmem:[%s154 + $0xd0] sm:$0xff] %v207
                %v209 = vld [vmem:[%s153 + $0x1a8] sm:$0xff]
                %210 = vst [vmem:[%s154 + $0xd8] sm:$0xff] %v209
                %v211 = vld [vmem:[%s153 + $0x1c0] sm:$0xff]
                %212 = vst [vmem:[%s154 + $0xe0] sm:$0xff] %v211
                %v213 = vld [vmem:[%s153 + $0x1c8] sm:$0xff]
                %214 = vst [vmem:[%s154 + $0xe8] sm:$0xff] %v213
                %v215 = vld [vmem:[%s153 + $0x1e0] sm:$0xff]
                %216 = vst [vmem:[%s154 + $0xf0] sm:$0xff] %v215
                %v217 = vld [vmem:[%s153 + $0x1e8] sm:$0xff]
                %218 = vst [vmem:[%s154 + $0xf8] sm:$0xff] %v217
                %v219 = vld [vmem:[%s153 + $0x200] sm:$0xff]
                %220 = vst [vmem:[%s154 + $0x100] sm:$0xff] %v219
                %v221 = vld [vmem:[%s153 + $0x208] sm:$0xff]
                %222 = vst [vmem:[%s154 + $0x108] sm:$0xff] %v221
                %v223 = vld [vmem:[%s153 + $0x220] sm:$0xff]
                %224 = vst [vmem:[%s154 + $0x110] sm:$0xff] %v223
                %v225 = vld [vmem:[%s153 + $0x228] sm:$0xff]
                %226 = vst [vmem:[%s154 + $0x118] sm:$0xff] %v225
                %v227 = vld [vmem:[%s153 + $0x240] sm:$0xff]
                %228 = vst [vmem:[%s154 + $0x120] sm:$0xff] %v227
                %v229 = vld [vmem:[%s153 + $0x248] sm:$0xff]
                %230 = vst [vmem:[%s154 + $0x128] sm:$0xff] %v229
                %v231 = vld [vmem:[%s153 + $0x260] sm:$0xff]
                %232 = vst [vmem:[%s154 + $0x130] sm:$0xff] %v231
                %v233 = vld [vmem:[%s153 + $0x268] sm:$0xff]
                %234 = vst [vmem:[%s154 + $0x138] sm:$0xff] %v233
                %v235 = vld [vmem:[%s153 + $0x280] sm:$0xff]
                %236 = vst [vmem:[%s154 + $0x140] sm:$0xff] %v235
                %v237 = vld [vmem:[%s153 + $0x288] sm:$0xff]
                %238 = vst [vmem:[%s154 + $0x148] sm:$0xff] %v237
                %v239 = vld [vmem:[%s153 + $0x2a0] sm:$0xff]
                %240 = vst [vmem:[%s154 + $0x150] sm:$0xff] %v239
                %v241 = vld [vmem:[%s153 + $0x2a8] sm:$0xff]
                %242 = vst [vmem:[%s154 + $0x158] sm:$0xff] %v241
              $region33: #{generator_forward.19} parent=27 // loop_footer
                %s152 = sadd.s32 1, %s148
              $region34: #{generator_forward.19} parent=27 // loop_footer_branch
                %147 = sbr.rel target = $region30
              $region35: #{generator_forward.19} parent=27 // loop_exit
                _
            $region28: #{generator_forward.19} parent=23 // pred_fallthru
              _
            // Predicated region
            $region36: #{generator_forward.19} parent=23 // pred_check
              _
            $region37: #{generator_forward.19} parent=23 // pred_check_branch
              %244 = sbr.rel target = $region39
            $region38: #{generator_forward.19} parent=23 // pred_region
              _
            $region39: #{generator_forward.19} parent=23 // pred_fallthru
              _
          $region24: #{generator_forward.19} parent=19 // pred_fallthru
            _
          %245 = vnop
        $region20: #{generator_forward.19} parent=15 // pred_fallthru
          _
        // Predicated region
        $region40: #{generator_forward.19} parent=15 // pred_check
          %p246 = pneg %p77
        $region41: #{generator_forward.19} parent=15 // pred_check_branch
          %248 = sbr.rel (%p246) target = $region43
        $region42: #{generator_forward.19} parent=15 // pred_region
          %s249 = sand.u32 %s67, 1
          %s250 = sand.u32 %s67, 1
          %s251 = smul.addr %s250, 512
          %s252 = scalar_lea.vmem [#allocation4], %s251
          %s253 = smul.u32 64, %s17
          %s254 = smul.u32 2, %s16
          %s255 = smul.addr %s253, 4
          %s256 = sadd.s32 %s254, %s255
          %s257 = smul.addr %s256, 4
          %s258 = scalar_lea.vmem %s1, %s257
          // Predicated region
          $region44: #{generator_forward.19} parent=42 // pred_check
            _
          $region45: #{generator_forward.19} parent=42 // pred_check_branch
            %260 = sbr.rel (0) target = $region47
          $region46: #{generator_forward.19} parent=42 // pred_region
            // Predicated region
            $region48: #{generator_forward.19} parent=46 // pred_check
              _
            $region49: #{generator_forward.19} parent=46 // pred_check_branch
              %262 = sbr.rel (0) target = $region51
            $region50: #{generator_forward.19} parent=46 // pred_region
              // Predicated region
              $region63: #{generator_forward.19} parent=50 // pred_check
                _
              $region64: #{generator_forward.19} parent=50 // pred_check_branch
                %403 = sbr.rel (0) target = $region66
              $region65: #{generator_forward.19} parent=50 // pred_region
                loop: start=0, step=1, limit=1
                $region67: #{generator_forward.19} parent=65 // loop_pre_header
                  _
                $region68: #{generator_forward.19} parent=65 // loop_header
                  %s405 = sphi 0, %s409
                  %p406 = scmp.ge.s32.totalorder %s405, 1
                  %s410 = sphi %s258, %s258
                  %s411 = sphi %s252, %s252
                $region69: #{generator_forward.19} parent=65 // loop_header_branch
                  %408 = sbr.rel (%p406) target = $region73
                $region70: #{generator_forward.19} parent=65 // loop_body
                  %v412 = vld [vmem:[%s410] sm:$0xff]
                  %413 = vst [vmem:[%s411] sm:$0xff] %v412
                  %v414 = vld [vmem:[%s410 + $0x10] sm:$0xff]
                  %415 = vst [vmem:[%s411 + $0x8] sm:$0xff] %v414
                  %v416 = vld [vmem:[%s410 + $0x20] sm:$0xff]
                  %417 = vst [vmem:[%s411 + $0x10] sm:$0xff] %v416
                  %v418 = vld [vmem:[%s410 + $0x30] sm:$0xff]
                  %419 = vst [vmem:[%s411 + $0x18] sm:$0xff] %v418
                  %v420 = vld [vmem:[%s410 + $0x40] sm:$0xff]
                  %421 = vst [vmem:[%s411 + $0x20] sm:$0xff] %v420
                  %v422 = vld [vmem:[%s410 + $0x50] sm:$0xff]
                  %423 = vst [vmem:[%s411 + $0x28] sm:$0xff] %v422
                  %v424 = vld [vmem:[%s410 + $0x60] sm:$0xff]
                  %425 = vst [vmem:[%s411 + $0x30] sm:$0xff] %v424
                  %v426 = vld [vmem:[%s410 + $0x70] sm:$0xff]
                  %427 = vst [vmem:[%s411 + $0x38] sm:$0xff] %v426
                  %v428 = vld [vmem:[%s410 + $0x80] sm:$0xff]
                  %429 = vst [vmem:[%s411 + $0x40] sm:$0xff] %v428
                  %v430 = vld [vmem:[%s410 + $0x90] sm:$0xff]
                  %431 = vst [vmem:[%s411 + $0x48] sm:$0xff] %v430
                  %v432 = vld [vmem:[%s410 + $0xa0] sm:$0xff]
                  %433 = vst [vmem:[%s411 + $0x50] sm:$0xff] %v432
                  %v434 = vld [vmem:[%s410 + $0xb0] sm:$0xff]
                  %435 = vst [vmem:[%s411 + $0x58] sm:$0xff] %v434
                  %v436 = vld [vmem:[%s410 + $0xc0] sm:$0xff]
                  %437 = vst [vmem:[%s411 + $0x60] sm:$0xff] %v436
                  %v438 = vld [vmem:[%s410 + $0xd0] sm:$0xff]
                  %439 = vst [vmem:[%s411 + $0x68] sm:$0xff] %v438
                  %v440 = vld [vmem:[%s410 + $0xe0] sm:$0xff]
                  %441 = vst [vmem:[%s411 + $0x70] sm:$0xff] %v440
                  %v442 = vld [vmem:[%s410 + $0xf0] sm:$0xff]
                  %443 = vst [vmem:[%s411 + $0x78] sm:$0xff] %v442
                  %v444 = vld [vmem:[%s410 + $0x100] sm:$0xff]
                  %445 = vst [vmem:[%s411 + $0x80] sm:$0xff] %v444
                  %v446 = vld [vmem:[%s410 + $0x110] sm:$0xff]
                  %447 = vst [vmem:[%s411 + $0x88] sm:$0xff] %v446
                  %v448 = vld [vmem:[%s410 + $0x120] sm:$0xff]
                  %449 = vst [vmem:[%s411 + $0x90] sm:$0xff] %v448
                  %v450 = vld [vmem:[%s410 + $0x130] sm:$0xff]
                  %451 = vst [vmem:[%s411 + $0x98] sm:$0xff] %v450
                  %v452 = vld [vmem:[%s410 + $0x140] sm:$0xff]
                  %453 = vst [vmem:[%s411 + $0xa0] sm:$0xff] %v452
                  %v454 = vld [vmem:[%s410 + $0x150] sm:$0xff]
                  %455 = vst [vmem:[%s411 + $0xa8] sm:$0xff] %v454
                  %v456 = vld [vmem:[%s410 + $0x160] sm:$0xff]
                  %457 = vst [vmem:[%s411 + $0xb0] sm:$0xff] %v456
                  %v458 = vld [vmem:[%s410 + $0x170] sm:$0xff]
                  %459 = vst [vmem:[%s411 + $0xb8] sm:$0xff] %v458
                  %v460 = vld [vmem:[%s410 + $0x180] sm:$0xff]
                  %461 = vst [vmem:[%s411 + $0xc0] sm:$0xff] %v460
                  %v462 = vld [vmem:[%s410 + $0x190] sm:$0xff]
                  %463 = vst [vmem:[%s411 + $0xc8] sm:$0xff] %v462
                  %v464 = vld [vmem:[%s410 + $0x1a0] sm:$0xff]
                  %465 = vst [vmem:[%s411 + $0xd0] sm:$0xff] %v464
                  %v466 = vld [vmem:[%s410 + $0x1b0] sm:$0xff]
                  %467 = vst [vmem:[%s411 + $0xd8] sm:$0xff] %v466
                  %v468 = vld [vmem:[%s410 + $0x1c0] sm:$0xff]
                  %469 = vst [vmem:[%s411 + $0xe0] sm:$0xff] %v468
                  %v470 = vld [vmem:[%s410 + $0x1d0] sm:$0xff]
                  %471 = vst [vmem:[%s411 + $0xe8] sm:$0xff] %v470
                  %v472 = vld [vmem:[%s410 + $0x1e0] sm:$0xff]
                  %473 = vst [vmem:[%s411 + $0xf0] sm:$0xff] %v472
                  %v474 = vld [vmem:[%s410 + $0x1f0] sm:$0xff]
                  %475 = vst [vmem:[%s411 + $0xf8] sm:$0xff] %v474
                  %v476 = vld [vmem:[%s410 + $0x200] sm:$0xff]
                  %477 = vst [vmem:[%s411 + $0x100] sm:$0xff] %v476
                  %v478 = vld [vmem:[%s410 + $0x210] sm:$0xff]
                  %479 = vst [vmem:[%s411 + $0x108] sm:$0xff] %v478
                  %v480 = vld [vmem:[%s410 + $0x220] sm:$0xff]
                  %481 = vst [vmem:[%s411 + $0x110] sm:$0xff] %v480
                  %v482 = vld [vmem:[%s410 + $0x230] sm:$0xff]
                  %483 = vst [vmem:[%s411 + $0x118] sm:$0xff] %v482
                  %v484 = vld [vmem:[%s410 + $0x240] sm:$0xff]
                  %485 = vst [vmem:[%s411 + $0x120] sm:$0xff] %v484
                  %v486 = vld [vmem:[%s410 + $0x250] sm:$0xff]
                  %487 = vst [vmem:[%s411 + $0x128] sm:$0xff] %v486
                  %v488 = vld [vmem:[%s410 + $0x260] sm:$0xff]
                  %489 = vst [vmem:[%s411 + $0x130] sm:$0xff] %v488
                  %v490 = vld [vmem:[%s410 + $0x270] sm:$0xff]
                  %491 = vst [vmem:[%s411 + $0x138] sm:$0xff] %v490
                  %v492 = vld [vmem:[%s410 + $0x280] sm:$0xff]
                  %493 = vst [vmem:[%s411 + $0x140] sm:$0xff] %v492
                  %v494 = vld [vmem:[%s410 + $0x290] sm:$0xff]
                  %495 = vst [vmem:[%s411 + $0x148] sm:$0xff] %v494
                  %v496 = vld [vmem:[%s410 + $0x2a0] sm:$0xff]
                  %497 = vst [vmem:[%s411 + $0x150] sm:$0xff] %v496
                  %v498 = vld [vmem:[%s410 + $0x2b0] sm:$0xff]
                  %499 = vst [vmem:[%s411 + $0x158] sm:$0xff] %v498
                  %v500 = vld [vmem:[%s410 + $0x2c0] sm:$0xff]
                  %501 = vst [vmem:[%s411 + $0x160] sm:$0xff] %v500
                  %v502 = vld [vmem:[%s410 + $0x2d0] sm:$0xff]
                  %503 = vst [vmem:[%s411 + $0x168] sm:$0xff] %v502
                  %v504 = vld [vmem:[%s410 + $0x2e0] sm:$0xff]
                  %505 = vst [vmem:[%s411 + $0x170] sm:$0xff] %v504
                  %v506 = vld [vmem:[%s410 + $0x2f0] sm:$0xff]
                  %507 = vst [vmem:[%s411 + $0x178] sm:$0xff] %v506
                  %v508 = vld [vmem:[%s410 + $0x300] sm:$0xff]
                  %509 = vst [vmem:[%s411 + $0x180] sm:$0xff] %v508
                  %v510 = vld [vmem:[%s410 + $0x310] sm:$0xff]
                  %511 = vst [vmem:[%s411 + $0x188] sm:$0xff] %v510
                  %v512 = vld [vmem:[%s410 + $0x320] sm:$0xff]
                  %513 = vst [vmem:[%s411 + $0x190] sm:$0xff] %v512
                  %v514 = vld [vmem:[%s410 + $0x330] sm:$0xff]
                  %515 = vst [vmem:[%s411 + $0x198] sm:$0xff] %v514
                  %v516 = vld [vmem:[%s410 + $0x340] sm:$0xff]
                  %517 = vst [vmem:[%s411 + $0x1a0] sm:$0xff] %v516
                  %v518 = vld [vmem:[%s410 + $0x350] sm:$0xff]
                  %519 = vst [vmem:[%s411 + $0x1a8] sm:$0xff] %v518
                  %v520 = vld [vmem:[%s410 + $0x360] sm:$0xff]
                  %521 = vst [vmem:[%s411 + $0x1b0] sm:$0xff] %v520
                  %v522 = vld [vmem:[%s410 + $0x370] sm:$0xff]
                  %523 = vst [vmem:[%s411 + $0x1b8] sm:$0xff] %v522
                  %v524 = vld [vmem:[%s410 + $0x380] sm:$0xff]
                  %525 = vst [vmem:[%s411 + $0x1c0] sm:$0xff] %v524
                  %v526 = vld [vmem:[%s410 + $0x390] sm:$0xff]
                  %527 = vst [vmem:[%s411 + $0x1c8] sm:$0xff] %v526
                  %v528 = vld [vmem:[%s410 + $0x3a0] sm:$0xff]
                  %529 = vst [vmem:[%s411 + $0x1d0] sm:$0xff] %v528
                  %v530 = vld [vmem:[%s410 + $0x3b0] sm:$0xff]
                  %531 = vst [vmem:[%s411 + $0x1d8] sm:$0xff] %v530
                  %v532 = vld [vmem:[%s410 + $0x3c0] sm:$0xff]
                  %533 = vst [vmem:[%s411 + $0x1e0] sm:$0xff] %v532
                  %v534 = vld [vmem:[%s410 + $0x3d0] sm:$0xff]
                  %535 = vst [vmem:[%s411 + $0x1e8] sm:$0xff] %v534
                  %v536 = vld [vmem:[%s410 + $0x3e0] sm:$0xff]
                  %537 = vst [vmem:[%s411 + $0x1f0] sm:$0xff] %v536
                  %v538 = vld [vmem:[%s410 + $0x3f0] sm:$0xff]
                  %539 = vst [vmem:[%s411 + $0x1f8] sm:$0xff] %v538
                $region71: #{generator_forward.19} parent=65 // loop_footer
                  %s409 = sadd.s32 1, %s405
                $region72: #{generator_forward.19} parent=65 // loop_footer_branch
                  %404 = sbr.rel target = $region68
                $region73: #{generator_forward.19} parent=65 // loop_exit
                  _
              $region66: #{generator_forward.19} parent=50 // pred_fallthru
                _
              // Predicated region
              $region74: #{generator_forward.19} parent=50 // pred_check
                _
              $region75: #{generator_forward.19} parent=50 // pred_check_branch
                %541 = sbr.rel target = $region77
              $region76: #{generator_forward.19} parent=50 // pred_region
                _
              $region77: #{generator_forward.19} parent=50 // pred_fallthru
                _
            $region51: #{generator_forward.19} parent=46 // pred_fallthru
              _
            // Predicated region
            $region52: #{generator_forward.19} parent=46 // pred_check
              _
            $region53: #{generator_forward.19} parent=46 // pred_check_branch
              %264 = sbr.rel target = $region55
            $region54: #{generator_forward.19} parent=46 // pred_region
              loop: start=0, step=1, limit=1
              $region56: #{generator_forward.19} parent=54 // loop_pre_header
                _
              $region57: #{generator_forward.19} parent=54 // loop_header
                %s267 = sphi 0, %s271
                %p268 = scmp.ge.s32.totalorder %s267, 1
                %s272 = sphi %s258, %s258
                %s273 = sphi %s252, %s252
              $region58: #{generator_forward.19} parent=54 // loop_header_branch
                %270 = sbr.rel (%p268) target = $region62
              $region59: #{generator_forward.19} parent=54 // loop_body
                %v274 = vld [vmem:[%s272] sm:$0xff]
                %275 = vst [vmem:[%s273] sm:$0xff] %v274
                %v276 = vld [vmem:[%s272 + $0x10] sm:$0xff]
                %277 = vst [vmem:[%s273 + $0x8] sm:$0xff] %v276
                %v278 = vld [vmem:[%s272 + $0x20] sm:$0xff]
                %279 = vst [vmem:[%s273 + $0x10] sm:$0xff] %v278
                %v280 = vld [vmem:[%s272 + $0x30] sm:$0xff]
                %281 = vst [vmem:[%s273 + $0x18] sm:$0xff] %v280
                %v282 = vld [vmem:[%s272 + $0x40] sm:$0xff]
                %283 = vst [vmem:[%s273 + $0x20] sm:$0xff] %v282
                %v284 = vld [vmem:[%s272 + $0x50] sm:$0xff]
                %285 = vst [vmem:[%s273 + $0x28] sm:$0xff] %v284
                %v286 = vld [vmem:[%s272 + $0x60] sm:$0xff]
                %287 = vst [vmem:[%s273 + $0x30] sm:$0xff] %v286
                %v288 = vld [vmem:[%s272 + $0x70] sm:$0xff]
                %289 = vst [vmem:[%s273 + $0x38] sm:$0xff] %v288
                %v290 = vld [vmem:[%s272 + $0x80] sm:$0xff]
                %291 = vst [vmem:[%s273 + $0x40] sm:$0xff] %v290
                %v292 = vld [vmem:[%s272 + $0x90] sm:$0xff]
                %293 = vst [vmem:[%s273 + $0x48] sm:$0xff] %v292
                %v294 = vld [vmem:[%s272 + $0xa0] sm:$0xff]
                %295 = vst [vmem:[%s273 + $0x50] sm:$0xff] %v294
                %v296 = vld [vmem:[%s272 + $0xb0] sm:$0xff]
                %297 = vst [vmem:[%s273 + $0x58] sm:$0xff] %v296
                %v298 = vld [vmem:[%s272 + $0xc0] sm:$0xff]
                %299 = vst [vmem:[%s273 + $0x60] sm:$0xff] %v298
                %v300 = vld [vmem:[%s272 + $0xd0] sm:$0xff]
                %301 = vst [vmem:[%s273 + $0x68] sm:$0xff] %v300
                %v302 = vld [vmem:[%s272 + $0xe0] sm:$0xff]
                %303 = vst [vmem:[%s273 + $0x70] sm:$0xff] %v302
                %v304 = vld [vmem:[%s272 + $0xf0] sm:$0xff]
                %305 = vst [vmem:[%s273 + $0x78] sm:$0xff] %v304
                %v306 = vld [vmem:[%s272 + $0x100] sm:$0xff]
                %307 = vst [vmem:[%s273 + $0x80] sm:$0xff] %v306
                %v308 = vld [vmem:[%s272 + $0x110] sm:$0xff]
                %309 = vst [vmem:[%s273 + $0x88] sm:$0xff] %v308
                %v310 = vld [vmem:[%s272 + $0x120] sm:$0xff]
                %311 = vst [vmem:[%s273 + $0x90] sm:$0xff] %v310
                %v312 = vld [vmem:[%s272 + $0x130] sm:$0xff]
                %313 = vst [vmem:[%s273 + $0x98] sm:$0xff] %v312
                %v314 = vld [vmem:[%s272 + $0x140] sm:$0xff]
                %315 = vst [vmem:[%s273 + $0xa0] sm:$0xff] %v314
                %v316 = vld [vmem:[%s272 + $0x150] sm:$0xff]
                %317 = vst [vmem:[%s273 + $0xa8] sm:$0xff] %v316
                %v318 = vld [vmem:[%s272 + $0x160] sm:$0xff]
                %319 = vst [vmem:[%s273 + $0xb0] sm:$0xff] %v318
                %v320 = vld [vmem:[%s272 + $0x170] sm:$0xff]
                %321 = vst [vmem:[%s273 + $0xb8] sm:$0xff] %v320
                %v322 = vld [vmem:[%s272 + $0x180] sm:$0xff]
                %323 = vst [vmem:[%s273 + $0xc0] sm:$0xff] %v322
                %v324 = vld [vmem:[%s272 + $0x190] sm:$0xff]
                %325 = vst [vmem:[%s273 + $0xc8] sm:$0xff] %v324
                %v326 = vld [vmem:[%s272 + $0x1a0] sm:$0xff]
                %327 = vst [vmem:[%s273 + $0xd0] sm:$0xff] %v326
                %v328 = vld [vmem:[%s272 + $0x1b0] sm:$0xff]
                %329 = vst [vmem:[%s273 + $0xd8] sm:$0xff] %v328
                %v330 = vld [vmem:[%s272 + $0x1c0] sm:$0xff]
                %331 = vst [vmem:[%s273 + $0xe0] sm:$0xff] %v330
                %v332 = vld [vmem:[%s272 + $0x1d0] sm:$0xff]
                %333 = vst [vmem:[%s273 + $0xe8] sm:$0xff] %v332
                %v334 = vld [vmem:[%s272 + $0x1e0] sm:$0xff]
                %335 = vst [vmem:[%s273 + $0xf0] sm:$0xff] %v334
                %v336 = vld [vmem:[%s272 + $0x1f0] sm:$0xff]
                %337 = vst [vmem:[%s273 + $0xf8] sm:$0xff] %v336
                %v338 = vld [vmem:[%s272 + $0x200] sm:$0xff]
                %339 = vst [vmem:[%s273 + $0x100] sm:$0xff] %v338
                %v340 = vld [vmem:[%s272 + $0x210] sm:$0xff]
                %341 = vst [vmem:[%s273 + $0x108] sm:$0xff] %v340
                %v342 = vld [vmem:[%s272 + $0x220] sm:$0xff]
                %343 = vst [vmem:[%s273 + $0x110] sm:$0xff] %v342
                %v344 = vld [vmem:[%s272 + $0x230] sm:$0xff]
                %345 = vst [vmem:[%s273 + $0x118] sm:$0xff] %v344
                %v346 = vld [vmem:[%s272 + $0x240] sm:$0xff]
                %347 = vst [vmem:[%s273 + $0x120] sm:$0xff] %v346
                %v348 = vld [vmem:[%s272 + $0x250] sm:$0xff]
                %349 = vst [vmem:[%s273 + $0x128] sm:$0xff] %v348
                %v350 = vld [vmem:[%s272 + $0x260] sm:$0xff]
                %351 = vst [vmem:[%s273 + $0x130] sm:$0xff] %v350
                %v352 = vld [vmem:[%s272 + $0x270] sm:$0xff]
                %353 = vst [vmem:[%s273 + $0x138] sm:$0xff] %v352
                %v354 = vld [vmem:[%s272 + $0x280] sm:$0xff]
                %355 = vst [vmem:[%s273 + $0x140] sm:$0xff] %v354
                %v356 = vld [vmem:[%s272 + $0x290] sm:$0xff]
                %357 = vst [vmem:[%s273 + $0x148] sm:$0xff] %v356
                %v358 = vld [vmem:[%s272 + $0x2a0] sm:$0xff]
                %359 = vst [vmem:[%s273 + $0x150] sm:$0xff] %v358
                %v360 = vld [vmem:[%s272 + $0x2b0] sm:$0xff]
                %361 = vst [vmem:[%s273 + $0x158] sm:$0xff] %v360
                %v362 = vld [vmem:[%s272 + $0x2c0] sm:$0xff]
                %363 = vst [vmem:[%s273 + $0x160] sm:$0xff] %v362
                %v364 = vld [vmem:[%s272 + $0x2d0] sm:$0xff]
                %365 = vst [vmem:[%s273 + $0x168] sm:$0xff] %v364
                %v366 = vld [vmem:[%s272 + $0x2e0] sm:$0xff]
                %367 = vst [vmem:[%s273 + $0x170] sm:$0xff] %v366
                %v368 = vld [vmem:[%s272 + $0x2f0] sm:$0xff]
                %369 = vst [vmem:[%s273 + $0x178] sm:$0xff] %v368
                %v370 = vld [vmem:[%s272 + $0x300] sm:$0xff]
                %371 = vst [vmem:[%s273 + $0x180] sm:$0xff] %v370
                %v372 = vld [vmem:[%s272 + $0x310] sm:$0xff]
                %373 = vst [vmem:[%s273 + $0x188] sm:$0xff] %v372
                %v374 = vld [vmem:[%s272 + $0x320] sm:$0xff]
                %375 = vst [vmem:[%s273 + $0x190] sm:$0xff] %v374
                %v376 = vld [vmem:[%s272 + $0x330] sm:$0xff]
                %377 = vst [vmem:[%s273 + $0x198] sm:$0xff] %v376
                %v378 = vld [vmem:[%s272 + $0x340] sm:$0xff]
                %379 = vst [vmem:[%s273 + $0x1a0] sm:$0xff] %v378
                %v380 = vld [vmem:[%s272 + $0x350] sm:$0xff]
                %381 = vst [vmem:[%s273 + $0x1a8] sm:$0xff] %v380
                %v382 = vld [vmem:[%s272 + $0x360] sm:$0xff]
                %383 = vst [vmem:[%s273 + $0x1b0] sm:$0xff] %v382
                %v384 = vld [vmem:[%s272 + $0x370] sm:$0xff]
                %385 = vst [vmem:[%s273 + $0x1b8] sm:$0xff] %v384
                %v386 = vld [vmem:[%s272 + $0x380] sm:$0xff]
                %387 = vst [vmem:[%s273 + $0x1c0] sm:$0xff] %v386
                %v388 = vld [vmem:[%s272 + $0x390] sm:$0xff]
                %389 = vst [vmem:[%s273 + $0x1c8] sm:$0xff] %v388
                %v390 = vld [vmem:[%s272 + $0x3a0] sm:$0xff]
                %391 = vst [vmem:[%s273 + $0x1d0] sm:$0xff] %v390
                %v392 = vld [vmem:[%s272 + $0x3b0] sm:$0xff]
                %393 = vst [vmem:[%s273 + $0x1d8] sm:$0xff] %v392
                %v394 = vld [vmem:[%s272 + $0x3c0] sm:$0xff]
                %395 = vst [vmem:[%s273 + $0x1e0] sm:$0xff] %v394
                %v396 = vld [vmem:[%s272 + $0x3d0] sm:$0xff]
                %397 = vst [vmem:[%s273 + $0x1e8] sm:$0xff] %v396
                %v398 = vld [vmem:[%s272 + $0x3e0] sm:$0xff]
                %399 = vst [vmem:[%s273 + $0x1f0] sm:$0xff] %v398
                %v400 = vld [vmem:[%s272 + $0x3f0] sm:$0xff]
                %401 = vst [vmem:[%s273 + $0x1f8] sm:$0xff] %v400
              $region60: #{generator_forward.19} parent=54 // loop_footer
                %s271 = sadd.s32 1, %s267
              $region61: #{generator_forward.19} parent=54 // loop_footer_branch
                %266 = sbr.rel target = $region57
              $region62: #{generator_forward.19} parent=54 // loop_exit
                _
            $region55: #{generator_forward.19} parent=46 // pred_fallthru
              _
          $region47: #{generator_forward.19} parent=42 // pred_fallthru
            _
          %542 = vnop
        $region43: #{generator_forward.19} parent=15 // pred_fallthru
          _
      $region16: #{generator_forward.19} parent=5 // pred_fallthru
        _
      %p543 = scmp.le.s32.totalorder 1, %s8
      %p544 = scmp.lt.s32.totalorder %s8, 5
      %p545 = pnand %p543, %p544
      %p546 = pneg %p545
      // Predicated region
      $region78: #{generator_forward.19} parent=5 // pred_check
        _
      $region79: #{generator_forward.19} parent=5 // pred_check_branch
        %548 = sbr.rel (%p545) target = $region81
      $region80: #{generator_forward.19} parent=5 // pred_region
        %s549 = ssub.s32 %s8, 1
        %s550 = sand.u32 %s42, 1
        %s551 = sand.u32 %s42, 1
        %s552 = smul.addr %s551, 352
        %s553 = scalar_lea.vmem [#allocation3], %s552
        // Predicated region
        $region82: #{generator_forward.19} parent=80 // pred_check
          %p554 = pneg %p55
        $region83: #{generator_forward.19} parent=80 // pred_check_branch
          %556 = sbr.rel (%p554) target = $region85
        $region84: #{generator_forward.19} parent=80 // pred_region
          _
        $region85: #{generator_forward.19} parent=80 // pred_fallthru
          _
        %s557 = sand.u32 %s70, 1
        %s558 = sand.u32 %s70, 1
        %s559 = smul.addr %s558, 512
        %s560 = scalar_lea.vmem [#allocation4], %s559
        // Predicated region
        $region86: #{generator_forward.19} parent=80 // pred_check
          %p561 = pneg %p83
        $region87: #{generator_forward.19} parent=80 // pred_check_branch
          %563 = sbr.rel (%p561) target = $region89
        $region88: #{generator_forward.19} parent=80 // pred_region
          _
        $region89: #{generator_forward.19} parent=80 // pred_fallthru
          _
        %s564 = sand.u32 %s42, 1
        %s565 = sand.u32 %s42, 1
        %s566 = smul.addr %s565, 352
        %s567 = scalar_lea.vmem [#allocation3], %s566
        %p568 = pneg %p55
        %p569 = pneg %p52
        %s570 = sand.u32 %s70, 1
        %s571 = sand.u32 %s70, 1
        %s572 = smul.addr %s571, 512
        %s573 = scalar_lea.vmem [#allocation4], %s572
        %p574 = pneg %p83
        %p575 = pneg %p80
        %p576 = pneg %p111
        %p577 = pneg %p108
        %s578 = sand.u32 %s98, 1
        %s579 = sand.u32 %s98, 1
        %s580 = smul.addr %s579, 352
        %s581 = scalar_lea.vmem [#allocation5], %s580
        %s582 = smul.u32 22, %s18
        %s583 = smul.u32 4, %s20
        %s584 = smul.u32 64, %s20
        %s585 = smul.u32 2, %s19
        %s586 = smul.u32 22, %s18
        %s587 = smul.u32 2, %s19
        %p588 = scmp.eq.s32.totalorder %s20, 0
        // Predicated region
        $region90: #{generator_forward.19} parent=80 // pred_check
          %p589 = pneg %p588
        $region91: #{generator_forward.19} parent=80 // pred_check_branch
          %591 = sbr.rel (%p589) target = $region93
        $region92: #{generator_forward.19} parent=80 // pred_region
          %592 = vst [vmem:[#allocation2] sm:$0xff] 0.0
          %593 = vst [vmem:[#allocation2 + $0x8] sm:$0xff] 0.0
          %594 = vst [vmem:[#allocation2 + $0x10] sm:$0xff] 0.0
          %595 = vst [vmem:[#allocation2 + $0x18] sm:$0xff] 0.0
          %596 = vst [vmem:[#allocation2 + $0x20] sm:$0xff] 0.0
          %597 = vst [vmem:[#allocation2 + $0x28] sm:$0xff] 0.0
          %598 = vst [vmem:[#allocation2 + $0x30] sm:$0xff] 0.0
          %599 = vst [vmem:[#allocation2 + $0x38] sm:$0xff] 0.0
          %600 = vst [vmem:[#allocation2 + $0x40] sm:$0xff] 0.0
          %601 = vst [vmem:[#allocation2 + $0x48] sm:$0xff] 0.0
          %602 = vst [vmem:[#allocation2 + $0x50] sm:$0xff] 0.0
          %603 = vst [vmem:[#allocation2 + $0x58] sm:$0xff] 0.0
          %604 = vst [vmem:[#allocation2 + $0x60] sm:$0xff] 0.0
          %605 = vst [vmem:[#allocation2 + $0x68] sm:$0xff] 0.0
          %606 = vst [vmem:[#allocation2 + $0x70] sm:$0xff] 0.0
          %607 = vst [vmem:[#allocation2 + $0x78] sm:$0xff] 0.0
          %608 = vst [vmem:[#allocation2 + $0x80] sm:$0xff] 0.0
          %609 = vst [vmem:[#allocation2 + $0x88] sm:$0xff] 0.0
          %610 = vst [vmem:[#allocation2 + $0x90] sm:$0xff] 0.0
          %611 = vst [vmem:[#allocation2 + $0x98] sm:$0xff] 0.0
          %612 = vst [vmem:[#allocation2 + $0xa0] sm:$0xff] 0.0
          %613 = vst [vmem:[#allocation2 + $0xa8] sm:$0xff] 0.0
          %614 = vst [vmem:[#allocation2 + $0xb0] sm:$0xff] 0.0
          %615 = vst [vmem:[#allocation2 + $0xb8] sm:$0xff] 0.0
          %616 = vst [vmem:[#allocation2 + $0xc0] sm:$0xff] 0.0
          %617 = vst [vmem:[#allocation2 + $0xc8] sm:$0xff] 0.0
          %618 = vst [vmem:[#allocation2 + $0xd0] sm:$0xff] 0.0
          %619 = vst [vmem:[#allocation2 + $0xd8] sm:$0xff] 0.0
          %620 = vst [vmem:[#allocation2 + $0xe0] sm:$0xff] 0.0
          %621 = vst [vmem:[#allocation2 + $0xe8] sm:$0xff] 0.0
          %622 = vst [vmem:[#allocation2 + $0xf0] sm:$0xff] 0.0
          %623 = vst [vmem:[#allocation2 + $0xf8] sm:$0xff] 0.0
          %624 = vst [vmem:[#allocation2 + $0x100] sm:$0xff] 0.0
          %625 = vst [vmem:[#allocation2 + $0x108] sm:$0xff] 0.0
          %626 = vst [vmem:[#allocation2 + $0x110] sm:$0xff] 0.0
          %627 = vst [vmem:[#allocation2 + $0x118] sm:$0xff] 0.0
          %628 = vst [vmem:[#allocation2 + $0x120] sm:$0xff] 0.0
          %629 = vst [vmem:[#allocation2 + $0x128] sm:$0xff] 0.0
          %630 = vst [vmem:[#allocation2 + $0x130] sm:$0xff] 0.0
          %631 = vst [vmem:[#allocation2 + $0x138] sm:$0xff] 0.0
          %632 = vst [vmem:[#allocation2 + $0x140] sm:$0xff] 0.0
          %633 = vst [vmem:[#allocation2 + $0x148] sm:$0xff] 0.0
          %634 = vst [vmem:[#allocation2 + $0x150] sm:$0xff] 0.0
          %635 = vst [vmem:[#allocation2 + $0x158] sm:$0xff] 0.0
        $region93: #{generator_forward.19} parent=80 // pred_fallthru
          _
        %v636 = vld [vmem:[#allocation2] sm:$0xff]
        %v637 = vld [vmem:[#allocation2 + $0x8] sm:$0xff]
        %v638 = vld [vmem:[#allocation2 + $0x10] sm:$0xff]
        %v639 = vld [vmem:[#allocation2 + $0x18] sm:$0xff]
        %v640 = vld [vmem:[#allocation2 + $0x20] sm:$0xff]
        %v641 = vld [vmem:[#allocation2 + $0x28] sm:$0xff]
        %v642 = vld [vmem:[#allocation2 + $0x30] sm:$0xff]
        %v643 = vld [vmem:[#allocation2 + $0x38] sm:$0xff]
        %v644 = vld [vmem:[#allocation2 + $0x40] sm:$0xff]
        %v645 = vld [vmem:[#allocation2 + $0x48] sm:$0xff]
        %v646 = vld [vmem:[#allocation2 + $0x50] sm:$0xff]
        %v647 = vld [vmem:[#allocation2 + $0x58] sm:$0xff]
        %v648 = vld [vmem:[#allocation2 + $0x60] sm:$0xff]
        %v649 = vld [vmem:[#allocation2 + $0x68] sm:$0xff]
        %v650 = vld [vmem:[#allocation2 + $0x70] sm:$0xff]
        %v651 = vld [vmem:[#allocation2 + $0x78] sm:$0xff]
        %v652 = vld [vmem:[#allocation2 + $0x80] sm:$0xff]
        %v653 = vld [vmem:[#allocation2 + $0x88] sm:$0xff]
        %v654 = vld [vmem:[#allocation2 + $0x90] sm:$0xff]
        %v655 = vld [vmem:[#allocation2 + $0x98] sm:$0xff]
        %v656 = vld [vmem:[#allocation2 + $0xa0] sm:$0xff]
        %v657 = vld [vmem:[#allocation2 + $0xa8] sm:$0xff]
        %v658 = vld [vmem:[#allocation2 + $0xb0] sm:$0xff]
        %v659 = vld [vmem:[#allocation2 + $0xb8] sm:$0xff]
        %v660 = vld [vmem:[#allocation2 + $0xc0] sm:$0xff]
        %v661 = vld [vmem:[#allocation2 + $0xc8] sm:$0xff]
        %v662 = vld [vmem:[#allocation2 + $0xd0] sm:$0xff]
        %v663 = vld [vmem:[#allocation2 + $0xd8] sm:$0xff]
        %v664 = vld [vmem:[#allocation2 + $0xe0] sm:$0xff]
        %v665 = vld [vmem:[#allocation2 + $0xe8] sm:$0xff]
        %v666 = vld [vmem:[#allocation2 + $0xf0] sm:$0xff]
        %v667 = vld [vmem:[#allocation2 + $0xf8] sm:$0xff]
        %v668 = vld [vmem:[#allocation2 + $0x100] sm:$0xff]
        %v669 = vld [vmem:[#allocation2 + $0x108] sm:$0xff]
        %v670 = vld [vmem:[#allocation2 + $0x110] sm:$0xff]
        %v671 = vld [vmem:[#allocation2 + $0x118] sm:$0xff]
        %v672 = vld [vmem:[#allocation2 + $0x120] sm:$0xff]
        %v673 = vld [vmem:[#allocation2 + $0x128] sm:$0xff]
        %v674 = vld [vmem:[#allocation2 + $0x130] sm:$0xff]
        %v675 = vld [vmem:[#allocation2 + $0x138] sm:$0xff]
        %v676 = vld [vmem:[#allocation2 + $0x140] sm:$0xff]
        %v677 = vld [vmem:[#allocation2 + $0x148] sm:$0xff]
        %v678 = vld [vmem:[#allocation2 + $0x150] sm:$0xff]
        %v679 = vld [vmem:[#allocation2 + $0x158] sm:$0xff]
        %v680 = vld [vmem:[%s553] sm:$0xff]
        %v681 = vld [vmem:[%s553 + $0x8] sm:$0xff]
        %v682 = vld [vmem:[%s553 + $0x10] sm:$0xff]
        %v683 = vld [vmem:[%s553 + $0x18] sm:$0xff]
        %v684 = vld [vmem:[%s553 + $0x20] sm:$0xff]
        %v685 = vld [vmem:[%s553 + $0x28] sm:$0xff]
        %v686 = vld [vmem:[%s553 + $0x30] sm:$0xff]
        %v687 = vld [vmem:[%s553 + $0x38] sm:$0xff]
        %v688 = vld [vmem:[%s553 + $0x40] sm:$0xff]
        %v689 = vld [vmem:[%s553 + $0x48] sm:$0xff]
        %v690 = vld [vmem:[%s553 + $0x50] sm:$0xff]
        %v691 = vld [vmem:[%s553 + $0x58] sm:$0xff]
        %v692 = vld [vmem:[%s553 + $0x60] sm:$0xff]
        %v693 = vld [vmem:[%s553 + $0x68] sm:$0xff]
        %v694 = vld [vmem:[%s553 + $0x70] sm:$0xff]
        %v695 = vld [vmem:[%s553 + $0x78] sm:$0xff]
        %v696 = vld [vmem:[%s553 + $0x80] sm:$0xff]
        %v697 = vld [vmem:[%s553 + $0x88] sm:$0xff]
        %v698 = vld [vmem:[%s553 + $0x90] sm:$0xff]
        %v699 = vld [vmem:[%s553 + $0x98] sm:$0xff]
        %v700 = vld [vmem:[%s553 + $0xa0] sm:$0xff]
        %v701 = vld [vmem:[%s553 + $0xa8] sm:$0xff]
        %v702 = vld [vmem:[%s553 + $0xb0] sm:$0xff]
        %v703 = vld [vmem:[%s553 + $0xb8] sm:$0xff]
        %v704 = vld [vmem:[%s553 + $0xc0] sm:$0xff]
        %v705 = vld [vmem:[%s553 + $0xc8] sm:$0xff]
        %v706 = vld [vmem:[%s553 + $0xd0] sm:$0xff]
        %v707 = vld [vmem:[%s553 + $0xd8] sm:$0xff]
        %v708 = vld [vmem:[%s553 + $0xe0] sm:$0xff]
        %v709 = vld [vmem:[%s553 + $0xe8] sm:$0xff]
        %v710 = vld [vmem:[%s553 + $0xf0] sm:$0xff]
        %v711 = vld [vmem:[%s553 + $0xf8] sm:$0xff]
        %v712 = vld [vmem:[%s553 + $0x100] sm:$0xff]
        %v713 = vld [vmem:[%s553 + $0x108] sm:$0xff]
        %v714 = vld [vmem:[%s553 + $0x110] sm:$0xff]
        %v715 = vld [vmem:[%s553 + $0x118] sm:$0xff]
        %v716 = vld [vmem:[%s553 + $0x120] sm:$0xff]
        %v717 = vld [vmem:[%s553 + $0x128] sm:$0xff]
        %v718 = vld [vmem:[%s553 + $0x130] sm:$0xff]
        %v719 = vld [vmem:[%s553 + $0x138] sm:$0xff]
        %v720 = vld [vmem:[%s553 + $0x140] sm:$0xff]
        %v721 = vld [vmem:[%s553 + $0x148] sm:$0xff]
        %v722 = vld [vmem:[%s553 + $0x150] sm:$0xff]
        %v723 = vld [vmem:[%s553 + $0x158] sm:$0xff]
        %v724 = vld [vmem:[%s560] sm:$0xff]
        %v725 = vld [vmem:[%s560 + $0x8] sm:$0xff]
        %v726 = vld [vmem:[%s560 + $0x10] sm:$0xff]
        %v727 = vld [vmem:[%s560 + $0x18] sm:$0xff]
        %v728 = vld [vmem:[%s560 + $0x20] sm:$0xff]
        %v729 = vld [vmem:[%s560 + $0x28] sm:$0xff]
        %v730 = vld [vmem:[%s560 + $0x30] sm:$0xff]
        %v731 = vld [vmem:[%s560 + $0x38] sm:$0xff]
        %v732 = vld [vmem:[%s560 + $0x40] sm:$0xff]
        %v733 = vld [vmem:[%s560 + $0x48] sm:$0xff]
        %v734 = vld [vmem:[%s560 + $0x50] sm:$0xff]
        %v735 = vld [vmem:[%s560 + $0x58] sm:$0xff]
        %v736 = vld [vmem:[%s560 + $0x60] sm:$0xff]
        %v737 = vld [vmem:[%s560 + $0x68] sm:$0xff]
        %v738 = vld [vmem:[%s560 + $0x70] sm:$0xff]
        %v739 = vld [vmem:[%s560 + $0x78] sm:$0xff]
        %v740 = vld [vmem:[%s560 + $0x80] sm:$0xff]
        %v741 = vld [vmem:[%s560 + $0x88] sm:$0xff]
        %v742 = vld [vmem:[%s560 + $0x90] sm:$0xff]
        %v743 = vld [vmem:[%s560 + $0x98] sm:$0xff]
        %v744 = vld [vmem:[%s560 + $0xa0] sm:$0xff]
        %v745 = vld [vmem:[%s560 + $0xa8] sm:$0xff]
        %v746 = vld [vmem:[%s560 + $0xb0] sm:$0xff]
        %v747 = vld [vmem:[%s560 + $0xb8] sm:$0xff]
        %v748 = vld [vmem:[%s560 + $0xc0] sm:$0xff]
        %v749 = vld [vmem:[%s560 + $0xc8] sm:$0xff]
        %v750 = vld [vmem:[%s560 + $0xd0] sm:$0xff]
        %v751 = vld [vmem:[%s560 + $0xd8] sm:$0xff]
        %v752 = vld [vmem:[%s560 + $0xe0] sm:$0xff]
        %v753 = vld [vmem:[%s560 + $0xe8] sm:$0xff]
        %v754 = vld [vmem:[%s560 + $0xf0] sm:$0xff]
        %v755 = vld [vmem:[%s560 + $0xf8] sm:$0xff]
        %v756 = vld [vmem:[%s560 + $0x100] sm:$0xff]
        %v757 = vld [vmem:[%s560 + $0x108] sm:$0xff]
        %v758 = vld [vmem:[%s560 + $0x110] sm:$0xff]
        %v759 = vld [vmem:[%s560 + $0x118] sm:$0xff]
        %v760 = vld [vmem:[%s560 + $0x120] sm:$0xff]
        %v761 = vld [vmem:[%s560 + $0x128] sm:$0xff]
        %v762 = vld [vmem:[%s560 + $0x130] sm:$0xff]
        %v763 = vld [vmem:[%s560 + $0x138] sm:$0xff]
        %v764 = vld [vmem:[%s560 + $0x140] sm:$0xff]
        %v765 = vld [vmem:[%s560 + $0x148] sm:$0xff]
        %v766 = vld [vmem:[%s560 + $0x150] sm:$0xff]
        %v767 = vld [vmem:[%s560 + $0x158] sm:$0xff]
        %v768 = vld [vmem:[%s560 + $0x160] sm:$0xff]
        %v769 = vld [vmem:[%s560 + $0x168] sm:$0xff]
        %v770 = vld [vmem:[%s560 + $0x170] sm:$0xff]
        %v771 = vld [vmem:[%s560 + $0x178] sm:$0xff]
        %v772 = vld [vmem:[%s560 + $0x180] sm:$0xff]
        %v773 = vld [vmem:[%s560 + $0x188] sm:$0xff]
        %v774 = vld [vmem:[%s560 + $0x190] sm:$0xff]
        %v775 = vld [vmem:[%s560 + $0x198] sm:$0xff]
        %v776 = vld [vmem:[%s560 + $0x1a0] sm:$0xff]
        %v777 = vld [vmem:[%s560 + $0x1a8] sm:$0xff]
        %v778 = vld [vmem:[%s560 + $0x1b0] sm:$0xff]
        %v779 = vld [vmem:[%s560 + $0x1b8] sm:$0xff]
        %v780 = vld [vmem:[%s560 + $0x1c0] sm:$0xff]
        %v781 = vld [vmem:[%s560 + $0x1c8] sm:$0xff]
        %v782 = vld [vmem:[%s560 + $0x1d0] sm:$0xff]
        %v783 = vld [vmem:[%s560 + $0x1d8] sm:$0xff]
        %v784 = vld [vmem:[%s560 + $0x1e0] sm:$0xff]
        %v785 = vld [vmem:[%s560 + $0x1e8] sm:$0xff]
        %v786 = vld [vmem:[%s560 + $0x1f0] sm:$0xff]
        %v787 = vld [vmem:[%s560 + $0x1f8] sm:$0xff]
        %v832 = vunpack.c.l.b16 %v680
        %v833 = vunpack.c.h.b16 %v680
        %v834 = vunpack.c.l.b16 %v681
        %v835 = vunpack.c.h.b16 %v681
        %v836 = vunpack.c.l.b16 %v682
        %v837 = vunpack.c.h.b16 %v682
        %v838 = vunpack.c.l.b16 %v683
        %v839 = vunpack.c.h.b16 %v683
        %v840 = vunpack.c.l.b16 %v684
        %v841 = vunpack.c.h.b16 %v684
        %v842 = vunpack.c.l.b16 %v685
        %v843 = vunpack.c.h.b16 %v685
        %v844 = vunpack.c.l.b16 %v686
        %v845 = vunpack.c.h.b16 %v686
        %v846 = vunpack.c.l.b16 %v687
        %v847 = vunpack.c.h.b16 %v687
        %v848 = vunpack.c.l.b16 %v688
        %v849 = vunpack.c.h.b16 %v688
        %v850 = vunpack.c.l.b16 %v689
        %v851 = vunpack.c.h.b16 %v689
        %v852 = vunpack.c.l.b16 %v690
        %v853 = vunpack.c.h.b16 %v690
        %v854 = vunpack.c.l.b16 %v691
        %v855 = vunpack.c.h.b16 %v691
        %v856 = vunpack.c.l.b16 %v692
        %v857 = vunpack.c.h.b16 %v692
        %v858 = vunpack.c.l.b16 %v693
        %v859 = vunpack.c.h.b16 %v693
        %v860 = vunpack.c.l.b16 %v694
        %v861 = vunpack.c.h.b16 %v694
        %v862 = vunpack.c.l.b16 %v695
        %v863 = vunpack.c.h.b16 %v695
        %v864 = vunpack.c.l.b16 %v696
        %v865 = vunpack.c.h.b16 %v696
        %v866 = vunpack.c.l.b16 %v697
        %v867 = vunpack.c.h.b16 %v697
        %v868 = vunpack.c.l.b16 %v698
        %v869 = vunpack.c.h.b16 %v698
        %v870 = vunpack.c.l.b16 %v699
        %v871 = vunpack.c.h.b16 %v699
        %v872 = vunpack.c.l.b16 %v700
        %v873 = vunpack.c.h.b16 %v700
        %v874 = vunpack.c.l.b16 %v701
        %v875 = vunpack.c.h.b16 %v701
        %v876 = vunpack.c.l.b16 %v702
        %v877 = vunpack.c.h.b16 %v702
        %v878 = vunpack.c.l.b16 %v703
        %v879 = vunpack.c.h.b16 %v703
        %v880 = vunpack.c.l.b16 %v704
        %v881 = vunpack.c.h.b16 %v704
        %v882 = vunpack.c.l.b16 %v705
        %v883 = vunpack.c.h.b16 %v705
        %v884 = vunpack.c.l.b16 %v706
        %v885 = vunpack.c.h.b16 %v706
        %v886 = vunpack.c.l.b16 %v707
        %v887 = vunpack.c.h.b16 %v707
        %v888 = vunpack.c.l.b16 %v708
        %v889 = vunpack.c.h.b16 %v708
        %v890 = vunpack.c.l.b16 %v709
        %v891 = vunpack.c.h.b16 %v709
        %v892 = vunpack.c.l.b16 %v710
        %v893 = vunpack.c.h.b16 %v710
        %v894 = vunpack.c.l.b16 %v711
        %v895 = vunpack.c.h.b16 %v711
        %v896 = vunpack.c.l.b16 %v712
        %v897 = vunpack.c.h.b16 %v712
        %v898 = vunpack.c.l.b16 %v713
        %v899 = vunpack.c.h.b16 %v713
        %v900 = vunpack.c.l.b16 %v714
        %v901 = vunpack.c.h.b16 %v714
        %v902 = vunpack.c.l.b16 %v715
        %v903 = vunpack.c.h.b16 %v715
        %v904 = vunpack.c.l.b16 %v716
        %v905 = vunpack.c.h.b16 %v716
        %v906 = vunpack.c.l.b16 %v717
        %v907 = vunpack.c.h.b16 %v717
        %v908 = vunpack.c.l.b16 %v718
        %v909 = vunpack.c.h.b16 %v718
        %v910 = vunpack.c.l.b16 %v719
        %v911 = vunpack.c.h.b16 %v719
        %v912 = vunpack.c.l.b16 %v720
        %v913 = vunpack.c.h.b16 %v720
        %v914 = vunpack.c.l.b16 %v721
        %v915 = vunpack.c.h.b16 %v721
        %v916 = vunpack.c.l.b16 %v722
        %v917 = vunpack.c.h.b16 %v722
        %v918 = vunpack.c.l.b16 %v723
        %v919 = vunpack.c.h.b16 %v723
        %v920 = vpack.c.b16 %v836, %v832
        %v921 = vpack.c.b16 %v837, %v833
        %v922 = vpack.c.b16 %v838, %v834
        %v923 = vpack.c.b16 %v839, %v835
        %v924 = vpack.c.b16 %v844, %v840
        %v925 = vpack.c.b16 %v845, %v841
        %v926 = vpack.c.b16 %v846, %v842
        %v927 = vpack.c.b16 %v847, %v843
        %v928 = vpack.c.b16 %v852, %v848
        %v929 = vpack.c.b16 %v853, %v849
        %v930 = vpack.c.b16 %v854, %v850
        %v931 = vpack.c.b16 %v855, %v851
        %v932 = vpack.c.b16 %v860, %v856
        %v933 = vpack.c.b16 %v861, %v857
        %v934 = vpack.c.b16 %v862, %v858
        %v935 = vpack.c.b16 %v863, %v859
        %v936 = vpack.c.b16 %v868, %v864
        %v937 = vpack.c.b16 %v869, %v865
        %v938 = vpack.c.b16 %v870, %v866
        %v939 = vpack.c.b16 %v871, %v867
        %v940 = vpack.c.b16 %v876, %v872
        %v941 = vpack.c.b16 %v877, %v873
        %v942 = vpack.c.b16 %v878, %v874
        %v943 = vpack.c.b16 %v879, %v875
        %v944 = vpack.c.b16 %v884, %v880
        %v945 = vpack.c.b16 %v885, %v881
        %v946 = vpack.c.b16 %v886, %v882
        %v947 = vpack.c.b16 %v887, %v883
        %v948 = vpack.c.b16 %v892, %v888
        %v949 = vpack.c.b16 %v893, %v889
        %v950 = vpack.c.b16 %v894, %v890
        %v951 = vpack.c.b16 %v895, %v891
        %v952 = vpack.c.b16 %v900, %v896
        %v953 = vpack.c.b16 %v901, %v897
        %v954 = vpack.c.b16 %v902, %v898
        %v955 = vpack.c.b16 %v903, %v899
        %v956 = vpack.c.b16 %v908, %v904
        %v957 = vpack.c.b16 %v909, %v905
        %v958 = vpack.c.b16 %v910, %v906
        %v959 = vpack.c.b16 %v911, %v907
        %v960 = vpack.c.b16 %v916, %v912
        %v961 = vpack.c.b16 %v917, %v913
        %v962 = vpack.c.b16 %v918, %v914
        %v963 = vpack.c.b16 %v919, %v915
        %v1072 = vunpack.c.l.b16 %v724
        %v1073 = vunpack.c.h.b16 %v724
        %v1074 = vunpack.c.l.b16 %v725
        %v1075 = vunpack.c.h.b16 %v725
        %v1076 = vunpack.c.l.b16 %v726
        %v1077 = vunpack.c.h.b16 %v726
        %v1078 = vunpack.c.l.b16 %v727
        %v1079 = vunpack.c.h.b16 %v727
        %v1080 = vunpack.c.l.b16 %v728
        %v1081 = vunpack.c.h.b16 %v728
        %v1082 = vunpack.c.l.b16 %v729
        %v1083 = vunpack.c.h.b16 %v729
        %v1084 = vunpack.c.l.b16 %v730
        %v1085 = vunpack.c.h.b16 %v730
        %v1086 = vunpack.c.l.b16 %v731
        %v1087 = vunpack.c.h.b16 %v731
        %v1088 = vunpack.c.l.b16 %v732
        %v1089 = vunpack.c.h.b16 %v732
        %v1090 = vunpack.c.l.b16 %v733
        %v1091 = vunpack.c.h.b16 %v733
        %v1092 = vunpack.c.l.b16 %v734
        %v1093 = vunpack.c.h.b16 %v734
        %v1094 = vunpack.c.l.b16 %v735
        %v1095 = vunpack.c.h.b16 %v735
        %v1096 = vunpack.c.l.b16 %v736
        %v1097 = vunpack.c.h.b16 %v736
        %v1098 = vunpack.c.l.b16 %v737
        %v1099 = vunpack.c.h.b16 %v737
        %v1100 = vunpack.c.l.b16 %v738
        %v1101 = vunpack.c.h.b16 %v738
        %v1102 = vunpack.c.l.b16 %v739
        %v1103 = vunpack.c.h.b16 %v739
        %v1104 = vunpack.c.l.b16 %v740
        %v1105 = vunpack.c.h.b16 %v740
        %v1106 = vunpack.c.l.b16 %v741
        %v1107 = vunpack.c.h.b16 %v741
        %v1108 = vunpack.c.l.b16 %v742
        %v1109 = vunpack.c.h.b16 %v742
        %v1110 = vunpack.c.l.b16 %v743
        %v1111 = vunpack.c.h.b16 %v743
        %v1112 = vunpack.c.l.b16 %v744
        %v1113 = vunpack.c.h.b16 %v744
        %v1114 = vunpack.c.l.b16 %v745
        %v1115 = vunpack.c.h.b16 %v745
        %v1116 = vunpack.c.l.b16 %v746
        %v1117 = vunpack.c.h.b16 %v746
        %v1118 = vunpack.c.l.b16 %v747
        %v1119 = vunpack.c.h.b16 %v747
        %v1120 = vunpack.c.l.b16 %v748
        %v1121 = vunpack.c.h.b16 %v748
        %v1122 = vunpack.c.l.b16 %v749
        %v1123 = vunpack.c.h.b16 %v749
        %v1124 = vunpack.c.l.b16 %v750
        %v1125 = vunpack.c.h.b16 %v750
        %v1126 = vunpack.c.l.b16 %v751
        %v1127 = vunpack.c.h.b16 %v751
        %v1128 = vunpack.c.l.b16 %v752
        %v1129 = vunpack.c.h.b16 %v752
        %v1130 = vunpack.c.l.b16 %v753
        %v1131 = vunpack.c.h.b16 %v753
        %v1132 = vunpack.c.l.b16 %v754
        %v1133 = vunpack.c.h.b16 %v754
        %v1134 = vunpack.c.l.b16 %v755
        %v1135 = vunpack.c.h.b16 %v755
        %v1136 = vunpack.c.l.b16 %v756
        %v1137 = vunpack.c.h.b16 %v756
        %v1138 = vunpack.c.l.b16 %v757
        %v1139 = vunpack.c.h.b16 %v757
        %v1140 = vunpack.c.l.b16 %v758
        %v1141 = vunpack.c.h.b16 %v758
        %v1142 = vunpack.c.l.b16 %v759
        %v1143 = vunpack.c.h.b16 %v759
        %v1144 = vunpack.c.l.b16 %v760
        %v1145 = vunpack.c.h.b16 %v760
        %v1146 = vunpack.c.l.b16 %v761
        %v1147 = vunpack.c.h.b16 %v761
        %v1148 = vunpack.c.l.b16 %v762
        %v1149 = vunpack.c.h.b16 %v762
        %v1150 = vunpack.c.l.b16 %v763
        %v1151 = vunpack.c.h.b16 %v763
        %v1152 = vunpack.c.l.b16 %v764
        %v1153 = vunpack.c.h.b16 %v764
        %v1154 = vunpack.c.l.b16 %v765
        %v1155 = vunpack.c.h.b16 %v765
        %v1156 = vunpack.c.l.b16 %v766
        %v1157 = vunpack.c.h.b16 %v766
        %v1158 = vunpack.c.l.b16 %v767
        %v1159 = vunpack.c.h.b16 %v767
        %v1160 = vunpack.c.l.b16 %v768
        %v1161 = vunpack.c.h.b16 %v768
        %v1162 = vunpack.c.l.b16 %v769
        %v1163 = vunpack.c.h.b16 %v769
        %v1164 = vunpack.c.l.b16 %v770
        %v1165 = vunpack.c.h.b16 %v770
        %v1166 = vunpack.c.l.b16 %v771
        %v1167 = vunpack.c.h.b16 %v771
        %v1168 = vunpack.c.l.b16 %v772
        %v1169 = vunpack.c.h.b16 %v772
        %v1170 = vunpack.c.l.b16 %v773
        %v1171 = vunpack.c.h.b16 %v773
        %v1172 = vunpack.c.l.b16 %v774
        %v1173 = vunpack.c.h.b16 %v774
        %v1174 = vunpack.c.l.b16 %v775
        %v1175 = vunpack.c.h.b16 %v775
        %v1176 = vunpack.c.l.b16 %v776
        %v1177 = vunpack.c.h.b16 %v776
        %v1178 = vunpack.c.l.b16 %v777
        %v1179 = vunpack.c.h.b16 %v777
        %v1180 = vunpack.c.l.b16 %v778
        %v1181 = vunpack.c.h.b16 %v778
        %v1182 = vunpack.c.l.b16 %v779
        %v1183 = vunpack.c.h.b16 %v779
        %v1184 = vunpack.c.l.b16 %v780
        %v1185 = vunpack.c.h.b16 %v780
        %v1186 = vunpack.c.l.b16 %v781
        %v1187 = vunpack.c.h.b16 %v781
        %v1188 = vunpack.c.l.b16 %v782
        %v1189 = vunpack.c.h.b16 %v782
        %v1190 = vunpack.c.l.b16 %v783
        %v1191 = vunpack.c.h.b16 %v783
        %v1192 = vunpack.c.l.b16 %v784
        %v1193 = vunpack.c.h.b16 %v784
        %v1194 = vunpack.c.l.b16 %v785
        %v1195 = vunpack.c.h.b16 %v785
        %v1196 = vunpack.c.l.b16 %v786
        %v1197 = vunpack.c.h.b16 %v786
        %v1198 = vunpack.c.l.b16 %v787
        %v1199 = vunpack.c.h.b16 %v787
        %v1200 = vpack.c.b16 %v1074, %v1072
        %v1201 = vpack.c.b16 %v1075, %v1073
        %v1202 = vpack.c.b16 %v1078, %v1076
        %v1203 = vpack.c.b16 %v1079, %v1077
        %v1204 = vpack.c.b16 %v1082, %v1080
        %v1205 = vpack.c.b16 %v1083, %v1081
        %v1206 = vpack.c.b16 %v1086, %v1084
        %v1207 = vpack.c.b16 %v1087, %v1085
        %v1208 = vpack.c.b16 %v1090, %v1088
        %v1209 = vpack.c.b16 %v1091, %v1089
        %v1210 = vpack.c.b16 %v1094, %v1092
        %v1211 = vpack.c.b16 %v1095, %v1093
        %v1212 = vpack.c.b16 %v1098, %v1096
        %v1213 = vpack.c.b16 %v1099, %v1097
        %v1214 = vpack.c.b16 %v1102, %v1100
        %v1215 = vpack.c.b16 %v1103, %v1101
        %v1216 = vpack.c.b16 %v1106, %v1104
        %v1217 = vpack.c.b16 %v1107, %v1105
        %v1218 = vpack.c.b16 %v1110, %v1108
        %v1219 = vpack.c.b16 %v1111, %v1109
        %v1220 = vpack.c.b16 %v1114, %v1112
        %v1221 = vpack.c.b16 %v1115, %v1113
        %v1222 = vpack.c.b16 %v1118, %v1116
        %v1223 = vpack.c.b16 %v1119, %v1117
        %v1224 = vpack.c.b16 %v1122, %v1120
        %v1225 = vpack.c.b16 %v1123, %v1121
        %v1226 = vpack.c.b16 %v1126, %v1124
        %v1227 = vpack.c.b16 %v1127, %v1125
        %v1228 = vpack.c.b16 %v1130, %v1128
        %v1229 = vpack.c.b16 %v1131, %v1129
        %v1230 = vpack.c.b16 %v1134, %v1132
        %v1231 = vpack.c.b16 %v1135, %v1133
        %v1232 = vpack.c.b16 %v1138, %v1136
        %v1233 = vpack.c.b16 %v1139, %v1137
        %v1234 = vpack.c.b16 %v1142, %v1140
        %v1235 = vpack.c.b16 %v1143, %v1141
        %v1236 = vpack.c.b16 %v1146, %v1144
        %v1237 = vpack.c.b16 %v1147, %v1145
        %v1238 = vpack.c.b16 %v1150, %v1148
        %v1239 = vpack.c.b16 %v1151, %v1149
        %v1240 = vpack.c.b16 %v1154, %v1152
        %v1241 = vpack.c.b16 %v1155, %v1153
        %v1242 = vpack.c.b16 %v1158, %v1156
        %v1243 = vpack.c.b16 %v1159, %v1157
        %v1244 = vpack.c.b16 %v1162, %v1160
        %v1245 = vpack.c.b16 %v1163, %v1161
        %v1246 = vpack.c.b16 %v1166, %v1164
        %v1247 = vpack.c.b16 %v1167, %v1165
        %v1248 = vpack.c.b16 %v1170, %v1168
        %v1249 = vpack.c.b16 %v1171, %v1169
        %v1250 = vpack.c.b16 %v1174, %v1172
        %v1251 = vpack.c.b16 %v1175, %v1173
        %v1252 = vpack.c.b16 %v1178, %v1176
        %v1253 = vpack.c.b16 %v1179, %v1177
        %v1254 = vpack.c.b16 %v1182, %v1180
        %v1255 = vpack.c.b16 %v1183, %v1181
        %v1256 = vpack.c.b16 %v1186, %v1184
        %v1257 = vpack.c.b16 %v1187, %v1185
        %v1258 = vpack.c.b16 %v1190, %v1188
        %v1259 = vpack.c.b16 %v1191, %v1189
        %v1260 = vpack.c.b16 %v1194, %v1192
        %v1261 = vpack.c.b16 %v1195, %v1193
        %v1262 = vpack.c.b16 %v1198, %v1196
        %v1263 = vpack.c.b16 %v1199, %v1197
        %1328 = vmatprep.subr.bf16.mxu0 %v1201
        %1329 = vmatpush1.bf16.msra.mxu0 %v1200
        %1330 = vmatprep.subr.bf16.mxu0 %v1203
        %1331 = vmatpush1.bf16.msra.mxu0 %v1202
        %1332 = vmatprep.subr.bf16.mxu0 %v1205
        %1333 = vmatpush1.bf16.msra.mxu0 %v1204
        %1334 = vmatprep.subr.bf16.mxu0 %v1207
        %1335 = vmatpush1.bf16.msra.mxu0 %v1206
        %1336 = vmatprep.subr.bf16.mxu0 %v1209
        %1337 = vmatpush1.bf16.msra.mxu0 %v1208
        %1338 = vmatprep.subr.bf16.mxu0 %v1211
        %1339 = vmatpush1.bf16.msra.mxu0 %v1210
        %1340 = vmatprep.subr.bf16.mxu0 %v1213
        %1341 = vmatpush1.bf16.msra.mxu0 %v1212
        %1342 = vmatprep.subr.bf16.mxu0 %v1215
        %1343 = vmatpush1.bf16.msra.mxu0 %v1214
        %1344 = vmatprep.subr.bf16.mxu0 %v1217
        %1345 = vmatpush1.bf16.msra.mxu0 %v1216
        %1346 = vmatprep.subr.bf16.mxu0 %v1219
        %1347 = vmatpush1.bf16.msra.mxu0 %v1218
        %1348 = vmatprep.subr.bf16.mxu0 %v1221
        %1349 = vmatpush1.bf16.msra.mxu0 %v1220
        %1350 = vmatprep.subr.bf16.mxu0 %v1223
        %1351 = vmatpush1.bf16.msra.mxu0 %v1222
        %1352 = vmatprep.subr.bf16.mxu0 %v1225
        %1353 = vmatpush1.bf16.msra.mxu0 %v1224
        %1354 = vmatprep.subr.bf16.mxu0 %v1227
        %1355 = vmatpush1.bf16.msra.mxu0 %v1226
        %1356 = vmatprep.subr.bf16.mxu0 %v1229
        %1357 = vmatpush1.bf16.msra.mxu0 %v1228
        %1358 = vmatprep.subr.bf16.mxu0 %v1231
        %1359 = vmatpush1.bf16.msra.mxu0 %v1230
        %1360 = vmatprep.mubr.bf16.mxu0 %v921
        %1361 = vmatmul.mubr.bf16.gmra.mrb[0].mxu0 %v920
        %v1362 = vpop.f32.mrb[0].mxu0
        %v1363 = vadd.f32 0.0, %v1362
        %v1364 = vpop.f32.mrb[0].mxu0
        %v1365 = vadd.f32 0.0, %v1364
        %v1366 = vpop.f32.mrb[0].mxu0
        %v1367 = vadd.f32 0.0, %v1366
        %v1368 = vpop.f32.mrb[0].mxu0
        %v1369 = vadd.f32 0.0, %v1368
        %1370 = vmatprep.mubr.bf16.mxu0 %v925
        %1371 = vmatmul.mubr.bf16.gmra.mrb[0].mxu0 %v924
        %v1372 = vpop.f32.mrb[0].mxu0
        %v1373 = vadd.f32 0.0, %v1372
        %v1374 = vpop.f32.mrb[0].mxu0
        %v1375 = vadd.f32 0.0, %v1374
        %v1376 = vpop.f32.mrb[0].mxu0
        %v1377 = vadd.f32 0.0, %v1376
        %v1378 = vpop.f32.mrb[0].mxu0
        %v1379 = vadd.f32 0.0, %v1378
        %1380 = vmatprep.mubr.bf16.mxu0 %v929
        %1381 = vmatmul.mubr.bf16.gmra.mrb[0].mxu0 %v928
        %v1382 = vpop.f32.mrb[0].mxu0
        %v1383 = vadd.f32 0.0, %v1382
        %v1384 = vpop.f32.mrb[0].mxu0
        %v1385 = vadd.f32 0.0, %v1384
        %v1386 = vpop.f32.mrb[0].mxu0
        %v1387 = vadd.f32 0.0, %v1386
        %v1388 = vpop.f32.mrb[0].mxu0
        %v1389 = vadd.f32 0.0, %v1388
        %1390 = vmatprep.mubr.bf16.mxu0 %v933
        %1391 = vmatmul.mubr.bf16.gmra.mrb[0].mxu0 %v932
        %v1392 = vpop.f32.mrb[0].mxu0
        %v1393 = vadd.f32 0.0, %v1392
        %v1394 = vpop.f32.mrb[0].mxu0
        %v1395 = vadd.f32 0.0, %v1394
        %v1396 = vpop.f32.mrb[0].mxu0
        %v1397 = vadd.f32 0.0, %v1396
        %v1398 = vpop.f32.mrb[0].mxu0
        %v1399 = vadd.f32 0.0, %v1398
        %1400 = vmatprep.mubr.bf16.mxu0 %v937
        %1401 = vmatmul.mubr.bf16.gmra.mrb[0].mxu0 %v936
        %v1402 = vpop.f32.mrb[0].mxu0
        %v1403 = vadd.f32 0.0, %v1402
        %v1404 = vpop.f32.mrb[0].mxu0
        %v1405 = vadd.f32 0.0, %v1404
        %v1406 = vpop.f32.mrb[0].mxu0
        %v1407 = vadd.f32 0.0, %v1406
        %v1408 = vpop.f32.mrb[0].mxu0
        %v1409 = vadd.f32 0.0, %v1408
        %1410 = vmatprep.mubr.bf16.mxu0 %v941
        %1411 = vmatmul.mubr.bf16.gmra.mrb[0].mxu0 %v940
        %v1412 = vpop.f32.mrb[0].mxu0
        %v1413 = vadd.f32 0.0, %v1412
        %v1414 = vpop.f32.mrb[0].mxu0
        %v1415 = vadd.f32 0.0, %v1414
        %v1416 = vpop.f32.mrb[0].mxu0
        %v1417 = vadd.f32 0.0, %v1416
        %v1418 = vpop.f32.mrb[0].mxu0
        %v1419 = vadd.f32 0.0, %v1418
        %1420 = vmatprep.mubr.bf16.mxu0 %v945
        %1421 = vmatmul.mubr.bf16.gmra.mrb[0].mxu0 %v944
        %v1422 = vpop.f32.mrb[0].mxu0
        %v1423 = vadd.f32 0.0, %v1422
        %v1424 = vpop.f32.mrb[0].mxu0
        %v1425 = vadd.f32 0.0, %v1424
        %v1426 = vpop.f32.mrb[0].mxu0
        %v1427 = vadd.f32 0.0, %v1426
        %v1428 = vpop.f32.mrb[0].mxu0
        %v1429 = vadd.f32 0.0, %v1428
        %1430 = vmatprep.mubr.bf16.mxu0 %v949
        %1431 = vmatmul.mubr.bf16.gmra.mrb[0].mxu0 %v948
        %v1432 = vpop.f32.mrb[0].mxu0
        %v1433 = vadd.f32 0.0, %v1432
        %v1434 = vpop.f32.mrb[0].mxu0
        %v1435 = vadd.f32 0.0, %v1434
        %v1436 = vpop.f32.mrb[0].mxu0
        %v1437 = vadd.f32 0.0, %v1436
        %v1438 = vpop.f32.mrb[0].mxu0
        %v1439 = vadd.f32 0.0, %v1438
        %1440 = vmatprep.mubr.bf16.mxu0 %v953
        %1441 = vmatmul.mubr.bf16.gmra.mrb[0].mxu0 %v952
        %v1442 = vpop.f32.mrb[0].mxu0
        %v1443 = vadd.f32 0.0, %v1442
        %v1444 = vpop.f32.mrb[0].mxu0
        %v1445 = vadd.f32 0.0, %v1444
        %v1446 = vpop.f32.mrb[0].mxu0
        %v1447 = vadd.f32 0.0, %v1446
        %v1448 = vpop.f32.mrb[0].mxu0
        %v1449 = vadd.f32 0.0, %v1448
        %1450 = vmatprep.mubr.bf16.mxu0 %v957
        %1451 = vmatmul.mubr.bf16.gmra.mrb[0].mxu0 %v956
        %v1452 = vpop.f32.mrb[0].mxu0
        %v1453 = vadd.f32 0.0, %v1452
        %v1454 = vpop.f32.mrb[0].mxu0
        %v1455 = vadd.f32 0.0, %v1454
        %v1456 = vpop.f32.mrb[0].mxu0
        %v1457 = vadd.f32 0.0, %v1456
        %v1458 = vpop.f32.mrb[0].mxu0
        %v1459 = vadd.f32 0.0, %v1458
        %1460 = vmatprep.mubr.bf16.mxu0 %v961
        %1461 = vmatmul.mubr.bf16.gmra.mrb[0].mxu0 %v960
        %v1462 = vpop.f32.mrb[0].mxu0
        %v1463 = vadd.f32 0.0, %v1462
        %v1464 = vpop.f32.mrb[0].mxu0
        %v1465 = vadd.f32 0.0, %v1464
        %v1466 = vpop.f32.mrb[0].mxu0
        %v1467 = vadd.f32 0.0, %v1466
        %v1468 = vpop.f32.mrb[0].mxu0
        %v1469 = vadd.f32 0.0, %v1468
        %1470 = vdwg.mxu0
        %1471 = vmatprep.subr.bf16.mxu0 %v1233
        %1472 = vmatpush1.bf16.msra.mxu0 %v1232
        %1473 = vmatprep.subr.bf16.mxu0 %v1235
        %1474 = vmatpush1.bf16.msra.mxu0 %v1234
        %1475 = vmatprep.subr.bf16.mxu0 %v1237
        %1476 = vmatpush1.bf16.msra.mxu0 %v1236
        %1477 = vmatprep.subr.bf16.mxu0 %v1239
        %1478 = vmatpush1.bf16.msra.mxu0 %v1238
        %1479 = vmatprep.subr.bf16.mxu0 %v1241
        %1480 = vmatpush1.bf16.msra.mxu0 %v1240
        %1481 = vmatprep.subr.bf16.mxu0 %v1243
        %1482 = vmatpush1.bf16.msra.mxu0 %v1242
        %1483 = vmatprep.subr.bf16.mxu0 %v1245
        %1484 = vmatpush1.bf16.msra.mxu0 %v1244
        %1485 = vmatprep.subr.bf16.mxu0 %v1247
        %1486 = vmatpush1.bf16.msra.mxu0 %v1246
        %1487 = vmatprep.subr.bf16.mxu0 %v1249
        %1488 = vmatpush1.bf16.msra.mxu0 %v1248
        %1489 = vmatprep.subr.bf16.mxu0 %v1251
        %1490 = vmatpush1.bf16.msra.mxu0 %v1250
        %1491 = vmatprep.subr.bf16.mxu0 %v1253
        %1492 = vmatpush1.bf16.msra.mxu0 %v1252
        %1493 = vmatprep.subr.bf16.mxu0 %v1255
        %1494 = vmatpush1.bf16.msra.mxu0 %v1254
        %1495 = vmatprep.subr.bf16.mxu0 %v1257
        %1496 = vmatpush1.bf16.msra.mxu0 %v1256
        %1497 = vmatprep.subr.bf16.mxu0 %v1259
        %1498 = vmatpush1.bf16.msra.mxu0 %v1258
        %1499 = vmatprep.subr.bf16.mxu0 %v1261
        %1500 = vmatpush1.bf16.msra.mxu0 %v1260
        %1501 = vmatprep.subr.bf16.mxu0 %v1263
        %1502 = vmatpush1.bf16.msra.mxu0 %v1262
        %1503 = vmatprep.mubr.bf16.mxu0 %v923
        %1504 = vmatmul.mubr.bf16.gmra.mrb[0].mxu0 %v922
        %v1505 = vpop.f32.mrb[0].mxu0
        %v1506 = vadd.f32 %v1363, %v1505
        %v1507 = vpop.f32.mrb[0].mxu0
        %v1508 = vadd.f32 %v1365, %v1507
        %v1509 = vpop.f32.mrb[0].mxu0
        %v1510 = vadd.f32 %v1367, %v1509
        %v1511 = vpop.f32.mrb[0].mxu0
        %v1512 = vadd.f32 %v1369, %v1511
        %1513 = vmatprep.mubr.bf16.mxu0 %v927
        %1514 = vmatmul.mubr.bf16.gmra.mrb[0].mxu0 %v926
        %v1515 = vpop.f32.mrb[0].mxu0
        %v1516 = vadd.f32 %v1373, %v1515
        %v1517 = vpop.f32.mrb[0].mxu0
        %v1518 = vadd.f32 %v1375, %v1517
        %v1519 = vpop.f32.mrb[0].mxu0
        %v1520 = vadd.f32 %v1377, %v1519
        %v1521 = vpop.f32.mrb[0].mxu0
        %v1522 = vadd.f32 %v1379, %v1521
        %1523 = vmatprep.mubr.bf16.mxu0 %v931
        %1524 = vmatmul.mubr.bf16.gmra.mrb[0].mxu0 %v930
        %v1525 = vpop.f32.mrb[0].mxu0
        %v1526 = vadd.f32 %v1383, %v1525
        %v1527 = vpop.f32.mrb[0].mxu0
        %v1528 = vadd.f32 %v1385, %v1527
        %v1529 = vpop.f32.mrb[0].mxu0
        %v1530 = vadd.f32 %v1387, %v1529
        %v1531 = vpop.f32.mrb[0].mxu0
        %v1532 = vadd.f32 %v1389, %v1531
        %1533 = vmatprep.mubr.bf16.mxu0 %v935
        %1534 = vmatmul.mubr.bf16.gmra.mrb[0].mxu0 %v934
        %v1535 = vpop.f32.mrb[0].mxu0
        %v1536 = vadd.f32 %v1393, %v1535
        %v1537 = vpop.f32.mrb[0].mxu0
        %v1538 = vadd.f32 %v1395, %v1537
        %v1539 = vpop.f32.mrb[0].mxu0
        %v1540 = vadd.f32 %v1397, %v1539
        %v1541 = vpop.f32.mrb[0].mxu0
        %v1542 = vadd.f32 %v1399, %v1541
        %1543 = vmatprep.mubr.bf16.mxu0 %v939
        %1544 = vmatmul.mubr.bf16.gmra.mrb[0].mxu0 %v938
        %v1545 = vpop.f32.mrb[0].mxu0
        %v1546 = vadd.f32 %v1403, %v1545
        %v1547 = vpop.f32.mrb[0].mxu0
        %v1548 = vadd.f32 %v1405, %v1547
        %v1549 = vpop.f32.mrb[0].mxu0
        %v1550 = vadd.f32 %v1407, %v1549
        %v1551 = vpop.f32.mrb[0].mxu0
        %v1552 = vadd.f32 %v1409, %v1551
        %1553 = vmatprep.mubr.bf16.mxu0 %v943
        %1554 = vmatmul.mubr.bf16.gmra.mrb[0].mxu0 %v942
        %v1555 = vpop.f32.mrb[0].mxu0
        %v1556 = vadd.f32 %v1413, %v1555
        %v1557 = vpop.f32.mrb[0].mxu0
        %v1558 = vadd.f32 %v1415, %v1557
        %v1559 = vpop.f32.mrb[0].mxu0
        %v1560 = vadd.f32 %v1417, %v1559
        %v1561 = vpop.f32.mrb[0].mxu0
        %v1562 = vadd.f32 %v1419, %v1561
        %1563 = vmatprep.mubr.bf16.mxu0 %v947
        %1564 = vmatmul.mubr.bf16.gmra.mrb[0].mxu0 %v946
        %v1565 = vpop.f32.mrb[0].mxu0
        %v1566 = vadd.f32 %v1423, %v1565
        %v1567 = vpop.f32.mrb[0].mxu0
        %v1568 = vadd.f32 %v1425, %v1567
        %v1569 = vpop.f32.mrb[0].mxu0
        %v1570 = vadd.f32 %v1427, %v1569
        %v1571 = vpop.f32.mrb[0].mxu0
        %v1572 = vadd.f32 %v1429, %v1571
        %1573 = vmatprep.mubr.bf16.mxu0 %v951
        %1574 = vmatmul.mubr.bf16.gmra.mrb[0].mxu0 %v950
        %v1575 = vpop.f32.mrb[0].mxu0
        %v1576 = vadd.f32 %v1433, %v1575
        %v1577 = vpop.f32.mrb[0].mxu0
        %v1578 = vadd.f32 %v1435, %v1577
        %v1579 = vpop.f32.mrb[0].mxu0
        %v1580 = vadd.f32 %v1437, %v1579
        %v1581 = vpop.f32.mrb[0].mxu0
        %v1582 = vadd.f32 %v1439, %v1581
        %1583 = vmatprep.mubr.bf16.mxu0 %v955
        %1584 = vmatmul.mubr.bf16.gmra.mrb[0].mxu0 %v954
        %v1585 = vpop.f32.mrb[0].mxu0
        %v1586 = vadd.f32 %v1443, %v1585
        %v1587 = vpop.f32.mrb[0].mxu0
        %v1588 = vadd.f32 %v1445, %v1587
        %v1589 = vpop.f32.mrb[0].mxu0
        %v1590 = vadd.f32 %v1447, %v1589
        %v1591 = vpop.f32.mrb[0].mxu0
        %v1592 = vadd.f32 %v1449, %v1591
        %1593 = vmatprep.mubr.bf16.mxu0 %v959
        %1594 = vmatmul.mubr.bf16.gmra.mrb[0].mxu0 %v958
        %v1595 = vpop.f32.mrb[0].mxu0
        %v1596 = vadd.f32 %v1453, %v1595
        %v1597 = vpop.f32.mrb[0].mxu0
        %v1598 = vadd.f32 %v1455, %v1597
        %v1599 = vpop.f32.mrb[0].mxu0
        %v1600 = vadd.f32 %v1457, %v1599
        %v1601 = vpop.f32.mrb[0].mxu0
        %v1602 = vadd.f32 %v1459, %v1601
        %1603 = vmatprep.mubr.bf16.mxu0 %v963
        %1604 = vmatmul.mubr.bf16.gmra.mrb[0].mxu0 %v962
        %v1605 = vpop.f32.mrb[0].mxu0
        %v1606 = vadd.f32 %v1463, %v1605
        %v1607 = vpop.f32.mrb[0].mxu0
        %v1608 = vadd.f32 %v1465, %v1607
        %v1609 = vpop.f32.mrb[0].mxu0
        %v1610 = vadd.f32 %v1467, %v1609
        %v1611 = vpop.f32.mrb[0].mxu0
        %v1612 = vadd.f32 %v1469, %v1611
        %1613 = vdwg.mxu0
        %v1614 = vadd.f32 %v636, %v1506
        %v1615 = vadd.f32 %v637, %v1508
        %v1616 = vadd.f32 %v638, %v1510
        %v1617 = vadd.f32 %v639, %v1512
        %v1618 = vadd.f32 %v640, %v1516
        %v1619 = vadd.f32 %v641, %v1518
        %v1620 = vadd.f32 %v642, %v1520
        %v1621 = vadd.f32 %v643, %v1522
        %v1622 = vadd.f32 %v644, %v1526
        %v1623 = vadd.f32 %v645, %v1528
        %v1624 = vadd.f32 %v646, %v1530
        %v1625 = vadd.f32 %v647, %v1532
        %v1626 = vadd.f32 %v648, %v1536
        %v1627 = vadd.f32 %v649, %v1538
        %v1628 = vadd.f32 %v650, %v1540
        %v1629 = vadd.f32 %v651, %v1542
        %v1630 = vadd.f32 %v652, %v1546
        %v1631 = vadd.f32 %v653, %v1548
        %v1632 = vadd.f32 %v654, %v1550
        %v1633 = vadd.f32 %v655, %v1552
        %v1634 = vadd.f32 %v656, %v1556
        %v1635 = vadd.f32 %v657, %v1558
        %v1636 = vadd.f32 %v658, %v1560
        %v1637 = vadd.f32 %v659, %v1562
        %v1638 = vadd.f32 %v660, %v1566
        %v1639 = vadd.f32 %v661, %v1568
        %v1640 = vadd.f32 %v662, %v1570
        %v1641 = vadd.f32 %v663, %v1572
        %v1642 = vadd.f32 %v664, %v1576
        %v1643 = vadd.f32 %v665, %v1578
        %v1644 = vadd.f32 %v666, %v1580
        %v1645 = vadd.f32 %v667, %v1582
        %v1646 = vadd.f32 %v668, %v1586
        %v1647 = vadd.f32 %v669, %v1588
        %v1648 = vadd.f32 %v670, %v1590
        %v1649 = vadd.f32 %v671, %v1592
        %v1650 = vadd.f32 %v672, %v1596
        %v1651 = vadd.f32 %v673, %v1598
        %v1652 = vadd.f32 %v674, %v1600
        %v1653 = vadd.f32 %v675, %v1602
        %v1654 = vadd.f32 %v676, %v1606
        %v1655 = vadd.f32 %v677, %v1608
        %v1656 = vadd.f32 %v678, %v1610
        %v1657 = vadd.f32 %v679, %v1612
        %1658 = vst [vmem:[#allocation2] sm:$0xff] %v1614
        %1659 = vst [vmem:[#allocation2 + $0x8] sm:$0xff] %v1615
        %1660 = vst [vmem:[#allocation2 + $0x10] sm:$0xff] %v1616
        %1661 = vst [vmem:[#allocation2 + $0x18] sm:$0xff] %v1617
        %1662 = vst [vmem:[#allocation2 + $0x20] sm:$0xff] %v1618
        %1663 = vst [vmem:[#allocation2 + $0x28] sm:$0xff] %v1619
        %1664 = vst [vmem:[#allocation2 + $0x30] sm:$0xff] %v1620
        %1665 = vst [vmem:[#allocation2 + $0x38] sm:$0xff] %v1621
        %1666 = vst [vmem:[#allocation2 + $0x40] sm:$0xff] %v1622
        %1667 = vst [vmem:[#allocation2 + $0x48] sm:$0xff] %v1623
        %1668 = vst [vmem:[#allocation2 + $0x50] sm:$0xff] %v1624
        %1669 = vst [vmem:[#allocation2 + $0x58] sm:$0xff] %v1625
        %1670 = vst [vmem:[#allocation2 + $0x60] sm:$0xff] %v1626
        %1671 = vst [vmem:[#allocation2 + $0x68] sm:$0xff] %v1627
        %1672 = vst [vmem:[#allocation2 + $0x70] sm:$0xff] %v1628
        %1673 = vst [vmem:[#allocation2 + $0x78] sm:$0xff] %v1629
        %1674 = vst [vmem:[#allocation2 + $0x80] sm:$0xff] %v1630
        %1675 = vst [vmem:[#allocation2 + $0x88] sm:$0xff] %v1631
        %1676 = vst [vmem:[#allocation2 + $0x90] sm:$0xff] %v1632
        %1677 = vst [vmem:[#allocation2 + $0x98] sm:$0xff] %v1633
        %1678 = vst [vmem:[#allocation2 + $0xa0] sm:$0xff] %v1634
        %1679 = vst [vmem:[#allocation2 + $0xa8] sm:$0xff] %v1635
        %1680 = vst [vmem:[#allocation2 + $0xb0] sm:$0xff] %v1636
        %1681 = vst [vmem:[#allocation2 + $0xb8] sm:$0xff] %v1637
        %1682 = vst [vmem:[#allocation2 + $0xc0] sm:$0xff] %v1638
        %1683 = vst [vmem:[#allocation2 + $0xc8] sm:$0xff] %v1639
        %1684 = vst [vmem:[#allocation2 + $0xd0] sm:$0xff] %v1640
        %1685 = vst [vmem:[#allocation2 + $0xd8] sm:$0xff] %v1641
        %1686 = vst [vmem:[#allocation2 + $0xe0] sm:$0xff] %v1642
        %1687 = vst [vmem:[#allocation2 + $0xe8] sm:$0xff] %v1643
        %1688 = vst [vmem:[#allocation2 + $0xf0] sm:$0xff] %v1644
        %1689 = vst [vmem:[#allocation2 + $0xf8] sm:$0xff] %v1645
        %1690 = vst [vmem:[#allocation2 + $0x100] sm:$0xff] %v1646
        %1691 = vst [vmem:[#allocation2 + $0x108] sm:$0xff] %v1647
        %1692 = vst [vmem:[#allocation2 + $0x110] sm:$0xff] %v1648
        %1693 = vst [vmem:[#allocation2 + $0x118] sm:$0xff] %v1649
        %1694 = vst [vmem:[#allocation2 + $0x120] sm:$0xff] %v1650
        %1695 = vst [vmem:[#allocation2 + $0x128] sm:$0xff] %v1651
        %1696 = vst [vmem:[#allocation2 + $0x130] sm:$0xff] %v1652
        %1697 = vst [vmem:[#allocation2 + $0x138] sm:$0xff] %v1653
        %1698 = vst [vmem:[#allocation2 + $0x140] sm:$0xff] %v1654
        %1699 = vst [vmem:[#allocation2 + $0x148] sm:$0xff] %v1655
        %1700 = vst [vmem:[#allocation2 + $0x150] sm:$0xff] %v1656
        %1701 = vst [vmem:[#allocation2 + $0x158] sm:$0xff] %v1657
        %p1702 = scmp.eq.s32.totalorder %s20, 1
        // Predicated region
        $region94: #{generator_forward.19} parent=80 // pred_check
          %p1703 = pneg %p1702
        $region95: #{generator_forward.19} parent=80 // pred_check_branch
          %1705 = sbr.rel (%p1703) target = $region97
        $region96: #{generator_forward.19} parent=80 // pred_region
          %v1706 = vld [vmem:[#allocation2] sm:$0xff]
          %v1707 = vld [vmem:[#allocation2 + $0x8] sm:$0xff]
          %v1708 = vld [vmem:[#allocation2 + $0x10] sm:$0xff]
          %v1709 = vld [vmem:[#allocation2 + $0x18] sm:$0xff]
          %v1710 = vld [vmem:[#allocation2 + $0x20] sm:$0xff]
          %v1711 = vld [vmem:[#allocation2 + $0x28] sm:$0xff]
          %v1712 = vld [vmem:[#allocation2 + $0x30] sm:$0xff]
          %v1713 = vld [vmem:[#allocation2 + $0x38] sm:$0xff]
          %v1714 = vld [vmem:[#allocation2 + $0x40] sm:$0xff]
          %v1715 = vld [vmem:[#allocation2 + $0x48] sm:$0xff]
          %v1716 = vld [vmem:[#allocation2 + $0x50] sm:$0xff]
          %v1717 = vld [vmem:[#allocation2 + $0x58] sm:$0xff]
          %v1718 = vld [vmem:[#allocation2 + $0x60] sm:$0xff]
          %v1719 = vld [vmem:[#allocation2 + $0x68] sm:$0xff]
          %v1720 = vld [vmem:[#allocation2 + $0x70] sm:$0xff]
          %v1721 = vld [vmem:[#allocation2 + $0x78] sm:$0xff]
          %v1722 = vld [vmem:[#allocation2 + $0x80] sm:$0xff]
          %v1723 = vld [vmem:[#allocation2 + $0x88] sm:$0xff]
          %v1724 = vld [vmem:[#allocation2 + $0x90] sm:$0xff]
          %v1725 = vld [vmem:[#allocation2 + $0x98] sm:$0xff]
          %v1726 = vld [vmem:[#allocation2 + $0xa0] sm:$0xff]
          %v1727 = vld [vmem:[#allocation2 + $0xa8] sm:$0xff]
          %v1728 = vld [vmem:[#allocation2 + $0xb0] sm:$0xff]
          %v1729 = vld [vmem:[#allocation2 + $0xb8] sm:$0xff]
          %v1730 = vld [vmem:[#allocation2 + $0xc0] sm:$0xff]
          %v1731 = vld [vmem:[#allocation2 + $0xc8] sm:$0xff]
          %v1732 = vld [vmem:[#allocation2 + $0xd0] sm:$0xff]
          %v1733 = vld [vmem:[#allocation2 + $0xd8] sm:$0xff]
          %v1734 = vld [vmem:[#allocation2 + $0xe0] sm:$0xff]
          %v1735 = vld [vmem:[#allocation2 + $0xe8] sm:$0xff]
          %v1736 = vld [vmem:[#allocation2 + $0xf0] sm:$0xff]
          %v1737 = vld [vmem:[#allocation2 + $0xf8] sm:$0xff]
          %v1738 = vld [vmem:[#allocation2 + $0x100] sm:$0xff]
          %v1739 = vld [vmem:[#allocation2 + $0x108] sm:$0xff]
          %v1740 = vld [vmem:[#allocation2 + $0x110] sm:$0xff]
          %v1741 = vld [vmem:[#allocation2 + $0x118] sm:$0xff]
          %v1742 = vld [vmem:[#allocation2 + $0x120] sm:$0xff]
          %v1743 = vld [vmem:[#allocation2 + $0x128] sm:$0xff]
          %v1744 = vld [vmem:[#allocation2 + $0x130] sm:$0xff]
          %v1745 = vld [vmem:[#allocation2 + $0x138] sm:$0xff]
          %v1746 = vld [vmem:[#allocation2 + $0x140] sm:$0xff]
          %v1747 = vld [vmem:[#allocation2 + $0x148] sm:$0xff]
          %v1748 = vld [vmem:[#allocation2 + $0x150] sm:$0xff]
          %v1749 = vld [vmem:[#allocation2 + $0x158] sm:$0xff]
          %1750 = vst [vmem:[%s581] sm:$0xff] %v1706
          %1751 = vst [vmem:[%s581 + $0x8] sm:$0xff] %v1707
          %1752 = vst [vmem:[%s581 + $0x10] sm:$0xff] %v1708
          %1753 = vst [vmem:[%s581 + $0x18] sm:$0xff] %v1709
          %1754 = vst [vmem:[%s581 + $0x20] sm:$0xff] %v1710
          %1755 = vst [vmem:[%s581 + $0x28] sm:$0xff] %v1711
          %1756 = vst [vmem:[%s581 + $0x30] sm:$0xff] %v1712
          %1757 = vst [vmem:[%s581 + $0x38] sm:$0xff] %v1713
          %1758 = vst [vmem:[%s581 + $0x40] sm:$0xff] %v1714
          %1759 = vst [vmem:[%s581 + $0x48] sm:$0xff] %v1715
          %1760 = vst [vmem:[%s581 + $0x50] sm:$0xff] %v1716
          %1761 = vst [vmem:[%s581 + $0x58] sm:$0xff] %v1717
          %1762 = vst [vmem:[%s581 + $0x60] sm:$0xff] %v1718
          %1763 = vst [vmem:[%s581 + $0x68] sm:$0xff] %v1719
          %1764 = vst [vmem:[%s581 + $0x70] sm:$0xff] %v1720
          %1765 = vst [vmem:[%s581 + $0x78] sm:$0xff] %v1721
          %1766 = vst [vmem:[%s581 + $0x80] sm:$0xff] %v1722
          %1767 = vst [vmem:[%s581 + $0x88] sm:$0xff] %v1723
          %1768 = vst [vmem:[%s581 + $0x90] sm:$0xff] %v1724
          %1769 = vst [vmem:[%s581 + $0x98] sm:$0xff] %v1725
          %1770 = vst [vmem:[%s581 + $0xa0] sm:$0xff] %v1726
          %1771 = vst [vmem:[%s581 + $0xa8] sm:$0xff] %v1727
          %1772 = vst [vmem:[%s581 + $0xb0] sm:$0xff] %v1728
          %1773 = vst [vmem:[%s581 + $0xb8] sm:$0xff] %v1729
          %1774 = vst [vmem:[%s581 + $0xc0] sm:$0xff] %v1730
          %1775 = vst [vmem:[%s581 + $0xc8] sm:$0xff] %v1731
          %1776 = vst [vmem:[%s581 + $0xd0] sm:$0xff] %v1732
          %1777 = vst [vmem:[%s581 + $0xd8] sm:$0xff] %v1733
          %1778 = vst [vmem:[%s581 + $0xe0] sm:$0xff] %v1734
          %1779 = vst [vmem:[%s581 + $0xe8] sm:$0xff] %v1735
          %1780 = vst [vmem:[%s581 + $0xf0] sm:$0xff] %v1736
          %1781 = vst [vmem:[%s581 + $0xf8] sm:$0xff] %v1737
          %1782 = vst [vmem:[%s581 + $0x100] sm:$0xff] %v1738
          %1783 = vst [vmem:[%s581 + $0x108] sm:$0xff] %v1739
          %1784 = vst [vmem:[%s581 + $0x110] sm:$0xff] %v1740
          %1785 = vst [vmem:[%s581 + $0x118] sm:$0xff] %v1741
          %1786 = vst [vmem:[%s581 + $0x120] sm:$0xff] %v1742
          %1787 = vst [vmem:[%s581 + $0x128] sm:$0xff] %v1743
          %1788 = vst [vmem:[%s581 + $0x130] sm:$0xff] %v1744
          %1789 = vst [vmem:[%s581 + $0x138] sm:$0xff] %v1745
          %1790 = vst [vmem:[%s581 + $0x140] sm:$0xff] %v1746
          %1791 = vst [vmem:[%s581 + $0x148] sm:$0xff] %v1747
          %1792 = vst [vmem:[%s581 + $0x150] sm:$0xff] %v1748
          %1793 = vst [vmem:[%s581 + $0x158] sm:$0xff] %v1749
        $region97: #{generator_forward.19} parent=80 // pred_fallthru
          _
        %s1794 = sand.u32 %s98, 1
        %s1795 = sand.u32 %s98, 1
        %s1796 = smul.addr %s1795, 352
        %s1797 = scalar_lea.vmem [#allocation5], %s1796
        // Predicated region
        $region98: #{generator_forward.19} parent=80 // pred_check
          %p1798 = pneg %p108
        $region99: #{generator_forward.19} parent=80 // pred_check_branch
          %1800 = sbr.rel (%p1798) target = $region101
        $region100: #{generator_forward.19} parent=80 // pred_region
          %s1801 = smul.u32 22, %s18
          %s1802 = smul.u32 2, %s19
          %s1803 = smul.addr %s1801, 4
          %s1804 = sadd.s32 %s1802, %s1803
          %s1805 = smul.addr %s1804, 8
          %s1806 = scalar_lea.vmem %s2, %s1805
          // Predicated region
          $region102: #{generator_forward.19} parent=100 // pred_check
            _
          $region103: #{generator_forward.19} parent=100 // pred_check_branch
            %1808 = sbr.rel (0) target = $region105
          $region104: #{generator_forward.19} parent=100 // pred_region
            // Predicated region
            $region106: #{generator_forward.19} parent=104 // pred_check
              _
            $region107: #{generator_forward.19} parent=104 // pred_check_branch
              %1810 = sbr.rel (0) target = $region109
            $region108: #{generator_forward.19} parent=104 // pred_region
              loop: start=0, step=1, limit=1
              $region110: #{generator_forward.19} parent=108 // loop_pre_header
                _
              $region111: #{generator_forward.19} parent=108 // loop_header
                %s1812 = sphi 0, %s1816
                %p1813 = scmp.ge.s32.totalorder %s1812, 1
                %s1817 = sphi %s1797, %s1797
                %s1818 = sphi %s1806, %s1806
              $region112: #{generator_forward.19} parent=108 // loop_header_branch
                %1815 = sbr.rel (%p1813) target = $region116
              $region113: #{generator_forward.19} parent=108 // loop_body
                %v1819 = vld [vmem:[%s1817] sm:$0xff]
                %1820 = vst [vmem:[%s1818] sm:$0xff] %v1819
                %v1821 = vld [vmem:[%s1817 + $0x8] sm:$0xff]
                %1822 = vst [vmem:[%s1818 + $0x8] sm:$0xff] %v1821
                %v1823 = vld [vmem:[%s1817 + $0x10] sm:$0xff]
                %1824 = vst [vmem:[%s1818 + $0x20] sm:$0xff] %v1823
                %v1825 = vld [vmem:[%s1817 + $0x18] sm:$0xff]
                %1826 = vst [vmem:[%s1818 + $0x28] sm:$0xff] %v1825
                %v1827 = vld [vmem:[%s1817 + $0x20] sm:$0xff]
                %1828 = vst [vmem:[%s1818 + $0x40] sm:$0xff] %v1827
                %v1829 = vld [vmem:[%s1817 + $0x28] sm:$0xff]
                %1830 = vst [vmem:[%s1818 + $0x48] sm:$0xff] %v1829
                %v1831 = vld [vmem:[%s1817 + $0x30] sm:$0xff]
                %1832 = vst [vmem:[%s1818 + $0x60] sm:$0xff] %v1831
                %v1833 = vld [vmem:[%s1817 + $0x38] sm:$0xff]
                %1834 = vst [vmem:[%s1818 + $0x68] sm:$0xff] %v1833
                %v1835 = vld [vmem:[%s1817 + $0x40] sm:$0xff]
                %1836 = vst [vmem:[%s1818 + $0x80] sm:$0xff] %v1835
                %v1837 = vld [vmem:[%s1817 + $0x48] sm:$0xff]
                %1838 = vst [vmem:[%s1818 + $0x88] sm:$0xff] %v1837
                %v1839 = vld [vmem:[%s1817 + $0x50] sm:$0xff]
                %1840 = vst [vmem:[%s1818 + $0xa0] sm:$0xff] %v1839
                %v1841 = vld [vmem:[%s1817 + $0x58] sm:$0xff]
                %1842 = vst [vmem:[%s1818 + $0xa8] sm:$0xff] %v1841
                %v1843 = vld [vmem:[%s1817 + $0x60] sm:$0xff]
                %1844 = vst [vmem:[%s1818 + $0xc0] sm:$0xff] %v1843
                %v1845 = vld [vmem:[%s1817 + $0x68] sm:$0xff]
                %1846 = vst [vmem:[%s1818 + $0xc8] sm:$0xff] %v1845
                %v1847 = vld [vmem:[%s1817 + $0x70] sm:$0xff]
                %1848 = vst [vmem:[%s1818 + $0xe0] sm:$0xff] %v1847
                %v1849 = vld [vmem:[%s1817 + $0x78] sm:$0xff]
                %1850 = vst [vmem:[%s1818 + $0xe8] sm:$0xff] %v1849
                %v1851 = vld [vmem:[%s1817 + $0x80] sm:$0xff]
                %1852 = vst [vmem:[%s1818 + $0x100] sm:$0xff] %v1851
                %v1853 = vld [vmem:[%s1817 + $0x88] sm:$0xff]
                %1854 = vst [vmem:[%s1818 + $0x108] sm:$0xff] %v1853
                %v1855 = vld [vmem:[%s1817 + $0x90] sm:$0xff]
                %1856 = vst [vmem:[%s1818 + $0x120] sm:$0xff] %v1855
                %v1857 = vld [vmem:[%s1817 + $0x98] sm:$0xff]
                %1858 = vst [vmem:[%s1818 + $0x128] sm:$0xff] %v1857
                %v1859 = vld [vmem:[%s1817 + $0xa0] sm:$0xff]
                %1860 = vst [vmem:[%s1818 + $0x140] sm:$0xff] %v1859
                %v1861 = vld [vmem:[%s1817 + $0xa8] sm:$0xff]
                %1862 = vst [vmem:[%s1818 + $0x148] sm:$0xff] %v1861
                %v1863 = vld [vmem:[%s1817 + $0xb0] sm:$0xff]
                %1864 = vst [vmem:[%s1818 + $0x160] sm:$0xff] %v1863
                %v1865 = vld [vmem:[%s1817 + $0xb8] sm:$0xff]
                %1866 = vst [vmem:[%s1818 + $0x168] sm:$0xff] %v1865
                %v1867 = vld [vmem:[%s1817 + $0xc0] sm:$0xff]
                %1868 = vst [vmem:[%s1818 + $0x180] sm:$0xff] %v1867
                %v1869 = vld [vmem:[%s1817 + $0xc8] sm:$0xff]
                %1870 = vst [vmem:[%s1818 + $0x188] sm:$0xff] %v1869
                %v1871 = vld [vmem:[%s1817 + $0xd0] sm:$0xff]
                %1872 = vst [vmem:[%s1818 + $0x1a0] sm:$0xff] %v1871
                %v1873 = vld [vmem:[%s1817 + $0xd8] sm:$0xff]
                %1874 = vst [vmem:[%s1818 + $0x1a8] sm:$0xff] %v1873
                %v1875 = vld [vmem:[%s1817 + $0xe0] sm:$0xff]
                %1876 = vst [vmem:[%s1818 + $0x1c0] sm:$0xff] %v1875
                %v1877 = vld [vmem:[%s1817 + $0xe8] sm:$0xff]
                %1878 = vst [vmem:[%s1818 + $0x1c8] sm:$0xff] %v1877
                %v1879 = vld [vmem:[%s1817 + $0xf0] sm:$0xff]
                %1880 = vst [vmem:[%s1818 + $0x1e0] sm:$0xff] %v1879
                %v1881 = vld [vmem:[%s1817 + $0xf8] sm:$0xff]
                %1882 = vst [vmem:[%s1818 + $0x1e8] sm:$0xff] %v1881
                %v1883 = vld [vmem:[%s1817 + $0x100] sm:$0xff]
                %1884 = vst [vmem:[%s1818 + $0x200] sm:$0xff] %v1883
                %v1885 = vld [vmem:[%s1817 + $0x108] sm:$0xff]
                %1886 = vst [vmem:[%s1818 + $0x208] sm:$0xff] %v1885
                %v1887 = vld [vmem:[%s1817 + $0x110] sm:$0xff]
                %1888 = vst [vmem:[%s1818 + $0x220] sm:$0xff] %v1887
                %v1889 = vld [vmem:[%s1817 + $0x118] sm:$0xff]
                %1890 = vst [vmem:[%s1818 + $0x228] sm:$0xff] %v1889
                %v1891 = vld [vmem:[%s1817 + $0x120] sm:$0xff]
                %1892 = vst [vmem:[%s1818 + $0x240] sm:$0xff] %v1891
                %v1893 = vld [vmem:[%s1817 + $0x128] sm:$0xff]
                %1894 = vst [vmem:[%s1818 + $0x248] sm:$0xff] %v1893
                %v1895 = vld [vmem:[%s1817 + $0x130] sm:$0xff]
                %1896 = vst [vmem:[%s1818 + $0x260] sm:$0xff] %v1895
                %v1897 = vld [vmem:[%s1817 + $0x138] sm:$0xff]
                %1898 = vst [vmem:[%s1818 + $0x268] sm:$0xff] %v1897
                %v1899 = vld [vmem:[%s1817 + $0x140] sm:$0xff]
                %1900 = vst [vmem:[%s1818 + $0x280] sm:$0xff] %v1899
                %v1901 = vld [vmem:[%s1817 + $0x148] sm:$0xff]
                %1902 = vst [vmem:[%s1818 + $0x288] sm:$0xff] %v1901
                %v1903 = vld [vmem:[%s1817 + $0x150] sm:$0xff]
                %1904 = vst [vmem:[%s1818 + $0x2a0] sm:$0xff] %v1903
                %v1905 = vld [vmem:[%s1817 + $0x158] sm:$0xff]
                %1906 = vst [vmem:[%s1818 + $0x2a8] sm:$0xff] %v1905
              $region114: #{generator_forward.19} parent=108 // loop_footer
                %s1816 = sadd.s32 1, %s1812
              $region115: #{generator_forward.19} parent=108 // loop_footer_branch
                %1811 = sbr.rel target = $region111
              $region116: #{generator_forward.19} parent=108 // loop_exit
                _
            $region109: #{generator_forward.19} parent=104 // pred_fallthru
              _
            // Predicated region
            $region117: #{generator_forward.19} parent=104 // pred_check
              _
            $region118: #{generator_forward.19} parent=104 // pred_check_branch
              %1908 = sbr.rel target = $region120
            $region119: #{generator_forward.19} parent=104 // pred_region
              _
            $region120: #{generator_forward.19} parent=104 // pred_fallthru
              _
          $region105: #{generator_forward.19} parent=100 // pred_fallthru
            _
          %1909 = vnop
        $region101: #{generator_forward.19} parent=80 // pred_fallthru
          _
      $region81: #{generator_forward.19} parent=5 // pred_fallthru
        _
      %p1910 = scmp.le.s32.totalorder 2, %s8
      // Predicated region
      $region121: #{generator_forward.19} parent=5 // pred_check
        %p1911 = pneg %p1910
      $region122: #{generator_forward.19} parent=5 // pred_check_branch
        %1913 = sbr.rel (%p1911) target = $region124
      $region123: #{generator_forward.19} parent=5 // pred_region
        %s1914 = ssub.s32 %s8, 2
        // Predicated region
        $region125: #{generator_forward.19} parent=123 // pred_check
          %p1915 = pneg %p114
        $region126: #{generator_forward.19} parent=123 // pred_check_branch
          %1917 = sbr.rel (%p1915) target = $region128
        $region127: #{generator_forward.19} parent=123 // pred_region
          %s1918 = sand.u32 %s99, 1
          %s1919 = sand.u32 %s99, 1
          %s1920 = smul.addr %s1919, 352
          %s1921 = scalar_lea.vmem [#allocation5], %s1920
        $region128: #{generator_forward.19} parent=123 // pred_fallthru
          _
      $region124: #{generator_forward.19} parent=5 // pred_fallthru
        _
    $region6: #{generator_forward.19} parent=1 // loop_footer
      %s12 = sadd.s32 1, %s8
    $region7: #{generator_forward.19} parent=1 // loop_footer_branch
      %7 = sbr.rel target = $region3
    $region8: #{generator_forward.19} parent=1 // loop_exit
      _

// kernel: generator_forward.20
$region0: #{generator_forward.20}
  #allocation0 [shape = 'u32[]', space=smem, size = 0x4, offset = 0x4, fixed_abs, tag = 'smem constant byte address 0x4 - core index']
  #allocation1 [shape = 'u32[144,128]{1,0:T(1,128)}', space=vmem, size = 0x12000, scoped, tag = 'internal scratch']
  %s0 = inlined_call_operand.vmem [shape: f32[512,128], index: 0, kind: input, shape index: {}]
  %s1 = inlined_call_operand.vmem [shape: f32[1,128], index: 1, kind: output, shape index: {0}]
  %s2 = inlined_call_operand.vmem [shape: f32[1,128], index: 2, kind: output, shape index: {1}]
  %3 = xla_tuple %s1, %s2
  %s4 = sld [smem:[#allocation0]]
  $region49: #{generator_forward.20} parent=0
    _
  %s6 = ssub.s32 1, %s4
  %s7 = scalar_select 0, %s6, %s4
  loop: start=0, step=1, limit=4
  $region2: #{generator_forward.20} parent=0 // loop_pre_header
    _
  $region3: #{generator_forward.20} parent=0 // loop_header
    %s9 = sphi 0, %s13
    %p10 = scmp.ge.s32.totalorder %s9, 4
    %s19 = sphi 0, %s21
    %s22 = sphi 0, %s19
    %s23 = sphi 0, %s22
    %s39 = sphi 0, %s23
    %s43 = sphi 0, %s43
    %s45 = sphi 0, %s43
    %s46 = sphi 0, %s45
    %s60 = sphi 0, %s46
    %s64 = sphi 0, %s64
    %s66 = sphi 0, %s64
    %s67 = sphi 0, %s66
    %s81 = sphi 0, %s67
  $region4: #{generator_forward.20} parent=0 // loop_header_branch
    %12 = sbr.rel (%p10) target = $region8
  $region5: #{generator_forward.20} parent=0 // loop_body
    %s14 = ssub.s32 %s9, 1
    %s15 = ssub.s32 %s9, 2
    %s16 = sadd.s32 %s9, 1
    %s17 = ssub.s32 %s9, %s16
    %p18 = scmp.eq.s32.totalorder %s17, 0
    %s20 = sadd.s32 %s19, 1
    %s21 = scalar_select %p18, %s19, %s20
    %p24 = pneg %p18
    %p25 = scmp.eq.s32.totalorder %s9, 1
    %p26 = por %p24, %p25
    %p27 = scmp.ne.s32.totalorder %s19, %s22
    %p28 = scmp.eq.s32.totalorder %s9, 0
    %p29 = por %p27, %p28
    %p30 = scmp.ne.s32.totalorder %s19, %s22
    %p31 = scmp.eq.s32.totalorder %s14, 1
    %p32 = por %p30, %p31
    %p33 = scmp.ne.s32.totalorder %s22, %s23
    %p34 = scmp.eq.s32.totalorder %s14, 0
    %p35 = por %p33, %p34
    %p36 = scmp.ne.s32.totalorder %s22, %s23
    %p37 = scmp.eq.s32.totalorder %s15, 1
    %p38 = por %p36, %p37
    %p40 = scmp.ne.s32.totalorder %s23, %s39
    %p41 = scmp.eq.s32.totalorder %s15, 0
    %p42 = por %p40, %p41
    %s44 = sadd.s32 %s43, 1
    %p47 = scmp.eq.s32.totalorder %s9, 1
    %p48 = scmp.ne.s32.totalorder %s43, %s45
    %p49 = scmp.eq.s32.totalorder %s9, 0
    %p50 = por %p48, %p49
    %p51 = scmp.ne.s32.totalorder %s43, %s45
    %p52 = scmp.eq.s32.totalorder %s14, 1
    %p53 = por %p51, %p52
    %p54 = scmp.ne.s32.totalorder %s45, %s46
    %p55 = scmp.eq.s32.totalorder %s14, 0
    %p56 = por %p54, %p55
    %p57 = scmp.ne.s32.totalorder %s45, %s46
    %p58 = scmp.eq.s32.totalorder %s15, 1
    %p59 = por %p57, %p58
    %p61 = scmp.ne.s32.totalorder %s46, %s60
    %p62 = scmp.eq.s32.totalorder %s15, 0
    %p63 = por %p61, %p62
    %s65 = sadd.s32 %s64, 1
    %p68 = scmp.eq.s32.totalorder %s9, 1
    %p69 = scmp.ne.s32.totalorder %s64, %s66
    %p70 = scmp.eq.s32.totalorder %s9, 0
    %p71 = por %p69, %p70
    %p72 = scmp.ne.s32.totalorder %s64, %s66
    %p73 = scmp.eq.s32.totalorder %s14, 1
    %p74 = por %p72, %p73
    %p75 = scmp.ne.s32.totalorder %s66, %s67
    %p76 = scmp.eq.s32.totalorder %s14, 0
    %p77 = por %p75, %p76
    %p78 = scmp.ne.s32.totalorder %s66, %s67
    %p79 = scmp.eq.s32.totalorder %s15, 1
    %p80 = por %p78, %p79
    %p82 = scmp.ne.s32.totalorder %s67, %s81
    %p83 = scmp.eq.s32.totalorder %s15, 0
    %p84 = por %p82, %p83
    %p85 = scmp.le.s32.totalorder 1, %s9
    %p86 = scmp.lt.s32.totalorder %s9, 3
    %p87 = pnand %p85, %p86
    %p88 = pneg %p87
    // Predicated region
    $region9: #{generator_forward.20} parent=5 // pred_check
      _
    $region10: #{generator_forward.20} parent=5 // pred_check_branch
      %90 = sbr.rel (%p87) target = $region12
    $region11: #{generator_forward.20} parent=5 // pred_region
      %s91 = ssub.s32 %s9, 1
    $region12: #{generator_forward.20} parent=5 // pred_fallthru
      _
    %p92 = scmp.lt.s32.totalorder %s9, 2
    // Predicated region
    $region13: #{generator_forward.20} parent=5 // pred_check
      %p93 = pneg %p92
    $region14: #{generator_forward.20} parent=5 // pred_check_branch
      %95 = sbr.rel (%p93) target = $region16
    $region15: #{generator_forward.20} parent=5 // pred_region
      // Predicated region
      $region17: #{generator_forward.20} parent=15 // pred_check
        %p96 = pneg %p29
      $region18: #{generator_forward.20} parent=15 // pred_check_branch
        %98 = sbr.rel (%p96) target = $region20
      $region19: #{generator_forward.20} parent=15 // pred_region
        %s99 = smul.u32 32, %s9
        %p100 = scmp.lt.s32.totalorder %s99, 63
        %s101 = scalar_select %p100, %s99, 63
        %s102 = smul.addr %s101, 8
        %s103 = scalar_lea.vmem %s0, %s102
        %s104 = smul.u32 32, %s9
      $region20: #{generator_forward.20} parent=15 // pred_fallthru
        _
    $region16: #{generator_forward.20} parent=5 // pred_fallthru
      _
    %p105 = scmp.le.s32.totalorder 1, %s9
    %p106 = scmp.lt.s32.totalorder %s9, 3
    %p107 = pnand %p105, %p106
    %p108 = pneg %p107
    // Predicated region
    $region21: #{generator_forward.20} parent=5 // pred_check
      _
    $region22: #{generator_forward.20} parent=5 // pred_check_branch
      %110 = sbr.rel (%p107) target = $region24
    $region23: #{generator_forward.20} parent=5 // pred_region
      %s111 = ssub.s32 %s9, 1
      %s112 = smul.u32 32, %s14
      %p113 = scmp.lt.s32.totalorder %s112, 63
      %s114 = scalar_select %p113, %s112, 63
      %s115 = smul.addr %s114, 8
      %s116 = scalar_lea.vmem %s0, %s115
      %p117 = pneg %p35
      %p118 = pneg %p32
      %p119 = pneg %p56
      %p120 = pneg %p53
      %p121 = pneg %p77
      %p122 = pneg %p74
      %s123 = smul.u32 32, %s14
      %p124 = scmp.lt.s32.totalorder %s123, 63
      %s125 = scalar_select %p124, %s123, 63
      %s126 = smul.addr %s125, 8
      %s127 = scalar_lea.vmem %s0, %s126
      %s128 = smul.u32 32, %s14
      %p129 = scmp.eq.s32.totalorder %s14, 0
      // Predicated region
      $region25: #{generator_forward.20} parent=23 // pred_check
        %p130 = pneg %p129
      $region26: #{generator_forward.20} parent=23 // pred_check_branch
        %132 = sbr.rel (%p130) target = $region28
      $region27: #{generator_forward.20} parent=23 // pred_region
        %133 = vst [vmem:[%s1] sm:$0x1] 0.0
        %134 = vst [vmem:[%s2] sm:$0x1] 0.0
      $region28: #{generator_forward.20} parent=23 // pred_fallthru
        _
      %v135 = vld [vmem:[%s127] sm:$0xff]
      %v136 = vld [vmem:[%s127 + $0x8] sm:$0xff]
      %v137 = vld [vmem:[%s127 + $0x10] sm:$0xff]
      %v138 = vld [vmem:[%s127 + $0x18] sm:$0xff]
      %v139 = vld [vmem:[%s127 + $0x20] sm:$0xff]
      %v140 = vld [vmem:[%s127 + $0x28] sm:$0xff]
      %v141 = vld [vmem:[%s127 + $0x30] sm:$0xff]
      %v142 = vld [vmem:[%s127 + $0x38] sm:$0xff]
      %v143 = vld [vmem:[%s127 + $0x40] sm:$0xff]
      %v144 = vld [vmem:[%s127 + $0x48] sm:$0xff]
      %v145 = vld [vmem:[%s127 + $0x50] sm:$0xff]
      %v146 = vld [vmem:[%s127 + $0x58] sm:$0xff]
      %v147 = vld [vmem:[%s127 + $0x60] sm:$0xff]
      %v148 = vld [vmem:[%s127 + $0x68] sm:$0xff]
      %v149 = vld [vmem:[%s127 + $0x70] sm:$0xff]
      %v150 = vld [vmem:[%s127 + $0x78] sm:$0xff]
      %v151 = vld [vmem:[%s127 + $0x80] sm:$0xff]
      %v152 = vld [vmem:[%s127 + $0x88] sm:$0xff]
      %v153 = vld [vmem:[%s127 + $0x90] sm:$0xff]
      %v154 = vld [vmem:[%s127 + $0x98] sm:$0xff]
      %v155 = vld [vmem:[%s127 + $0xa0] sm:$0xff]
      %v156 = vld [vmem:[%s127 + $0xa8] sm:$0xff]
      %v157 = vld [vmem:[%s127 + $0xb0] sm:$0xff]
      %v158 = vld [vmem:[%s127 + $0xb8] sm:$0xff]
      %v159 = vld [vmem:[%s127 + $0xc0] sm:$0xff]
      %v160 = vld [vmem:[%s127 + $0xc8] sm:$0xff]
      %v161 = vld [vmem:[%s127 + $0xd0] sm:$0xff]
      %v162 = vld [vmem:[%s127 + $0xd8] sm:$0xff]
      %v163 = vld [vmem:[%s127 + $0xe0] sm:$0xff]
      %v164 = vld [vmem:[%s127 + $0xe8] sm:$0xff]
      %v165 = vld [vmem:[%s127 + $0xf0] sm:$0xff]
      %v166 = vld [vmem:[%s127 + $0xf8] sm:$0xff]
      %v167 = vld [vmem:[%s1] sm:$0x1]
      %v168 = vadd.f32 %v135, %v136
      %v169 = vadd.f32 %v168, %v137
      %v170 = vadd.f32 %v169, %v138
      %v171 = vadd.f32 %v170, %v139
      %v172 = vadd.f32 %v171, %v140
      %v173 = vadd.f32 %v172, %v141
      %v174 = vadd.f32 %v173, %v142
      %v175 = vadd.f32 %v174, %v143
      %v176 = vadd.f32 %v175, %v144
      %v177 = vadd.f32 %v176, %v145
      %v178 = vadd.f32 %v177, %v146
      %v179 = vadd.f32 %v178, %v147
      %v180 = vadd.f32 %v179, %v148
      %v181 = vadd.f32 %v180, %v149
      %v182 = vadd.f32 %v181, %v150
      %v183 = vadd.f32 %v182, %v151
      %v184 = vadd.f32 %v183, %v152
      %v185 = vadd.f32 %v184, %v153
      %v186 = vadd.f32 %v185, %v154
      %v187 = vadd.f32 %v186, %v155
      %v188 = vadd.f32 %v187, %v156
      %v189 = vadd.f32 %v188, %v157
      %v190 = vadd.f32 %v189, %v158
      %v191 = vadd.f32 %v190, %v159
      %v192 = vadd.f32 %v191, %v160
      %v193 = vadd.f32 %v192, %v161
      %v194 = vadd.f32 %v193, %v162
      %v195 = vadd.f32 %v194, %v163
      %v196 = vadd.f32 %v195, %v164
      %v197 = vadd.f32 %v196, %v165
      %v198 = vadd.f32 %v197, %v166
      %v199 = vrot.slane %v198, 4
      %v200 = vadd.f32 %v198, %v199
      %v201 = vrot.slane %v200, 2
      %v202 = vadd.f32 %v200, %v201
      %v203 = vrot.slane %v202, 1
      %v204 = vadd.f32 %v202, %v203
      %v205 = vadd.f32 %v167, %v204
      %206 = vst [vmem:[%s1] sm:$0x1] %v205
      %v207 = vld [vmem:[%s2] sm:$0x1]
      %v208 = vmul.f32 %v135, %v135
      %v209 = vmul.f32 %v136, %v136
      %v210 = vmul.f32 %v137, %v137
      %v211 = vmul.f32 %v138, %v138
      %v212 = vmul.f32 %v139, %v139
      %v213 = vmul.f32 %v140, %v140
      %v214 = vmul.f32 %v141, %v141
      %v215 = vmul.f32 %v142, %v142
      %v216 = vmul.f32 %v143, %v143
      %v217 = vmul.f32 %v144, %v144
      %v218 = vmul.f32 %v145, %v145
      %v219 = vmul.f32 %v146, %v146
      %v220 = vmul.f32 %v147, %v147
      %v221 = vmul.f32 %v148, %v148
      %v222 = vmul.f32 %v149, %v149
      %v223 = vmul.f32 %v150, %v150
      %v224 = vmul.f32 %v151, %v151
      %v225 = vmul.f32 %v152, %v152
      %v226 = vmul.f32 %v153, %v153
      %v227 = vmul.f32 %v154, %v154
      %v228 = vmul.f32 %v155, %v155
      %v229 = vmul.f32 %v156, %v156
      %v230 = vmul.f32 %v157, %v157
      %v231 = vmul.f32 %v158, %v158
      %v232 = vmul.f32 %v159, %v159
      %v233 = vmul.f32 %v160, %v160
      %v234 = vmul.f32 %v161, %v161
      %v235 = vmul.f32 %v162, %v162
      %v236 = vmul.f32 %v163, %v163
      %v237 = vmul.f32 %v164, %v164
      %v238 = vmul.f32 %v165, %v165
      %v239 = vmul.f32 %v166, %v166
      %v240 = vadd.f32 %v208, %v209
      %v241 = vadd.f32 %v240, %v210
      %v242 = vadd.f32 %v241, %v211
      %v243 = vadd.f32 %v242, %v212
      %v244 = vadd.f32 %v243, %v213
      %v245 = vadd.f32 %v244, %v214
      %v246 = vadd.f32 %v245, %v215
      %v247 = vadd.f32 %v246, %v216
      %v248 = vadd.f32 %v247, %v217
      %v249 = vadd.f32 %v248, %v218
      %v250 = vadd.f32 %v249, %v219
      %v251 = vadd.f32 %v250, %v220
      %v252 = vadd.f32 %v251, %v221
      %v253 = vadd.f32 %v252, %v222
      %v254 = vadd.f32 %v253, %v223
      %v255 = vadd.f32 %v254, %v224
      %v256 = vadd.f32 %v255, %v225
      %v257 = vadd.f32 %v256, %v226
      %v258 = vadd.f32 %v257, %v227
      %v259 = vadd.f32 %v258, %v228
      %v260 = vadd.f32 %v259, %v229
      %v261 = vadd.f32 %v260, %v230
      %v262 = vadd.f32 %v261, %v231
      %v263 = vadd.f32 %v262, %v232
      %v264 = vadd.f32 %v263, %v233
      %v265 = vadd.f32 %v264, %v234
      %v266 = vadd.f32 %v265, %v235
      %v267 = vadd.f32 %v266, %v236
      %v268 = vadd.f32 %v267, %v237
      %v269 = vadd.f32 %v268, %v238
      %v270 = vadd.f32 %v269, %v239
      %v271 = vrot.slane %v270, 4
      %v272 = vadd.f32 %v270, %v271
      %v273 = vrot.slane %v272, 2
      %v274 = vadd.f32 %v272, %v273
      %v275 = vrot.slane %v274, 1
      %v276 = vadd.f32 %v274, %v275
      %v277 = vadd.f32 %v207, %v276
      %278 = vst [vmem:[%s2] sm:$0x1] %v277
      // Predicated region
      $region29: #{generator_forward.20} parent=23 // pred_check
        %p279 = pneg %p53
      $region30: #{generator_forward.20} parent=23 // pred_check_branch
        %281 = sbr.rel (%p279) target = $region32
      $region31: #{generator_forward.20} parent=23 // pred_region
        _
      $region32: #{generator_forward.20} parent=23 // pred_fallthru
        _
      // Predicated region
      $region33: #{generator_forward.20} parent=23 // pred_check
        %p282 = pneg %p74
      $region34: #{generator_forward.20} parent=23 // pred_check_branch
        %284 = sbr.rel (%p282) target = $region36
      $region35: #{generator_forward.20} parent=23 // pred_region
        _
      $region36: #{generator_forward.20} parent=23 // pred_fallthru
        _
      // Predicated region
      $region37: #{generator_forward.20} parent=23 // pred_check
        %p285 = pneg %p53
      $region38: #{generator_forward.20} parent=23 // pred_check_branch
        %287 = sbr.rel (%p285) target = $region40
      $region39: #{generator_forward.20} parent=23 // pred_region
        _
      $region40: #{generator_forward.20} parent=23 // pred_fallthru
        _
      // Predicated region
      $region41: #{generator_forward.20} parent=23 // pred_check
        %p288 = pneg %p74
      $region42: #{generator_forward.20} parent=23 // pred_check_branch
        %290 = sbr.rel (%p288) target = $region44
      $region43: #{generator_forward.20} parent=23 // pred_region
        _
      $region44: #{generator_forward.20} parent=23 // pred_fallthru
        _
    $region24: #{generator_forward.20} parent=5 // pred_fallthru
      _
    %p291 = scmp.le.s32.totalorder 2, %s9
    // Predicated region
    $region45: #{generator_forward.20} parent=5 // pred_check
      %p292 = pneg %p291
    $region46: #{generator_forward.20} parent=5 // pred_check_branch
      %294 = sbr.rel (%p292) target = $region48
    $region47: #{generator_forward.20} parent=5 // pred_region
      %s295 = ssub.s32 %s9, 2
    $region48: #{generator_forward.20} parent=5 // pred_fallthru
      _
  $region6: #{generator_forward.20} parent=0 // loop_footer
    %s13 = sadd.s32 1, %s9
  $region7: #{generator_forward.20} parent=0 // loop_footer_branch
    %8 = sbr.rel target = $region3
  $region8: #{generator_forward.20} parent=0 // loop_exit
    _

// kernel: generator_forward.21
$region0: #{generator_forward.21}
  #allocation0 [shape = 'u32[]', space=smem, size = 0x4, offset = 0x4, fixed_abs, tag = 'smem constant byte address 0x4 - core index']
  #allocation1 [shape = 'u32[144,128]{1,0:T(1,128)}', space=vmem, size = 0x12000, scoped, tag = 'internal scratch']
  %s0 = inlined_call_operand.vmem [shape: f32[512,128], index: 0, kind: input, shape index: {}]
  %s1 = inlined_call_operand.vmem [shape: f32[1,128], index: 1, kind: input, shape index: {}]
  %s2 = inlined_call_operand.vmem [shape: f32[1,128], index: 2, kind: input, shape index: {}]
  %s3 = inlined_call_operand.vmem [shape: bf16[512,128], index: 3, kind: output, shape index: {}]
  %s4 = sld [smem:[#allocation0]]
  $region45: #{generator_forward.21} parent=0
    _
  %s6 = ssub.s32 1, %s4
  %s7 = scalar_select 0, %s6, %s4
  loop: start=0, step=1, limit=4
  $region2: #{generator_forward.21} parent=0 // loop_pre_header
    _
  $region3: #{generator_forward.21} parent=0 // loop_header
    %s9 = sphi 0, %s13
    %p10 = scmp.ge.s32.totalorder %s9, 4
    %s19 = sphi 0, %s21
    %s22 = sphi 0, %s19
    %s23 = sphi 0, %s22
    %s39 = sphi 0, %s23
    %s43 = sphi 0, %s43
    %s45 = sphi 0, %s43
    %s46 = sphi 0, %s45
    %s60 = sphi 0, %s46
    %s64 = sphi 0, %s64
    %s66 = sphi 0, %s64
    %s67 = sphi 0, %s66
    %s81 = sphi 0, %s67
    %s87 = sphi 0, %s89
    %s90 = sphi 0, %s87
    %s91 = sphi 0, %s90
    %s107 = sphi 0, %s91
  $region4: #{generator_forward.21} parent=0 // loop_header_branch
    %12 = sbr.rel (%p10) target = $region8
  $region5: #{generator_forward.21} parent=0 // loop_body
    %s14 = ssub.s32 %s9, 1
    %s15 = ssub.s32 %s9, 2
    %s16 = sadd.s32 %s9, 1
    %s17 = ssub.s32 %s9, %s16
    %p18 = scmp.eq.s32.totalorder %s17, 0
    %s20 = sadd.s32 %s19, 1
    %s21 = scalar_select %p18, %s19, %s20
    %p24 = pneg %p18
    %p25 = scmp.eq.s32.totalorder %s9, 1
    %p26 = por %p24, %p25
    %p27 = scmp.ne.s32.totalorder %s19, %s22
    %p28 = scmp.eq.s32.totalorder %s9, 0
    %p29 = por %p27, %p28
    %p30 = scmp.ne.s32.totalorder %s19, %s22
    %p31 = scmp.eq.s32.totalorder %s14, 1
    %p32 = por %p30, %p31
    %p33 = scmp.ne.s32.totalorder %s22, %s23
    %p34 = scmp.eq.s32.totalorder %s14, 0
    %p35 = por %p33, %p34
    %p36 = scmp.ne.s32.totalorder %s22, %s23
    %p37 = scmp.eq.s32.totalorder %s15, 1
    %p38 = por %p36, %p37
    %p40 = scmp.ne.s32.totalorder %s23, %s39
    %p41 = scmp.eq.s32.totalorder %s15, 0
    %p42 = por %p40, %p41
    %s44 = sadd.s32 %s43, 1
    %p47 = scmp.eq.s32.totalorder %s9, 1
    %p48 = scmp.ne.s32.totalorder %s43, %s45
    %p49 = scmp.eq.s32.totalorder %s9, 0
    %p50 = por %p48, %p49
    %p51 = scmp.ne.s32.totalorder %s43, %s45
    %p52 = scmp.eq.s32.totalorder %s14, 1
    %p53 = por %p51, %p52
    %p54 = scmp.ne.s32.totalorder %s45, %s46
    %p55 = scmp.eq.s32.totalorder %s14, 0
    %p56 = por %p54, %p55
    %p57 = scmp.ne.s32.totalorder %s45, %s46
    %p58 = scmp.eq.s32.totalorder %s15, 1
    %p59 = por %p57, %p58
    %p61 = scmp.ne.s32.totalorder %s46, %s60
    %p62 = scmp.eq.s32.totalorder %s15, 0
    %p63 = por %p61, %p62
    %s65 = sadd.s32 %s64, 1
    %p68 = scmp.eq.s32.totalorder %s9, 1
    %p69 = scmp.ne.s32.totalorder %s64, %s66
    %p70 = scmp.eq.s32.totalorder %s9, 0
    %p71 = por %p69, %p70
    %p72 = scmp.ne.s32.totalorder %s64, %s66
    %p73 = scmp.eq.s32.totalorder %s14, 1
    %p74 = por %p72, %p73
    %p75 = scmp.ne.s32.totalorder %s66, %s67
    %p76 = scmp.eq.s32.totalorder %s14, 0
    %p77 = por %p75, %p76
    %p78 = scmp.ne.s32.totalorder %s66, %s67
    %p79 = scmp.eq.s32.totalorder %s15, 1
    %p80 = por %p78, %p79
    %p82 = scmp.ne.s32.totalorder %s67, %s81
    %p83 = scmp.eq.s32.totalorder %s15, 0
    %p84 = por %p82, %p83
    %s85 = ssub.s32 %s9, %s16
    %p86 = scmp.eq.s32.totalorder %s85, 0
    %s88 = sadd.s32 %s87, 1
    %s89 = scalar_select %p86, %s87, %s88
    %p92 = pneg %p86
    %p93 = scmp.eq.s32.totalorder %s9, 1
    %p94 = por %p92, %p93
    %p95 = scmp.ne.s32.totalorder %s87, %s90
    %p96 = scmp.eq.s32.totalorder %s9, 0
    %p97 = por %p95, %p96
    %p98 = scmp.ne.s32.totalorder %s87, %s90
    %p99 = scmp.eq.s32.totalorder %s14, 1
    %p100 = por %p98, %p99
    %p101 = scmp.ne.s32.totalorder %s90, %s91
    %p102 = scmp.eq.s32.totalorder %s14, 0
    %p103 = por %p101, %p102
    %p104 = scmp.ne.s32.totalorder %s90, %s91
    %p105 = scmp.eq.s32.totalorder %s15, 1
    %p106 = por %p104, %p105
    %p108 = scmp.ne.s32.totalorder %s91, %s107
    %p109 = scmp.eq.s32.totalorder %s15, 0
    %p110 = por %p108, %p109
    %p111 = scmp.le.s32.totalorder 1, %s9
    %p112 = scmp.lt.s32.totalorder %s9, 3
    %p113 = pnand %p111, %p112
    %p114 = pneg %p113
    // Predicated region
    $region9: #{generator_forward.21} parent=5 // pred_check
      _
    $region10: #{generator_forward.21} parent=5 // pred_check_branch
      %116 = sbr.rel (%p113) target = $region12
    $region11: #{generator_forward.21} parent=5 // pred_region
      %s117 = ssub.s32 %s9, 1
      // Predicated region
      $region13: #{generator_forward.21} parent=11 // pred_check
        %p118 = pneg %p56
      $region14: #{generator_forward.21} parent=11 // pred_check_branch
        %120 = sbr.rel (%p118) target = $region16
      $region15: #{generator_forward.21} parent=11 // pred_region
        _
      $region16: #{generator_forward.21} parent=11 // pred_fallthru
        _
      // Predicated region
      $region17: #{generator_forward.21} parent=11 // pred_check
        %p121 = pneg %p77
      $region18: #{generator_forward.21} parent=11 // pred_check_branch
        %123 = sbr.rel (%p121) target = $region20
      $region19: #{generator_forward.21} parent=11 // pred_region
        _
      $region20: #{generator_forward.21} parent=11 // pred_fallthru
        _
    $region12: #{generator_forward.21} parent=5 // pred_fallthru
      _
    %p124 = scmp.lt.s32.totalorder %s9, 2
    // Predicated region
    $region21: #{generator_forward.21} parent=5 // pred_check
      %p125 = pneg %p124
    $region22: #{generator_forward.21} parent=5 // pred_check_branch
      %127 = sbr.rel (%p125) target = $region24
    $region23: #{generator_forward.21} parent=5 // pred_region
      // Predicated region
      $region25: #{generator_forward.21} parent=23 // pred_check
        %p128 = pneg %p29
      $region26: #{generator_forward.21} parent=23 // pred_check_branch
        %130 = sbr.rel (%p128) target = $region28
      $region27: #{generator_forward.21} parent=23 // pred_region
        %s131 = smul.u32 32, %s9
        %p132 = scmp.lt.s32.totalorder %s131, 63
        %s133 = scalar_select %p132, %s131, 63
        %s134 = smul.addr %s133, 8
        %s135 = scalar_lea.vmem %s0, %s134
        %s136 = smul.u32 32, %s9
      $region28: #{generator_forward.21} parent=23 // pred_fallthru
        _
    $region24: #{generator_forward.21} parent=5 // pred_fallthru
      _
    %p137 = scmp.le.s32.totalorder 1, %s9
    %p138 = scmp.lt.s32.totalorder %s9, 3
    %p139 = pnand %p137, %p138
    %p140 = pneg %p139
    // Predicated region
    $region29: #{generator_forward.21} parent=5 // pred_check
      _
    $region30: #{generator_forward.21} parent=5 // pred_check_branch
      %142 = sbr.rel (%p139) target = $region32
    $region31: #{generator_forward.21} parent=5 // pred_region
      %s143 = ssub.s32 %s9, 1
      %s144 = smul.u32 32, %s14
      %p145 = scmp.lt.s32.totalorder %s144, 63
      %s146 = scalar_select %p145, %s144, 63
      %s147 = smul.addr %s146, 8
      %s148 = scalar_lea.vmem %s0, %s147
      %p149 = pneg %p35
      %p150 = pneg %p32
      %p151 = pneg %p56
      %p152 = pneg %p53
      %p153 = pneg %p77
      %p154 = pneg %p74
      %p155 = pneg %p103
      %p156 = pneg %p100
      %s157 = smul.u32 32, %s14
      %p158 = scmp.lt.s32.totalorder %s157, 63
      %s159 = scalar_select %p158, %s157, 63
      %s160 = smul.addr %s159, 4
      %s161 = scalar_lea.vmem %s3, %s160
      %s162 = smul.u32 32, %s14
      %p163 = scmp.lt.s32.totalorder %s162, 63
      %s164 = scalar_select %p163, %s162, 63
      %s165 = smul.addr %s164, 8
      %s166 = scalar_lea.vmem %s0, %s165
      %s167 = smul.u32 32, %s14
      %s168 = smul.u32 32, %s14
      %p169 = scmp.lt.s32.totalorder %s168, 63
      %s170 = scalar_select %p169, %s168, 63
      %s171 = smul.addr %s170, 4
      %s172 = scalar_lea.vmem %s3, %s171
      %s173 = smul.u32 32, %s14
      %v174 = vld [vmem:[%s166] sm:$0xff]
      %v175 = vld [vmem:[%s166 + $0x8] sm:$0xff]
      %v176 = vld [vmem:[%s166 + $0x10] sm:$0xff]
      %v177 = vld [vmem:[%s166 + $0x18] sm:$0xff]
      %v178 = vld [vmem:[%s166 + $0x20] sm:$0xff]
      %v179 = vld [vmem:[%s166 + $0x28] sm:$0xff]
      %v180 = vld [vmem:[%s166 + $0x30] sm:$0xff]
      %v181 = vld [vmem:[%s166 + $0x38] sm:$0xff]
      %v182 = vld [vmem:[%s166 + $0x40] sm:$0xff]
      %v183 = vld [vmem:[%s166 + $0x48] sm:$0xff]
      %v184 = vld [vmem:[%s166 + $0x50] sm:$0xff]
      %v185 = vld [vmem:[%s166 + $0x58] sm:$0xff]
      %v186 = vld [vmem:[%s166 + $0x60] sm:$0xff]
      %v187 = vld [vmem:[%s166 + $0x68] sm:$0xff]
      %v188 = vld [vmem:[%s166 + $0x70] sm:$0xff]
      %v189 = vld [vmem:[%s166 + $0x78] sm:$0xff]
      %v190 = vld [vmem:[%s166 + $0x80] sm:$0xff]
      %v191 = vld [vmem:[%s166 + $0x88] sm:$0xff]
      %v192 = vld [vmem:[%s166 + $0x90] sm:$0xff]
      %v193 = vld [vmem:[%s166 + $0x98] sm:$0xff]
      %v194 = vld [vmem:[%s166 + $0xa0] sm:$0xff]
      %v195 = vld [vmem:[%s166 + $0xa8] sm:$0xff]
      %v196 = vld [vmem:[%s166 + $0xb0] sm:$0xff]
      %v197 = vld [vmem:[%s166 + $0xb8] sm:$0xff]
      %v198 = vld [vmem:[%s166 + $0xc0] sm:$0xff]
      %v199 = vld [vmem:[%s166 + $0xc8] sm:$0xff]
      %v200 = vld [vmem:[%s166 + $0xd0] sm:$0xff]
      %v201 = vld [vmem:[%s166 + $0xd8] sm:$0xff]
      %v202 = vld [vmem:[%s166 + $0xe0] sm:$0xff]
      %v203 = vld [vmem:[%s166 + $0xe8] sm:$0xff]
      %v204 = vld [vmem:[%s166 + $0xf0] sm:$0xff]
      %v205 = vld [vmem:[%s166 + $0xf8] sm:$0xff]
      %v206 = vld [vmem:[%s1] sm:$0x1]
      %v208 = vlaneseq
      %v209 = vshrl.u32 %v208, 7
      %v210 = vsub.s32 0, %v209
      %v211 = vrot.slane %v206, %v210
      %v213 = vmul.f32 %v174, %v211
      %v214 = vmul.f32 %v175, %v211
      %v215 = vmul.f32 %v176, %v211
      %v216 = vmul.f32 %v177, %v211
      %v217 = vmul.f32 %v178, %v211
      %v218 = vmul.f32 %v179, %v211
      %v219 = vmul.f32 %v180, %v211
      %v220 = vmul.f32 %v181, %v211
      %v221 = vmul.f32 %v182, %v211
      %v222 = vmul.f32 %v183, %v211
      %v223 = vmul.f32 %v184, %v211
      %v224 = vmul.f32 %v185, %v211
      %v225 = vmul.f32 %v186, %v211
      %v226 = vmul.f32 %v187, %v211
      %v227 = vmul.f32 %v188, %v211
      %v228 = vmul.f32 %v189, %v211
      %v229 = vmul.f32 %v190, %v211
      %v230 = vmul.f32 %v191, %v211
      %v231 = vmul.f32 %v192, %v211
      %v232 = vmul.f32 %v193, %v211
      %v233 = vmul.f32 %v194, %v211
      %v234 = vmul.f32 %v195, %v211
      %v235 = vmul.f32 %v196, %v211
      %v236 = vmul.f32 %v197, %v211
      %v237 = vmul.f32 %v198, %v211
      %v238 = vmul.f32 %v199, %v211
      %v239 = vmul.f32 %v200, %v211
      %v240 = vmul.f32 %v201, %v211
      %v241 = vmul.f32 %v202, %v211
      %v242 = vmul.f32 %v203, %v211
      %v243 = vmul.f32 %v204, %v211
      %v244 = vmul.f32 %v205, %v211
      %v245 = vld [vmem:[%s2] sm:$0x1]
      %v247 = vlaneseq
      %v248 = vshrl.u32 %v247, 7
      %v249 = vsub.s32 0, %v248
      %v250 = vrot.slane %v245, %v249
      %v252 = vadd.f32 %v213, %v250
      %v253 = vadd.f32 %v214, %v250
      %v254 = vadd.f32 %v215, %v250
      %v255 = vadd.f32 %v216, %v250
      %v256 = vadd.f32 %v217, %v250
      %v257 = vadd.f32 %v218, %v250
      %v258 = vadd.f32 %v219, %v250
      %v259 = vadd.f32 %v220, %v250
      %v260 = vadd.f32 %v221, %v250
      %v261 = vadd.f32 %v222, %v250
      %v262 = vadd.f32 %v223, %v250
      %v263 = vadd.f32 %v224, %v250
      %v264 = vadd.f32 %v225, %v250
      %v265 = vadd.f32 %v226, %v250
      %v266 = vadd.f32 %v227, %v250
      %v267 = vadd.f32 %v228, %v250
      %v268 = vadd.f32 %v229, %v250
      %v269 = vadd.f32 %v230, %v250
      %v270 = vadd.f32 %v231, %v250
      %v271 = vadd.f32 %v232, %v250
      %v272 = vadd.f32 %v233, %v250
      %v273 = vadd.f32 %v234, %v250
      %v274 = vadd.f32 %v235, %v250
      %v275 = vadd.f32 %v236, %v250
      %v276 = vadd.f32 %v237, %v250
      %v277 = vadd.f32 %v238, %v250
      %v278 = vadd.f32 %v239, %v250
      %v279 = vadd.f32 %v240, %v250
      %v280 = vadd.f32 %v241, %v250
      %v281 = vadd.f32 %v242, %v250
      %v282 = vadd.f32 %v243, %v250
      %v283 = vadd.f32 %v244, %v250
      %v284 = vmax.f32 %v252, 0.0
      %v285 = vmax.f32 %v253, 0.0
      %v286 = vmax.f32 %v254, 0.0
      %v287 = vmax.f32 %v255, 0.0
      %v288 = vmax.f32 %v256, 0.0
      %v289 = vmax.f32 %v257, 0.0
      %v290 = vmax.f32 %v258, 0.0
      %v291 = vmax.f32 %v259, 0.0
      %v292 = vmax.f32 %v260, 0.0
      %v293 = vmax.f32 %v261, 0.0
      %v294 = vmax.f32 %v262, 0.0
      %v295 = vmax.f32 %v263, 0.0
      %v296 = vmax.f32 %v264, 0.0
      %v297 = vmax.f32 %v265, 0.0
      %v298 = vmax.f32 %v266, 0.0
      %v299 = vmax.f32 %v267, 0.0
      %v300 = vmax.f32 %v268, 0.0
      %v301 = vmax.f32 %v269, 0.0
      %v302 = vmax.f32 %v270, 0.0
      %v303 = vmax.f32 %v271, 0.0
      %v304 = vmax.f32 %v272, 0.0
      %v305 = vmax.f32 %v273, 0.0
      %v306 = vmax.f32 %v274, 0.0
      %v307 = vmax.f32 %v275, 0.0
      %v308 = vmax.f32 %v276, 0.0
      %v309 = vmax.f32 %v277, 0.0
      %v310 = vmax.f32 %v278, 0.0
      %v311 = vmax.f32 %v279, 0.0
      %v312 = vmax.f32 %v280, 0.0
      %v313 = vmax.f32 %v281, 0.0
      %v314 = vmax.f32 %v282, 0.0
      %v315 = vmax.f32 %v283, 0.0
      %v316 = vpack.c.bf16 %v285, %v284
      %v317 = vpack.c.bf16 %v287, %v286
      %v318 = vpack.c.bf16 %v289, %v288
      %v319 = vpack.c.bf16 %v291, %v290
      %v320 = vpack.c.bf16 %v293, %v292
      %v321 = vpack.c.bf16 %v295, %v294
      %v322 = vpack.c.bf16 %v297, %v296
      %v323 = vpack.c.bf16 %v299, %v298
      %v324 = vpack.c.bf16 %v301, %v300
      %v325 = vpack.c.bf16 %v303, %v302
      %v326 = vpack.c.bf16 %v305, %v304
      %v327 = vpack.c.bf16 %v307, %v306
      %v328 = vpack.c.bf16 %v309, %v308
      %v329 = vpack.c.bf16 %v311, %v310
      %v330 = vpack.c.bf16 %v313, %v312
      %v331 = vpack.c.bf16 %v315, %v314
      %v348 = vunpack.c.l.b16 %v316
      %v349 = vunpack.c.h.b16 %v316
      %v350 = vunpack.c.l.b16 %v317
      %v351 = vunpack.c.h.b16 %v317
      %v352 = vunpack.c.l.b16 %v318
      %v353 = vunpack.c.h.b16 %v318
      %v354 = vunpack.c.l.b16 %v319
      %v355 = vunpack.c.h.b16 %v319
      %v356 = vunpack.c.l.b16 %v320
      %v357 = vunpack.c.h.b16 %v320
      %v358 = vunpack.c.l.b16 %v321
      %v359 = vunpack.c.h.b16 %v321
      %v360 = vunpack.c.l.b16 %v322
      %v361 = vunpack.c.h.b16 %v322
      %v362 = vunpack.c.l.b16 %v323
      %v363 = vunpack.c.h.b16 %v323
      %v364 = vunpack.c.l.b16 %v324
      %v365 = vunpack.c.h.b16 %v324
      %v366 = vunpack.c.l.b16 %v325
      %v367 = vunpack.c.h.b16 %v325
      %v368 = vunpack.c.l.b16 %v326
      %v369 = vunpack.c.h.b16 %v326
      %v370 = vunpack.c.l.b16 %v327
      %v371 = vunpack.c.h.b16 %v327
      %v372 = vunpack.c.l.b16 %v328
      %v373 = vunpack.c.h.b16 %v328
      %v374 = vunpack.c.l.b16 %v329
      %v375 = vunpack.c.h.b16 %v329
      %v376 = vunpack.c.l.b16 %v330
      %v377 = vunpack.c.h.b16 %v330
      %v378 = vunpack.c.l.b16 %v331
      %v379 = vunpack.c.h.b16 %v331
      %v380 = vpack.c.b16 %v348, %v348
      %v381 = vpack.c.b16 %v349, %v349
      %v382 = vpack.c.b16 %v350, %v350
      %v383 = vpack.c.b16 %v351, %v351
      %v384 = vpack.c.b16 %v352, %v352
      %v385 = vpack.c.b16 %v353, %v353
      %v386 = vpack.c.b16 %v354, %v354
      %v387 = vpack.c.b16 %v355, %v355
      %v388 = vpack.c.b16 %v356, %v356
      %v389 = vpack.c.b16 %v357, %v357
      %v390 = vpack.c.b16 %v358, %v358
      %v391 = vpack.c.b16 %v359, %v359
      %v392 = vpack.c.b16 %v360, %v360
      %v393 = vpack.c.b16 %v361, %v361
      %v394 = vpack.c.b16 %v362, %v362
      %v395 = vpack.c.b16 %v363, %v363
      %v396 = vpack.c.b16 %v364, %v364
      %v397 = vpack.c.b16 %v365, %v365
      %v398 = vpack.c.b16 %v366, %v366
      %v399 = vpack.c.b16 %v367, %v367
      %v400 = vpack.c.b16 %v368, %v368
      %v401 = vpack.c.b16 %v369, %v369
      %v402 = vpack.c.b16 %v370, %v370
      %v403 = vpack.c.b16 %v371, %v371
      %v404 = vpack.c.b16 %v372, %v372
      %v405 = vpack.c.b16 %v373, %v373
      %v406 = vpack.c.b16 %v374, %v374
      %v407 = vpack.c.b16 %v375, %v375
      %v408 = vpack.c.b16 %v376, %v376
      %v409 = vpack.c.b16 %v377, %v377
      %v410 = vpack.c.b16 %v378, %v378
      %v411 = vpack.c.b16 %v379, %v379
      %444 = vst [vmem:[%s172] sm:$0xf] %v380
      %445 = vst [vmem:[%s172 + $0x4] sm:$0xf] %v381
      %446 = vst [vmem:[%s172 + $0x8] sm:$0xf] %v382
      %447 = vst [vmem:[%s172 + $0xc] sm:$0xf] %v383
      %448 = vst [vmem:[%s172 + $0x10] sm:$0xf] %v384
      %449 = vst [vmem:[%s172 + $0x14] sm:$0xf] %v385
      %450 = vst [vmem:[%s172 + $0x18] sm:$0xf] %v386
      %451 = vst [vmem:[%s172 + $0x1c] sm:$0xf] %v387
      %452 = vst [vmem:[%s172 + $0x20] sm:$0xf] %v388
      %453 = vst [vmem:[%s172 + $0x24] sm:$0xf] %v389
      %454 = vst [vmem:[%s172 + $0x28] sm:$0xf] %v390
      %455 = vst [vmem:[%s172 + $0x2c] sm:$0xf] %v391
      %456 = vst [vmem:[%s172 + $0x30] sm:$0xf] %v392
      %457 = vst [vmem:[%s172 + $0x34] sm:$0xf] %v393
      %458 = vst [vmem:[%s172 + $0x38] sm:$0xf] %v394
      %459 = vst [vmem:[%s172 + $0x3c] sm:$0xf] %v395
      %460 = vst [vmem:[%s172 + $0x40] sm:$0xf] %v396
      %461 = vst [vmem:[%s172 + $0x44] sm:$0xf] %v397
      %462 = vst [vmem:[%s172 + $0x48] sm:$0xf] %v398
      %463 = vst [vmem:[%s172 + $0x4c] sm:$0xf] %v399
      %464 = vst [vmem:[%s172 + $0x50] sm:$0xf] %v400
      %465 = vst [vmem:[%s172 + $0x54] sm:$0xf] %v401
      %466 = vst [vmem:[%s172 + $0x58] sm:$0xf] %v402
      %467 = vst [vmem:[%s172 + $0x5c] sm:$0xf] %v403
      %468 = vst [vmem:[%s172 + $0x60] sm:$0xf] %v404
      %469 = vst [vmem:[%s172 + $0x64] sm:$0xf] %v405
      %470 = vst [vmem:[%s172 + $0x68] sm:$0xf] %v406
      %471 = vst [vmem:[%s172 + $0x6c] sm:$0xf] %v407
      %472 = vst [vmem:[%s172 + $0x70] sm:$0xf] %v408
      %473 = vst [vmem:[%s172 + $0x74] sm:$0xf] %v409
      %474 = vst [vmem:[%s172 + $0x78] sm:$0xf] %v410
      %475 = vst [vmem:[%s172 + $0x7c] sm:$0xf] %v411
      %s476 = smul.u32 32, %s14
      %p477 = scmp.lt.s32.totalorder %s476, 63
      %s478 = scalar_select %p477, %s476, 63
      %s479 = smul.addr %s478, 4
      %s480 = scalar_lea.vmem %s3, %s479
      // Predicated region
      $region33: #{generator_forward.21} parent=31 // pred_check
        %p481 = pneg %p100
      $region34: #{generator_forward.21} parent=31 // pred_check_branch
        %483 = sbr.rel (%p481) target = $region36
      $region35: #{generator_forward.21} parent=31 // pred_region
        %s484 = smul.u32 32, %s14
      $region36: #{generator_forward.21} parent=31 // pred_fallthru
        _
    $region32: #{generator_forward.21} parent=5 // pred_fallthru
      _
    %p485 = scmp.le.s32.totalorder 2, %s9
    // Predicated region
    $region37: #{generator_forward.21} parent=5 // pred_check
      %p486 = pneg %p485
    $region38: #{generator_forward.21} parent=5 // pred_check_branch
      %488 = sbr.rel (%p486) target = $region40
    $region39: #{generator_forward.21} parent=5 // pred_region
      %s489 = ssub.s32 %s9, 2
      // Predicated region
      $region41: #{generator_forward.21} parent=39 // pred_check
        %p490 = pneg %p106
      $region42: #{generator_forward.21} parent=39 // pred_check_branch
        %492 = sbr.rel (%p490) target = $region44
      $region43: #{generator_forward.21} parent=39 // pred_region
        %s493 = smul.u32 32, %s15
        %p494 = scmp.lt.s32.totalorder %s493, 63
        %s495 = scalar_select %p494, %s493, 63
        %s496 = smul.addr %s495, 4
        %s497 = scalar_lea.vmem %s3, %s496
      $region44: #{generator_forward.21} parent=39 // pred_fallthru
        _
    $region40: #{generator_forward.21} parent=5 // pred_fallthru
      _
  $region6: #{generator_forward.21} parent=0 // loop_footer
    %s13 = sadd.s32 1, %s9
  $region7: #{generator_forward.21} parent=0 // loop_footer_branch
    %8 = sbr.rel target = $region3
  $region8: #{generator_forward.21} parent=0 // loop_exit
    _

// kernel: generator_forward.22
$region0: #{generator_forward.22}
  #allocation0 [shape = 'u32[]', space=smem, size = 0x4, offset = 0x4, fixed_abs, tag = 'smem constant byte address 0x4 - core index']
  #allocation1 [shape = 'u32[144,128]{1,0:T(1,128)}', space=vmem, size = 0x12000, scoped, tag = 'internal scratch']
  #allocation2 [shape = 'f32[128,256]{1,0:T(8,128)}', space=vmem, size = 0x20000, scoped, tag = 'scratch operand']
  %s0 = inlined_call_operand.vmem [shape: bf16[640,512], index: 0, kind: input, shape index: {}]
  %s1 = inlined_call_operand.vmem [shape: bf16[512,256], index: 1, kind: input, shape index: {}]
  %s2 = inlined_call_operand.vmem [shape: f32[640,256], index: 2, kind: output, shape index: {}]
  %s3 = sld [smem:[#allocation0]]
  $region49: #{generator_forward.22} parent=0
    _
  %s5 = ssub.s32 1, %s3
  %s6 = scalar_select 0, %s5, %s3
  loop: start=0, step=1, limit=7
  $region2: #{generator_forward.22} parent=0 // loop_pre_header
    _
  $region3: #{generator_forward.22} parent=0 // loop_header
    %s8 = sphi 0, %s12
    %p9 = scmp.ge.s32.totalorder %s8, 7
    %s15 = sphi 0, %s34
    %s16 = sphi 0, %s30
    %s17 = sphi 0, %s26
    %s18 = sphi 0, %s15
    %s19 = sphi 0, %s16
    %s20 = sphi 0, %s17
    %s21 = sphi 0, %s18
    %s22 = sphi 0, %s19
    %s23 = sphi 0, %s20
    %s39 = sphi 0, %s41
    %s42 = sphi 0, %s39
    %s43 = sphi 0, %s42
    %s59 = sphi 0, %s43
    %s67 = sphi 0, %s69
    %s70 = sphi 0, %s67
    %s71 = sphi 0, %s70
    %s87 = sphi 0, %s71
    %s95 = sphi 0, %s97
    %s98 = sphi 0, %s95
    %s99 = sphi 0, %s98
    %s115 = sphi 0, %s99
  $region4: #{generator_forward.22} parent=0 // loop_header_branch
    %11 = sbr.rel (%p9) target = $region8
  $region5: #{generator_forward.22} parent=0 // loop_body
    %s13 = ssub.s32 %s8, 1
    %s14 = ssub.s32 %s8, 2
    %s24 = sadd.s32 1, %s17
    %p25 = scmp.ge.s32.totalorder %s24, 1
    %s26 = scalar_select %p25, 0, %s24
    %s27 = sadd.s32 1, %s16
    %s28 = scalar_select %p25, %s27, %s16
    %p29 = scmp.ge.s32.totalorder %s28, 1
    %s30 = scalar_select %p29, 0, %s28
    %s31 = sadd.s32 1, %s15
    %s32 = scalar_select %p29, %s31, %s15
    %p33 = scmp.ge.s32.totalorder %s32, 5
    %s34 = scalar_select %p33, 0, %s32
    %s35 = ssub.s32 %s15, %s34
    %s36 = ssub.s32 %s17, %s26
    %s37 = sor.u32 %s35, %s36
    %p38 = scmp.eq.s32.totalorder %s37, 0
    %s40 = sadd.s32 %s39, 1
    %s41 = scalar_select %p38, %s39, %s40
    %p44 = pneg %p38
    %p45 = scmp.eq.s32.totalorder %s8, 4
    %p46 = por %p44, %p45
    %p47 = scmp.ne.s32.totalorder %s39, %s42
    %p48 = scmp.eq.s32.totalorder %s8, 0
    %p49 = por %p47, %p48
    %p50 = scmp.ne.s32.totalorder %s39, %s42
    %p51 = scmp.eq.s32.totalorder %s13, 4
    %p52 = por %p50, %p51
    %p53 = scmp.ne.s32.totalorder %s42, %s43
    %p54 = scmp.eq.s32.totalorder %s13, 0
    %p55 = por %p53, %p54
    %p56 = scmp.ne.s32.totalorder %s42, %s43
    %p57 = scmp.eq.s32.totalorder %s14, 4
    %p58 = por %p56, %p57
    %p60 = scmp.ne.s32.totalorder %s43, %s59
    %p61 = scmp.eq.s32.totalorder %s14, 0
    %p62 = por %p60, %p61
    %s63 = ssub.s32 %s17, %s26
    %s64 = ssub.s32 %s16, %s30
    %s65 = sor.u32 %s63, %s64
    %p66 = scmp.eq.s32.totalorder %s65, 0
    %s68 = sadd.s32 %s67, 1
    %s69 = scalar_select %p66, %s67, %s68
    %p72 = pneg %p66
    %p73 = scmp.eq.s32.totalorder %s8, 4
    %p74 = por %p72, %p73
    %p75 = scmp.ne.s32.totalorder %s67, %s70
    %p76 = scmp.eq.s32.totalorder %s8, 0
    %p77 = por %p75, %p76
    %p78 = scmp.ne.s32.totalorder %s67, %s70
    %p79 = scmp.eq.s32.totalorder %s13, 4
    %p80 = por %p78, %p79
    %p81 = scmp.ne.s32.totalorder %s70, %s71
    %p82 = scmp.eq.s32.totalorder %s13, 0
    %p83 = por %p81, %p82
    %p84 = scmp.ne.s32.totalorder %s70, %s71
    %p85 = scmp.eq.s32.totalorder %s14, 4
    %p86 = por %p84, %p85
    %p88 = scmp.ne.s32.totalorder %s71, %s87
    %p89 = scmp.eq.s32.totalorder %s14, 0
    %p90 = por %p88, %p89
    %s91 = ssub.s32 %s15, %s34
    %s92 = ssub.s32 %s16, %s30
    %s93 = sor.u32 %s91, %s92
    %p94 = scmp.eq.s32.totalorder %s93, 0
    %s96 = sadd.s32 %s95, 1
    %s97 = scalar_select %p94, %s95, %s96
    %p100 = pneg %p94
    %p101 = scmp.eq.s32.totalorder %s8, 4
    %p102 = por %p100, %p101
    %p103 = scmp.ne.s32.totalorder %s95, %s98
    %p104 = scmp.eq.s32.totalorder %s8, 0
    %p105 = por %p103, %p104
    %p106 = scmp.ne.s32.totalorder %s95, %s98
    %p107 = scmp.eq.s32.totalorder %s13, 4
    %p108 = por %p106, %p107
    %p109 = scmp.ne.s32.totalorder %s98, %s99
    %p110 = scmp.eq.s32.totalorder %s13, 0
    %p111 = por %p109, %p110
    %p112 = scmp.ne.s32.totalorder %s98, %s99
    %p113 = scmp.eq.s32.totalorder %s14, 4
    %p114 = por %p112, %p113
    %p116 = scmp.ne.s32.totalorder %s99, %s115
    %p117 = scmp.eq.s32.totalorder %s14, 0
    %p118 = por %p116, %p117
    %p119 = scmp.le.s32.totalorder 1, %s8
    %p120 = scmp.lt.s32.totalorder %s8, 6
    %p121 = pnand %p119, %p120
    %p122 = pneg %p121
    // Predicated region
    $region9: #{generator_forward.22} parent=5 // pred_check
      _
    $region10: #{generator_forward.22} parent=5 // pred_check_branch
      %124 = sbr.rel (%p121) target = $region12
    $region11: #{generator_forward.22} parent=5 // pred_region
      %s125 = ssub.s32 %s8, 1
      // Predicated region
      $region13: #{generator_forward.22} parent=11 // pred_check
        %p126 = pneg %p83
      $region14: #{generator_forward.22} parent=11 // pred_check_branch
        %128 = sbr.rel (%p126) target = $region16
      $region15: #{generator_forward.22} parent=11 // pred_region
        %s129 = smul.u32 64, %s20
        %s130 = smul.u32 2, %s19
        %p131 = scmp.lt.s32.totalorder %s129, 63
        %s132 = scalar_select %p131, %s129, 63
        %p133 = scmp.lt.s32.totalorder %s130, 1
        %s134 = scalar_select %p133, %s130, 1
        %s135 = smul.addr %s132, 2
        %s136 = sadd.s32 %s134, %s135
        %s137 = smul.addr %s136, 4
        %s138 = scalar_lea.vmem %s1, %s137
        %s139 = smul.u32 64, %s20
        %s140 = smul.u32 2, %s19
      $region16: #{generator_forward.22} parent=11 // pred_fallthru
        _
    $region12: #{generator_forward.22} parent=5 // pred_fallthru
      _
    %p141 = scmp.lt.s32.totalorder %s8, 5
    // Predicated region
    $region17: #{generator_forward.22} parent=5 // pred_check
      %p142 = pneg %p141
    $region18: #{generator_forward.22} parent=5 // pred_check_branch
      %144 = sbr.rel (%p142) target = $region20
    $region19: #{generator_forward.22} parent=5 // pred_region
      // Predicated region
      $region21: #{generator_forward.22} parent=19 // pred_check
        %p145 = pneg %p49
      $region22: #{generator_forward.22} parent=19 // pred_check_branch
        %147 = sbr.rel (%p145) target = $region24
      $region23: #{generator_forward.22} parent=19 // pred_region
        %s148 = smul.u32 16, %s15
        %s149 = smul.u32 4, %s17
        %p150 = scmp.lt.s32.totalorder %s148, 79
        %s151 = scalar_select %p150, %s148, 79
        %p152 = scmp.lt.s32.totalorder %s149, 3
        %s153 = scalar_select %p152, %s149, 3
        %s154 = smul.addr %s151, 4
        %s155 = sadd.s32 %s153, %s154
        %s156 = smul.addr %s155, 4
        %s157 = scalar_lea.vmem %s0, %s156
        %s158 = smul.u32 16, %s15
        %s159 = smul.u32 4, %s17
      $region24: #{generator_forward.22} parent=19 // pred_fallthru
        _
    $region20: #{generator_forward.22} parent=5 // pred_fallthru
      _
    %p160 = scmp.le.s32.totalorder 1, %s8
    %p161 = scmp.lt.s32.totalorder %s8, 6
    %p162 = pnand %p160, %p161
    %p163 = pneg %p162
    // Predicated region
    $region25: #{generator_forward.22} parent=5 // pred_check
      _
    $region26: #{generator_forward.22} parent=5 // pred_check_branch
      %165 = sbr.rel (%p162) target = $region28
    $region27: #{generator_forward.22} parent=5 // pred_region
      %s166 = ssub.s32 %s8, 1
      %s167 = smul.u32 16, %s18
      %s168 = smul.u32 4, %s20
      %p169 = scmp.lt.s32.totalorder %s167, 79
      %s170 = scalar_select %p169, %s167, 79
      %p171 = scmp.lt.s32.totalorder %s168, 3
      %s172 = scalar_select %p171, %s168, 3
      %s173 = smul.addr %s170, 4
      %s174 = sadd.s32 %s172, %s173
      %s175 = smul.addr %s174, 4
      %s176 = scalar_lea.vmem %s0, %s175
      %p177 = pneg %p55
      %p178 = pneg %p52
      %s179 = smul.u32 64, %s20
      %s180 = smul.u32 2, %s19
      %p181 = scmp.lt.s32.totalorder %s179, 63
      %s182 = scalar_select %p181, %s179, 63
      %p183 = scmp.lt.s32.totalorder %s180, 1
      %s184 = scalar_select %p183, %s180, 1
      %s185 = smul.addr %s182, 2
      %s186 = sadd.s32 %s184, %s185
      %s187 = smul.addr %s186, 4
      %s188 = scalar_lea.vmem %s1, %s187
      %p189 = pneg %p83
      %p190 = pneg %p80
      %p191 = pneg %p111
      %p192 = pneg %p108
      %s193 = smul.u32 16, %s18
      %s194 = smul.u32 2, %s19
      %p195 = scmp.lt.s32.totalorder %s193, 79
      %s196 = scalar_select %p195, %s193, 79
      %p197 = scmp.lt.s32.totalorder %s194, 1
      %s198 = scalar_select %p197, %s194, 1
      %s199 = smul.addr %s196, 2
      %s200 = sadd.s32 %s198, %s199
      %s201 = smul.addr %s200, 8
      %s202 = scalar_lea.vmem %s2, %s201
      %s203 = smul.u32 16, %s18
      %s204 = smul.u32 4, %s20
      %p205 = scmp.lt.s32.totalorder %s203, 79
      %s206 = scalar_select %p205, %s203, 79
      %p207 = scmp.lt.s32.totalorder %s204, 3
      %s208 = scalar_select %p207, %s204, 3
      %s209 = smul.addr %s206, 4
      %s210 = sadd.s32 %s208, %s209
      %s211 = smul.addr %s210, 4
      %s212 = scalar_lea.vmem %s0, %s211
      %s213 = smul.u32 16, %s18
      %s214 = smul.u32 4, %s20
      %s215 = smul.u32 64, %s20
      %s216 = smul.u32 2, %s19
      %p217 = scmp.lt.s32.totalorder %s215, 63
      %s218 = scalar_select %p217, %s215, 63
      %p219 = scmp.lt.s32.totalorder %s216, 1
      %s220 = scalar_select %p219, %s216, 1
      %s221 = smul.addr %s218, 2
      %s222 = sadd.s32 %s220, %s221
      %s223 = smul.addr %s222, 4
      %s224 = scalar_lea.vmem %s1, %s223
      %s225 = smul.u32 64, %s20
      %s226 = smul.u32 2, %s19
      %s227 = smul.u32 16, %s18
      %s228 = smul.u32 2, %s19
      %p229 = scmp.lt.s32.totalorder %s227, 79
      %s230 = scalar_select %p229, %s227, 79
      %p231 = scmp.lt.s32.totalorder %s228, 1
      %s232 = scalar_select %p231, %s228, 1
      %s233 = smul.addr %s230, 2
      %s234 = sadd.s32 %s232, %s233
      %s235 = smul.addr %s234, 8
      %s236 = scalar_lea.vmem %s2, %s235
      %s237 = smul.u32 16, %s18
      %s238 = smul.u32 2, %s19
      %p239 = scmp.eq.s32.totalorder %s20, 0
      // Predicated region
      $region29: #{generator_forward.22} parent=27 // pred_check
        %p240 = pneg %p239
      $region30: #{generator_forward.22} parent=27 // pred_check_branch
        %242 = sbr.rel (%p240) target = $region32
      $region31: #{generator_forward.22} parent=27 // pred_region
        %243 = vst [vmem:[#allocation2] sm:$0xff] 0.0
        %244 = vst [vmem:[#allocation2 + $0x8] sm:$0xff] 0.0
        %245 = vst [vmem:[#allocation2 + $0x10] sm:$0xff] 0.0
        %246 = vst [vmem:[#allocation2 + $0x18] sm:$0xff] 0.0
        %247 = vst [vmem:[#allocation2 + $0x20] sm:$0xff] 0.0
        %248 = vst [vmem:[#allocation2 + $0x28] sm:$0xff] 0.0
        %249 = vst [vmem:[#allocation2 + $0x30] sm:$0xff] 0.0
        %250 = vst [vmem:[#allocation2 + $0x38] sm:$0xff] 0.0
        %251 = vst [vmem:[#allocation2 + $0x40] sm:$0xff] 0.0
        %252 = vst [vmem:[#allocation2 + $0x48] sm:$0xff] 0.0
        %253 = vst [vmem:[#allocation2 + $0x50] sm:$0xff] 0.0
        %254 = vst [vmem:[#allocation2 + $0x58] sm:$0xff] 0.0
        %255 = vst [vmem:[#allocation2 + $0x60] sm:$0xff] 0.0
        %256 = vst [vmem:[#allocation2 + $0x68] sm:$0xff] 0.0
        %257 = vst [vmem:[#allocation2 + $0x70] sm:$0xff] 0.0
        %258 = vst [vmem:[#allocation2 + $0x78] sm:$0xff] 0.0
        %259 = vst [vmem:[#allocation2 + $0x80] sm:$0xff] 0.0
        %260 = vst [vmem:[#allocation2 + $0x88] sm:$0xff] 0.0
        %261 = vst [vmem:[#allocation2 + $0x90] sm:$0xff] 0.0
        %262 = vst [vmem:[#allocation2 + $0x98] sm:$0xff] 0.0
        %263 = vst [vmem:[#allocation2 + $0xa0] sm:$0xff] 0.0
        %264 = vst [vmem:[#allocation2 + $0xa8] sm:$0xff] 0.0
        %265 = vst [vmem:[#allocation2 + $0xb0] sm:$0xff] 0.0
        %266 = vst [vmem:[#allocation2 + $0xb8] sm:$0xff] 0.0
        %267 = vst [vmem:[#allocation2 + $0xc0] sm:$0xff] 0.0
        %268 = vst [vmem:[#allocation2 + $0xc8] sm:$0xff] 0.0
        %269 = vst [vmem:[#allocation2 + $0xd0] sm:$0xff] 0.0
        %270 = vst [vmem:[#allocation2 + $0xd8] sm:$0xff] 0.0
        %271 = vst [vmem:[#allocation2 + $0xe0] sm:$0xff] 0.0
        %272 = vst [vmem:[#allocation2 + $0xe8] sm:$0xff] 0.0
        %273 = vst [vmem:[#allocation2 + $0xf0] sm:$0xff] 0.0
        %274 = vst [vmem:[#allocation2 + $0xf8] sm:$0xff] 0.0
      $region32: #{generator_forward.22} parent=27 // pred_fallthru
        _
      %v275 = vld [vmem:[#allocation2] sm:$0xff]
      %v276 = vld [vmem:[#allocation2 + $0x8] sm:$0xff]
      %v277 = vld [vmem:[#allocation2 + $0x10] sm:$0xff]
      %v278 = vld [vmem:[#allocation2 + $0x18] sm:$0xff]
      %v279 = vld [vmem:[#allocation2 + $0x20] sm:$0xff]
      %v280 = vld [vmem:[#allocation2 + $0x28] sm:$0xff]
      %v281 = vld [vmem:[#allocation2 + $0x30] sm:$0xff]
      %v282 = vld [vmem:[#allocation2 + $0x38] sm:$0xff]
      %v283 = vld [vmem:[#allocation2 + $0x40] sm:$0xff]
      %v284 = vld [vmem:[#allocation2 + $0x48] sm:$0xff]
      %v285 = vld [vmem:[#allocation2 + $0x50] sm:$0xff]
      %v286 = vld [vmem:[#allocation2 + $0x58] sm:$0xff]
      %v287 = vld [vmem:[#allocation2 + $0x60] sm:$0xff]
      %v288 = vld [vmem:[#allocation2 + $0x68] sm:$0xff]
      %v289 = vld [vmem:[#allocation2 + $0x70] sm:$0xff]
      %v290 = vld [vmem:[#allocation2 + $0x78] sm:$0xff]
      %v291 = vld [vmem:[#allocation2 + $0x80] sm:$0xff]
      %v292 = vld [vmem:[#allocation2 + $0x88] sm:$0xff]
      %v293 = vld [vmem:[#allocation2 + $0x90] sm:$0xff]
      %v294 = vld [vmem:[#allocation2 + $0x98] sm:$0xff]
      %v295 = vld [vmem:[#allocation2 + $0xa0] sm:$0xff]
      %v296 = vld [vmem:[#allocation2 + $0xa8] sm:$0xff]
      %v297 = vld [vmem:[#allocation2 + $0xb0] sm:$0xff]
      %v298 = vld [vmem:[#allocation2 + $0xb8] sm:$0xff]
      %v299 = vld [vmem:[#allocation2 + $0xc0] sm:$0xff]
      %v300 = vld [vmem:[#allocation2 + $0xc8] sm:$0xff]
      %v301 = vld [vmem:[#allocation2 + $0xd0] sm:$0xff]
      %v302 = vld [vmem:[#allocation2 + $0xd8] sm:$0xff]
      %v303 = vld [vmem:[#allocation2 + $0xe0] sm:$0xff]
      %v304 = vld [vmem:[#allocation2 + $0xe8] sm:$0xff]
      %v305 = vld [vmem:[#allocation2 + $0xf0] sm:$0xff]
      %v306 = vld [vmem:[#allocation2 + $0xf8] sm:$0xff]
      %v307 = vld [vmem:[%s212] sm:$0xff]
      %v308 = vld [vmem:[%s212 + $0x8] sm:$0xff]
      %v309 = vld [vmem:[%s212 + $0x10] sm:$0xff]
      %v310 = vld [vmem:[%s212 + $0x18] sm:$0xff]
      %v311 = vld [vmem:[%s212 + $0x20] sm:$0xff]
      %v312 = vld [vmem:[%s212 + $0x28] sm:$0xff]
      %v313 = vld [vmem:[%s212 + $0x30] sm:$0xff]
      %v314 = vld [vmem:[%s212 + $0x38] sm:$0xff]
      %v315 = vld [vmem:[%s212 + $0x40] sm:$0xff]
      %v316 = vld [vmem:[%s212 + $0x48] sm:$0xff]
      %v317 = vld [vmem:[%s212 + $0x50] sm:$0xff]
      %v318 = vld [vmem:[%s212 + $0x58] sm:$0xff]
      %v319 = vld [vmem:[%s212 + $0x60] sm:$0xff]
      %v320 = vld [vmem:[%s212 + $0x68] sm:$0xff]
      %v321 = vld [vmem:[%s212 + $0x70] sm:$0xff]
      %v322 = vld [vmem:[%s212 + $0x78] sm:$0xff]
      %v323 = vld [vmem:[%s212 + $0x80] sm:$0xff]
      %v324 = vld [vmem:[%s212 + $0x88] sm:$0xff]
      %v325 = vld [vmem:[%s212 + $0x90] sm:$0xff]
      %v326 = vld [vmem:[%s212 + $0x98] sm:$0xff]
      %v327 = vld [vmem:[%s212 + $0xa0] sm:$0xff]
      %v328 = vld [vmem:[%s212 + $0xa8] sm:$0xff]
      %v329 = vld [vmem:[%s212 + $0xb0] sm:$0xff]
      %v330 = vld [vmem:[%s212 + $0xb8] sm:$0xff]
      %v331 = vld [vmem:[%s212 + $0xc0] sm:$0xff]
      %v332 = vld [vmem:[%s212 + $0xc8] sm:$0xff]
      %v333 = vld [vmem:[%s212 + $0xd0] sm:$0xff]
      %v334 = vld [vmem:[%s212 + $0xd8] sm:$0xff]
      %v335 = vld [vmem:[%s212 + $0xe0] sm:$0xff]
      %v336 = vld [vmem:[%s212 + $0xe8] sm:$0xff]
      %v337 = vld [vmem:[%s212 + $0xf0] sm:$0xff]
      %v338 = vld [vmem:[%s212 + $0xf8] sm:$0xff]
      %v339 = vld [vmem:[%s224] sm:$0xff]
      %v340 = vld [vmem:[%s224 + $0x8] sm:$0xff]
      %v341 = vld [vmem:[%s224 + $0x10] sm:$0xff]
      %v342 = vld [vmem:[%s224 + $0x18] sm:$0xff]
      %v343 = vld [vmem:[%s224 + $0x20] sm:$0xff]
      %v344 = vld [vmem:[%s224 + $0x28] sm:$0xff]
      %v345 = vld [vmem:[%s224 + $0x30] sm:$0xff]
      %v346 = vld [vmem:[%s224 + $0x38] sm:$0xff]
      %v347 = vld [vmem:[%s224 + $0x40] sm:$0xff]
      %v348 = vld [vmem:[%s224 + $0x48] sm:$0xff]
      %v349 = vld [vmem:[%s224 + $0x50] sm:$0xff]
      %v350 = vld [vmem:[%s224 + $0x58] sm:$0xff]
      %v351 = vld [vmem:[%s224 + $0x60] sm:$0xff]
      %v352 = vld [vmem:[%s224 + $0x68] sm:$0xff]
      %v353 = vld [vmem:[%s224 + $0x70] sm:$0xff]
      %v354 = vld [vmem:[%s224 + $0x78] sm:$0xff]
      %v355 = vld [vmem:[%s224 + $0x80] sm:$0xff]
      %v356 = vld [vmem:[%s224 + $0x88] sm:$0xff]
      %v357 = vld [vmem:[%s224 + $0x90] sm:$0xff]
      %v358 = vld [vmem:[%s224 + $0x98] sm:$0xff]
      %v359 = vld [vmem:[%s224 + $0xa0] sm:$0xff]
      %v360 = vld [vmem:[%s224 + $0xa8] sm:$0xff]
      %v361 = vld [vmem:[%s224 + $0xb0] sm:$0xff]
      %v362 = vld [vmem:[%s224 + $0xb8] sm:$0xff]
      %v363 = vld [vmem:[%s224 + $0xc0] sm:$0xff]
      %v364 = vld [vmem:[%s224 + $0xc8] sm:$0xff]
      %v365 = vld [vmem:[%s224 + $0xd0] sm:$0xff]
      %v366 = vld [vmem:[%s224 + $0xd8] sm:$0xff]
      %v367 = vld [vmem:[%s224 + $0xe0] sm:$0xff]
      %v368 = vld [vmem:[%s224 + $0xe8] sm:$0xff]
      %v369 = vld [vmem:[%s224 + $0xf0] sm:$0xff]
      %v370 = vld [vmem:[%s224 + $0xf8] sm:$0xff]
      %v371 = vld [vmem:[%s224 + $0x100] sm:$0xff]
      %v372 = vld [vmem:[%s224 + $0x108] sm:$0xff]
      %v373 = vld [vmem:[%s224 + $0x110] sm:$0xff]
      %v374 = vld [vmem:[%s224 + $0x118] sm:$0xff]
      %v375 = vld [vmem:[%s224 + $0x120] sm:$0xff]
      %v376 = vld [vmem:[%s224 + $0x128] sm:$0xff]
      %v377 = vld [vmem:[%s224 + $0x130] sm:$0xff]
      %v378 = vld [vmem:[%s224 + $0x138] sm:$0xff]
      %v379 = vld [vmem:[%s224 + $0x140] sm:$0xff]
      %v380 = vld [vmem:[%s224 + $0x148] sm:$0xff]
      %v381 = vld [vmem:[%s224 + $0x150] sm:$0xff]
      %v382 = vld [vmem:[%s224 + $0x158] sm:$0xff]
      %v383 = vld [vmem:[%s224 + $0x160] sm:$0xff]
      %v384 = vld [vmem:[%s224 + $0x168] sm:$0xff]
      %v385 = vld [vmem:[%s224 + $0x170] sm:$0xff]
      %v386 = vld [vmem:[%s224 + $0x178] sm:$0xff]
      %v387 = vld [vmem:[%s224 + $0x180] sm:$0xff]
      %v388 = vld [vmem:[%s224 + $0x188] sm:$0xff]
      %v389 = vld [vmem:[%s224 + $0x190] sm:$0xff]
      %v390 = vld [vmem:[%s224 + $0x198] sm:$0xff]
      %v391 = vld [vmem:[%s224 + $0x1a0] sm:$0xff]
      %v392 = vld [vmem:[%s224 + $0x1a8] sm:$0xff]
      %v393 = vld [vmem:[%s224 + $0x1b0] sm:$0xff]
      %v394 = vld [vmem:[%s224 + $0x1b8] sm:$0xff]
      %v395 = vld [vmem:[%s224 + $0x1c0] sm:$0xff]
      %v396 = vld [vmem:[%s224 + $0x1c8] sm:$0xff]
      %v397 = vld [vmem:[%s224 + $0x1d0] sm:$0xff]
      %v398 = vld [vmem:[%s224 + $0x1d8] sm:$0xff]
      %v399 = vld [vmem:[%s224 + $0x1e0] sm:$0xff]
      %v400 = vld [vmem:[%s224 + $0x1e8] sm:$0xff]
      %v401 = vld [vmem:[%s224 + $0x1f0] sm:$0xff]
      %v402 = vld [vmem:[%s224 + $0x1f8] sm:$0xff]
      %v435 = vunpack.c.l.b16 %v307
      %v436 = vunpack.c.h.b16 %v307
      %v437 = vunpack.c.l.b16 %v308
      %v438 = vunpack.c.h.b16 %v308
      %v439 = vunpack.c.l.b16 %v309
      %v440 = vunpack.c.h.b16 %v309
      %v441 = vunpack.c.l.b16 %v310
      %v442 = vunpack.c.h.b16 %v310
      %v443 = vunpack.c.l.b16 %v311
      %v444 = vunpack.c.h.b16 %v311
      %v445 = vunpack.c.l.b16 %v312
      %v446 = vunpack.c.h.b16 %v312
      %v447 = vunpack.c.l.b16 %v313
      %v448 = vunpack.c.h.b16 %v313
      %v449 = vunpack.c.l.b16 %v314
      %v450 = vunpack.c.h.b16 %v314
      %v451 = vunpack.c.l.b16 %v315
      %v452 = vunpack.c.h.b16 %v315
      %v453 = vunpack.c.l.b16 %v316
      %v454 = vunpack.c.h.b16 %v316
      %v455 = vunpack.c.l.b16 %v317
      %v456 = vunpack.c.h.b16 %v317
      %v457 = vunpack.c.l.b16 %v318
      %v458 = vunpack.c.h.b16 %v318
      %v459 = vunpack.c.l.b16 %v319
      %v460 = vunpack.c.h.b16 %v319
      %v461 = vunpack.c.l.b16 %v320
      %v462 = vunpack.c.h.b16 %v320
      %v463 = vunpack.c.l.b16 %v321
      %v464 = vunpack.c.h.b16 %v321
      %v465 = vunpack.c.l.b16 %v322
      %v466 = vunpack.c.h.b16 %v322
      %v467 = vunpack.c.l.b16 %v323
      %v468 = vunpack.c.h.b16 %v323
      %v469 = vunpack.c.l.b16 %v324
      %v470 = vunpack.c.h.b16 %v324
      %v471 = vunpack.c.l.b16 %v325
      %v472 = vunpack.c.h.b16 %v325
      %v473 = vunpack.c.l.b16 %v326
      %v474 = vunpack.c.h.b16 %v326
      %v475 = vunpack.c.l.b16 %v327
      %v476 = vunpack.c.h.b16 %v327
      %v477 = vunpack.c.l.b16 %v328
      %v478 = vunpack.c.h.b16 %v328
      %v479 = vunpack.c.l.b16 %v329
      %v480 = vunpack.c.h.b16 %v329
      %v481 = vunpack.c.l.b16 %v330
      %v482 = vunpack.c.h.b16 %v330
      %v483 = vunpack.c.l.b16 %v331
      %v484 = vunpack.c.h.b16 %v331
      %v485 = vunpack.c.l.b16 %v332
      %v486 = vunpack.c.h.b16 %v332
      %v487 = vunpack.c.l.b16 %v333
      %v488 = vunpack.c.h.b16 %v333
      %v489 = vunpack.c.l.b16 %v334
      %v490 = vunpack.c.h.b16 %v334
      %v491 = vunpack.c.l.b16 %v335
      %v492 = vunpack.c.h.b16 %v335
      %v493 = vunpack.c.l.b16 %v336
      %v494 = vunpack.c.h.b16 %v336
      %v495 = vunpack.c.l.b16 %v337
      %v496 = vunpack.c.h.b16 %v337
      %v497 = vunpack.c.l.b16 %v338
      %v498 = vunpack.c.h.b16 %v338
      %v499 = vpack.c.b16 %v439, %v435
      %v500 = vpack.c.b16 %v440, %v436
      %v501 = vpack.c.b16 %v441, %v437
      %v502 = vpack.c.b16 %v442, %v438
      %v503 = vpack.c.b16 %v447, %v443
      %v504 = vpack.c.b16 %v448, %v444
      %v505 = vpack.c.b16 %v449, %v445
      %v506 = vpack.c.b16 %v450, %v446
      %v507 = vpack.c.b16 %v455, %v451
      %v508 = vpack.c.b16 %v456, %v452
      %v509 = vpack.c.b16 %v457, %v453
      %v510 = vpack.c.b16 %v458, %v454
      %v511 = vpack.c.b16 %v463, %v459
      %v512 = vpack.c.b16 %v464, %v460
      %v513 = vpack.c.b16 %v465, %v461
      %v514 = vpack.c.b16 %v466, %v462
      %v515 = vpack.c.b16 %v471, %v467
      %v516 = vpack.c.b16 %v472, %v468
      %v517 = vpack.c.b16 %v473, %v469
      %v518 = vpack.c.b16 %v474, %v470
      %v519 = vpack.c.b16 %v479, %v475
      %v520 = vpack.c.b16 %v480, %v476
      %v521 = vpack.c.b16 %v481, %v477
      %v522 = vpack.c.b16 %v482, %v478
      %v523 = vpack.c.b16 %v487, %v483
      %v524 = vpack.c.b16 %v488, %v484
      %v525 = vpack.c.b16 %v489, %v485
      %v526 = vpack.c.b16 %v490, %v486
      %v527 = vpack.c.b16 %v495, %v491
      %v528 = vpack.c.b16 %v496, %v492
      %v529 = vpack.c.b16 %v497, %v493
      %v530 = vpack.c.b16 %v498, %v494
      %v627 = vunpack.c.l.b16 %v339
      %v628 = vunpack.c.h.b16 %v339
      %v629 = vunpack.c.l.b16 %v340
      %v630 = vunpack.c.h.b16 %v340
      %v631 = vunpack.c.l.b16 %v341
      %v632 = vunpack.c.h.b16 %v341
      %v633 = vunpack.c.l.b16 %v342
      %v634 = vunpack.c.h.b16 %v342
      %v635 = vunpack.c.l.b16 %v343
      %v636 = vunpack.c.h.b16 %v343
      %v637 = vunpack.c.l.b16 %v344
      %v638 = vunpack.c.h.b16 %v344
      %v639 = vunpack.c.l.b16 %v345
      %v640 = vunpack.c.h.b16 %v345
      %v641 = vunpack.c.l.b16 %v346
      %v642 = vunpack.c.h.b16 %v346
      %v643 = vunpack.c.l.b16 %v347
      %v644 = vunpack.c.h.b16 %v347
      %v645 = vunpack.c.l.b16 %v348
      %v646 = vunpack.c.h.b16 %v348
      %v647 = vunpack.c.l.b16 %v349
      %v648 = vunpack.c.h.b16 %v349
      %v649 = vunpack.c.l.b16 %v350
      %v650 = vunpack.c.h.b16 %v350
      %v651 = vunpack.c.l.b16 %v351
      %v652 = vunpack.c.h.b16 %v351
      %v653 = vunpack.c.l.b16 %v352
      %v654 = vunpack.c.h.b16 %v352
      %v655 = vunpack.c.l.b16 %v353
      %v656 = vunpack.c.h.b16 %v353
      %v657 = vunpack.c.l.b16 %v354
      %v658 = vunpack.c.h.b16 %v354
      %v659 = vunpack.c.l.b16 %v355
      %v660 = vunpack.c.h.b16 %v355
      %v661 = vunpack.c.l.b16 %v356
      %v662 = vunpack.c.h.b16 %v356
      %v663 = vunpack.c.l.b16 %v357
      %v664 = vunpack.c.h.b16 %v357
      %v665 = vunpack.c.l.b16 %v358
      %v666 = vunpack.c.h.b16 %v358
      %v667 = vunpack.c.l.b16 %v359
      %v668 = vunpack.c.h.b16 %v359
      %v669 = vunpack.c.l.b16 %v360
      %v670 = vunpack.c.h.b16 %v360
      %v671 = vunpack.c.l.b16 %v361
      %v672 = vunpack.c.h.b16 %v361
      %v673 = vunpack.c.l.b16 %v362
      %v674 = vunpack.c.h.b16 %v362
      %v675 = vunpack.c.l.b16 %v363
      %v676 = vunpack.c.h.b16 %v363
      %v677 = vunpack.c.l.b16 %v364
      %v678 = vunpack.c.h.b16 %v364
      %v679 = vunpack.c.l.b16 %v365
      %v680 = vunpack.c.h.b16 %v365
      %v681 = vunpack.c.l.b16 %v366
      %v682 = vunpack.c.h.b16 %v366
      %v683 = vunpack.c.l.b16 %v367
      %v684 = vunpack.c.h.b16 %v367
      %v685 = vunpack.c.l.b16 %v368
      %v686 = vunpack.c.h.b16 %v368
      %v687 = vunpack.c.l.b16 %v369
      %v688 = vunpack.c.h.b16 %v369
      %v689 = vunpack.c.l.b16 %v370
      %v690 = vunpack.c.h.b16 %v370
      %v691 = vunpack.c.l.b16 %v371
      %v692 = vunpack.c.h.b16 %v371
      %v693 = vunpack.c.l.b16 %v372
      %v694 = vunpack.c.h.b16 %v372
      %v695 = vunpack.c.l.b16 %v373
      %v696 = vunpack.c.h.b16 %v373
      %v697 = vunpack.c.l.b16 %v374
      %v698 = vunpack.c.h.b16 %v374
      %v699 = vunpack.c.l.b16 %v375
      %v700 = vunpack.c.h.b16 %v375
      %v701 = vunpack.c.l.b16 %v376
      %v702 = vunpack.c.h.b16 %v376
      %v703 = vunpack.c.l.b16 %v377
      %v704 = vunpack.c.h.b16 %v377
      %v705 = vunpack.c.l.b16 %v378
      %v706 = vunpack.c.h.b16 %v378
      %v707 = vunpack.c.l.b16 %v379
      %v708 = vunpack.c.h.b16 %v379
      %v709 = vunpack.c.l.b16 %v380
      %v710 = vunpack.c.h.b16 %v380
      %v711 = vunpack.c.l.b16 %v381
      %v712 = vunpack.c.h.b16 %v381
      %v713 = vunpack.c.l.b16 %v382
      %v714 = vunpack.c.h.b16 %v382
      %v715 = vunpack.c.l.b16 %v383
      %v716 = vunpack.c.h.b16 %v383
      %v717 = vunpack.c.l.b16 %v384
      %v718 = vunpack.c.h.b16 %v384
      %v719 = vunpack.c.l.b16 %v385
      %v720 = vunpack.c.h.b16 %v385
      %v721 = vunpack.c.l.b16 %v386
      %v722 = vunpack.c.h.b16 %v386
      %v723 = vunpack.c.l.b16 %v387
      %v724 = vunpack.c.h.b16 %v387
      %v725 = vunpack.c.l.b16 %v388
      %v726 = vunpack.c.h.b16 %v388
      %v727 = vunpack.c.l.b16 %v389
      %v728 = vunpack.c.h.b16 %v389
      %v729 = vunpack.c.l.b16 %v390
      %v730 = vunpack.c.h.b16 %v390
      %v731 = vunpack.c.l.b16 %v391
      %v732 = vunpack.c.h.b16 %v391
      %v733 = vunpack.c.l.b16 %v392
      %v734 = vunpack.c.h.b16 %v392
      %v735 = vunpack.c.l.b16 %v393
      %v736 = vunpack.c.h.b16 %v393
      %v737 = vunpack.c.l.b16 %v394
      %v738 = vunpack.c.h.b16 %v394
      %v739 = vunpack.c.l.b16 %v395
      %v740 = vunpack.c.h.b16 %v395
      %v741 = vunpack.c.l.b16 %v396
      %v742 = vunpack.c.h.b16 %v396
      %v743 = vunpack.c.l.b16 %v397
      %v744 = vunpack.c.h.b16 %v397
      %v745 = vunpack.c.l.b16 %v398
      %v746 = vunpack.c.h.b16 %v398
      %v747 = vunpack.c.l.b16 %v399
      %v748 = vunpack.c.h.b16 %v399
      %v749 = vunpack.c.l.b16 %v400
      %v750 = vunpack.c.h.b16 %v400
      %v751 = vunpack.c.l.b16 %v401
      %v752 = vunpack.c.h.b16 %v401
      %v753 = vunpack.c.l.b16 %v402
      %v754 = vunpack.c.h.b16 %v402
      %v755 = vpack.c.b16 %v629, %v627
      %v756 = vpack.c.b16 %v630, %v628
      %v757 = vpack.c.b16 %v633, %v631
      %v758 = vpack.c.b16 %v634, %v632
      %v759 = vpack.c.b16 %v637, %v635
      %v760 = vpack.c.b16 %v638, %v636
      %v761 = vpack.c.b16 %v641, %v639
      %v762 = vpack.c.b16 %v642, %v640
      %v763 = vpack.c.b16 %v645, %v643
      %v764 = vpack.c.b16 %v646, %v644
      %v765 = vpack.c.b16 %v649, %v647
      %v766 = vpack.c.b16 %v650, %v648
      %v767 = vpack.c.b16 %v653, %v651
      %v768 = vpack.c.b16 %v654, %v652
      %v769 = vpack.c.b16 %v657, %v655
      %v770 = vpack.c.b16 %v658, %v656
      %v771 = vpack.c.b16 %v661, %v659
      %v772 = vpack.c.b16 %v662, %v660
      %v773 = vpack.c.b16 %v665, %v663
      %v774 = vpack.c.b16 %v666, %v664
      %v775 = vpack.c.b16 %v669, %v667
      %v776 = vpack.c.b16 %v670, %v668
      %v777 = vpack.c.b16 %v673, %v671
      %v778 = vpack.c.b16 %v674, %v672
      %v779 = vpack.c.b16 %v677, %v675
      %v780 = vpack.c.b16 %v678, %v676
      %v781 = vpack.c.b16 %v681, %v679
      %v782 = vpack.c.b16 %v682, %v680
      %v783 = vpack.c.b16 %v685, %v683
      %v784 = vpack.c.b16 %v686, %v684
      %v785 = vpack.c.b16 %v689, %v687
      %v786 = vpack.c.b16 %v690, %v688
      %v787 = vpack.c.b16 %v693, %v691
      %v788 = vpack.c.b16 %v694, %v692
      %v789 = vpack.c.b16 %v697, %v695
      %v790 = vpack.c.b16 %v698, %v696
      %v791 = vpack.c.b16 %v701, %v699
      %v792 = vpack.c.b16 %v702, %v700
      %v793 = vpack.c.b16 %v705, %v703
      %v794 = vpack.c.b16 %v706, %v704
      %v795 = vpack.c.b16 %v709, %v707
      %v796 = vpack.c.b16 %v710, %v708
      %v797 = vpack.c.b16 %v713, %v711
      %v798 = vpack.c.b16 %v714, %v712
      %v799 = vpack.c.b16 %v717, %v715
      %v800 = vpack.c.b16 %v718, %v716
      %v801 = vpack.c.b16 %v721, %v719
      %v802 = vpack.c.b16 %v722, %v720
      %v803 = vpack.c.b16 %v725, %v723
      %v804 = vpack.c.b16 %v726, %v724
      %v805 = vpack.c.b16 %v729, %v727
      %v806 = vpack.c.b16 %v730, %v728
      %v807 = vpack.c.b16 %v733, %v731
      %v808 = vpack.c.b16 %v734, %v732
      %v809 = vpack.c.b16 %v737, %v735
      %v810 = vpack.c.b16 %v738, %v736
      %v811 = vpack.c.b16 %v741, %v739
      %v812 = vpack.c.b16 %v742, %v740
      %v813 = vpack.c.b16 %v745, %v743
      %v814 = vpack.c.b16 %v746, %v744
      %v815 = vpack.c.b16 %v749, %v747
      %v816 = vpack.c.b16 %v750, %v748
      %v817 = vpack.c.b16 %v753, %v751
      %v818 = vpack.c.b16 %v754, %v752
      %883 = vmatprep.subr.bf16.mxu0 %v756
      %884 = vmatpush1.bf16.msra.mxu0 %v755
      %885 = vmatprep.subr.bf16.mxu0 %v758
      %886 = vmatpush1.bf16.msra.mxu0 %v757
      %887 = vmatprep.subr.bf16.mxu0 %v760
      %888 = vmatpush1.bf16.msra.mxu0 %v759
      %889 = vmatprep.subr.bf16.mxu0 %v762
      %890 = vmatpush1.bf16.msra.mxu0 %v761
      %891 = vmatprep.subr.bf16.mxu0 %v764
      %892 = vmatpush1.bf16.msra.mxu0 %v763
      %893 = vmatprep.subr.bf16.mxu0 %v766
      %894 = vmatpush1.bf16.msra.mxu0 %v765
      %895 = vmatprep.subr.bf16.mxu0 %v768
      %896 = vmatpush1.bf16.msra.mxu0 %v767
      %897 = vmatprep.subr.bf16.mxu0 %v770
      %898 = vmatpush1.bf16.msra.mxu0 %v769
      %899 = vmatprep.subr.bf16.mxu0 %v772
      %900 = vmatpush1.bf16.msra.mxu0 %v771
      %901 = vmatprep.subr.bf16.mxu0 %v774
      %902 = vmatpush1.bf16.msra.mxu0 %v773
      %903 = vmatprep.subr.bf16.mxu0 %v776
      %904 = vmatpush1.bf16.msra.mxu0 %v775
      %905 = vmatprep.subr.bf16.mxu0 %v778
      %906 = vmatpush1.bf16.msra.mxu0 %v777
      %907 = vmatprep.subr.bf16.mxu0 %v780
      %908 = vmatpush1.bf16.msra.mxu0 %v779
      %909 = vmatprep.subr.bf16.mxu0 %v782
      %910 = vmatpush1.bf16.msra.mxu0 %v781
      %911 = vmatprep.subr.bf16.mxu0 %v784
      %912 = vmatpush1.bf16.msra.mxu0 %v783
      %913 = vmatprep.subr.bf16.mxu0 %v786
      %914 = vmatpush1.bf16.msra.mxu0 %v785
      %915 = vmatprep.mubr.bf16.mxu0 %v500
      %916 = vmatmul.mubr.bf16.gmra.mrb[0].mxu0 %v499
      %v917 = vpop.f32.mrb[0].mxu0
      %v918 = vadd.f32 0.0, %v917
      %v919 = vpop.f32.mrb[0].mxu0
      %v920 = vadd.f32 0.0, %v919
      %v921 = vpop.f32.mrb[0].mxu0
      %v922 = vadd.f32 0.0, %v921
      %v923 = vpop.f32.mrb[0].mxu0
      %v924 = vadd.f32 0.0, %v923
      %925 = vmatprep.mubr.bf16.mxu0 %v504
      %926 = vmatmul.mubr.bf16.gmra.mrb[0].mxu0 %v503
      %v927 = vpop.f32.mrb[0].mxu0
      %v928 = vadd.f32 0.0, %v927
      %v929 = vpop.f32.mrb[0].mxu0
      %v930 = vadd.f32 0.0, %v929
      %v931 = vpop.f32.mrb[0].mxu0
      %v932 = vadd.f32 0.0, %v931
      %v933 = vpop.f32.mrb[0].mxu0
      %v934 = vadd.f32 0.0, %v933
      %935 = vmatprep.mubr.bf16.mxu0 %v508
      %936 = vmatmul.mubr.bf16.gmra.mrb[0].mxu0 %v507
      %v937 = vpop.f32.mrb[0].mxu0
      %v938 = vadd.f32 0.0, %v937
      %v939 = vpop.f32.mrb[0].mxu0
      %v940 = vadd.f32 0.0, %v939
      %v941 = vpop.f32.mrb[0].mxu0
      %v942 = vadd.f32 0.0, %v941
      %v943 = vpop.f32.mrb[0].mxu0
      %v944 = vadd.f32 0.0, %v943
      %945 = vmatprep.mubr.bf16.mxu0 %v512
      %946 = vmatmul.mubr.bf16.gmra.mrb[0].mxu0 %v511
      %v947 = vpop.f32.mrb[0].mxu0
      %v948 = vadd.f32 0.0, %v947
      %v949 = vpop.f32.mrb[0].mxu0
      %v950 = vadd.f32 0.0, %v949
      %v951 = vpop.f32.mrb[0].mxu0
      %v952 = vadd.f32 0.0, %v951
      %v953 = vpop.f32.mrb[0].mxu0
      %v954 = vadd.f32 0.0, %v953
      %955 = vmatprep.mubr.bf16.mxu0 %v516
      %956 = vmatmul.mubr.bf16.gmra.mrb[0].mxu0 %v515
      %v957 = vpop.f32.mrb[0].mxu0
      %v958 = vadd.f32 0.0, %v957
      %v959 = vpop.f32.mrb[0].mxu0
      %v960 = vadd.f32 0.0, %v959
      %v961 = vpop.f32.mrb[0].mxu0
      %v962 = vadd.f32 0.0, %v961
      %v963 = vpop.f32.mrb[0].mxu0
      %v964 = vadd.f32 0.0, %v963
      %965 = vmatprep.mubr.bf16.mxu0 %v520
      %966 = vmatmul.mubr.bf16.gmra.mrb[0].mxu0 %v519
      %v967 = vpop.f32.mrb[0].mxu0
      %v968 = vadd.f32 0.0, %v967
      %v969 = vpop.f32.mrb[0].mxu0
      %v970 = vadd.f32 0.0, %v969
      %v971 = vpop.f32.mrb[0].mxu0
      %v972 = vadd.f32 0.0, %v971
      %v973 = vpop.f32.mrb[0].mxu0
      %v974 = vadd.f32 0.0, %v973
      %975 = vmatprep.mubr.bf16.mxu0 %v524
      %976 = vmatmul.mubr.bf16.gmra.mrb[0].mxu0 %v523
      %v977 = vpop.f32.mrb[0].mxu0
      %v978 = vadd.f32 0.0, %v977
      %v979 = vpop.f32.mrb[0].mxu0
      %v980 = vadd.f32 0.0, %v979
      %v981 = vpop.f32.mrb[0].mxu0
      %v982 = vadd.f32 0.0, %v981
      %v983 = vpop.f32.mrb[0].mxu0
      %v984 = vadd.f32 0.0, %v983
      %985 = vmatprep.mubr.bf16.mxu0 %v528
      %986 = vmatmul.mubr.bf16.gmra.mrb[0].mxu0 %v527
      %v987 = vpop.f32.mrb[0].mxu0
      %v988 = vadd.f32 0.0, %v987
      %v989 = vpop.f32.mrb[0].mxu0
      %v990 = vadd.f32 0.0, %v989
      %v991 = vpop.f32.mrb[0].mxu0
      %v992 = vadd.f32 0.0, %v991
      %v993 = vpop.f32.mrb[0].mxu0
      %v994 = vadd.f32 0.0, %v993
      %995 = vdwg.mxu0
      %996 = vmatprep.subr.bf16.mxu0 %v788
      %997 = vmatpush1.bf16.msra.mxu0 %v787
      %998 = vmatprep.subr.bf16.mxu0 %v790
      %999 = vmatpush1.bf16.msra.mxu0 %v789
      %1000 = vmatprep.subr.bf16.mxu0 %v792
      %1001 = vmatpush1.bf16.msra.mxu0 %v791
      %1002 = vmatprep.subr.bf16.mxu0 %v794
      %1003 = vmatpush1.bf16.msra.mxu0 %v793
      %1004 = vmatprep.subr.bf16.mxu0 %v796
      %1005 = vmatpush1.bf16.msra.mxu0 %v795
      %1006 = vmatprep.subr.bf16.mxu0 %v798
      %1007 = vmatpush1.bf16.msra.mxu0 %v797
      %1008 = vmatprep.subr.bf16.mxu0 %v800
      %1009 = vmatpush1.bf16.msra.mxu0 %v799
      %1010 = vmatprep.subr.bf16.mxu0 %v802
      %1011 = vmatpush1.bf16.msra.mxu0 %v801
      %1012 = vmatprep.subr.bf16.mxu0 %v804
      %1013 = vmatpush1.bf16.msra.mxu0 %v803
      %1014 = vmatprep.subr.bf16.mxu0 %v806
      %1015 = vmatpush1.bf16.msra.mxu0 %v805
      %1016 = vmatprep.subr.bf16.mxu0 %v808
      %1017 = vmatpush1.bf16.msra.mxu0 %v807
      %1018 = vmatprep.subr.bf16.mxu0 %v810
      %1019 = vmatpush1.bf16.msra.mxu0 %v809
      %1020 = vmatprep.subr.bf16.mxu0 %v812
      %1021 = vmatpush1.bf16.msra.mxu0 %v811
      %1022 = vmatprep.subr.bf16.mxu0 %v814
      %1023 = vmatpush1.bf16.msra.mxu0 %v813
      %1024 = vmatprep.subr.bf16.mxu0 %v816
      %1025 = vmatpush1.bf16.msra.mxu0 %v815
      %1026 = vmatprep.subr.bf16.mxu0 %v818
      %1027 = vmatpush1.bf16.msra.mxu0 %v817
      %1028 = vmatprep.mubr.bf16.mxu0 %v502
      %1029 = vmatmul.mubr.bf16.gmra.mrb[0].mxu0 %v501
      %v1030 = vpop.f32.mrb[0].mxu0
      %v1031 = vadd.f32 %v918, %v1030
      %v1032 = vpop.f32.mrb[0].mxu0
      %v1033 = vadd.f32 %v920, %v1032
      %v1034 = vpop.f32.mrb[0].mxu0
      %v1035 = vadd.f32 %v922, %v1034
      %v1036 = vpop.f32.mrb[0].mxu0
      %v1037 = vadd.f32 %v924, %v1036
      %1038 = vmatprep.mubr.bf16.mxu0 %v506
      %1039 = vmatmul.mubr.bf16.gmra.mrb[0].mxu0 %v505
      %v1040 = vpop.f32.mrb[0].mxu0
      %v1041 = vadd.f32 %v928, %v1040
      %v1042 = vpop.f32.mrb[0].mxu0
      %v1043 = vadd.f32 %v930, %v1042
      %v1044 = vpop.f32.mrb[0].mxu0
      %v1045 = vadd.f32 %v932, %v1044
      %v1046 = vpop.f32.mrb[0].mxu0
      %v1047 = vadd.f32 %v934, %v1046
      %1048 = vmatprep.mubr.bf16.mxu0 %v510
      %1049 = vmatmul.mubr.bf16.gmra.mrb[0].mxu0 %v509
      %v1050 = vpop.f32.mrb[0].mxu0
      %v1051 = vadd.f32 %v938, %v1050
      %v1052 = vpop.f32.mrb[0].mxu0
      %v1053 = vadd.f32 %v940, %v1052
      %v1054 = vpop.f32.mrb[0].mxu0
      %v1055 = vadd.f32 %v942, %v1054
      %v1056 = vpop.f32.mrb[0].mxu0
      %v1057 = vadd.f32 %v944, %v1056
      %1058 = vmatprep.mubr.bf16.mxu0 %v514
      %1059 = vmatmul.mubr.bf16.gmra.mrb[0].mxu0 %v513
      %v1060 = vpop.f32.mrb[0].mxu0
      %v1061 = vadd.f32 %v948, %v1060
      %v1062 = vpop.f32.mrb[0].mxu0
      %v1063 = vadd.f32 %v950, %v1062
      %v1064 = vpop.f32.mrb[0].mxu0
      %v1065 = vadd.f32 %v952, %v1064
      %v1066 = vpop.f32.mrb[0].mxu0
      %v1067 = vadd.f32 %v954, %v1066
      %1068 = vmatprep.mubr.bf16.mxu0 %v518
      %1069 = vmatmul.mubr.bf16.gmra.mrb[0].mxu0 %v517
      %v1070 = vpop.f32.mrb[0].mxu0
      %v1071 = vadd.f32 %v958, %v1070
      %v1072 = vpop.f32.mrb[0].mxu0
      %v1073 = vadd.f32 %v960, %v1072
      %v1074 = vpop.f32.mrb[0].mxu0
      %v1075 = vadd.f32 %v962, %v1074
      %v1076 = vpop.f32.mrb[0].mxu0
      %v1077 = vadd.f32 %v964, %v1076
      %1078 = vmatprep.mubr.bf16.mxu0 %v522
      %1079 = vmatmul.mubr.bf16.gmra.mrb[0].mxu0 %v521
      %v1080 = vpop.f32.mrb[0].mxu0
      %v1081 = vadd.f32 %v968, %v1080
      %v1082 = vpop.f32.mrb[0].mxu0
      %v1083 = vadd.f32 %v970, %v1082
      %v1084 = vpop.f32.mrb[0].mxu0
      %v1085 = vadd.f32 %v972, %v1084
      %v1086 = vpop.f32.mrb[0].mxu0
      %v1087 = vadd.f32 %v974, %v1086
      %1088 = vmatprep.mubr.bf16.mxu0 %v526
      %1089 = vmatmul.mubr.bf16.gmra.mrb[0].mxu0 %v525
      %v1090 = vpop.f32.mrb[0].mxu0
      %v1091 = vadd.f32 %v978, %v1090
      %v1092 = vpop.f32.mrb[0].mxu0
      %v1093 = vadd.f32 %v980, %v1092
      %v1094 = vpop.f32.mrb[0].mxu0
      %v1095 = vadd.f32 %v982, %v1094
      %v1096 = vpop.f32.mrb[0].mxu0
      %v1097 = vadd.f32 %v984, %v1096
      %1098 = vmatprep.mubr.bf16.mxu0 %v530
      %1099 = vmatmul.mubr.bf16.gmra.mrb[0].mxu0 %v529
      %v1100 = vpop.f32.mrb[0].mxu0
      %v1101 = vadd.f32 %v988, %v1100
      %v1102 = vpop.f32.mrb[0].mxu0
      %v1103 = vadd.f32 %v990, %v1102
      %v1104 = vpop.f32.mrb[0].mxu0
      %v1105 = vadd.f32 %v992, %v1104
      %v1106 = vpop.f32.mrb[0].mxu0
      %v1107 = vadd.f32 %v994, %v1106
      %1108 = vdwg.mxu0
      %v1109 = vadd.f32 %v275, %v1031
      %v1110 = vadd.f32 %v276, %v1033
      %v1111 = vadd.f32 %v277, %v1035
      %v1112 = vadd.f32 %v278, %v1037
      %v1113 = vadd.f32 %v279, %v1041
      %v1114 = vadd.f32 %v280, %v1043
      %v1115 = vadd.f32 %v281, %v1045
      %v1116 = vadd.f32 %v282, %v1047
      %v1117 = vadd.f32 %v283, %v1051
      %v1118 = vadd.f32 %v284, %v1053
      %v1119 = vadd.f32 %v285, %v1055
      %v1120 = vadd.f32 %v286, %v1057
      %v1121 = vadd.f32 %v287, %v1061
      %v1122 = vadd.f32 %v288, %v1063
      %v1123 = vadd.f32 %v289, %v1065
      %v1124 = vadd.f32 %v290, %v1067
      %v1125 = vadd.f32 %v291, %v1071
      %v1126 = vadd.f32 %v292, %v1073
      %v1127 = vadd.f32 %v293, %v1075
      %v1128 = vadd.f32 %v294, %v1077
      %v1129 = vadd.f32 %v295, %v1081
      %v1130 = vadd.f32 %v296, %v1083
      %v1131 = vadd.f32 %v297, %v1085
      %v1132 = vadd.f32 %v298, %v1087
      %v1133 = vadd.f32 %v299, %v1091
      %v1134 = vadd.f32 %v300, %v1093
      %v1135 = vadd.f32 %v301, %v1095
      %v1136 = vadd.f32 %v302, %v1097
      %v1137 = vadd.f32 %v303, %v1101
      %v1138 = vadd.f32 %v304, %v1103
      %v1139 = vadd.f32 %v305, %v1105
      %v1140 = vadd.f32 %v306, %v1107
      %1141 = vst [vmem:[#allocation2] sm:$0xff] %v1109
      %1142 = vst [vmem:[#allocation2 + $0x8] sm:$0xff] %v1110
      %1143 = vst [vmem:[#allocation2 + $0x10] sm:$0xff] %v1111
      %1144 = vst [vmem:[#allocation2 + $0x18] sm:$0xff] %v1112
      %1145 = vst [vmem:[#allocation2 + $0x20] sm:$0xff] %v1113
      %1146 = vst [vmem:[#allocation2 + $0x28] sm:$0xff] %v1114
      %1147 = vst [vmem:[#allocation2 + $0x30] sm:$0xff] %v1115
      %1148 = vst [vmem:[#allocation2 + $0x38] sm:$0xff] %v1116
      %1149 = vst [vmem:[#allocation2 + $0x40] sm:$0xff] %v1117
      %1150 = vst [vmem:[#allocation2 + $0x48] sm:$0xff] %v1118
      %1151 = vst [vmem:[#allocation2 + $0x50] sm:$0xff] %v1119
      %1152 = vst [vmem:[#allocation2 + $0x58] sm:$0xff] %v1120
      %1153 = vst [vmem:[#allocation2 + $0x60] sm:$0xff] %v1121
      %1154 = vst [vmem:[#allocation2 + $0x68] sm:$0xff] %v1122
      %1155 = vst [vmem:[#allocation2 + $0x70] sm:$0xff] %v1123
      %1156 = vst [vmem:[#allocation2 + $0x78] sm:$0xff] %v1124
      %1157 = vst [vmem:[#allocation2 + $0x80] sm:$0xff] %v1125
      %1158 = vst [vmem:[#allocation2 + $0x88] sm:$0xff] %v1126
      %1159 = vst [vmem:[#allocation2 + $0x90] sm:$0xff] %v1127
      %1160 = vst [vmem:[#allocation2 + $0x98] sm:$0xff] %v1128
      %1161 = vst [vmem:[#allocation2 + $0xa0] sm:$0xff] %v1129
      %1162 = vst [vmem:[#allocation2 + $0xa8] sm:$0xff] %v1130
      %1163 = vst [vmem:[#allocation2 + $0xb0] sm:$0xff] %v1131
      %1164 = vst [vmem:[#allocation2 + $0xb8] sm:$0xff] %v1132
      %1165 = vst [vmem:[#allocation2 + $0xc0] sm:$0xff] %v1133
      %1166 = vst [vmem:[#allocation2 + $0xc8] sm:$0xff] %v1134
      %1167 = vst [vmem:[#allocation2 + $0xd0] sm:$0xff] %v1135
      %1168 = vst [vmem:[#allocation2 + $0xd8] sm:$0xff] %v1136
      %1169 = vst [vmem:[#allocation2 + $0xe0] sm:$0xff] %v1137
      %1170 = vst [vmem:[#allocation2 + $0xe8] sm:$0xff] %v1138
      %1171 = vst [vmem:[#allocation2 + $0xf0] sm:$0xff] %v1139
      %1172 = vst [vmem:[#allocation2 + $0xf8] sm:$0xff] %v1140
      // Predicated region
      $region33: #{generator_forward.22} parent=27 // pred_check
        %p1173 = pneg %p239
      $region34: #{generator_forward.22} parent=27 // pred_check_branch
        %1175 = sbr.rel (%p1173) target = $region36
      $region35: #{generator_forward.22} parent=27 // pred_region
        %v1176 = vld [vmem:[#allocation2] sm:$0xff]
        %v1177 = vld [vmem:[#allocation2 + $0x8] sm:$0xff]
        %v1178 = vld [vmem:[#allocation2 + $0x10] sm:$0xff]
        %v1179 = vld [vmem:[#allocation2 + $0x18] sm:$0xff]
        %v1180 = vld [vmem:[#allocation2 + $0x20] sm:$0xff]
        %v1181 = vld [vmem:[#allocation2 + $0x28] sm:$0xff]
        %v1182 = vld [vmem:[#allocation2 + $0x30] sm:$0xff]
        %v1183 = vld [vmem:[#allocation2 + $0x38] sm:$0xff]
        %v1184 = vld [vmem:[#allocation2 + $0x40] sm:$0xff]
        %v1185 = vld [vmem:[#allocation2 + $0x48] sm:$0xff]
        %v1186 = vld [vmem:[#allocation2 + $0x50] sm:$0xff]
        %v1187 = vld [vmem:[#allocation2 + $0x58] sm:$0xff]
        %v1188 = vld [vmem:[#allocation2 + $0x60] sm:$0xff]
        %v1189 = vld [vmem:[#allocation2 + $0x68] sm:$0xff]
        %v1190 = vld [vmem:[#allocation2 + $0x70] sm:$0xff]
        %v1191 = vld [vmem:[#allocation2 + $0x78] sm:$0xff]
        %v1192 = vld [vmem:[#allocation2 + $0x80] sm:$0xff]
        %v1193 = vld [vmem:[#allocation2 + $0x88] sm:$0xff]
        %v1194 = vld [vmem:[#allocation2 + $0x90] sm:$0xff]
        %v1195 = vld [vmem:[#allocation2 + $0x98] sm:$0xff]
        %v1196 = vld [vmem:[#allocation2 + $0xa0] sm:$0xff]
        %v1197 = vld [vmem:[#allocation2 + $0xa8] sm:$0xff]
        %v1198 = vld [vmem:[#allocation2 + $0xb0] sm:$0xff]
        %v1199 = vld [vmem:[#allocation2 + $0xb8] sm:$0xff]
        %v1200 = vld [vmem:[#allocation2 + $0xc0] sm:$0xff]
        %v1201 = vld [vmem:[#allocation2 + $0xc8] sm:$0xff]
        %v1202 = vld [vmem:[#allocation2 + $0xd0] sm:$0xff]
        %v1203 = vld [vmem:[#allocation2 + $0xd8] sm:$0xff]
        %v1204 = vld [vmem:[#allocation2 + $0xe0] sm:$0xff]
        %v1205 = vld [vmem:[#allocation2 + $0xe8] sm:$0xff]
        %v1206 = vld [vmem:[#allocation2 + $0xf0] sm:$0xff]
        %v1207 = vld [vmem:[#allocation2 + $0xf8] sm:$0xff]
        %1208 = vst [vmem:[%s236] sm:$0xff] %v1176
        %1209 = vst [vmem:[%s236 + $0x8] sm:$0xff] %v1177
        %1210 = vst [vmem:[%s236 + $0x10] sm:$0xff] %v1178
        %1211 = vst [vmem:[%s236 + $0x18] sm:$0xff] %v1179
        %1212 = vst [vmem:[%s236 + $0x20] sm:$0xff] %v1180
        %1213 = vst [vmem:[%s236 + $0x28] sm:$0xff] %v1181
        %1214 = vst [vmem:[%s236 + $0x30] sm:$0xff] %v1182
        %1215 = vst [vmem:[%s236 + $0x38] sm:$0xff] %v1183
        %1216 = vst [vmem:[%s236 + $0x40] sm:$0xff] %v1184
        %1217 = vst [vmem:[%s236 + $0x48] sm:$0xff] %v1185
        %1218 = vst [vmem:[%s236 + $0x50] sm:$0xff] %v1186
        %1219 = vst [vmem:[%s236 + $0x58] sm:$0xff] %v1187
        %1220 = vst [vmem:[%s236 + $0x60] sm:$0xff] %v1188
        %1221 = vst [vmem:[%s236 + $0x68] sm:$0xff] %v1189
        %1222 = vst [vmem:[%s236 + $0x70] sm:$0xff] %v1190
        %1223 = vst [vmem:[%s236 + $0x78] sm:$0xff] %v1191
        %1224 = vst [vmem:[%s236 + $0x80] sm:$0xff] %v1192
        %1225 = vst [vmem:[%s236 + $0x88] sm:$0xff] %v1193
        %1226 = vst [vmem:[%s236 + $0x90] sm:$0xff] %v1194
        %1227 = vst [vmem:[%s236 + $0x98] sm:$0xff] %v1195
        %1228 = vst [vmem:[%s236 + $0xa0] sm:$0xff] %v1196
        %1229 = vst [vmem:[%s236 + $0xa8] sm:$0xff] %v1197
        %1230 = vst [vmem:[%s236 + $0xb0] sm:$0xff] %v1198
        %1231 = vst [vmem:[%s236 + $0xb8] sm:$0xff] %v1199
        %1232 = vst [vmem:[%s236 + $0xc0] sm:$0xff] %v1200
        %1233 = vst [vmem:[%s236 + $0xc8] sm:$0xff] %v1201
        %1234 = vst [vmem:[%s236 + $0xd0] sm:$0xff] %v1202
        %1235 = vst [vmem:[%s236 + $0xd8] sm:$0xff] %v1203
        %1236 = vst [vmem:[%s236 + $0xe0] sm:$0xff] %v1204
        %1237 = vst [vmem:[%s236 + $0xe8] sm:$0xff] %v1205
        %1238 = vst [vmem:[%s236 + $0xf0] sm:$0xff] %v1206
        %1239 = vst [vmem:[%s236 + $0xf8] sm:$0xff] %v1207
      $region36: #{generator_forward.22} parent=27 // pred_fallthru
        _
      %s1240 = smul.u32 16, %s18
      %s1241 = smul.u32 2, %s19
      %p1242 = scmp.lt.s32.totalorder %s1240, 79
      %s1243 = scalar_select %p1242, %s1240, 79
      %p1244 = scmp.lt.s32.totalorder %s1241, 1
      %s1245 = scalar_select %p1244, %s1241, 1
      %s1246 = smul.addr %s1243, 2
      %s1247 = sadd.s32 %s1245, %s1246
      %s1248 = smul.addr %s1247, 8
      %s1249 = scalar_lea.vmem %s2, %s1248
      // Predicated region
      $region37: #{generator_forward.22} parent=27 // pred_check
        %p1250 = pneg %p108
      $region38: #{generator_forward.22} parent=27 // pred_check_branch
        %1252 = sbr.rel (%p1250) target = $region40
      $region39: #{generator_forward.22} parent=27 // pred_region
        %s1253 = smul.u32 16, %s18
        %s1254 = smul.u32 2, %s19
      $region40: #{generator_forward.22} parent=27 // pred_fallthru
        _
    $region28: #{generator_forward.22} parent=5 // pred_fallthru
      _
    %p1255 = scmp.le.s32.totalorder 2, %s8
    // Predicated region
    $region41: #{generator_forward.22} parent=5 // pred_check
      %p1256 = pneg %p1255
    $region42: #{generator_forward.22} parent=5 // pred_check_branch
      %1258 = sbr.rel (%p1256) target = $region44
    $region43: #{generator_forward.22} parent=5 // pred_region
      %s1259 = ssub.s32 %s8, 2
      // Predicated region
      $region45: #{generator_forward.22} parent=43 // pred_check
        %p1260 = pneg %p114
      $region46: #{generator_forward.22} parent=43 // pred_check_branch
        %1262 = sbr.rel (%p1260) target = $region48
      $region47: #{generator_forward.22} parent=43 // pred_region
        %s1263 = smul.u32 16, %s21
        %s1264 = smul.u32 2, %s22
        %p1265 = scmp.lt.s32.totalorder %s1263, 79
        %s1266 = scalar_select %p1265, %s1263, 79
        %p1267 = scmp.lt.s32.totalorder %s1264, 1
        %s1268 = scalar_select %p1267, %s1264, 1
        %s1269 = smul.addr %s1266, 2
        %s1270 = sadd.s32 %s1268, %s1269
        %s1271 = smul.addr %s1270, 8
        %s1272 = scalar_lea.vmem %s2, %s1271
      $region48: #{generator_forward.22} parent=43 // pred_fallthru
        _
    $region44: #{generator_forward.22} parent=5 // pred_fallthru
      _
  $region6: #{generator_forward.22} parent=0 // loop_footer
    %s12 = sadd.s32 1, %s8
  $region7: #{generator_forward.22} parent=0 // loop_footer_branch
    %7 = sbr.rel target = $region3
  $region8: #{generator_forward.22} parent=0 // loop_exit
    _

// kernel: generator_forward.23
$region0: #{generator_forward.23}
  #allocation0 [shape = 'u32[]', space=smem, size = 0x4, offset = 0x4, fixed_abs, tag = 'smem constant byte address 0x4 - core index']
  #allocation1 [shape = 'u32[144,128]{1,0:T(1,128)}', space=vmem, size = 0x12000, scoped, tag = 'internal scratch']
  %s0 = inlined_call_operand.vmem [shape: f32[1024,128], index: 0, kind: input, shape index: {}]
  %s1 = inlined_call_operand.vmem [shape: f32[1,128], index: 1, kind: output, shape index: {0}]
  %s2 = inlined_call_operand.vmem [shape: f32[1,128], index: 2, kind: output, shape index: {1}]
  %3 = xla_tuple %s1, %s2
  %s4 = sld [smem:[#allocation0]]
  $region49: #{generator_forward.23} parent=0
    _
  %s6 = ssub.s32 1, %s4
  %s7 = scalar_select 0, %s6, %s4
  loop: start=0, step=1, limit=4
  $region2: #{generator_forward.23} parent=0 // loop_pre_header
    _
  $region3: #{generator_forward.23} parent=0 // loop_header
    %s9 = sphi 0, %s13
    %p10 = scmp.ge.s32.totalorder %s9, 4
    %s19 = sphi 0, %s21
    %s22 = sphi 0, %s19
    %s23 = sphi 0, %s22
    %s39 = sphi 0, %s23
    %s43 = sphi 0, %s43
    %s45 = sphi 0, %s43
    %s46 = sphi 0, %s45
    %s60 = sphi 0, %s46
    %s64 = sphi 0, %s64
    %s66 = sphi 0, %s64
    %s67 = sphi 0, %s66
    %s81 = sphi 0, %s67
  $region4: #{generator_forward.23} parent=0 // loop_header_branch
    %12 = sbr.rel (%p10) target = $region8
  $region5: #{generator_forward.23} parent=0 // loop_body
    %s14 = ssub.s32 %s9, 1
    %s15 = ssub.s32 %s9, 2
    %s16 = sadd.s32 %s9, 1
    %s17 = ssub.s32 %s9, %s16
    %p18 = scmp.eq.s32.totalorder %s17, 0
    %s20 = sadd.s32 %s19, 1
    %s21 = scalar_select %p18, %s19, %s20
    %p24 = pneg %p18
    %p25 = scmp.eq.s32.totalorder %s9, 1
    %p26 = por %p24, %p25
    %p27 = scmp.ne.s32.totalorder %s19, %s22
    %p28 = scmp.eq.s32.totalorder %s9, 0
    %p29 = por %p27, %p28
    %p30 = scmp.ne.s32.totalorder %s19, %s22
    %p31 = scmp.eq.s32.totalorder %s14, 1
    %p32 = por %p30, %p31
    %p33 = scmp.ne.s32.totalorder %s22, %s23
    %p34 = scmp.eq.s32.totalorder %s14, 0
    %p35 = por %p33, %p34
    %p36 = scmp.ne.s32.totalorder %s22, %s23
    %p37 = scmp.eq.s32.totalorder %s15, 1
    %p38 = por %p36, %p37
    %p40 = scmp.ne.s32.totalorder %s23, %s39
    %p41 = scmp.eq.s32.totalorder %s15, 0
    %p42 = por %p40, %p41
    %s44 = sadd.s32 %s43, 1
    %p47 = scmp.eq.s32.totalorder %s9, 1
    %p48 = scmp.ne.s32.totalorder %s43, %s45
    %p49 = scmp.eq.s32.totalorder %s9, 0
    %p50 = por %p48, %p49
    %p51 = scmp.ne.s32.totalorder %s43, %s45
    %p52 = scmp.eq.s32.totalorder %s14, 1
    %p53 = por %p51, %p52
    %p54 = scmp.ne.s32.totalorder %s45, %s46
    %p55 = scmp.eq.s32.totalorder %s14, 0
    %p56 = por %p54, %p55
    %p57 = scmp.ne.s32.totalorder %s45, %s46
    %p58 = scmp.eq.s32.totalorder %s15, 1
    %p59 = por %p57, %p58
    %p61 = scmp.ne.s32.totalorder %s46, %s60
    %p62 = scmp.eq.s32.totalorder %s15, 0
    %p63 = por %p61, %p62
    %s65 = sadd.s32 %s64, 1
    %p68 = scmp.eq.s32.totalorder %s9, 1
    %p69 = scmp.ne.s32.totalorder %s64, %s66
    %p70 = scmp.eq.s32.totalorder %s9, 0
    %p71 = por %p69, %p70
    %p72 = scmp.ne.s32.totalorder %s64, %s66
    %p73 = scmp.eq.s32.totalorder %s14, 1
    %p74 = por %p72, %p73
    %p75 = scmp.ne.s32.totalorder %s66, %s67
    %p76 = scmp.eq.s32.totalorder %s14, 0
    %p77 = por %p75, %p76
    %p78 = scmp.ne.s32.totalorder %s66, %s67
    %p79 = scmp.eq.s32.totalorder %s15, 1
    %p80 = por %p78, %p79
    %p82 = scmp.ne.s32.totalorder %s67, %s81
    %p83 = scmp.eq.s32.totalorder %s15, 0
    %p84 = por %p82, %p83
    %p85 = scmp.le.s32.totalorder 1, %s9
    %p86 = scmp.lt.s32.totalorder %s9, 3
    %p87 = pnand %p85, %p86
    %p88 = pneg %p87
    // Predicated region
    $region9: #{generator_forward.23} parent=5 // pred_check
      _
    $region10: #{generator_forward.23} parent=5 // pred_check_branch
      %90 = sbr.rel (%p87) target = $region12
    $region11: #{generator_forward.23} parent=5 // pred_region
      %s91 = ssub.s32 %s9, 1
    $region12: #{generator_forward.23} parent=5 // pred_fallthru
      _
    %p92 = scmp.lt.s32.totalorder %s9, 2
    // Predicated region
    $region13: #{generator_forward.23} parent=5 // pred_check
      %p93 = pneg %p92
    $region14: #{generator_forward.23} parent=5 // pred_check_branch
      %95 = sbr.rel (%p93) target = $region16
    $region15: #{generator_forward.23} parent=5 // pred_region
      // Predicated region
      $region17: #{generator_forward.23} parent=15 // pred_check
        %p96 = pneg %p29
      $region18: #{generator_forward.23} parent=15 // pred_check_branch
        %98 = sbr.rel (%p96) target = $region20
      $region19: #{generator_forward.23} parent=15 // pred_region
        %s99 = smul.u32 64, %s9
        %p100 = scmp.lt.s32.totalorder %s99, 127
        %s101 = scalar_select %p100, %s99, 127
        %s102 = smul.addr %s101, 8
        %s103 = scalar_lea.vmem %s0, %s102
        %s104 = smul.u32 64, %s9
      $region20: #{generator_forward.23} parent=15 // pred_fallthru
        _
    $region16: #{generator_forward.23} parent=5 // pred_fallthru
      _
    %p105 = scmp.le.s32.totalorder 1, %s9
    %p106 = scmp.lt.s32.totalorder %s9, 3
    %p107 = pnand %p105, %p106
    %p108 = pneg %p107
    // Predicated region
    $region21: #{generator_forward.23} parent=5 // pred_check
      _
    $region22: #{generator_forward.23} parent=5 // pred_check_branch
      %110 = sbr.rel (%p107) target = $region24
    $region23: #{generator_forward.23} parent=5 // pred_region
      %s111 = ssub.s32 %s9, 1
      %s112 = smul.u32 64, %s14
      %p113 = scmp.lt.s32.totalorder %s112, 127
      %s114 = scalar_select %p113, %s112, 127
      %s115 = smul.addr %s114, 8
      %s116 = scalar_lea.vmem %s0, %s115
      %p117 = pneg %p35
      %p118 = pneg %p32
      %p119 = pneg %p56
      %p120 = pneg %p53
      %p121 = pneg %p77
      %p122 = pneg %p74
      %s123 = smul.u32 64, %s14
      %p124 = scmp.lt.s32.totalorder %s123, 127
      %s125 = scalar_select %p124, %s123, 127
      %s126 = smul.addr %s125, 8
      %s127 = scalar_lea.vmem %s0, %s126
      %s128 = smul.u32 64, %s14
      %p129 = scmp.eq.s32.totalorder %s14, 0
      // Predicated region
      $region25: #{generator_forward.23} parent=23 // pred_check
        %p130 = pneg %p129
      $region26: #{generator_forward.23} parent=23 // pred_check_branch
        %132 = sbr.rel (%p130) target = $region28
      $region27: #{generator_forward.23} parent=23 // pred_region
        %133 = vst [vmem:[%s1] sm:$0x1] 0.0
        %134 = vst [vmem:[%s2] sm:$0x1] 0.0
      $region28: #{generator_forward.23} parent=23 // pred_fallthru
        _
      %v135 = vld [vmem:[%s127] sm:$0xff]
      %v136 = vld [vmem:[%s127 + $0x8] sm:$0xff]
      %v137 = vld [vmem:[%s127 + $0x10] sm:$0xff]
      %v138 = vld [vmem:[%s127 + $0x18] sm:$0xff]
      %v139 = vld [vmem:[%s127 + $0x20] sm:$0xff]
      %v140 = vld [vmem:[%s127 + $0x28] sm:$0xff]
      %v141 = vld [vmem:[%s127 + $0x30] sm:$0xff]
      %v142 = vld [vmem:[%s127 + $0x38] sm:$0xff]
      %v143 = vld [vmem:[%s127 + $0x40] sm:$0xff]
      %v144 = vld [vmem:[%s127 + $0x48] sm:$0xff]
      %v145 = vld [vmem:[%s127 + $0x50] sm:$0xff]
      %v146 = vld [vmem:[%s127 + $0x58] sm:$0xff]
      %v147 = vld [vmem:[%s127 + $0x60] sm:$0xff]
      %v148 = vld [vmem:[%s127 + $0x68] sm:$0xff]
      %v149 = vld [vmem:[%s127 + $0x70] sm:$0xff]
      %v150 = vld [vmem:[%s127 + $0x78] sm:$0xff]
      %v151 = vld [vmem:[%s127 + $0x80] sm:$0xff]
      %v152 = vld [vmem:[%s127 + $0x88] sm:$0xff]
      %v153 = vld [vmem:[%s127 + $0x90] sm:$0xff]
      %v154 = vld [vmem:[%s127 + $0x98] sm:$0xff]
      %v155 = vld [vmem:[%s127 + $0xa0] sm:$0xff]
      %v156 = vld [vmem:[%s127 + $0xa8] sm:$0xff]
      %v157 = vld [vmem:[%s127 + $0xb0] sm:$0xff]
      %v158 = vld [vmem:[%s127 + $0xb8] sm:$0xff]
      %v159 = vld [vmem:[%s127 + $0xc0] sm:$0xff]
      %v160 = vld [vmem:[%s127 + $0xc8] sm:$0xff]
      %v161 = vld [vmem:[%s127 + $0xd0] sm:$0xff]
      %v162 = vld [vmem:[%s127 + $0xd8] sm:$0xff]
      %v163 = vld [vmem:[%s127 + $0xe0] sm:$0xff]
      %v164 = vld [vmem:[%s127 + $0xe8] sm:$0xff]
      %v165 = vld [vmem:[%s127 + $0xf0] sm:$0xff]
      %v166 = vld [vmem:[%s127 + $0xf8] sm:$0xff]
      %v167 = vld [vmem:[%s127 + $0x100] sm:$0xff]
      %v168 = vld [vmem:[%s127 + $0x108] sm:$0xff]
      %v169 = vld [vmem:[%s127 + $0x110] sm:$0xff]
      %v170 = vld [vmem:[%s127 + $0x118] sm:$0xff]
      %v171 = vld [vmem:[%s127 + $0x120] sm:$0xff]
      %v172 = vld [vmem:[%s127 + $0x128] sm:$0xff]
      %v173 = vld [vmem:[%s127 + $0x130] sm:$0xff]
      %v174 = vld [vmem:[%s127 + $0x138] sm:$0xff]
      %v175 = vld [vmem:[%s127 + $0x140] sm:$0xff]
      %v176 = vld [vmem:[%s127 + $0x148] sm:$0xff]
      %v177 = vld [vmem:[%s127 + $0x150] sm:$0xff]
      %v178 = vld [vmem:[%s127 + $0x158] sm:$0xff]
      %v179 = vld [vmem:[%s127 + $0x160] sm:$0xff]
      %v180 = vld [vmem:[%s127 + $0x168] sm:$0xff]
      %v181 = vld [vmem:[%s127 + $0x170] sm:$0xff]
      %v182 = vld [vmem:[%s127 + $0x178] sm:$0xff]
      %v183 = vld [vmem:[%s127 + $0x180] sm:$0xff]
      %v184 = vld [vmem:[%s127 + $0x188] sm:$0xff]
      %v185 = vld [vmem:[%s127 + $0x190] sm:$0xff]
      %v186 = vld [vmem:[%s127 + $0x198] sm:$0xff]
      %v187 = vld [vmem:[%s127 + $0x1a0] sm:$0xff]
      %v188 = vld [vmem:[%s127 + $0x1a8] sm:$0xff]
      %v189 = vld [vmem:[%s127 + $0x1b0] sm:$0xff]
      %v190 = vld [vmem:[%s127 + $0x1b8] sm:$0xff]
      %v191 = vld [vmem:[%s127 + $0x1c0] sm:$0xff]
      %v192 = vld [vmem:[%s127 + $0x1c8] sm:$0xff]
      %v193 = vld [vmem:[%s127 + $0x1d0] sm:$0xff]
      %v194 = vld [vmem:[%s127 + $0x1d8] sm:$0xff]
      %v195 = vld [vmem:[%s127 + $0x1e0] sm:$0xff]
      %v196 = vld [vmem:[%s127 + $0x1e8] sm:$0xff]
      %v197 = vld [vmem:[%s127 + $0x1f0] sm:$0xff]
      %v198 = vld [vmem:[%s127 + $0x1f8] sm:$0xff]
      %v199 = vld [vmem:[%s1] sm:$0x1]
      %v200 = vadd.f32 %v135, %v136
      %v201 = vadd.f32 %v200, %v137
      %v202 = vadd.f32 %v201, %v138
      %v203 = vadd.f32 %v202, %v139
      %v204 = vadd.f32 %v203, %v140
      %v205 = vadd.f32 %v204, %v141
      %v206 = vadd.f32 %v205, %v142
      %v207 = vadd.f32 %v206, %v143
      %v208 = vadd.f32 %v207, %v144
      %v209 = vadd.f32 %v208, %v145
      %v210 = vadd.f32 %v209, %v146
      %v211 = vadd.f32 %v210, %v147
      %v212 = vadd.f32 %v211, %v148
      %v213 = vadd.f32 %v212, %v149
      %v214 = vadd.f32 %v213, %v150
      %v215 = vadd.f32 %v214, %v151
      %v216 = vadd.f32 %v215, %v152
      %v217 = vadd.f32 %v216, %v153
      %v218 = vadd.f32 %v217, %v154
      %v219 = vadd.f32 %v218, %v155
      %v220 = vadd.f32 %v219, %v156
      %v221 = vadd.f32 %v220, %v157
      %v222 = vadd.f32 %v221, %v158
      %v223 = vadd.f32 %v222, %v159
      %v224 = vadd.f32 %v223, %v160
      %v225 = vadd.f32 %v224, %v161
      %v226 = vadd.f32 %v225, %v162
      %v227 = vadd.f32 %v226, %v163
      %v228 = vadd.f32 %v227, %v164
      %v229 = vadd.f32 %v228, %v165
      %v230 = vadd.f32 %v229, %v166
      %v231 = vadd.f32 %v230, %v167
      %v232 = vadd.f32 %v231, %v168
      %v233 = vadd.f32 %v232, %v169
      %v234 = vadd.f32 %v233, %v170
      %v235 = vadd.f32 %v234, %v171
      %v236 = vadd.f32 %v235, %v172
      %v237 = vadd.f32 %v236, %v173
      %v238 = vadd.f32 %v237, %v174
      %v239 = vadd.f32 %v238, %v175
      %v240 = vadd.f32 %v239, %v176
      %v241 = vadd.f32 %v240, %v177
      %v242 = vadd.f32 %v241, %v178
      %v243 = vadd.f32 %v242, %v179
      %v244 = vadd.f32 %v243, %v180
      %v245 = vadd.f32 %v244, %v181
      %v246 = vadd.f32 %v245, %v182
      %v247 = vadd.f32 %v246, %v183
      %v248 = vadd.f32 %v247, %v184
      %v249 = vadd.f32 %v248, %v185
      %v250 = vadd.f32 %v249, %v186
      %v251 = vadd.f32 %v250, %v187
      %v252 = vadd.f32 %v251, %v188
      %v253 = vadd.f32 %v252, %v189
      %v254 = vadd.f32 %v253, %v190
      %v255 = vadd.f32 %v254, %v191
      %v256 = vadd.f32 %v255, %v192
      %v257 = vadd.f32 %v256, %v193
      %v258 = vadd.f32 %v257, %v194
      %v259 = vadd.f32 %v258, %v195
      %v260 = vadd.f32 %v259, %v196
      %v261 = vadd.f32 %v260, %v197
      %v262 = vadd.f32 %v261, %v198
      %v263 = vrot.slane %v262, 4
      %v264 = vadd.f32 %v262, %v263
      %v265 = vrot.slane %v264, 2
      %v266 = vadd.f32 %v264, %v265
      %v267 = vrot.slane %v266, 1
      %v268 = vadd.f32 %v266, %v267
      %v269 = vadd.f32 %v199, %v268
      %270 = vst [vmem:[%s1] sm:$0x1] %v269
      %v271 = vld [vmem:[%s2] sm:$0x1]
      %v272 = vmul.f32 %v135, %v135
      %v273 = vmul.f32 %v136, %v136
      %v274 = vmul.f32 %v137, %v137
      %v275 = vmul.f32 %v138, %v138
      %v276 = vmul.f32 %v139, %v139
      %v277 = vmul.f32 %v140, %v140
      %v278 = vmul.f32 %v141, %v141
      %v279 = vmul.f32 %v142, %v142
      %v280 = vmul.f32 %v143, %v143
      %v281 = vmul.f32 %v144, %v144
      %v282 = vmul.f32 %v145, %v145
      %v283 = vmul.f32 %v146, %v146
      %v284 = vmul.f32 %v147, %v147
      %v285 = vmul.f32 %v148, %v148
      %v286 = vmul.f32 %v149, %v149
      %v287 = vmul.f32 %v150, %v150
      %v288 = vmul.f32 %v151, %v151
      %v289 = vmul.f32 %v152, %v152
      %v290 = vmul.f32 %v153, %v153
      %v291 = vmul.f32 %v154, %v154
      %v292 = vmul.f32 %v155, %v155
      %v293 = vmul.f32 %v156, %v156
      %v294 = vmul.f32 %v157, %v157
      %v295 = vmul.f32 %v158, %v158
      %v296 = vmul.f32 %v159, %v159
      %v297 = vmul.f32 %v160, %v160
      %v298 = vmul.f32 %v161, %v161
      %v299 = vmul.f32 %v162, %v162
      %v300 = vmul.f32 %v163, %v163
      %v301 = vmul.f32 %v164, %v164
      %v302 = vmul.f32 %v165, %v165
      %v303 = vmul.f32 %v166, %v166
      %v304 = vmul.f32 %v167, %v167
      %v305 = vmul.f32 %v168, %v168
      %v306 = vmul.f32 %v169, %v169
      %v307 = vmul.f32 %v170, %v170
      %v308 = vmul.f32 %v171, %v171
      %v309 = vmul.f32 %v172, %v172
      %v310 = vmul.f32 %v173, %v173
      %v311 = vmul.f32 %v174, %v174
      %v312 = vmul.f32 %v175, %v175
      %v313 = vmul.f32 %v176, %v176
      %v314 = vmul.f32 %v177, %v177
      %v315 = vmul.f32 %v178, %v178
      %v316 = vmul.f32 %v179, %v179
      %v317 = vmul.f32 %v180, %v180
      %v318 = vmul.f32 %v181, %v181
      %v319 = vmul.f32 %v182, %v182
      %v320 = vmul.f32 %v183, %v183
      %v321 = vmul.f32 %v184, %v184
      %v322 = vmul.f32 %v185, %v185
      %v323 = vmul.f32 %v186, %v186
      %v324 = vmul.f32 %v187, %v187
      %v325 = vmul.f32 %v188, %v188
      %v326 = vmul.f32 %v189, %v189
      %v327 = vmul.f32 %v190, %v190
      %v328 = vmul.f32 %v191, %v191
      %v329 = vmul.f32 %v192, %v192
      %v330 = vmul.f32 %v193, %v193
      %v331 = vmul.f32 %v194, %v194
      %v332 = vmul.f32 %v195, %v195
      %v333 = vmul.f32 %v196, %v196
      %v334 = vmul.f32 %v197, %v197
      %v335 = vmul.f32 %v198, %v198
      %v336 = vadd.f32 %v272, %v273
      %v337 = vadd.f32 %v336, %v274
      %v338 = vadd.f32 %v337, %v275
      %v339 = vadd.f32 %v338, %v276
      %v340 = vadd.f32 %v339, %v277
      %v341 = vadd.f32 %v340, %v278
      %v342 = vadd.f32 %v341, %v279
      %v343 = vadd.f32 %v342, %v280
      %v344 = vadd.f32 %v343, %v281
      %v345 = vadd.f32 %v344, %v282
      %v346 = vadd.f32 %v345, %v283
      %v347 = vadd.f32 %v346, %v284
      %v348 = vadd.f32 %v347, %v285
      %v349 = vadd.f32 %v348, %v286
      %v350 = vadd.f32 %v349, %v287
      %v351 = vadd.f32 %v350, %v288
      %v352 = vadd.f32 %v351, %v289
      %v353 = vadd.f32 %v352, %v290
      %v354 = vadd.f32 %v353, %v291
      %v355 = vadd.f32 %v354, %v292
      %v356 = vadd.f32 %v355, %v293
      %v357 = vadd.f32 %v356, %v294
      %v358 = vadd.f32 %v357, %v295
      %v359 = vadd.f32 %v358, %v296
      %v360 = vadd.f32 %v359, %v297
      %v361 = vadd.f32 %v360, %v298
      %v362 = vadd.f32 %v361, %v299
      %v363 = vadd.f32 %v362, %v300
      %v364 = vadd.f32 %v363, %v301
      %v365 = vadd.f32 %v364, %v302
      %v366 = vadd.f32 %v365, %v303
      %v367 = vadd.f32 %v366, %v304
      %v368 = vadd.f32 %v367, %v305
      %v369 = vadd.f32 %v368, %v306
      %v370 = vadd.f32 %v369, %v307
      %v371 = vadd.f32 %v370, %v308
      %v372 = vadd.f32 %v371, %v309
      %v373 = vadd.f32 %v372, %v310
      %v374 = vadd.f32 %v373, %v311
      %v375 = vadd.f32 %v374, %v312
      %v376 = vadd.f32 %v375, %v313
      %v377 = vadd.f32 %v376, %v314
      %v378 = vadd.f32 %v377, %v315
      %v379 = vadd.f32 %v378, %v316
      %v380 = vadd.f32 %v379, %v317
      %v381 = vadd.f32 %v380, %v318
      %v382 = vadd.f32 %v381, %v319
      %v383 = vadd.f32 %v382, %v320
      %v384 = vadd.f32 %v383, %v321
      %v385 = vadd.f32 %v384, %v322
      %v386 = vadd.f32 %v385, %v323
      %v387 = vadd.f32 %v386, %v324
      %v388 = vadd.f32 %v387, %v325
      %v389 = vadd.f32 %v388, %v326
      %v390 = vadd.f32 %v389, %v327
      %v391 = vadd.f32 %v390, %v328
      %v392 = vadd.f32 %v391, %v329
      %v393 = vadd.f32 %v392, %v330
      %v394 = vadd.f32 %v393, %v331
      %v395 = vadd.f32 %v394, %v332
      %v396 = vadd.f32 %v395, %v333
      %v397 = vadd.f32 %v396, %v334
      %v398 = vadd.f32 %v397, %v335
      %v399 = vrot.slane %v398, 4
      %v400 = vadd.f32 %v398, %v399
      %v401 = vrot.slane %v400, 2
      %v402 = vadd.f32 %v400, %v401
      %v403 = vrot.slane %v402, 1
      %v404 = vadd.f32 %v402, %v403
      %v405 = vadd.f32 %v271, %v404
      %406 = vst [vmem:[%s2] sm:$0x1] %v405
      // Predicated region
      $region29: #{generator_forward.23} parent=23 // pred_check
        %p407 = pneg %p53
      $region30: #{generator_forward.23} parent=23 // pred_check_branch
        %409 = sbr.rel (%p407) target = $region32
      $region31: #{generator_forward.23} parent=23 // pred_region
        _
      $region32: #{generator_forward.23} parent=23 // pred_fallthru
        _
      // Predicated region
      $region33: #{generator_forward.23} parent=23 // pred_check
        %p410 = pneg %p74
      $region34: #{generator_forward.23} parent=23 // pred_check_branch
        %412 = sbr.rel (%p410) target = $region36
      $region35: #{generator_forward.23} parent=23 // pred_region
        _
      $region36: #{generator_forward.23} parent=23 // pred_fallthru
        _
      // Predicated region
      $region37: #{generator_forward.23} parent=23 // pred_check
        %p413 = pneg %p53
      $region38: #{generator_forward.23} parent=23 // pred_check_branch
        %415 = sbr.rel (%p413) target = $region40
      $region39: #{generator_forward.23} parent=23 // pred_region
        _
      $region40: #{generator_forward.23} parent=23 // pred_fallthru
        _
      // Predicated region
      $region41: #{generator_forward.23} parent=23 // pred_check
        %p416 = pneg %p74
      $region42: #{generator_forward.23} parent=23 // pred_check_branch
        %418 = sbr.rel (%p416) target = $region44
      $region43: #{generator_forward.23} parent=23 // pred_region
        _
      $region44: #{generator_forward.23} parent=23 // pred_fallthru
        _
    $region24: #{generator_forward.23} parent=5 // pred_fallthru
      _
    %p419 = scmp.le.s32.totalorder 2, %s9
    // Predicated region
    $region45: #{generator_forward.23} parent=5 // pred_check
      %p420 = pneg %p419
    $region46: #{generator_forward.23} parent=5 // pred_check_branch
      %422 = sbr.rel (%p420) target = $region48
    $region47: #{generator_forward.23} parent=5 // pred_region
      %s423 = ssub.s32 %s9, 2
    $region48: #{generator_forward.23} parent=5 // pred_fallthru
      _
  $region6: #{generator_forward.23} parent=0 // loop_footer
    %s13 = sadd.s32 1, %s9
  $region7: #{generator_forward.23} parent=0 // loop_footer_branch
    %8 = sbr.rel target = $region3
  $region8: #{generator_forward.23} parent=0 // loop_exit
    _

// kernel: tile.25
$region0: #{tile.25}
  #allocation0 [shape = 's32[1]{0}', space=sflag, size = 0x4, scoped, tag = 'scoped memory for tile.25']
  %s0 = inlined_call_operand.vmem [shape: f32[64], index: 0, kind: input, shape index: {}]
  %s1 = inlined_call_operand.vmem [shape: f32[2,64], index: 1, kind: output, shape index: {}]
  // Predicated region
  $region2: #{tile.25} parent=0 // pred_check
    _
  $region3: #{tile.25} parent=0 // pred_check_branch
    %3 = sbr.rel (0) target = $region5
  $region4: #{tile.25} parent=0 // pred_region
    _
  $region5: #{tile.25} parent=0 // pred_fallthru
    _
  %v4 = vld [vmem:[%s0] ss:$0 sm:$0xff]
  %5 = vst [vmem:[%s1] sm:$0x3] %v4

// kernel: tile.26
$region0: #{tile.26}
  %s0 = inlined_call_operand.vmem [shape: f32[2,64], index: 0, kind: input, shape index: {}]
  %s1 = inlined_call_operand.vmem [shape: f32[1,128], index: 1, kind: output, shape index: {}]
  $region1: #{tile.26} parent=0
    #allocation0 [shape = 'u8[4096]{0}', space=vmem, size = 0x1000, scoped, tag = 'scoped mem for output reshape']
    #allocation1 [shape = 'u8[4096]{0}', space=vmem, size = 0x1000, scoped, tag = 'scoped mem for input reshape']
    %s3 = sshllo.u32 0, 2
    %v4 = vld [vmem:[%s0] sm:%s3]
    %5 = vst [vmem:[#allocation1] sm:%s3] %v4
    %v6 = vld [vmem:[#allocation1] sm:$0x1]
    %vm7 = vcmask 523264
    %8 = vst.msk [vmem:[#allocation0] sm:$0x1] %vm7, %v6
    %s9 = scalar_lea.vmem [#allocation1], 1
    %v10 = vld [vmem:[%s9] sm:$0x1]
    %11 = vrot.lane.b32.xlu0 %v10, 64
    %v12 = vpop.permute.xlu0 %11
    %vm13 = vcmask 1048064
    %14 = vst.msk [vmem:[#allocation0] sm:$0x1] %vm13, %v12
    %s16 = sshllo.u32 0, 1
    %v18 = vld [vmem:[#allocation0] sm:%s16]
    %s19 = sshllo.u32 0, 1
    %20 = vst [vmem:[%s1] sm:%s19] %v18

// kernel: generator_forward.24
$region0: #{generator_forward.24}
  #allocation0 [shape = 'u32[]', space=smem, size = 0x4, offset = 0x4, fixed_abs, tag = 'smem constant byte address 0x4 - core index']
  #allocation1 [shape = 'u32[144,128]{1,0:T(1,128)}', space=vmem, size = 0x12000, scoped, tag = 'internal scratch']
  %s0 = inlined_call_operand.vmem [shape: f32[1024,128], index: 0, kind: input, shape index: {}]
  %s1 = inlined_call_operand.vmem [shape: f32[1,128], index: 1, kind: input, shape index: {}]
  %s2 = inlined_call_operand.vmem [shape: f32[1,128], index: 2, kind: input, shape index: {}]
  %s3 = inlined_call_operand.vmem [shape: bf16[1024,128], index: 3, kind: output, shape index: {}]
  %s4 = sld [smem:[#allocation0]]
  $region45: #{generator_forward.24} parent=0
    _
  %s6 = ssub.s32 1, %s4
  %s7 = scalar_select 0, %s6, %s4
  loop: start=0, step=1, limit=4
  $region2: #{generator_forward.24} parent=0 // loop_pre_header
    _
  $region3: #{generator_forward.24} parent=0 // loop_header
    %s9 = sphi 0, %s13
    %p10 = scmp.ge.s32.totalorder %s9, 4
    %s19 = sphi 0, %s21
    %s22 = sphi 0, %s19
    %s23 = sphi 0, %s22
    %s39 = sphi 0, %s23
    %s43 = sphi 0, %s43
    %s45 = sphi 0, %s43
    %s46 = sphi 0, %s45
    %s60 = sphi 0, %s46
    %s64 = sphi 0, %s64
    %s66 = sphi 0, %s64
    %s67 = sphi 0, %s66
    %s81 = sphi 0, %s67
    %s87 = sphi 0, %s89
    %s90 = sphi 0, %s87
    %s91 = sphi 0, %s90
    %s107 = sphi 0, %s91
  $region4: #{generator_forward.24} parent=0 // loop_header_branch
    %12 = sbr.rel (%p10) target = $region8
  $region5: #{generator_forward.24} parent=0 // loop_body
    %s14 = ssub.s32 %s9, 1
    %s15 = ssub.s32 %s9, 2
    %s16 = sadd.s32 %s9, 1
    %s17 = ssub.s32 %s9, %s16
    %p18 = scmp.eq.s32.totalorder %s17, 0
    %s20 = sadd.s32 %s19, 1
    %s21 = scalar_select %p18, %s19, %s20
    %p24 = pneg %p18
    %p25 = scmp.eq.s32.totalorder %s9, 1
    %p26 = por %p24, %p25
    %p27 = scmp.ne.s32.totalorder %s19, %s22
    %p28 = scmp.eq.s32.totalorder %s9, 0
    %p29 = por %p27, %p28
    %p30 = scmp.ne.s32.totalorder %s19, %s22
    %p31 = scmp.eq.s32.totalorder %s14, 1
    %p32 = por %p30, %p31
    %p33 = scmp.ne.s32.totalorder %s22, %s23
    %p34 = scmp.eq.s32.totalorder %s14, 0
    %p35 = por %p33, %p34
    %p36 = scmp.ne.s32.totalorder %s22, %s23
    %p37 = scmp.eq.s32.totalorder %s15, 1
    %p38 = por %p36, %p37
    %p40 = scmp.ne.s32.totalorder %s23, %s39
    %p41 = scmp.eq.s32.totalorder %s15, 0
    %p42 = por %p40, %p41
    %s44 = sadd.s32 %s43, 1
    %p47 = scmp.eq.s32.totalorder %s9, 1
    %p48 = scmp.ne.s32.totalorder %s43, %s45
    %p49 = scmp.eq.s32.totalorder %s9, 0
    %p50 = por %p48, %p49
    %p51 = scmp.ne.s32.totalorder %s43, %s45
    %p52 = scmp.eq.s32.totalorder %s14, 1
    %p53 = por %p51, %p52
    %p54 = scmp.ne.s32.totalorder %s45, %s46
    %p55 = scmp.eq.s32.totalorder %s14, 0
    %p56 = por %p54, %p55
    %p57 = scmp.ne.s32.totalorder %s45, %s46
    %p58 = scmp.eq.s32.totalorder %s15, 1
    %p59 = por %p57, %p58
    %p61 = scmp.ne.s32.totalorder %s46, %s60
    %p62 = scmp.eq.s32.totalorder %s15, 0
    %p63 = por %p61, %p62
    %s65 = sadd.s32 %s64, 1
    %p68 = scmp.eq.s32.totalorder %s9, 1
    %p69 = scmp.ne.s32.totalorder %s64, %s66
    %p70 = scmp.eq.s32.totalorder %s9, 0
    %p71 = por %p69, %p70
    %p72 = scmp.ne.s32.totalorder %s64, %s66
    %p73 = scmp.eq.s32.totalorder %s14, 1
    %p74 = por %p72, %p73
    %p75 = scmp.ne.s32.totalorder %s66, %s67
    %p76 = scmp.eq.s32.totalorder %s14, 0
    %p77 = por %p75, %p76
    %p78 = scmp.ne.s32.totalorder %s66, %s67
    %p79 = scmp.eq.s32.totalorder %s15, 1
    %p80 = por %p78, %p79
    %p82 = scmp.ne.s32.totalorder %s67, %s81
    %p83 = scmp.eq.s32.totalorder %s15, 0
    %p84 = por %p82, %p83
    %s85 = ssub.s32 %s9, %s16
    %p86 = scmp.eq.s32.totalorder %s85, 0
    %s88 = sadd.s32 %s87, 1
    %s89 = scalar_select %p86, %s87, %s88
    %p92 = pneg %p86
    %p93 = scmp.eq.s32.totalorder %s9, 1
    %p94 = por %p92, %p93
    %p95 = scmp.ne.s32.totalorder %s87, %s90
    %p96 = scmp.eq.s32.totalorder %s9, 0
    %p97 = por %p95, %p96
    %p98 = scmp.ne.s32.totalorder %s87, %s90
    %p99 = scmp.eq.s32.totalorder %s14, 1
    %p100 = por %p98, %p99
    %p101 = scmp.ne.s32.totalorder %s90, %s91
    %p102 = scmp.eq.s32.totalorder %s14, 0
    %p103 = por %p101, %p102
    %p104 = scmp.ne.s32.totalorder %s90, %s91
    %p105 = scmp.eq.s32.totalorder %s15, 1
    %p106 = por %p104, %p105
    %p108 = scmp.ne.s32.totalorder %s91, %s107
    %p109 = scmp.eq.s32.totalorder %s15, 0
    %p110 = por %p108, %p109
    %p111 = scmp.le.s32.totalorder 1, %s9
    %p112 = scmp.lt.s32.totalorder %s9, 3
    %p113 = pnand %p111, %p112
    %p114 = pneg %p113
    // Predicated region
    $region9: #{generator_forward.24} parent=5 // pred_check
      _
    $region10: #{generator_forward.24} parent=5 // pred_check_branch
      %116 = sbr.rel (%p113) target = $region12
    $region11: #{generator_forward.24} parent=5 // pred_region
      %s117 = ssub.s32 %s9, 1
      // Predicated region
      $region13: #{generator_forward.24} parent=11 // pred_check
        %p118 = pneg %p56
      $region14: #{generator_forward.24} parent=11 // pred_check_branch
        %120 = sbr.rel (%p118) target = $region16
      $region15: #{generator_forward.24} parent=11 // pred_region
        _
      $region16: #{generator_forward.24} parent=11 // pred_fallthru
        _
      // Predicated region
      $region17: #{generator_forward.24} parent=11 // pred_check
        %p121 = pneg %p77
      $region18: #{generator_forward.24} parent=11 // pred_check_branch
        %123 = sbr.rel (%p121) target = $region20
      $region19: #{generator_forward.24} parent=11 // pred_region
        _
      $region20: #{generator_forward.24} parent=11 // pred_fallthru
        _
    $region12: #{generator_forward.24} parent=5 // pred_fallthru
      _
    %p124 = scmp.lt.s32.totalorder %s9, 2
    // Predicated region
    $region21: #{generator_forward.24} parent=5 // pred_check
      %p125 = pneg %p124
    $region22: #{generator_forward.24} parent=5 // pred_check_branch
      %127 = sbr.rel (%p125) target = $region24
    $region23: #{generator_forward.24} parent=5 // pred_region
      // Predicated region
      $region25: #{generator_forward.24} parent=23 // pred_check
        %p128 = pneg %p29
      $region26: #{generator_forward.24} parent=23 // pred_check_branch
        %130 = sbr.rel (%p128) target = $region28
      $region27: #{generator_forward.24} parent=23 // pred_region
        %s131 = smul.u32 64, %s9
        %p132 = scmp.lt.s32.totalorder %s131, 127
        %s133 = scalar_select %p132, %s131, 127
        %s134 = smul.addr %s133, 8
        %s135 = scalar_lea.vmem %s0, %s134
        %s136 = smul.u32 64, %s9
      $region28: #{generator_forward.24} parent=23 // pred_fallthru
        _
    $region24: #{generator_forward.24} parent=5 // pred_fallthru
      _
    %p137 = scmp.le.s32.totalorder 1, %s9
    %p138 = scmp.lt.s32.totalorder %s9, 3
    %p139 = pnand %p137, %p138
    %p140 = pneg %p139
    // Predicated region
    $region29: #{generator_forward.24} parent=5 // pred_check
      _
    $region30: #{generator_forward.24} parent=5 // pred_check_branch
      %142 = sbr.rel (%p139) target = $region32
    $region31: #{generator_forward.24} parent=5 // pred_region
      %s143 = ssub.s32 %s9, 1
      %s144 = smul.u32 64, %s14
      %p145 = scmp.lt.s32.totalorder %s144, 127
      %s146 = scalar_select %p145, %s144, 127
      %s147 = smul.addr %s146, 8
      %s148 = scalar_lea.vmem %s0, %s147
      %p149 = pneg %p35
      %p150 = pneg %p32
      %p151 = pneg %p56
      %p152 = pneg %p53
      %p153 = pneg %p77
      %p154 = pneg %p74
      %p155 = pneg %p103
      %p156 = pneg %p100
      %s157 = smul.u32 64, %s14
      %p158 = scmp.lt.s32.totalorder %s157, 127
      %s159 = scalar_select %p158, %s157, 127
      %s160 = smul.addr %s159, 4
      %s161 = scalar_lea.vmem %s3, %s160
      %s162 = smul.u32 64, %s14
      %p163 = scmp.lt.s32.totalorder %s162, 127
      %s164 = scalar_select %p163, %s162, 127
      %s165 = smul.addr %s164, 8
      %s166 = scalar_lea.vmem %s0, %s165
      %s167 = smul.u32 64, %s14
      %s168 = smul.u32 64, %s14
      %p169 = scmp.lt.s32.totalorder %s168, 127
      %s170 = scalar_select %p169, %s168, 127
      %s171 = smul.addr %s170, 4
      %s172 = scalar_lea.vmem %s3, %s171
      %s173 = smul.u32 64, %s14
      %v174 = vld [vmem:[%s166] sm:$0xff]
      %v175 = vld [vmem:[%s166 + $0x8] sm:$0xff]
      %v176 = vld [vmem:[%s166 + $0x10] sm:$0xff]
      %v177 = vld [vmem:[%s166 + $0x18] sm:$0xff]
      %v178 = vld [vmem:[%s166 + $0x20] sm:$0xff]
      %v179 = vld [vmem:[%s166 + $0x28] sm:$0xff]
      %v180 = vld [vmem:[%s166 + $0x30] sm:$0xff]
      %v181 = vld [vmem:[%s166 + $0x38] sm:$0xff]
      %v182 = vld [vmem:[%s166 + $0x40] sm:$0xff]
      %v183 = vld [vmem:[%s166 + $0x48] sm:$0xff]
      %v184 = vld [vmem:[%s166 + $0x50] sm:$0xff]
      %v185 = vld [vmem:[%s166 + $0x58] sm:$0xff]
      %v186 = vld [vmem:[%s166 + $0x60] sm:$0xff]
      %v187 = vld [vmem:[%s166 + $0x68] sm:$0xff]
      %v188 = vld [vmem:[%s166 + $0x70] sm:$0xff]
      %v189 = vld [vmem:[%s166 + $0x78] sm:$0xff]
      %v190 = vld [vmem:[%s166 + $0x80] sm:$0xff]
      %v191 = vld [vmem:[%s166 + $0x88] sm:$0xff]
      %v192 = vld [vmem:[%s166 + $0x90] sm:$0xff]
      %v193 = vld [vmem:[%s166 + $0x98] sm:$0xff]
      %v194 = vld [vmem:[%s166 + $0xa0] sm:$0xff]
      %v195 = vld [vmem:[%s166 + $0xa8] sm:$0xff]
      %v196 = vld [vmem:[%s166 + $0xb0] sm:$0xff]
      %v197 = vld [vmem:[%s166 + $0xb8] sm:$0xff]
      %v198 = vld [vmem:[%s166 + $0xc0] sm:$0xff]
      %v199 = vld [vmem:[%s166 + $0xc8] sm:$0xff]
      %v200 = vld [vmem:[%s166 + $0xd0] sm:$0xff]
      %v201 = vld [vmem:[%s166 + $0xd8] sm:$0xff]
      %v202 = vld [vmem:[%s166 + $0xe0] sm:$0xff]
      %v203 = vld [vmem:[%s166 + $0xe8] sm:$0xff]
      %v204 = vld [vmem:[%s166 + $0xf0] sm:$0xff]
      %v205 = vld [vmem:[%s166 + $0xf8] sm:$0xff]
      %v206 = vld [vmem:[%s166 + $0x100] sm:$0xff]
      %v207 = vld [vmem:[%s166 + $0x108] sm:$0xff]
      %v208 = vld [vmem:[%s166 + $0x110] sm:$0xff]
      %v209 = vld [vmem:[%s166 + $0x118] sm:$0xff]
      %v210 = vld [vmem:[%s166 + $0x120] sm:$0xff]
      %v211 = vld [vmem:[%s166 + $0x128] sm:$0xff]
      %v212 = vld [vmem:[%s166 + $0x130] sm:$0xff]
      %v213 = vld [vmem:[%s166 + $0x138] sm:$0xff]
      %v214 = vld [vmem:[%s166 + $0x140] sm:$0xff]
      %v215 = vld [vmem:[%s166 + $0x148] sm:$0xff]
      %v216 = vld [vmem:[%s166 + $0x150] sm:$0xff]
      %v217 = vld [vmem:[%s166 + $0x158] sm:$0xff]
      %v218 = vld [vmem:[%s166 + $0x160] sm:$0xff]
      %v219 = vld [vmem:[%s166 + $0x168] sm:$0xff]
      %v220 = vld [vmem:[%s166 + $0x170] sm:$0xff]
      %v221 = vld [vmem:[%s166 + $0x178] sm:$0xff]
      %v222 = vld [vmem:[%s166 + $0x180] sm:$0xff]
      %v223 = vld [vmem:[%s166 + $0x188] sm:$0xff]
      %v224 = vld [vmem:[%s166 + $0x190] sm:$0xff]
      %v225 = vld [vmem:[%s166 + $0x198] sm:$0xff]
      %v226 = vld [vmem:[%s166 + $0x1a0] sm:$0xff]
      %v227 = vld [vmem:[%s166 + $0x1a8] sm:$0xff]
      %v228 = vld [vmem:[%s166 + $0x1b0] sm:$0xff]
      %v229 = vld [vmem:[%s166 + $0x1b8] sm:$0xff]
      %v230 = vld [vmem:[%s166 + $0x1c0] sm:$0xff]
      %v231 = vld [vmem:[%s166 + $0x1c8] sm:$0xff]
      %v232 = vld [vmem:[%s166 + $0x1d0] sm:$0xff]
      %v233 = vld [vmem:[%s166 + $0x1d8] sm:$0xff]
      %v234 = vld [vmem:[%s166 + $0x1e0] sm:$0xff]
      %v235 = vld [vmem:[%s166 + $0x1e8] sm:$0xff]
      %v236 = vld [vmem:[%s166 + $0x1f0] sm:$0xff]
      %v237 = vld [vmem:[%s166 + $0x1f8] sm:$0xff]
      %v238 = vld [vmem:[%s1] sm:$0x1]
      %v240 = vlaneseq
      %v241 = vshrl.u32 %v240, 7
      %v242 = vsub.s32 0, %v241
      %v243 = vrot.slane %v238, %v242
      %v245 = vmul.f32 %v174, %v243
      %v246 = vmul.f32 %v175, %v243
      %v247 = vmul.f32 %v176, %v243
      %v248 = vmul.f32 %v177, %v243
      %v249 = vmul.f32 %v178, %v243
      %v250 = vmul.f32 %v179, %v243
      %v251 = vmul.f32 %v180, %v243
      %v252 = vmul.f32 %v181, %v243
      %v253 = vmul.f32 %v182, %v243
      %v254 = vmul.f32 %v183, %v243
      %v255 = vmul.f32 %v184, %v243
      %v256 = vmul.f32 %v185, %v243
      %v257 = vmul.f32 %v186, %v243
      %v258 = vmul.f32 %v187, %v243
      %v259 = vmul.f32 %v188, %v243
      %v260 = vmul.f32 %v189, %v243
      %v261 = vmul.f32 %v190, %v243
      %v262 = vmul.f32 %v191, %v243
      %v263 = vmul.f32 %v192, %v243
      %v264 = vmul.f32 %v193, %v243
      %v265 = vmul.f32 %v194, %v243
      %v266 = vmul.f32 %v195, %v243
      %v267 = vmul.f32 %v196, %v243
      %v268 = vmul.f32 %v197, %v243
      %v269 = vmul.f32 %v198, %v243
      %v270 = vmul.f32 %v199, %v243
      %v271 = vmul.f32 %v200, %v243
      %v272 = vmul.f32 %v201, %v243
      %v273 = vmul.f32 %v202, %v243
      %v274 = vmul.f32 %v203, %v243
      %v275 = vmul.f32 %v204, %v243
      %v276 = vmul.f32 %v205, %v243
      %v277 = vmul.f32 %v206, %v243
      %v278 = vmul.f32 %v207, %v243
      %v279 = vmul.f32 %v208, %v243
      %v280 = vmul.f32 %v209, %v243
      %v281 = vmul.f32 %v210, %v243
      %v282 = vmul.f32 %v211, %v243
      %v283 = vmul.f32 %v212, %v243
      %v284 = vmul.f32 %v213, %v243
      %v285 = vmul.f32 %v214, %v243
      %v286 = vmul.f32 %v215, %v243
      %v287 = vmul.f32 %v216, %v243
      %v288 = vmul.f32 %v217, %v243
      %v289 = vmul.f32 %v218, %v243
      %v290 = vmul.f32 %v219, %v243
      %v291 = vmul.f32 %v220, %v243
      %v292 = vmul.f32 %v221, %v243
      %v293 = vmul.f32 %v222, %v243
      %v294 = vmul.f32 %v223, %v243
      %v295 = vmul.f32 %v224, %v243
      %v296 = vmul.f32 %v225, %v243
      %v297 = vmul.f32 %v226, %v243
      %v298 = vmul.f32 %v227, %v243
      %v299 = vmul.f32 %v228, %v243
      %v300 = vmul.f32 %v229, %v243
      %v301 = vmul.f32 %v230, %v243
      %v302 = vmul.f32 %v231, %v243
      %v303 = vmul.f32 %v232, %v243
      %v304 = vmul.f32 %v233, %v243
      %v305 = vmul.f32 %v234, %v243
      %v306 = vmul.f32 %v235, %v243
      %v307 = vmul.f32 %v236, %v243
      %v308 = vmul.f32 %v237, %v243
      %v309 = vld [vmem:[%s2] sm:$0x1]
      %v311 = vlaneseq
      %v312 = vshrl.u32 %v311, 7
      %v313 = vsub.s32 0, %v312
      %v314 = vrot.slane %v309, %v313
      %v316 = vadd.f32 %v245, %v314
      %v317 = vadd.f32 %v246, %v314
      %v318 = vadd.f32 %v247, %v314
      %v319 = vadd.f32 %v248, %v314
      %v320 = vadd.f32 %v249, %v314
      %v321 = vadd.f32 %v250, %v314
      %v322 = vadd.f32 %v251, %v314
      %v323 = vadd.f32 %v252, %v314
      %v324 = vadd.f32 %v253, %v314
      %v325 = vadd.f32 %v254, %v314
      %v326 = vadd.f32 %v255, %v314
      %v327 = vadd.f32 %v256, %v314
      %v328 = vadd.f32 %v257, %v314
      %v329 = vadd.f32 %v258, %v314
      %v330 = vadd.f32 %v259, %v314
      %v331 = vadd.f32 %v260, %v314
      %v332 = vadd.f32 %v261, %v314
      %v333 = vadd.f32 %v262, %v314
      %v334 = vadd.f32 %v263, %v314
      %v335 = vadd.f32 %v264, %v314
      %v336 = vadd.f32 %v265, %v314
      %v337 = vadd.f32 %v266, %v314
      %v338 = vadd.f32 %v267, %v314
      %v339 = vadd.f32 %v268, %v314
      %v340 = vadd.f32 %v269, %v314
      %v341 = vadd.f32 %v270, %v314
      %v342 = vadd.f32 %v271, %v314
      %v343 = vadd.f32 %v272, %v314
      %v344 = vadd.f32 %v273, %v314
      %v345 = vadd.f32 %v274, %v314
      %v346 = vadd.f32 %v275, %v314
      %v347 = vadd.f32 %v276, %v314
      %v348 = vadd.f32 %v277, %v314
      %v349 = vadd.f32 %v278, %v314
      %v350 = vadd.f32 %v279, %v314
      %v351 = vadd.f32 %v280, %v314
      %v352 = vadd.f32 %v281, %v314
      %v353 = vadd.f32 %v282, %v314
      %v354 = vadd.f32 %v283, %v314
      %v355 = vadd.f32 %v284, %v314
      %v356 = vadd.f32 %v285, %v314
      %v357 = vadd.f32 %v286, %v314
      %v358 = vadd.f32 %v287, %v314
      %v359 = vadd.f32 %v288, %v314
      %v360 = vadd.f32 %v289, %v314
      %v361 = vadd.f32 %v290, %v314
      %v362 = vadd.f32 %v291, %v314
      %v363 = vadd.f32 %v292, %v314
      %v364 = vadd.f32 %v293, %v314
      %v365 = vadd.f32 %v294, %v314
      %v366 = vadd.f32 %v295, %v314
      %v367 = vadd.f32 %v296, %v314
      %v368 = vadd.f32 %v297, %v314
      %v369 = vadd.f32 %v298, %v314
      %v370 = vadd.f32 %v299, %v314
      %v371 = vadd.f32 %v300, %v314
      %v372 = vadd.f32 %v301, %v314
      %v373 = vadd.f32 %v302, %v314
      %v374 = vadd.f32 %v303, %v314
      %v375 = vadd.f32 %v304, %v314
      %v376 = vadd.f32 %v305, %v314
      %v377 = vadd.f32 %v306, %v314
      %v378 = vadd.f32 %v307, %v314
      %v379 = vadd.f32 %v308, %v314
      %v380 = vmax.f32 %v316, 0.0
      %v381 = vmax.f32 %v317, 0.0
      %v382 = vmax.f32 %v318, 0.0
      %v383 = vmax.f32 %v319, 0.0
      %v384 = vmax.f32 %v320, 0.0
      %v385 = vmax.f32 %v321, 0.0
      %v386 = vmax.f32 %v322, 0.0
      %v387 = vmax.f32 %v323, 0.0
      %v388 = vmax.f32 %v324, 0.0
      %v389 = vmax.f32 %v325, 0.0
      %v390 = vmax.f32 %v326, 0.0
      %v391 = vmax.f32 %v327, 0.0
      %v392 = vmax.f32 %v328, 0.0
      %v393 = vmax.f32 %v329, 0.0
      %v394 = vmax.f32 %v330, 0.0
      %v395 = vmax.f32 %v331, 0.0
      %v396 = vmax.f32 %v332, 0.0
      %v397 = vmax.f32 %v333, 0.0
      %v398 = vmax.f32 %v334, 0.0
      %v399 = vmax.f32 %v335, 0.0
      %v400 = vmax.f32 %v336, 0.0
      %v401 = vmax.f32 %v337, 0.0
      %v402 = vmax.f32 %v338, 0.0
      %v403 = vmax.f32 %v339, 0.0
      %v404 = vmax.f32 %v340, 0.0
      %v405 = vmax.f32 %v341, 0.0
      %v406 = vmax.f32 %v342, 0.0
      %v407 = vmax.f32 %v343, 0.0
      %v408 = vmax.f32 %v344, 0.0
      %v409 = vmax.f32 %v345, 0.0
      %v410 = vmax.f32 %v346, 0.0
      %v411 = vmax.f32 %v347, 0.0
      %v412 = vmax.f32 %v348, 0.0
      %v413 = vmax.f32 %v349, 0.0
      %v414 = vmax.f32 %v350, 0.0
      %v415 = vmax.f32 %v351, 0.0
      %v416 = vmax.f32 %v352, 0.0
      %v417 = vmax.f32 %v353, 0.0
      %v418 = vmax.f32 %v354, 0.0
      %v419 = vmax.f32 %v355, 0.0
      %v420 = vmax.f32 %v356, 0.0
      %v421 = vmax.f32 %v357, 0.0
      %v422 = vmax.f32 %v358, 0.0
      %v423 = vmax.f32 %v359, 0.0
      %v424 = vmax.f32 %v360, 0.0
      %v425 = vmax.f32 %v361, 0.0
      %v426 = vmax.f32 %v362, 0.0
      %v427 = vmax.f32 %v363, 0.0
      %v428 = vmax.f32 %v364, 0.0
      %v429 = vmax.f32 %v365, 0.0
      %v430 = vmax.f32 %v366, 0.0
      %v431 = vmax.f32 %v367, 0.0
      %v432 = vmax.f32 %v368, 0.0
      %v433 = vmax.f32 %v369, 0.0
      %v434 = vmax.f32 %v370, 0.0
      %v435 = vmax.f32 %v371, 0.0
      %v436 = vmax.f32 %v372, 0.0
      %v437 = vmax.f32 %v373, 0.0
      %v438 = vmax.f32 %v374, 0.0
      %v439 = vmax.f32 %v375, 0.0
      %v440 = vmax.f32 %v376, 0.0
      %v441 = vmax.f32 %v377, 0.0
      %v442 = vmax.f32 %v378, 0.0
      %v443 = vmax.f32 %v379, 0.0
      %v444 = vpack.c.bf16 %v381, %v380
      %v445 = vpack.c.bf16 %v383, %v382
      %v446 = vpack.c.bf16 %v385, %v384
      %v447 = vpack.c.bf16 %v387, %v386
      %v448 = vpack.c.bf16 %v389, %v388
      %v449 = vpack.c.bf16 %v391, %v390
      %v450 = vpack.c.bf16 %v393, %v392
      %v451 = vpack.c.bf16 %v395, %v394
      %v452 = vpack.c.bf16 %v397, %v396
      %v453 = vpack.c.bf16 %v399, %v398
      %v454 = vpack.c.bf16 %v401, %v400
      %v455 = vpack.c.bf16 %v403, %v402
      %v456 = vpack.c.bf16 %v405, %v404
      %v457 = vpack.c.bf16 %v407, %v406
      %v458 = vpack.c.bf16 %v409, %v408
      %v459 = vpack.c.bf16 %v411, %v410
      %v460 = vpack.c.bf16 %v413, %v412
      %v461 = vpack.c.bf16 %v415, %v414
      %v462 = vpack.c.bf16 %v417, %v416
      %v463 = vpack.c.bf16 %v419, %v418
      %v464 = vpack.c.bf16 %v421, %v420
      %v465 = vpack.c.bf16 %v423, %v422
      %v466 = vpack.c.bf16 %v425, %v424
      %v467 = vpack.c.bf16 %v427, %v426
      %v468 = vpack.c.bf16 %v429, %v428
      %v469 = vpack.c.bf16 %v431, %v430
      %v470 = vpack.c.bf16 %v433, %v432
      %v471 = vpack.c.bf16 %v435, %v434
      %v472 = vpack.c.bf16 %v437, %v436
      %v473 = vpack.c.bf16 %v439, %v438
      %v474 = vpack.c.bf16 %v441, %v440
      %v475 = vpack.c.bf16 %v443, %v442
      %v508 = vunpack.c.l.b16 %v444
      %v509 = vunpack.c.h.b16 %v444
      %v510 = vunpack.c.l.b16 %v445
      %v511 = vunpack.c.h.b16 %v445
      %v512 = vunpack.c.l.b16 %v446
      %v513 = vunpack.c.h.b16 %v446
      %v514 = vunpack.c.l.b16 %v447
      %v515 = vunpack.c.h.b16 %v447
      %v516 = vunpack.c.l.b16 %v448
      %v517 = vunpack.c.h.b16 %v448
      %v518 = vunpack.c.l.b16 %v449
      %v519 = vunpack.c.h.b16 %v449
      %v520 = vunpack.c.l.b16 %v450
      %v521 = vunpack.c.h.b16 %v450
      %v522 = vunpack.c.l.b16 %v451
      %v523 = vunpack.c.h.b16 %v451
      %v524 = vunpack.c.l.b16 %v452
      %v525 = vunpack.c.h.b16 %v452
      %v526 = vunpack.c.l.b16 %v453
      %v527 = vunpack.c.h.b16 %v453
      %v528 = vunpack.c.l.b16 %v454
      %v529 = vunpack.c.h.b16 %v454
      %v530 = vunpack.c.l.b16 %v455
      %v531 = vunpack.c.h.b16 %v455
      %v532 = vunpack.c.l.b16 %v456
      %v533 = vunpack.c.h.b16 %v456
      %v534 = vunpack.c.l.b16 %v457
      %v535 = vunpack.c.h.b16 %v457
      %v536 = vunpack.c.l.b16 %v458
      %v537 = vunpack.c.h.b16 %v458
      %v538 = vunpack.c.l.b16 %v459
      %v539 = vunpack.c.h.b16 %v459
      %v540 = vunpack.c.l.b16 %v460
      %v541 = vunpack.c.h.b16 %v460
      %v542 = vunpack.c.l.b16 %v461
      %v543 = vunpack.c.h.b16 %v461
      %v544 = vunpack.c.l.b16 %v462
      %v545 = vunpack.c.h.b16 %v462
      %v546 = vunpack.c.l.b16 %v463
      %v547 = vunpack.c.h.b16 %v463
      %v548 = vunpack.c.l.b16 %v464
      %v549 = vunpack.c.h.b16 %v464
      %v550 = vunpack.c.l.b16 %v465
      %v551 = vunpack.c.h.b16 %v465
      %v552 = vunpack.c.l.b16 %v466
      %v553 = vunpack.c.h.b16 %v466
      %v554 = vunpack.c.l.b16 %v467
      %v555 = vunpack.c.h.b16 %v467
      %v556 = vunpack.c.l.b16 %v468
      %v557 = vunpack.c.h.b16 %v468
      %v558 = vunpack.c.l.b16 %v469
      %v559 = vunpack.c.h.b16 %v469
      %v560 = vunpack.c.l.b16 %v470
      %v561 = vunpack.c.h.b16 %v470
      %v562 = vunpack.c.l.b16 %v471
      %v563 = vunpack.c.h.b16 %v471
      %v564 = vunpack.c.l.b16 %v472
      %v565 = vunpack.c.h.b16 %v472
      %v566 = vunpack.c.l.b16 %v473
      %v567 = vunpack.c.h.b16 %v473
      %v568 = vunpack.c.l.b16 %v474
      %v569 = vunpack.c.h.b16 %v474
      %v570 = vunpack.c.l.b16 %v475
      %v571 = vunpack.c.h.b16 %v475
      %v572 = vpack.c.b16 %v508, %v508
      %v573 = vpack.c.b16 %v509, %v509
      %v574 = vpack.c.b16 %v510, %v510
      %v575 = vpack.c.b16 %v511, %v511
      %v576 = vpack.c.b16 %v512, %v512
      %v577 = vpack.c.b16 %v513, %v513
      %v578 = vpack.c.b16 %v514, %v514
      %v579 = vpack.c.b16 %v515, %v515
      %v580 = vpack.c.b16 %v516, %v516
      %v581 = vpack.c.b16 %v517, %v517
      %v582 = vpack.c.b16 %v518, %v518
      %v583 = vpack.c.b16 %v519, %v519
      %v584 = vpack.c.b16 %v520, %v520
      %v585 = vpack.c.b16 %v521, %v521
      %v586 = vpack.c.b16 %v522, %v522
      %v587 = vpack.c.b16 %v523, %v523
      %v588 = vpack.c.b16 %v524, %v524
      %v589 = vpack.c.b16 %v525, %v525
      %v590 = vpack.c.b16 %v526, %v526
      %v591 = vpack.c.b16 %v527, %v527
      %v592 = vpack.c.b16 %v528, %v528
      %v593 = vpack.c.b16 %v529, %v529
      %v594 = vpack.c.b16 %v530, %v530
      %v595 = vpack.c.b16 %v531, %v531
      %v596 = vpack.c.b16 %v532, %v532
      %v597 = vpack.c.b16 %v533, %v533
      %v598 = vpack.c.b16 %v534, %v534
      %v599 = vpack.c.b16 %v535, %v535
      %v600 = vpack.c.b16 %v536, %v536
      %v601 = vpack.c.b16 %v537, %v537
      %v602 = vpack.c.b16 %v538, %v538
      %v603 = vpack.c.b16 %v539, %v539
      %v604 = vpack.c.b16 %v540, %v540
      %v605 = vpack.c.b16 %v541, %v541
      %v606 = vpack.c.b16 %v542, %v542
      %v607 = vpack.c.b16 %v543, %v543
      %v608 = vpack.c.b16 %v544, %v544
      %v609 = vpack.c.b16 %v545, %v545
      %v610 = vpack.c.b16 %v546, %v546
      %v611 = vpack.c.b16 %v547, %v547
      %v612 = vpack.c.b16 %v548, %v548
      %v613 = vpack.c.b16 %v549, %v549
      %v614 = vpack.c.b16 %v550, %v550
      %v615 = vpack.c.b16 %v551, %v551
      %v616 = vpack.c.b16 %v552, %v552
      %v617 = vpack.c.b16 %v553, %v553
      %v618 = vpack.c.b16 %v554, %v554
      %v619 = vpack.c.b16 %v555, %v555
      %v620 = vpack.c.b16 %v556, %v556
      %v621 = vpack.c.b16 %v557, %v557
      %v622 = vpack.c.b16 %v558, %v558
      %v623 = vpack.c.b16 %v559, %v559
      %v624 = vpack.c.b16 %v560, %v560
      %v625 = vpack.c.b16 %v561, %v561
      %v626 = vpack.c.b16 %v562, %v562
      %v627 = vpack.c.b16 %v563, %v563
      %v628 = vpack.c.b16 %v564, %v564
      %v629 = vpack.c.b16 %v565, %v565
      %v630 = vpack.c.b16 %v566, %v566
      %v631 = vpack.c.b16 %v567, %v567
      %v632 = vpack.c.b16 %v568, %v568
      %v633 = vpack.c.b16 %v569, %v569
      %v634 = vpack.c.b16 %v570, %v570
      %v635 = vpack.c.b16 %v571, %v571
      %700 = vst [vmem:[%s172] sm:$0xf] %v572
      %701 = vst [vmem:[%s172 + $0x4] sm:$0xf] %v573
      %702 = vst [vmem:[%s172 + $0x8] sm:$0xf] %v574
      %703 = vst [vmem:[%s172 + $0xc] sm:$0xf] %v575
      %704 = vst [vmem:[%s172 + $0x10] sm:$0xf] %v576
      %705 = vst [vmem:[%s172 + $0x14] sm:$0xf] %v577
      %706 = vst [vmem:[%s172 + $0x18] sm:$0xf] %v578
      %707 = vst [vmem:[%s172 + $0x1c] sm:$0xf] %v579
      %708 = vst [vmem:[%s172 + $0x20] sm:$0xf] %v580
      %709 = vst [vmem:[%s172 + $0x24] sm:$0xf] %v581
      %710 = vst [vmem:[%s172 + $0x28] sm:$0xf] %v582
      %711 = vst [vmem:[%s172 + $0x2c] sm:$0xf] %v583
      %712 = vst [vmem:[%s172 + $0x30] sm:$0xf] %v584
      %713 = vst [vmem:[%s172 + $0x34] sm:$0xf] %v585
      %714 = vst [vmem:[%s172 + $0x38] sm:$0xf] %v586
      %715 = vst [vmem:[%s172 + $0x3c] sm:$0xf] %v587
      %716 = vst [vmem:[%s172 + $0x40] sm:$0xf] %v588
      %717 = vst [vmem:[%s172 + $0x44] sm:$0xf] %v589
      %718 = vst [vmem:[%s172 + $0x48] sm:$0xf] %v590
      %719 = vst [vmem:[%s172 + $0x4c] sm:$0xf] %v591
      %720 = vst [vmem:[%s172 + $0x50] sm:$0xf] %v592
      %721 = vst [vmem:[%s172 + $0x54] sm:$0xf] %v593
      %722 = vst [vmem:[%s172 + $0x58] sm:$0xf] %v594
      %723 = vst [vmem:[%s172 + $0x5c] sm:$0xf] %v595
      %724 = vst [vmem:[%s172 + $0x60] sm:$0xf] %v596
      %725 = vst [vmem:[%s172 + $0x64] sm:$0xf] %v597
      %726 = vst [vmem:[%s172 + $0x68] sm:$0xf] %v598
      %727 = vst [vmem:[%s172 + $0x6c] sm:$0xf] %v599
      %728 = vst [vmem:[%s172 + $0x70] sm:$0xf] %v600
      %729 = vst [vmem:[%s172 + $0x74] sm:$0xf] %v601
      %730 = vst [vmem:[%s172 + $0x78] sm:$0xf] %v602
      %731 = vst [vmem:[%s172 + $0x7c] sm:$0xf] %v603
      %732 = vst [vmem:[%s172 + $0x80] sm:$0xf] %v604
      %733 = vst [vmem:[%s172 + $0x84] sm:$0xf] %v605
      %734 = vst [vmem:[%s172 + $0x88] sm:$0xf] %v606
      %735 = vst [vmem:[%s172 + $0x8c] sm:$0xf] %v607
      %736 = vst [vmem:[%s172 + $0x90] sm:$0xf] %v608
      %737 = vst [vmem:[%s172 + $0x94] sm:$0xf] %v609
      %738 = vst [vmem:[%s172 + $0x98] sm:$0xf] %v610
      %739 = vst [vmem:[%s172 + $0x9c] sm:$0xf] %v611
      %740 = vst [vmem:[%s172 + $0xa0] sm:$0xf] %v612
      %741 = vst [vmem:[%s172 + $0xa4] sm:$0xf] %v613
      %742 = vst [vmem:[%s172 + $0xa8] sm:$0xf] %v614
      %743 = vst [vmem:[%s172 + $0xac] sm:$0xf] %v615
      %744 = vst [vmem:[%s172 + $0xb0] sm:$0xf] %v616
      %745 = vst [vmem:[%s172 + $0xb4] sm:$0xf] %v617
      %746 = vst [vmem:[%s172 + $0xb8] sm:$0xf] %v618
      %747 = vst [vmem:[%s172 + $0xbc] sm:$0xf] %v619
      %748 = vst [vmem:[%s172 + $0xc0] sm:$0xf] %v620
      %749 = vst [vmem:[%s172 + $0xc4] sm:$0xf] %v621
      %750 = vst [vmem:[%s172 + $0xc8] sm:$0xf] %v622
      %751 = vst [vmem:[%s172 + $0xcc] sm:$0xf] %v623
      %752 = vst [vmem:[%s172 + $0xd0] sm:$0xf] %v624
      %753 = vst [vmem:[%s172 + $0xd4] sm:$0xf] %v625
      %754 = vst [vmem:[%s172 + $0xd8] sm:$0xf] %v626
      %755 = vst [vmem:[%s172 + $0xdc] sm:$0xf] %v627
      %756 = vst [vmem:[%s172 + $0xe0] sm:$0xf] %v628
      %757 = vst [vmem:[%s172 + $0xe4] sm:$0xf] %v629
      %758 = vst [vmem:[%s172 + $0xe8] sm:$0xf] %v630
      %759 = vst [vmem:[%s172 + $0xec] sm:$0xf] %v631
      %760 = vst [vmem:[%s172 + $0xf0] sm:$0xf] %v632
      %761 = vst [vmem:[%s172 + $0xf4] sm:$0xf] %v633
      %762 = vst [vmem:[%s172 + $0xf8] sm:$0xf] %v634
      %763 = vst [vmem:[%s172 + $0xfc] sm:$0xf] %v635
      %s764 = smul.u32 64, %s14
      %p765 = scmp.lt.s32.totalorder %s764, 127
      %s766 = scalar_select %p765, %s764, 127
      %s767 = smul.addr %s766, 4
      %s768 = scalar_lea.vmem %s3, %s767
      // Predicated region
      $region33: #{generator_forward.24} parent=31 // pred_check
        %p769 = pneg %p100
      $region34: #{generator_forward.24} parent=31 // pred_check_branch
        %771 = sbr.rel (%p769) target = $region36
      $region35: #{generator_forward.24} parent=31 // pred_region
        %s772 = smul.u32 64, %s14
      $region36: #{generator_forward.24} parent=31 // pred_fallthru
        _
    $region32: #{generator_forward.24} parent=5 // pred_fallthru
      _
    %p773 = scmp.le.s32.totalorder 2, %s9
    // Predicated region
    $region37: #{generator_forward.24} parent=5 // pred_check
      %p774 = pneg %p773
    $region38: #{generator_forward.24} parent=5 // pred_check_branch
      %776 = sbr.rel (%p774) target = $region40
    $region39: #{generator_forward.24} parent=5 // pred_region
      %s777 = ssub.s32 %s9, 2
      // Predicated region
      $region41: #{generator_forward.24} parent=39 // pred_check
        %p778 = pneg %p106
      $region42: #{generator_forward.24} parent=39 // pred_check_branch
        %780 = sbr.rel (%p778) target = $region44
      $region43: #{generator_forward.24} parent=39 // pred_region
        %s781 = smul.u32 64, %s15
        %p782 = scmp.lt.s32.totalorder %s781, 127
        %s783 = scalar_select %p782, %s781, 127
        %s784 = smul.addr %s783, 4
        %s785 = scalar_lea.vmem %s3, %s784
      $region44: #{generator_forward.24} parent=39 // pred_fallthru
        _
    $region40: #{generator_forward.24} parent=5 // pred_fallthru
      _
  $region6: #{generator_forward.24} parent=0 // loop_footer
    %s13 = sadd.s32 1, %s9
  $region7: #{generator_forward.24} parent=0 // loop_footer_branch
    %8 = sbr.rel target = $region3
  $region8: #{generator_forward.24} parent=0 // loop_exit
    _

// kernel: generator_forward.25
$region0: #{generator_forward.25}
  #allocation0 [shape = 'u32[]', space=smem, size = 0x4, offset = 0x4, fixed_abs, tag = 'smem constant byte address 0x4 - core index']
  #allocation1 [shape = 'u32[144,128]{1,0:T(1,128)}', space=vmem, size = 0x12000, scoped, tag = 'internal scratch']
  #allocation2 [shape = 'f32[256,128]{1,0:T(8,128)}', space=vmem, size = 0x20000, scoped, tag = 'scratch operand']
  %s0 = inlined_call_operand.vmem [shape: bf16[2304,256], index: 0, kind: input, shape index: {}]
  %s1 = inlined_call_operand.vmem [shape: bf16[256,128], index: 1, kind: input, shape index: {}]
  %s2 = inlined_call_operand.vmem [shape: f32[2304,128], index: 2, kind: output, shape index: {}]
  %s3 = sld [smem:[#allocation0]]
  $region49: #{generator_forward.25} parent=0
    _
  %s5 = ssub.s32 1, %s3
  %s6 = scalar_select 0, %s5, %s3
  loop: start=0, step=1, limit=11
  $region2: #{generator_forward.25} parent=0 // loop_pre_header
    _
  $region3: #{generator_forward.25} parent=0 // loop_header
    %s8 = sphi 0, %s12
    %p9 = scmp.ge.s32.totalorder %s8, 11
    %s15 = sphi 0, %s34
    %s16 = sphi 0, %s30
    %s17 = sphi 0, %s26
    %s18 = sphi 0, %s15
    %s19 = sphi 0, %s16
    %s20 = sphi 0, %s17
    %s21 = sphi 0, %s18
    %s22 = sphi 0, %s19
    %s23 = sphi 0, %s20
    %s39 = sphi 0, %s41
    %s42 = sphi 0, %s39
    %s43 = sphi 0, %s42
    %s59 = sphi 0, %s43
    %s67 = sphi 0, %s69
    %s70 = sphi 0, %s67
    %s71 = sphi 0, %s70
    %s87 = sphi 0, %s71
    %s95 = sphi 0, %s97
    %s98 = sphi 0, %s95
    %s99 = sphi 0, %s98
    %s115 = sphi 0, %s99
  $region4: #{generator_forward.25} parent=0 // loop_header_branch
    %11 = sbr.rel (%p9) target = $region8
  $region5: #{generator_forward.25} parent=0 // loop_body
    %s13 = ssub.s32 %s8, 1
    %s14 = ssub.s32 %s8, 2
    %s24 = sadd.s32 1, %s17
    %p25 = scmp.ge.s32.totalorder %s24, 1
    %s26 = scalar_select %p25, 0, %s24
    %s27 = sadd.s32 1, %s16
    %s28 = scalar_select %p25, %s27, %s16
    %p29 = scmp.ge.s32.totalorder %s28, 1
    %s30 = scalar_select %p29, 0, %s28
    %s31 = sadd.s32 1, %s15
    %s32 = scalar_select %p29, %s31, %s15
    %p33 = scmp.ge.s32.totalorder %s32, 9
    %s34 = scalar_select %p33, 0, %s32
    %s35 = ssub.s32 %s15, %s34
    %s36 = ssub.s32 %s17, %s26
    %s37 = sor.u32 %s35, %s36
    %p38 = scmp.eq.s32.totalorder %s37, 0
    %s40 = sadd.s32 %s39, 1
    %s41 = scalar_select %p38, %s39, %s40
    %p44 = pneg %p38
    %p45 = scmp.eq.s32.totalorder %s8, 8
    %p46 = por %p44, %p45
    %p47 = scmp.ne.s32.totalorder %s39, %s42
    %p48 = scmp.eq.s32.totalorder %s8, 0
    %p49 = por %p47, %p48
    %p50 = scmp.ne.s32.totalorder %s39, %s42
    %p51 = scmp.eq.s32.totalorder %s13, 8
    %p52 = por %p50, %p51
    %p53 = scmp.ne.s32.totalorder %s42, %s43
    %p54 = scmp.eq.s32.totalorder %s13, 0
    %p55 = por %p53, %p54
    %p56 = scmp.ne.s32.totalorder %s42, %s43
    %p57 = scmp.eq.s32.totalorder %s14, 8
    %p58 = por %p56, %p57
    %p60 = scmp.ne.s32.totalorder %s43, %s59
    %p61 = scmp.eq.s32.totalorder %s14, 0
    %p62 = por %p60, %p61
    %s63 = ssub.s32 %s17, %s26
    %s64 = ssub.s32 %s16, %s30
    %s65 = sor.u32 %s63, %s64
    %p66 = scmp.eq.s32.totalorder %s65, 0
    %s68 = sadd.s32 %s67, 1
    %s69 = scalar_select %p66, %s67, %s68
    %p72 = pneg %p66
    %p73 = scmp.eq.s32.totalorder %s8, 8
    %p74 = por %p72, %p73
    %p75 = scmp.ne.s32.totalorder %s67, %s70
    %p76 = scmp.eq.s32.totalorder %s8, 0
    %p77 = por %p75, %p76
    %p78 = scmp.ne.s32.totalorder %s67, %s70
    %p79 = scmp.eq.s32.totalorder %s13, 8
    %p80 = por %p78, %p79
    %p81 = scmp.ne.s32.totalorder %s70, %s71
    %p82 = scmp.eq.s32.totalorder %s13, 0
    %p83 = por %p81, %p82
    %p84 = scmp.ne.s32.totalorder %s70, %s71
    %p85 = scmp.eq.s32.totalorder %s14, 8
    %p86 = por %p84, %p85
    %p88 = scmp.ne.s32.totalorder %s71, %s87
    %p89 = scmp.eq.s32.totalorder %s14, 0
    %p90 = por %p88, %p89
    %s91 = ssub.s32 %s15, %s34
    %s92 = ssub.s32 %s16, %s30
    %s93 = sor.u32 %s91, %s92
    %p94 = scmp.eq.s32.totalorder %s93, 0
    %s96 = sadd.s32 %s95, 1
    %s97 = scalar_select %p94, %s95, %s96
    %p100 = pneg %p94
    %p101 = scmp.eq.s32.totalorder %s8, 8
    %p102 = por %p100, %p101
    %p103 = scmp.ne.s32.totalorder %s95, %s98
    %p104 = scmp.eq.s32.totalorder %s8, 0
    %p105 = por %p103, %p104
    %p106 = scmp.ne.s32.totalorder %s95, %s98
    %p107 = scmp.eq.s32.totalorder %s13, 8
    %p108 = por %p106, %p107
    %p109 = scmp.ne.s32.totalorder %s98, %s99
    %p110 = scmp.eq.s32.totalorder %s13, 0
    %p111 = por %p109, %p110
    %p112 = scmp.ne.s32.totalorder %s98, %s99
    %p113 = scmp.eq.s32.totalorder %s14, 8
    %p114 = por %p112, %p113
    %p116 = scmp.ne.s32.totalorder %s99, %s115
    %p117 = scmp.eq.s32.totalorder %s14, 0
    %p118 = por %p116, %p117
    %p119 = scmp.le.s32.totalorder 1, %s8
    %p120 = scmp.lt.s32.totalorder %s8, 10
    %p121 = pnand %p119, %p120
    %p122 = pneg %p121
    // Predicated region
    $region9: #{generator_forward.25} parent=5 // pred_check
      _
    $region10: #{generator_forward.25} parent=5 // pred_check_branch
      %124 = sbr.rel (%p121) target = $region12
    $region11: #{generator_forward.25} parent=5 // pred_region
      %s125 = ssub.s32 %s8, 1
      // Predicated region
      $region13: #{generator_forward.25} parent=11 // pred_check
        %p126 = pneg %p83
      $region14: #{generator_forward.25} parent=11 // pred_check_branch
        %128 = sbr.rel (%p126) target = $region16
      $region15: #{generator_forward.25} parent=11 // pred_region
        %s129 = smul.u32 32, %s20
        %p130 = scmp.lt.s32.totalorder %s129, 31
        %s131 = scalar_select %p130, %s129, 31
        %p132 = scmp.lt.s32.totalorder %s19, 0
        %s133 = scalar_select %p132, %s19, 0
        %s134 = sadd.s32 %s133, %s131
        %s135 = smul.addr %s134, 4
        %s136 = scalar_lea.vmem %s1, %s135
        %s137 = smul.u32 32, %s20
      $region16: #{generator_forward.25} parent=11 // pred_fallthru
        _
    $region12: #{generator_forward.25} parent=5 // pred_fallthru
      _
    %p138 = scmp.lt.s32.totalorder %s8, 9
    // Predicated region
    $region17: #{generator_forward.25} parent=5 // pred_check
      %p139 = pneg %p138
    $region18: #{generator_forward.25} parent=5 // pred_check_branch
      %141 = sbr.rel (%p139) target = $region20
    $region19: #{generator_forward.25} parent=5 // pred_region
      // Predicated region
      $region21: #{generator_forward.25} parent=19 // pred_check
        %p142 = pneg %p49
      $region22: #{generator_forward.25} parent=19 // pred_check_branch
        %144 = sbr.rel (%p142) target = $region24
      $region23: #{generator_forward.25} parent=19 // pred_region
        %s145 = smul.u32 32, %s15
        %s146 = smul.u32 2, %s17
        %p147 = scmp.lt.s32.totalorder %s145, 287
        %s148 = scalar_select %p147, %s145, 287
        %p149 = scmp.lt.s32.totalorder %s146, 1
        %s150 = scalar_select %p149, %s146, 1
        %s151 = smul.addr %s148, 2
        %s152 = sadd.s32 %s150, %s151
        %s153 = smul.addr %s152, 4
        %s154 = scalar_lea.vmem %s0, %s153
        %s155 = smul.u32 32, %s15
        %s156 = smul.u32 2, %s17
      $region24: #{generator_forward.25} parent=19 // pred_fallthru
        _
    $region20: #{generator_forward.25} parent=5 // pred_fallthru
      _
    %p157 = scmp.le.s32.totalorder 1, %s8
    %p158 = scmp.lt.s32.totalorder %s8, 10
    %p159 = pnand %p157, %p158
    %p160 = pneg %p159
    // Predicated region
    $region25: #{generator_forward.25} parent=5 // pred_check
      _
    $region26: #{generator_forward.25} parent=5 // pred_check_branch
      %162 = sbr.rel (%p159) target = $region28
    $region27: #{generator_forward.25} parent=5 // pred_region
      %s163 = ssub.s32 %s8, 1
      %s164 = smul.u32 32, %s18
      %s165 = smul.u32 2, %s20
      %p166 = scmp.lt.s32.totalorder %s164, 287
      %s167 = scalar_select %p166, %s164, 287
      %p168 = scmp.lt.s32.totalorder %s165, 1
      %s169 = scalar_select %p168, %s165, 1
      %s170 = smul.addr %s167, 2
      %s171 = sadd.s32 %s169, %s170
      %s172 = smul.addr %s171, 4
      %s173 = scalar_lea.vmem %s0, %s172
      %p174 = pneg %p55
      %p175 = pneg %p52
      %s176 = smul.u32 32, %s20
      %p177 = scmp.lt.s32.totalorder %s176, 31
      %s178 = scalar_select %p177, %s176, 31
      %p179 = scmp.lt.s32.totalorder %s19, 0
      %s180 = scalar_select %p179, %s19, 0
      %s181 = sadd.s32 %s180, %s178
      %s182 = smul.addr %s181, 4
      %s183 = scalar_lea.vmem %s1, %s182
      %p184 = pneg %p83
      %p185 = pneg %p80
      %p186 = pneg %p111
      %p187 = pneg %p108
      %s188 = smul.u32 32, %s18
      %p189 = scmp.lt.s32.totalorder %s188, 287
      %s190 = scalar_select %p189, %s188, 287
      %p191 = scmp.lt.s32.totalorder %s19, 0
      %s192 = scalar_select %p191, %s19, 0
      %s193 = sadd.s32 %s192, %s190
      %s194 = smul.addr %s193, 8
      %s195 = scalar_lea.vmem %s2, %s194
      %s196 = smul.u32 32, %s18
      %s197 = smul.u32 2, %s20
      %p198 = scmp.lt.s32.totalorder %s196, 287
      %s199 = scalar_select %p198, %s196, 287
      %p200 = scmp.lt.s32.totalorder %s197, 1
      %s201 = scalar_select %p200, %s197, 1
      %s202 = smul.addr %s199, 2
      %s203 = sadd.s32 %s201, %s202
      %s204 = smul.addr %s203, 4
      %s205 = scalar_lea.vmem %s0, %s204
      %s206 = smul.u32 32, %s18
      %s207 = smul.u32 2, %s20
      %s208 = smul.u32 32, %s20
      %p209 = scmp.lt.s32.totalorder %s208, 31
      %s210 = scalar_select %p209, %s208, 31
      %p211 = scmp.lt.s32.totalorder %s19, 0
      %s212 = scalar_select %p211, %s19, 0
      %s213 = sadd.s32 %s212, %s210
      %s214 = smul.addr %s213, 4
      %s215 = scalar_lea.vmem %s1, %s214
      %s216 = smul.u32 32, %s20
      %s217 = smul.u32 32, %s18
      %p218 = scmp.lt.s32.totalorder %s217, 287
      %s219 = scalar_select %p218, %s217, 287
      %p220 = scmp.lt.s32.totalorder %s19, 0
      %s221 = scalar_select %p220, %s19, 0
      %s222 = sadd.s32 %s221, %s219
      %s223 = smul.addr %s222, 8
      %s224 = scalar_lea.vmem %s2, %s223
      %s225 = smul.u32 32, %s18
      %p227 = scmp.eq.s32.totalorder %s20, 0
      // Predicated region
      $region29: #{generator_forward.25} parent=27 // pred_check
        %p228 = pneg %p227
      $region30: #{generator_forward.25} parent=27 // pred_check_branch
        %230 = sbr.rel (%p228) target = $region32
      $region31: #{generator_forward.25} parent=27 // pred_region
        %231 = vst [vmem:[#allocation2] sm:$0xff] 0.0
        %232 = vst [vmem:[#allocation2 + $0x8] sm:$0xff] 0.0
        %233 = vst [vmem:[#allocation2 + $0x10] sm:$0xff] 0.0
        %234 = vst [vmem:[#allocation2 + $0x18] sm:$0xff] 0.0
        %235 = vst [vmem:[#allocation2 + $0x20] sm:$0xff] 0.0
        %236 = vst [vmem:[#allocation2 + $0x28] sm:$0xff] 0.0
        %237 = vst [vmem:[#allocation2 + $0x30] sm:$0xff] 0.0
        %238 = vst [vmem:[#allocation2 + $0x38] sm:$0xff] 0.0
        %239 = vst [vmem:[#allocation2 + $0x40] sm:$0xff] 0.0
        %240 = vst [vmem:[#allocation2 + $0x48] sm:$0xff] 0.0
        %241 = vst [vmem:[#allocation2 + $0x50] sm:$0xff] 0.0
        %242 = vst [vmem:[#allocation2 + $0x58] sm:$0xff] 0.0
        %243 = vst [vmem:[#allocation2 + $0x60] sm:$0xff] 0.0
        %244 = vst [vmem:[#allocation2 + $0x68] sm:$0xff] 0.0
        %245 = vst [vmem:[#allocation2 + $0x70] sm:$0xff] 0.0
        %246 = vst [vmem:[#allocation2 + $0x78] sm:$0xff] 0.0
        %247 = vst [vmem:[#allocation2 + $0x80] sm:$0xff] 0.0
        %248 = vst [vmem:[#allocation2 + $0x88] sm:$0xff] 0.0
        %249 = vst [vmem:[#allocation2 + $0x90] sm:$0xff] 0.0
        %250 = vst [vmem:[#allocation2 + $0x98] sm:$0xff] 0.0
        %251 = vst [vmem:[#allocation2 + $0xa0] sm:$0xff] 0.0
        %252 = vst [vmem:[#allocation2 + $0xa8] sm:$0xff] 0.0
        %253 = vst [vmem:[#allocation2 + $0xb0] sm:$0xff] 0.0
        %254 = vst [vmem:[#allocation2 + $0xb8] sm:$0xff] 0.0
        %255 = vst [vmem:[#allocation2 + $0xc0] sm:$0xff] 0.0
        %256 = vst [vmem:[#allocation2 + $0xc8] sm:$0xff] 0.0
        %257 = vst [vmem:[#allocation2 + $0xd0] sm:$0xff] 0.0
        %258 = vst [vmem:[#allocation2 + $0xd8] sm:$0xff] 0.0
        %259 = vst [vmem:[#allocation2 + $0xe0] sm:$0xff] 0.0
        %260 = vst [vmem:[#allocation2 + $0xe8] sm:$0xff] 0.0
        %261 = vst [vmem:[#allocation2 + $0xf0] sm:$0xff] 0.0
        %262 = vst [vmem:[#allocation2 + $0xf8] sm:$0xff] 0.0
      $region32: #{generator_forward.25} parent=27 // pred_fallthru
        _
      %v263 = vld [vmem:[#allocation2] sm:$0xff]
      %v264 = vld [vmem:[#allocation2 + $0x8] sm:$0xff]
      %v265 = vld [vmem:[#allocation2 + $0x10] sm:$0xff]
      %v266 = vld [vmem:[#allocation2 + $0x18] sm:$0xff]
      %v267 = vld [vmem:[#allocation2 + $0x20] sm:$0xff]
      %v268 = vld [vmem:[#allocation2 + $0x28] sm:$0xff]
      %v269 = vld [vmem:[#allocation2 + $0x30] sm:$0xff]
      %v270 = vld [vmem:[#allocation2 + $0x38] sm:$0xff]
      %v271 = vld [vmem:[#allocation2 + $0x40] sm:$0xff]
      %v272 = vld [vmem:[#allocation2 + $0x48] sm:$0xff]
      %v273 = vld [vmem:[#allocation2 + $0x50] sm:$0xff]
      %v274 = vld [vmem:[#allocation2 + $0x58] sm:$0xff]
      %v275 = vld [vmem:[#allocation2 + $0x60] sm:$0xff]
      %v276 = vld [vmem:[#allocation2 + $0x68] sm:$0xff]
      %v277 = vld [vmem:[#allocation2 + $0x70] sm:$0xff]
      %v278 = vld [vmem:[#allocation2 + $0x78] sm:$0xff]
      %v279 = vld [vmem:[#allocation2 + $0x80] sm:$0xff]
      %v280 = vld [vmem:[#allocation2 + $0x88] sm:$0xff]
      %v281 = vld [vmem:[#allocation2 + $0x90] sm:$0xff]
      %v282 = vld [vmem:[#allocation2 + $0x98] sm:$0xff]
      %v283 = vld [vmem:[#allocation2 + $0xa0] sm:$0xff]
      %v284 = vld [vmem:[#allocation2 + $0xa8] sm:$0xff]
      %v285 = vld [vmem:[#allocation2 + $0xb0] sm:$0xff]
      %v286 = vld [vmem:[#allocation2 + $0xb8] sm:$0xff]
      %v287 = vld [vmem:[#allocation2 + $0xc0] sm:$0xff]
      %v288 = vld [vmem:[#allocation2 + $0xc8] sm:$0xff]
      %v289 = vld [vmem:[#allocation2 + $0xd0] sm:$0xff]
      %v290 = vld [vmem:[#allocation2 + $0xd8] sm:$0xff]
      %v291 = vld [vmem:[#allocation2 + $0xe0] sm:$0xff]
      %v292 = vld [vmem:[#allocation2 + $0xe8] sm:$0xff]
      %v293 = vld [vmem:[#allocation2 + $0xf0] sm:$0xff]
      %v294 = vld [vmem:[#allocation2 + $0xf8] sm:$0xff]
      %v295 = vld [vmem:[%s205] sm:$0xff]
      %v296 = vld [vmem:[%s205 + $0x8] sm:$0xff]
      %v297 = vld [vmem:[%s205 + $0x10] sm:$0xff]
      %v298 = vld [vmem:[%s205 + $0x18] sm:$0xff]
      %v299 = vld [vmem:[%s205 + $0x20] sm:$0xff]
      %v300 = vld [vmem:[%s205 + $0x28] sm:$0xff]
      %v301 = vld [vmem:[%s205 + $0x30] sm:$0xff]
      %v302 = vld [vmem:[%s205 + $0x38] sm:$0xff]
      %v303 = vld [vmem:[%s205 + $0x40] sm:$0xff]
      %v304 = vld [vmem:[%s205 + $0x48] sm:$0xff]
      %v305 = vld [vmem:[%s205 + $0x50] sm:$0xff]
      %v306 = vld [vmem:[%s205 + $0x58] sm:$0xff]
      %v307 = vld [vmem:[%s205 + $0x60] sm:$0xff]
      %v308 = vld [vmem:[%s205 + $0x68] sm:$0xff]
      %v309 = vld [vmem:[%s205 + $0x70] sm:$0xff]
      %v310 = vld [vmem:[%s205 + $0x78] sm:$0xff]
      %v311 = vld [vmem:[%s205 + $0x80] sm:$0xff]
      %v312 = vld [vmem:[%s205 + $0x88] sm:$0xff]
      %v313 = vld [vmem:[%s205 + $0x90] sm:$0xff]
      %v314 = vld [vmem:[%s205 + $0x98] sm:$0xff]
      %v315 = vld [vmem:[%s205 + $0xa0] sm:$0xff]
      %v316 = vld [vmem:[%s205 + $0xa8] sm:$0xff]
      %v317 = vld [vmem:[%s205 + $0xb0] sm:$0xff]
      %v318 = vld [vmem:[%s205 + $0xb8] sm:$0xff]
      %v319 = vld [vmem:[%s205 + $0xc0] sm:$0xff]
      %v320 = vld [vmem:[%s205 + $0xc8] sm:$0xff]
      %v321 = vld [vmem:[%s205 + $0xd0] sm:$0xff]
      %v322 = vld [vmem:[%s205 + $0xd8] sm:$0xff]
      %v323 = vld [vmem:[%s205 + $0xe0] sm:$0xff]
      %v324 = vld [vmem:[%s205 + $0xe8] sm:$0xff]
      %v325 = vld [vmem:[%s205 + $0xf0] sm:$0xff]
      %v326 = vld [vmem:[%s205 + $0xf8] sm:$0xff]
      %v327 = vld [vmem:[%s215] sm:$0xf]
      %v328 = vld [vmem:[%s215 + $0x4] sm:$0xf]
      %v329 = vld [vmem:[%s215 + $0x8] sm:$0xf]
      %v330 = vld [vmem:[%s215 + $0xc] sm:$0xf]
      %v331 = vld [vmem:[%s215 + $0x10] sm:$0xf]
      %v332 = vld [vmem:[%s215 + $0x14] sm:$0xf]
      %v333 = vld [vmem:[%s215 + $0x18] sm:$0xf]
      %v334 = vld [vmem:[%s215 + $0x1c] sm:$0xf]
      %v335 = vld [vmem:[%s215 + $0x20] sm:$0xf]
      %v336 = vld [vmem:[%s215 + $0x24] sm:$0xf]
      %v337 = vld [vmem:[%s215 + $0x28] sm:$0xf]
      %v338 = vld [vmem:[%s215 + $0x2c] sm:$0xf]
      %v339 = vld [vmem:[%s215 + $0x30] sm:$0xf]
      %v340 = vld [vmem:[%s215 + $0x34] sm:$0xf]
      %v341 = vld [vmem:[%s215 + $0x38] sm:$0xf]
      %v342 = vld [vmem:[%s215 + $0x3c] sm:$0xf]
      %v343 = vld [vmem:[%s215 + $0x40] sm:$0xf]
      %v344 = vld [vmem:[%s215 + $0x44] sm:$0xf]
      %v345 = vld [vmem:[%s215 + $0x48] sm:$0xf]
      %v346 = vld [vmem:[%s215 + $0x4c] sm:$0xf]
      %v347 = vld [vmem:[%s215 + $0x50] sm:$0xf]
      %v348 = vld [vmem:[%s215 + $0x54] sm:$0xf]
      %v349 = vld [vmem:[%s215 + $0x58] sm:$0xf]
      %v350 = vld [vmem:[%s215 + $0x5c] sm:$0xf]
      %v351 = vld [vmem:[%s215 + $0x60] sm:$0xf]
      %v352 = vld [vmem:[%s215 + $0x64] sm:$0xf]
      %v353 = vld [vmem:[%s215 + $0x68] sm:$0xf]
      %v354 = vld [vmem:[%s215 + $0x6c] sm:$0xf]
      %v355 = vld [vmem:[%s215 + $0x70] sm:$0xf]
      %v356 = vld [vmem:[%s215 + $0x74] sm:$0xf]
      %v357 = vld [vmem:[%s215 + $0x78] sm:$0xf]
      %v358 = vld [vmem:[%s215 + $0x7c] sm:$0xf]
      %v391 = vunpack.c.l.b16 %v295
      %v392 = vunpack.c.h.b16 %v295
      %v393 = vunpack.c.l.b16 %v296
      %v394 = vunpack.c.h.b16 %v296
      %v395 = vunpack.c.l.b16 %v297
      %v396 = vunpack.c.h.b16 %v297
      %v397 = vunpack.c.l.b16 %v298
      %v398 = vunpack.c.h.b16 %v298
      %v399 = vunpack.c.l.b16 %v299
      %v400 = vunpack.c.h.b16 %v299
      %v401 = vunpack.c.l.b16 %v300
      %v402 = vunpack.c.h.b16 %v300
      %v403 = vunpack.c.l.b16 %v301
      %v404 = vunpack.c.h.b16 %v301
      %v405 = vunpack.c.l.b16 %v302
      %v406 = vunpack.c.h.b16 %v302
      %v407 = vunpack.c.l.b16 %v303
      %v408 = vunpack.c.h.b16 %v303
      %v409 = vunpack.c.l.b16 %v304
      %v410 = vunpack.c.h.b16 %v304
      %v411 = vunpack.c.l.b16 %v305
      %v412 = vunpack.c.h.b16 %v305
      %v413 = vunpack.c.l.b16 %v306
      %v414 = vunpack.c.h.b16 %v306
      %v415 = vunpack.c.l.b16 %v307
      %v416 = vunpack.c.h.b16 %v307
      %v417 = vunpack.c.l.b16 %v308
      %v418 = vunpack.c.h.b16 %v308
      %v419 = vunpack.c.l.b16 %v309
      %v420 = vunpack.c.h.b16 %v309
      %v421 = vunpack.c.l.b16 %v310
      %v422 = vunpack.c.h.b16 %v310
      %v423 = vunpack.c.l.b16 %v311
      %v424 = vunpack.c.h.b16 %v311
      %v425 = vunpack.c.l.b16 %v312
      %v426 = vunpack.c.h.b16 %v312
      %v427 = vunpack.c.l.b16 %v313
      %v428 = vunpack.c.h.b16 %v313
      %v429 = vunpack.c.l.b16 %v314
      %v430 = vunpack.c.h.b16 %v314
      %v431 = vunpack.c.l.b16 %v315
      %v432 = vunpack.c.h.b16 %v315
      %v433 = vunpack.c.l.b16 %v316
      %v434 = vunpack.c.h.b16 %v316
      %v435 = vunpack.c.l.b16 %v317
      %v436 = vunpack.c.h.b16 %v317
      %v437 = vunpack.c.l.b16 %v318
      %v438 = vunpack.c.h.b16 %v318
      %v439 = vunpack.c.l.b16 %v319
      %v440 = vunpack.c.h.b16 %v319
      %v441 = vunpack.c.l.b16 %v320
      %v442 = vunpack.c.h.b16 %v320
      %v443 = vunpack.c.l.b16 %v321
      %v444 = vunpack.c.h.b16 %v321
      %v445 = vunpack.c.l.b16 %v322
      %v446 = vunpack.c.h.b16 %v322
      %v447 = vunpack.c.l.b16 %v323
      %v448 = vunpack.c.h.b16 %v323
      %v449 = vunpack.c.l.b16 %v324
      %v450 = vunpack.c.h.b16 %v324
      %v451 = vunpack.c.l.b16 %v325
      %v452 = vunpack.c.h.b16 %v325
      %v453 = vunpack.c.l.b16 %v326
      %v454 = vunpack.c.h.b16 %v326
      %v455 = vpack.c.b16 %v393, %v391
      %v456 = vpack.c.b16 %v394, %v392
      %v457 = vpack.c.b16 %v397, %v395
      %v458 = vpack.c.b16 %v398, %v396
      %v459 = vpack.c.b16 %v401, %v399
      %v460 = vpack.c.b16 %v402, %v400
      %v461 = vpack.c.b16 %v405, %v403
      %v462 = vpack.c.b16 %v406, %v404
      %v463 = vpack.c.b16 %v409, %v407
      %v464 = vpack.c.b16 %v410, %v408
      %v465 = vpack.c.b16 %v413, %v411
      %v466 = vpack.c.b16 %v414, %v412
      %v467 = vpack.c.b16 %v417, %v415
      %v468 = vpack.c.b16 %v418, %v416
      %v469 = vpack.c.b16 %v421, %v419
      %v470 = vpack.c.b16 %v422, %v420
      %v471 = vpack.c.b16 %v425, %v423
      %v472 = vpack.c.b16 %v426, %v424
      %v473 = vpack.c.b16 %v429, %v427
      %v474 = vpack.c.b16 %v430, %v428
      %v475 = vpack.c.b16 %v433, %v431
      %v476 = vpack.c.b16 %v434, %v432
      %v477 = vpack.c.b16 %v437, %v435
      %v478 = vpack.c.b16 %v438, %v436
      %v479 = vpack.c.b16 %v441, %v439
      %v480 = vpack.c.b16 %v442, %v440
      %v481 = vpack.c.b16 %v445, %v443
      %v482 = vpack.c.b16 %v446, %v444
      %v483 = vpack.c.b16 %v449, %v447
      %v484 = vpack.c.b16 %v450, %v448
      %v485 = vpack.c.b16 %v453, %v451
      %v486 = vpack.c.b16 %v454, %v452
      %v551 = vunpack.c.l.b16 %v327
      %v552 = vunpack.c.l.b16 %v328
      %v553 = vunpack.c.l.b16 %v329
      %v554 = vunpack.c.l.b16 %v330
      %v555 = vunpack.c.l.b16 %v331
      %v556 = vunpack.c.l.b16 %v332
      %v557 = vunpack.c.l.b16 %v333
      %v558 = vunpack.c.l.b16 %v334
      %v559 = vunpack.c.l.b16 %v335
      %v560 = vunpack.c.l.b16 %v336
      %v561 = vunpack.c.l.b16 %v337
      %v562 = vunpack.c.l.b16 %v338
      %v563 = vunpack.c.l.b16 %v339
      %v564 = vunpack.c.l.b16 %v340
      %v565 = vunpack.c.l.b16 %v341
      %v566 = vunpack.c.l.b16 %v342
      %v567 = vunpack.c.l.b16 %v343
      %v568 = vunpack.c.l.b16 %v344
      %v569 = vunpack.c.l.b16 %v345
      %v570 = vunpack.c.l.b16 %v346
      %v571 = vunpack.c.l.b16 %v347
      %v572 = vunpack.c.l.b16 %v348
      %v573 = vunpack.c.l.b16 %v349
      %v574 = vunpack.c.l.b16 %v350
      %v575 = vunpack.c.l.b16 %v351
      %v576 = vunpack.c.l.b16 %v352
      %v577 = vunpack.c.l.b16 %v353
      %v578 = vunpack.c.l.b16 %v354
      %v579 = vunpack.c.l.b16 %v355
      %v580 = vunpack.c.l.b16 %v356
      %v581 = vunpack.c.l.b16 %v357
      %v582 = vunpack.c.l.b16 %v358
      %v583 = vpack.c.b16 %v552, %v551
      %v584 = vpack.c.b16 %v554, %v553
      %v585 = vpack.c.b16 %v556, %v555
      %v586 = vpack.c.b16 %v558, %v557
      %v587 = vpack.c.b16 %v560, %v559
      %v588 = vpack.c.b16 %v562, %v561
      %v589 = vpack.c.b16 %v564, %v563
      %v590 = vpack.c.b16 %v566, %v565
      %v591 = vpack.c.b16 %v568, %v567
      %v592 = vpack.c.b16 %v570, %v569
      %v593 = vpack.c.b16 %v572, %v571
      %v594 = vpack.c.b16 %v574, %v573
      %v595 = vpack.c.b16 %v576, %v575
      %v596 = vpack.c.b16 %v578, %v577
      %v597 = vpack.c.b16 %v580, %v579
      %v598 = vpack.c.b16 %v582, %v581
      %615 = vmatprep.subr.bf16.mxu0 0
      %616 = vmatpush1.bf16.msra.mxu0 %v583
      %617 = vmatprep.subr.bf16.mxu0 0
      %618 = vmatpush1.bf16.msra.mxu0 %v584
      %619 = vmatprep.subr.bf16.mxu0 0
      %620 = vmatpush1.bf16.msra.mxu0 %v585
      %621 = vmatprep.subr.bf16.mxu0 0
      %622 = vmatpush1.bf16.msra.mxu0 %v586
      %623 = vmatprep.subr.bf16.mxu0 0
      %624 = vmatpush1.bf16.msra.mxu0 %v587
      %625 = vmatprep.subr.bf16.mxu0 0
      %626 = vmatpush1.bf16.msra.mxu0 %v588
      %627 = vmatprep.subr.bf16.mxu0 0
      %628 = vmatpush1.bf16.msra.mxu0 %v589
      %629 = vmatprep.subr.bf16.mxu0 0
      %630 = vmatpush1.bf16.msra.mxu0 %v590
      %631 = vmatprep.subr.bf16.mxu0 0
      %632 = vmatpush1.bf16.msra.mxu0 %v591
      %633 = vmatprep.subr.bf16.mxu0 0
      %634 = vmatpush1.bf16.msra.mxu0 %v592
      %635 = vmatprep.subr.bf16.mxu0 0
      %636 = vmatpush1.bf16.msra.mxu0 %v593
      %637 = vmatprep.subr.bf16.mxu0 0
      %638 = vmatpush1.bf16.msra.mxu0 %v594
      %639 = vmatprep.subr.bf16.mxu0 0
      %640 = vmatpush1.bf16.msra.mxu0 %v595
      %641 = vmatprep.subr.bf16.mxu0 0
      %642 = vmatpush1.bf16.msra.mxu0 %v596
      %643 = vmatprep.subr.bf16.mxu0 0
      %644 = vmatpush1.bf16.msra.mxu0 %v597
      %645 = vmatprep.subr.bf16.mxu0 0
      %646 = vmatpush1.bf16.msra.mxu0 %v598
      %647 = vmatprep.mubr.bf16.mxu0 %v456
      %648 = vmatmul.mubr.bf16.gmra.mrb[0].mxu0 %v455
      %v649 = vpop.f32.mrb[0].mxu0
      %v650 = vadd.f32 0.0, %v649
      %v651 = vpop.f32.mrb[0].mxu0
      %v652 = vpop.f32.mrb[0].mxu0
      %v653 = vadd.f32 0.0, %v652
      %v654 = vpop.f32.mrb[0].mxu0
      %655 = vmatprep.mubr.bf16.mxu0 %v458
      %656 = vmatmul.mubr.bf16.gmra.mrb[0].mxu0 %v457
      %v657 = vpop.f32.mrb[0].mxu0
      %v658 = vadd.f32 0.0, %v657
      %v659 = vpop.f32.mrb[0].mxu0
      %v660 = vpop.f32.mrb[0].mxu0
      %v661 = vadd.f32 0.0, %v660
      %v662 = vpop.f32.mrb[0].mxu0
      %663 = vmatprep.mubr.bf16.mxu0 %v460
      %664 = vmatmul.mubr.bf16.gmra.mrb[0].mxu0 %v459
      %v665 = vpop.f32.mrb[0].mxu0
      %v666 = vadd.f32 0.0, %v665
      %v667 = vpop.f32.mrb[0].mxu0
      %v668 = vpop.f32.mrb[0].mxu0
      %v669 = vadd.f32 0.0, %v668
      %v670 = vpop.f32.mrb[0].mxu0
      %671 = vmatprep.mubr.bf16.mxu0 %v462
      %672 = vmatmul.mubr.bf16.gmra.mrb[0].mxu0 %v461
      %v673 = vpop.f32.mrb[0].mxu0
      %v674 = vadd.f32 0.0, %v673
      %v675 = vpop.f32.mrb[0].mxu0
      %v676 = vpop.f32.mrb[0].mxu0
      %v677 = vadd.f32 0.0, %v676
      %v678 = vpop.f32.mrb[0].mxu0
      %679 = vmatprep.mubr.bf16.mxu0 %v464
      %680 = vmatmul.mubr.bf16.gmra.mrb[0].mxu0 %v463
      %v681 = vpop.f32.mrb[0].mxu0
      %v682 = vadd.f32 0.0, %v681
      %v683 = vpop.f32.mrb[0].mxu0
      %v684 = vpop.f32.mrb[0].mxu0
      %v685 = vadd.f32 0.0, %v684
      %v686 = vpop.f32.mrb[0].mxu0
      %687 = vmatprep.mubr.bf16.mxu0 %v466
      %688 = vmatmul.mubr.bf16.gmra.mrb[0].mxu0 %v465
      %v689 = vpop.f32.mrb[0].mxu0
      %v690 = vadd.f32 0.0, %v689
      %v691 = vpop.f32.mrb[0].mxu0
      %v692 = vpop.f32.mrb[0].mxu0
      %v693 = vadd.f32 0.0, %v692
      %v694 = vpop.f32.mrb[0].mxu0
      %695 = vmatprep.mubr.bf16.mxu0 %v468
      %696 = vmatmul.mubr.bf16.gmra.mrb[0].mxu0 %v467
      %v697 = vpop.f32.mrb[0].mxu0
      %v698 = vadd.f32 0.0, %v697
      %v699 = vpop.f32.mrb[0].mxu0
      %v700 = vpop.f32.mrb[0].mxu0
      %v701 = vadd.f32 0.0, %v700
      %v702 = vpop.f32.mrb[0].mxu0
      %703 = vmatprep.mubr.bf16.mxu0 %v470
      %704 = vmatmul.mubr.bf16.gmra.mrb[0].mxu0 %v469
      %v705 = vpop.f32.mrb[0].mxu0
      %v706 = vadd.f32 0.0, %v705
      %v707 = vpop.f32.mrb[0].mxu0
      %v708 = vpop.f32.mrb[0].mxu0
      %v709 = vadd.f32 0.0, %v708
      %v710 = vpop.f32.mrb[0].mxu0
      %711 = vmatprep.mubr.bf16.mxu0 %v472
      %712 = vmatmul.mubr.bf16.gmra.mrb[0].mxu0 %v471
      %v713 = vpop.f32.mrb[0].mxu0
      %v714 = vadd.f32 0.0, %v713
      %v715 = vpop.f32.mrb[0].mxu0
      %v716 = vpop.f32.mrb[0].mxu0
      %v717 = vadd.f32 0.0, %v716
      %v718 = vpop.f32.mrb[0].mxu0
      %719 = vmatprep.mubr.bf16.mxu0 %v474
      %720 = vmatmul.mubr.bf16.gmra.mrb[0].mxu0 %v473
      %v721 = vpop.f32.mrb[0].mxu0
      %v722 = vadd.f32 0.0, %v721
      %v723 = vpop.f32.mrb[0].mxu0
      %v724 = vpop.f32.mrb[0].mxu0
      %v725 = vadd.f32 0.0, %v724
      %v726 = vpop.f32.mrb[0].mxu0
      %727 = vmatprep.mubr.bf16.mxu0 %v476
      %728 = vmatmul.mubr.bf16.gmra.mrb[0].mxu0 %v475
      %v729 = vpop.f32.mrb[0].mxu0
      %v730 = vadd.f32 0.0, %v729
      %v731 = vpop.f32.mrb[0].mxu0
      %v732 = vpop.f32.mrb[0].mxu0
      %v733 = vadd.f32 0.0, %v732
      %v734 = vpop.f32.mrb[0].mxu0
      %735 = vmatprep.mubr.bf16.mxu0 %v478
      %736 = vmatmul.mubr.bf16.gmra.mrb[0].mxu0 %v477
      %v737 = vpop.f32.mrb[0].mxu0
      %v738 = vadd.f32 0.0, %v737
      %v739 = vpop.f32.mrb[0].mxu0
      %v740 = vpop.f32.mrb[0].mxu0
      %v741 = vadd.f32 0.0, %v740
      %v742 = vpop.f32.mrb[0].mxu0
      %743 = vmatprep.mubr.bf16.mxu0 %v480
      %744 = vmatmul.mubr.bf16.gmra.mrb[0].mxu0 %v479
      %v745 = vpop.f32.mrb[0].mxu0
      %v746 = vadd.f32 0.0, %v745
      %v747 = vpop.f32.mrb[0].mxu0
      %v748 = vpop.f32.mrb[0].mxu0
      %v749 = vadd.f32 0.0, %v748
      %v750 = vpop.f32.mrb[0].mxu0
      %751 = vmatprep.mubr.bf16.mxu0 %v482
      %752 = vmatmul.mubr.bf16.gmra.mrb[0].mxu0 %v481
      %v753 = vpop.f32.mrb[0].mxu0
      %v754 = vadd.f32 0.0, %v753
      %v755 = vpop.f32.mrb[0].mxu0
      %v756 = vpop.f32.mrb[0].mxu0
      %v757 = vadd.f32 0.0, %v756
      %v758 = vpop.f32.mrb[0].mxu0
      %759 = vmatprep.mubr.bf16.mxu0 %v484
      %760 = vmatmul.mubr.bf16.gmra.mrb[0].mxu0 %v483
      %v761 = vpop.f32.mrb[0].mxu0
      %v762 = vadd.f32 0.0, %v761
      %v763 = vpop.f32.mrb[0].mxu0
      %v764 = vpop.f32.mrb[0].mxu0
      %v765 = vadd.f32 0.0, %v764
      %v766 = vpop.f32.mrb[0].mxu0
      %767 = vmatprep.mubr.bf16.mxu0 %v486
      %768 = vmatmul.mubr.bf16.gmra.mrb[0].mxu0 %v485
      %v769 = vpop.f32.mrb[0].mxu0
      %v770 = vadd.f32 0.0, %v769
      %v771 = vpop.f32.mrb[0].mxu0
      %v772 = vpop.f32.mrb[0].mxu0
      %v773 = vadd.f32 0.0, %v772
      %v774 = vpop.f32.mrb[0].mxu0
      %775 = vdwg.mxu0
      %v776 = vadd.f32 %v263, %v650
      %v777 = vadd.f32 %v264, %v653
      %v778 = vadd.f32 %v265, %v658
      %v779 = vadd.f32 %v266, %v661
      %v780 = vadd.f32 %v267, %v666
      %v781 = vadd.f32 %v268, %v669
      %v782 = vadd.f32 %v269, %v674
      %v783 = vadd.f32 %v270, %v677
      %v784 = vadd.f32 %v271, %v682
      %v785 = vadd.f32 %v272, %v685
      %v786 = vadd.f32 %v273, %v690
      %v787 = vadd.f32 %v274, %v693
      %v788 = vadd.f32 %v275, %v698
      %v789 = vadd.f32 %v276, %v701
      %v790 = vadd.f32 %v277, %v706
      %v791 = vadd.f32 %v278, %v709
      %v792 = vadd.f32 %v279, %v714
      %v793 = vadd.f32 %v280, %v717
      %v794 = vadd.f32 %v281, %v722
      %v795 = vadd.f32 %v282, %v725
      %v796 = vadd.f32 %v283, %v730
      %v797 = vadd.f32 %v284, %v733
      %v798 = vadd.f32 %v285, %v738
      %v799 = vadd.f32 %v286, %v741
      %v800 = vadd.f32 %v287, %v746
      %v801 = vadd.f32 %v288, %v749
      %v802 = vadd.f32 %v289, %v754
      %v803 = vadd.f32 %v290, %v757
      %v804 = vadd.f32 %v291, %v762
      %v805 = vadd.f32 %v292, %v765
      %v806 = vadd.f32 %v293, %v770
      %v807 = vadd.f32 %v294, %v773
      %808 = vst [vmem:[#allocation2] sm:$0xff] %v776
      %809 = vst [vmem:[#allocation2 + $0x8] sm:$0xff] %v777
      %810 = vst [vmem:[#allocation2 + $0x10] sm:$0xff] %v778
      %811 = vst [vmem:[#allocation2 + $0x18] sm:$0xff] %v779
      %812 = vst [vmem:[#allocation2 + $0x20] sm:$0xff] %v780
      %813 = vst [vmem:[#allocation2 + $0x28] sm:$0xff] %v781
      %814 = vst [vmem:[#allocation2 + $0x30] sm:$0xff] %v782
      %815 = vst [vmem:[#allocation2 + $0x38] sm:$0xff] %v783
      %816 = vst [vmem:[#allocation2 + $0x40] sm:$0xff] %v784
      %817 = vst [vmem:[#allocation2 + $0x48] sm:$0xff] %v785
      %818 = vst [vmem:[#allocation2 + $0x50] sm:$0xff] %v786
      %819 = vst [vmem:[#allocation2 + $0x58] sm:$0xff] %v787
      %820 = vst [vmem:[#allocation2 + $0x60] sm:$0xff] %v788
      %821 = vst [vmem:[#allocation2 + $0x68] sm:$0xff] %v789
      %822 = vst [vmem:[#allocation2 + $0x70] sm:$0xff] %v790
      %823 = vst [vmem:[#allocation2 + $0x78] sm:$0xff] %v791
      %824 = vst [vmem:[#allocation2 + $0x80] sm:$0xff] %v792
      %825 = vst [vmem:[#allocation2 + $0x88] sm:$0xff] %v793
      %826 = vst [vmem:[#allocation2 + $0x90] sm:$0xff] %v794
      %827 = vst [vmem:[#allocation2 + $0x98] sm:$0xff] %v795
      %828 = vst [vmem:[#allocation2 + $0xa0] sm:$0xff] %v796
      %829 = vst [vmem:[#allocation2 + $0xa8] sm:$0xff] %v797
      %830 = vst [vmem:[#allocation2 + $0xb0] sm:$0xff] %v798
      %831 = vst [vmem:[#allocation2 + $0xb8] sm:$0xff] %v799
      %832 = vst [vmem:[#allocation2 + $0xc0] sm:$0xff] %v800
      %833 = vst [vmem:[#allocation2 + $0xc8] sm:$0xff] %v801
      %834 = vst [vmem:[#allocation2 + $0xd0] sm:$0xff] %v802
      %835 = vst [vmem:[#allocation2 + $0xd8] sm:$0xff] %v803
      %836 = vst [vmem:[#allocation2 + $0xe0] sm:$0xff] %v804
      %837 = vst [vmem:[#allocation2 + $0xe8] sm:$0xff] %v805
      %838 = vst [vmem:[#allocation2 + $0xf0] sm:$0xff] %v806
      %839 = vst [vmem:[#allocation2 + $0xf8] sm:$0xff] %v807
      // Predicated region
      $region33: #{generator_forward.25} parent=27 // pred_check
        %p840 = pneg %p227
      $region34: #{generator_forward.25} parent=27 // pred_check_branch
        %842 = sbr.rel (%p840) target = $region36
      $region35: #{generator_forward.25} parent=27 // pred_region
        %v843 = vld [vmem:[#allocation2] sm:$0xff]
        %v844 = vld [vmem:[#allocation2 + $0x8] sm:$0xff]
        %v845 = vld [vmem:[#allocation2 + $0x10] sm:$0xff]
        %v846 = vld [vmem:[#allocation2 + $0x18] sm:$0xff]
        %v847 = vld [vmem:[#allocation2 + $0x20] sm:$0xff]
        %v848 = vld [vmem:[#allocation2 + $0x28] sm:$0xff]
        %v849 = vld [vmem:[#allocation2 + $0x30] sm:$0xff]
        %v850 = vld [vmem:[#allocation2 + $0x38] sm:$0xff]
        %v851 = vld [vmem:[#allocation2 + $0x40] sm:$0xff]
        %v852 = vld [vmem:[#allocation2 + $0x48] sm:$0xff]
        %v853 = vld [vmem:[#allocation2 + $0x50] sm:$0xff]
        %v854 = vld [vmem:[#allocation2 + $0x58] sm:$0xff]
        %v855 = vld [vmem:[#allocation2 + $0x60] sm:$0xff]
        %v856 = vld [vmem:[#allocation2 + $0x68] sm:$0xff]
        %v857 = vld [vmem:[#allocation2 + $0x70] sm:$0xff]
        %v858 = vld [vmem:[#allocation2 + $0x78] sm:$0xff]
        %v859 = vld [vmem:[#allocation2 + $0x80] sm:$0xff]
        %v860 = vld [vmem:[#allocation2 + $0x88] sm:$0xff]
        %v861 = vld [vmem:[#allocation2 + $0x90] sm:$0xff]
        %v862 = vld [vmem:[#allocation2 + $0x98] sm:$0xff]
        %v863 = vld [vmem:[#allocation2 + $0xa0] sm:$0xff]
        %v864 = vld [vmem:[#allocation2 + $0xa8] sm:$0xff]
        %v865 = vld [vmem:[#allocation2 + $0xb0] sm:$0xff]
        %v866 = vld [vmem:[#allocation2 + $0xb8] sm:$0xff]
        %v867 = vld [vmem:[#allocation2 + $0xc0] sm:$0xff]
        %v868 = vld [vmem:[#allocation2 + $0xc8] sm:$0xff]
        %v869 = vld [vmem:[#allocation2 + $0xd0] sm:$0xff]
        %v870 = vld [vmem:[#allocation2 + $0xd8] sm:$0xff]
        %v871 = vld [vmem:[#allocation2 + $0xe0] sm:$0xff]
        %v872 = vld [vmem:[#allocation2 + $0xe8] sm:$0xff]
        %v873 = vld [vmem:[#allocation2 + $0xf0] sm:$0xff]
        %v874 = vld [vmem:[#allocation2 + $0xf8] sm:$0xff]
        %v875 = vtanh.pop %v843
        %v876 = vtanh.pop %v844
        %v877 = vtanh.pop %v845
        %v878 = vtanh.pop %v846
        %v879 = vtanh.pop %v847
        %v880 = vtanh.pop %v848
        %v881 = vtanh.pop %v849
        %v882 = vtanh.pop %v850
        %v883 = vtanh.pop %v851
        %v884 = vtanh.pop %v852
        %v885 = vtanh.pop %v853
        %v886 = vtanh.pop %v854
        %v887 = vtanh.pop %v855
        %v888 = vtanh.pop %v856
        %v889 = vtanh.pop %v857
        %v890 = vtanh.pop %v858
        %v891 = vtanh.pop %v859
        %v892 = vtanh.pop %v860
        %v893 = vtanh.pop %v861
        %v894 = vtanh.pop %v862
        %v895 = vtanh.pop %v863
        %v896 = vtanh.pop %v864
        %v897 = vtanh.pop %v865
        %v898 = vtanh.pop %v866
        %v899 = vtanh.pop %v867
        %v900 = vtanh.pop %v868
        %v901 = vtanh.pop %v869
        %v902 = vtanh.pop %v870
        %v903 = vtanh.pop %v871
        %v904 = vtanh.pop %v872
        %v905 = vtanh.pop %v873
        %v906 = vtanh.pop %v874
        %907 = vst [vmem:[%s224] sm:$0xff] %v875
        %908 = vst [vmem:[%s224 + $0x8] sm:$0xff] %v876
        %909 = vst [vmem:[%s224 + $0x10] sm:$0xff] %v877
        %910 = vst [vmem:[%s224 + $0x18] sm:$0xff] %v878
        %911 = vst [vmem:[%s224 + $0x20] sm:$0xff] %v879
        %912 = vst [vmem:[%s224 + $0x28] sm:$0xff] %v880
        %913 = vst [vmem:[%s224 + $0x30] sm:$0xff] %v881
        %914 = vst [vmem:[%s224 + $0x38] sm:$0xff] %v882
        %915 = vst [vmem:[%s224 + $0x40] sm:$0xff] %v883
        %916 = vst [vmem:[%s224 + $0x48] sm:$0xff] %v884
        %917 = vst [vmem:[%s224 + $0x50] sm:$0xff] %v885
        %918 = vst [vmem:[%s224 + $0x58] sm:$0xff] %v886
        %919 = vst [vmem:[%s224 + $0x60] sm:$0xff] %v887
        %920 = vst [vmem:[%s224 + $0x68] sm:$0xff] %v888
        %921 = vst [vmem:[%s224 + $0x70] sm:$0xff] %v889
        %922 = vst [vmem:[%s224 + $0x78] sm:$0xff] %v890
        %923 = vst [vmem:[%s224 + $0x80] sm:$0xff] %v891
        %924 = vst [vmem:[%s224 + $0x88] sm:$0xff] %v892
        %925 = vst [vmem:[%s224 + $0x90] sm:$0xff] %v893
        %926 = vst [vmem:[%s224 + $0x98] sm:$0xff] %v894
        %927 = vst [vmem:[%s224 + $0xa0] sm:$0xff] %v895
        %928 = vst [vmem:[%s224 + $0xa8] sm:$0xff] %v896
        %929 = vst [vmem:[%s224 + $0xb0] sm:$0xff] %v897
        %930 = vst [vmem:[%s224 + $0xb8] sm:$0xff] %v898
        %931 = vst [vmem:[%s224 + $0xc0] sm:$0xff] %v899
        %932 = vst [vmem:[%s224 + $0xc8] sm:$0xff] %v900
        %933 = vst [vmem:[%s224 + $0xd0] sm:$0xff] %v901
        %934 = vst [vmem:[%s224 + $0xd8] sm:$0xff] %v902
        %935 = vst [vmem:[%s224 + $0xe0] sm:$0xff] %v903
        %936 = vst [vmem:[%s224 + $0xe8] sm:$0xff] %v904
        %937 = vst [vmem:[%s224 + $0xf0] sm:$0xff] %v905
        %938 = vst [vmem:[%s224 + $0xf8] sm:$0xff] %v906
      $region36: #{generator_forward.25} parent=27 // pred_fallthru
        _
      %s939 = smul.u32 32, %s18
      %p940 = scmp.lt.s32.totalorder %s939, 287
      %s941 = scalar_select %p940, %s939, 287
      %p942 = scmp.lt.s32.totalorder %s19, 0
      %s943 = scalar_select %p942, %s19, 0
      %s944 = sadd.s32 %s943, %s941
      %s945 = smul.addr %s944, 8
      %s946 = scalar_lea.vmem %s2, %s945
      // Predicated region
      $region37: #{generator_forward.25} parent=27 // pred_check
        %p947 = pneg %p108
      $region38: #{generator_forward.25} parent=27 // pred_check_branch
        %949 = sbr.rel (%p947) target = $region40
      $region39: #{generator_forward.25} parent=27 // pred_region
        %s950 = smul.u32 32, %s18
      $region40: #{generator_forward.25} parent=27 // pred_fallthru
        _
    $region28: #{generator_forward.25} parent=5 // pred_fallthru
      _
    %p951 = scmp.le.s32.totalorder 2, %s8
    // Predicated region
    $region41: #{generator_forward.25} parent=5 // pred_check
      %p952 = pneg %p951
    $region42: #{generator_forward.25} parent=5 // pred_check_branch
      %954 = sbr.rel (%p952) target = $region44
    $region43: #{generator_forward.25} parent=5 // pred_region
      %s955 = ssub.s32 %s8, 2
      // Predicated region
      $region45: #{generator_forward.25} parent=43 // pred_check
        %p956 = pneg %p114
      $region46: #{generator_forward.25} parent=43 // pred_check_branch
        %958 = sbr.rel (%p956) target = $region48
      $region47: #{generator_forward.25} parent=43 // pred_region
        %s959 = smul.u32 32, %s21
        %p960 = scmp.lt.s32.totalorder %s959, 287
        %s961 = scalar_select %p960, %s959, 287
        %p962 = scmp.lt.s32.totalorder %s22, 0
        %s963 = scalar_select %p962, %s22, 0
        %s964 = sadd.s32 %s963, %s961
        %s965 = smul.addr %s964, 8
        %s966 = scalar_lea.vmem %s2, %s965
      $region48: #{generator_forward.25} parent=43 // pred_fallthru
        _
    $region44: #{generator_forward.25} parent=5 // pred_fallthru
      _
  $region6: #{generator_forward.25} parent=0 // loop_footer
    %s12 = sadd.s32 1, %s8
  $region7: #{generator_forward.25} parent=0 // loop_footer_branch
    %7 = sbr.rel target = $region3
  $region8: #{generator_forward.25} parent=0 // loop_exit
    _

</llo_original>
